<compile_context>
chip_gen: v6e
topology: v6e:2x2x1
jax: 0.10.0
libtpu: 0.0.40
codegen_flags: <defaults>
</compile_context>

<pallas_src>
import functools

import jax
import jax.numpy as jnp
from jax.experimental import pallas as pl
from jax.experimental.pallas import tpu as pltpu


# ----------------------------------------------------------------------------
# Pallas kernels: out = mish?( (A @ W_scaled) + bias [+ residual] )
# A, W are bf16 (f32 MXU accumulation); epilogue math in f32.
# ----------------------------------------------------------------------------
def _stable_softplus(x):
    # numerically stable log(1 + exp(x)); matches torch.nn.functional.softplus
    return jnp.maximum(x, 0.0) + jnp.log1p(jnp.exp(-jnp.abs(x)))


def _mm_kernel(a_ref, w_ref, b_ref, o_ref, *, apply_mish):
    acc = jnp.dot(a_ref[...], w_ref[...], preferred_element_type=jnp.float32)
    y = acc + b_ref[...]
    if apply_mish:                       # Mish / FMish: x * tanh(softplus(x))
        y = y * jnp.tanh(_stable_softplus(y))
    o_ref[...] = y.astype(o_ref.dtype)


def _mm_res_kernel(a_ref, w_ref, b_ref, r_ref, o_ref, *, apply_mish):
    acc = jnp.dot(a_ref[...], w_ref[...], preferred_element_type=jnp.float32)
    y = acc + b_ref[...] + r_ref[...].astype(jnp.float32)
    if apply_mish:
        y = y * jnp.tanh(_stable_softplus(y))
    o_ref[...] = y.astype(o_ref.dtype)


def _round_up(x, m):
    return -(-x // m) * m


def _pick_tile_m(M, K, N, has_res, out_bytes):
    """Largest M-tile that keeps double-buffered operands inside a conservative
    VMEM budget (safe on v7x's 64 MiB), preferring >= 2 grid steps."""
    budget = 12 * 1024 * 1024
    t_sel = 8
    for t in (8, 16, 32, 64, 128, 256, 512):
        need = (2 * t * K * 2          # A tile, bf16, double-buffered
                + 2 * K * N * 2        # weights, bf16
                + 2 * t * N * out_bytes  # output tile
                + 2 * N * 4)           # bias
        if has_res:
            need += 2 * t * N * 2      # residual tile, bf16
        if need <= budget:
            t_sel = t
    # prefer at least 2 grid steps so both v7x TensorCores get work
    while t_sel > 8 and _round_up(M, t_sel) // t_sel < 2:
        t_sel //= 2
    return t_sel


def matmul_bias_act(a, w, bias, residual=None, apply_mish=False,
                    out_dtype=jnp.bfloat16):
    """a: [M, K], w: [K, N] (BN scale pre-folded), bias: [N],
    residual: [M, N] or None.  Returns [M, N] in out_dtype."""
    M, K = a.shape
    Kw, N = w.shape
    assert K == Kw
    a = a.astype(jnp.bfloat16)
    w = w.astype(jnp.bfloat16)
    bias2 = bias.reshape(1, N).astype(jnp.float32)
    out_bytes = jnp.dtype(out_dtype).itemsize
    has_res = residual is not None

    t = _pick_tile_m(M, K, N, has_res, out_bytes)
    Mp = _round_up(M, t)
    if Mp != M:
        a = jnp.pad(a, ((0, Mp - M), (0, 0)))
    grid = (Mp // t,)

    in_specs = [
        pl.BlockSpec((t, K), lambda i: (i, 0)),    # A tile (bf16)
        pl.BlockSpec((K, N), lambda i: (0, 0)),    # full scaled weights (bf16)
        pl.BlockSpec((1, N), lambda i: (0, 0)),    # folded BN bias (f32)
    ]
    args = [a, w, bias2]
    if has_res:
        r = residual.astype(jnp.bfloat16)
        if Mp != M:
            r = jnp.pad(r, ((0, Mp - M), (0, 0)))
        in_specs.append(pl.BlockSpec((t, N), lambda i: (i, 0)))
        args.append(r)
        kernel = functools.partial(_mm_res_kernel, apply_mish=apply_mish)
    else:
        kernel = functools.partial(_mm_kernel, apply_mish=apply_mish)

    out = pl.pallas_call(
        kernel,
        out_shape=jax.ShapeDtypeStruct((Mp, N), out_dtype),
        grid_spec=pltpu.PrefetchScalarGridSpec(
            num_scalar_prefetch=0,
            grid=grid,
            in_specs=in_specs,
            out_specs=pl.BlockSpec((t, N), lambda i: (i, 0)),
        ),
        compiler_params=pltpu.CompilerParams(
            dimension_semantics=("parallel",),
            vmem_limit_bytes=48 * 1024 * 1024,
        ),
    )(*args)
    return out[:M] if Mp != M else out


# ----------------------------------------------------------------------------
# Glue: im2col for 3x3x3 conv3d, weight reshaping, sub-pixel deconv
# ----------------------------------------------------------------------------
def _im2col3d(x, stride=1, pad=1, k=3):
    """x: [B, D, H, W, C] -> ([B*Do*Ho*Wo, k^3*C] (same dtype), (B, Do, Ho, Wo))."""
    B, D, H, W, C = x.shape
    if pad:
        x = jnp.pad(x, ((0, 0), (pad, pad), (pad, pad), (pad, pad), (0, 0)))
    Dp, Hp, Wp = D + 2 * pad, H + 2 * pad, W + 2 * pad
    Do = (Dp - k) // stride + 1
    Ho = (Hp - k) // stride + 1
    Wo = (Wp - k) // stride + 1
    cols = []
    for kd in range(k):
        for kh in range(k):
            for kw in range(k):
                sl = x[:,
                       kd:kd + stride * (Do - 1) + 1:stride,
                       kh:kh + stride * (Ho - 1) + 1:stride,
                       kw:kw + stride * (Wo - 1) + 1:stride, :]
                cols.append(sl)
    patches = jnp.stack(cols, axis=-2)            # [B, Do, Ho, Wo, k^3, C]
    return patches.reshape(B * Do * Ho * Wo, k * k * k * C), (B, Do, Ho, Wo)


def _conv_w_to_mat(w):
    """PyTorch Conv3d weight [Cout, Cin, 3,3,3] -> [27*Cin, Cout]."""
    Cout, Cin = w.shape[:2]
    wt = jnp.transpose(w, (2, 3, 4, 1, 0))        # [kd,kh,kw,Cin,Cout]
    return wt.reshape(27 * Cin, Cout)


def conv3d_bn_act(x, w, scale=None, bias=None, stride=1, apply_mish=False,
                  out_dtype=jnp.bfloat16):
    """3x3x3 conv, padding=1, given stride; BN scale folded into weights."""
    Cout = w.shape[0]
    a, (B, Do, Ho, Wo) = _im2col3d(x, stride=stride, pad=1)
    wmat = _conv_w_to_mat(w)
    if scale is not None:
        wmat = wmat * scale[None, :]
    if bias is None:
        bias = jnp.zeros((Cout,), jnp.float32)
    out = matmul_bias_act(a, wmat, bias, None, apply_mish, out_dtype)
    return out.reshape(B, Do, Ho, Wo, Cout)


def conv1x1_bn(x, w, scale, bias, out_dtype=jnp.bfloat16):
    """1x1x1 conv + folded BN (redir blocks).  w: [Cout, Cin, 1,1,1]."""
    B, D, H, W, C = x.shape
    Cout = w.shape[0]
    wmat = w.reshape(Cout, C).T * scale[None, :]          # [Cin, Cout] * scale
    out = matmul_bias_act(x.reshape(-1, C), wmat, bias, None, False, out_dtype)
    return out.reshape(B, D, H, W, Cout)


def deconv3d_bn_act(x, wt, scale, bias, residual=None, apply_mish=False,
                    out_dtype=jnp.bfloat16):
    """ConvTranspose3d(k=3, stride=2, padding=1, output_padding=1) + folded BN,
    fused residual add + Mish, via sub-pixel (8-parity) decomposition.
    x: [B, D, H, W, Cin], wt: [Cin, Cout, 3, 3, 3] -> [B, 2D, 2H, 2W, Cout]."""
    B, D, H, W, Cin = x.shape
    Cout = wt.shape[1]
    # Equivalent direct-conv weight: flip spatial dims, swap in/out channels,
    # fold the BN scale (per output channel).
    w_conv = jnp.transpose(jnp.flip(wt, axis=(2, 3, 4)), (1, 0, 2, 3, 4))  # [Cout,Cin,3,3,3]
    w_conv = w_conv * scale[:, None, None, None, None]

    # x padded by one zero on the far side of each spatial dim for the "+1" taps.
    xp = jnp.pad(x, ((0, 0), (0, 1), (0, 1), (0, 1), (0, 0)))

    if residual is not None:
        # residual[b, 2d+pd, 2h+ph, 2w+pw, c] -> res_r[b, d, pd, h, ph, w, pw, c]
        res_r = residual.reshape(B, D, 2, H, 2, W, 2, Cout)

    def taps_for(parity):
        # per-dim: even outputs use flipped-kernel tap 1 at shift 0;
        #          odd outputs use tap 0 at shift 0 and tap 2 at shift +1.
        return [(1, 0)] if parity == 0 else [(0, 0), (2, 1)]

    parts = []
    for pd in (0, 1):
        for ph in (0, 1):
            for pw in (0, 1):
                cols, wrows = [], []
                for (fd, sd) in taps_for(pd):
                    for (fh, sh) in taps_for(ph):
                        for (fw, sw) in taps_for(pw):
                            cols.append(xp[:, sd:sd + D, sh:sh + H, sw:sw + W, :])
                            wrows.append(w_conv[:, :, fd, fh, fw])   # [Cout, Cin]
                ntaps = len(cols)
                a = jnp.stack(cols, axis=-2).reshape(B * D * H * W, ntaps * Cin)
                wmat = jnp.transpose(jnp.stack(wrows, axis=0), (0, 2, 1))
                wmat = wmat.reshape(ntaps * Cin, Cout)
                res_p = None
                if residual is not None:
                    res_p = res_r[:, :, pd, :, ph, :, pw, :].reshape(-1, Cout)
                o = matmul_bias_act(a, wmat, bias, res_p, apply_mish, out_dtype)
                parts.append(o.reshape(B, D, H, W, Cout))

    # interleave the 8 parity outputs: out[b, 2d+pd, 2h+ph, 2w+pw, c]
    stack = jnp.stack(parts, axis=0).reshape(2, 2, 2, B, D, H, W, Cout)
    out = jnp.transpose(stack, (3, 4, 0, 5, 1, 6, 2, 7))
    return out.reshape(B, 2 * D, 2 * H, 2 * W, Cout)


# ----------------------------------------------------------------------------
# Parameters (deterministic init, eval-mode BN folded into scale/bias)
# ----------------------------------------------------------------------------
def _bn_fold(gamma, beta, running_mean, running_var, eps=1e-5):
    scale = gamma / jnp.sqrt(running_var + eps)
    bias = beta - running_mean * scale
    return scale, bias


def init_params(key, C):
    keys = iter(jax.random.split(key, 64))

    def conv_w(cout, cin, k):
        fan = cin * k ** 3
        return jax.random.normal(next(keys), (cout, cin, k, k, k), jnp.float32) * (2.0 / fan) ** 0.5

    def deconv_w(cin, cout, k):
        fan = cin * k ** 3
        return jax.random.normal(next(keys), (cin, cout, k, k, k), jnp.float32) * (2.0 / fan) ** 0.5

    def bn(c):
        gamma = 1.0 + 0.1 * jax.random.normal(next(keys), (c,), jnp.float32)
        beta = 0.1 * jax.random.normal(next(keys), (c,), jnp.float32)
        return _bn_fold(gamma, beta, jnp.zeros((c,), jnp.float32), jnp.ones((c,), jnp.float32))

    p = {}
    p['conv1_w'] = conv_w(2 * C, C, 3)                       # Conv3d(C, 2C, 3, s2, p1)
    p['combine1_w'] = conv_w(2 * C, 4 * C, 3)                # convbn_3d(4C, 2C) + Mish
    p['combine1_bn'] = bn(2 * C)
    p['conv2_w'] = conv_w(2 * C, 2 * C, 3)                   # convbn_3d(2C, 2C) + Mish
    p['conv2_bn'] = bn(2 * C)
    p['conv3_w'] = conv_w(4 * C, 2 * C, 3)                   # Conv3d(2C, 4C, 3, s2, p1)
    p['combine2_w'] = conv_w(4 * C, 6 * C, 3)                # convbn_3d(6C, 4C) + Mish
    p['combine2_bn'] = bn(4 * C)
    p['conv4_w'] = conv_w(4 * C, 4 * C, 3)                   # convbn_3d(4C, 4C) + Mish
    p['conv4_bn'] = bn(4 * C)
    p['conv8_w'] = deconv_w(4 * C, 2 * C, 3)                 # ConvTranspose3d(4C, 2C) + BN
    p['conv8_bn'] = bn(2 * C)
    p['conv9_w'] = deconv_w(2 * C, C, 3)                     # ConvTranspose3d(2C, C) + BN
    p['conv9_bn'] = bn(C)
    p['redir1_w'] = conv_w(C, C, 1)                          # convbn_3d(C, C, 1)
    p['redir1_bn'] = bn(C)
    p['redir2_w'] = conv_w(2 * C, 2 * C, 1)                  # convbn_3d(2C, 2C, 1)
    p['redir2_bn'] = bn(2 * C)
    return p


# ----------------------------------------------------------------------------
# Forward pass (mirrors hourglassup.forward)
# ----------------------------------------------------------------------------
def hourglassup_forward(params, x, feature4, feature5):
    # NCDHW -> channels-last, store activations as bf16 (GEMMs accumulate in f32)
    x_cl = jnp.transpose(x, (0, 2, 3, 4, 1)).astype(jnp.bfloat16)
    f4 = jnp.transpose(feature4, (0, 2, 3, 4, 1)).astype(jnp.bfloat16)
    f5 = jnp.transpose(feature5, (0, 2, 3, 4, 1)).astype(jnp.bfloat16)

    c1 = conv3d_bn_act(x_cl, params['conv1_w'], stride=2)                 # conv1 (no BN/bias)
    c1 = jnp.concatenate([c1, f4], axis=-1)                               # cat dim=1
    c1 = conv3d_bn_act(c1, params['combine1_w'], *params['combine1_bn'],
                       stride=1, apply_mish=True)                         # combine1
    c2 = conv3d_bn_act(c1, params['conv2_w'], *params['conv2_bn'],
                       stride=1, apply_mish=True)                         # conv2
    c3 = conv3d_bn_act(c2, params['conv3_w'], stride=2)                   # conv3 (no BN/bias)
    c3 = jnp.concatenate([c3, f5], axis=-1)                               # cat dim=1
    c3 = conv3d_bn_act(c3, params['combine2_w'], *params['combine2_bn'],
                       stride=1, apply_mish=True)                         # combine2
    c4 = conv3d_bn_act(c3, params['conv4_w'], *params['conv4_bn'],
                       stride=1, apply_mish=True)                         # conv4

    r2 = conv1x1_bn(c2, params['redir2_w'], *params['redir2_bn'])         # redir2
    c8 = deconv3d_bn_act(c4, params['conv8_w'], *params['conv8_bn'],
                         residual=r2, apply_mish=True)                    # FMish(conv8 + redir2)

    r1 = conv1x1_bn(x_cl, params['redir1_w'], *params['redir1_bn'])       # redir1
    c9 = deconv3d_bn_act(c8, params['conv9_w'], *params['conv9_bn'],
                         residual=r1, apply_mish=True,
                         out_dtype=jnp.float32)                           # FMish(conv9 + redir1)

    return jnp.transpose(c9, (0, 4, 1, 2, 3))                             # back to NCDHW


# ----------------------------------------------------------------------------
if __name__ == "__main__":
    key = jax.random.PRNGKey(0)
    B, C, D, H, W = 1, 4, 8, 8, 8
    kx, kf4, kf5, kp = jax.random.split(key, 4)

    x = jax.random.normal(kx, (B, C, D, H, W), jnp.float32)
    feature4 = jax.random.normal(kf4, (B, 2 * C, D // 2, H // 2, W // 2), jnp.float32)
    feature5 = jax.random.normal(kf5, (B, 2 * C, D // 4, H // 4, W // 4), jnp.float32)

    params = init_params(kp, C)

    fwd = jax.jit(functools.partial(hourglassup_forward, params))
    out = fwd(x, feature4, feature5)
    out = jax.block_until_ready(out)

    assert out.shape == (B, C, D, H, W), out.shape
    assert jnp.isfinite(out).all()
    print("KERNEL_OK")
</pallas_src>

<mosaic_0001>
module attributes {stable_mosaic.version = 11 : i64} {
  func.func @_mm_kernel(%arg0: i32, %arg1: memref<32x108xbf16, #tpu.memory_space<vmem>>, %arg2: memref<108x8xbf16, #tpu.memory_space<vmem>>, %arg3: memref<1x8xf32, #tpu.memory_space<vmem>>, %arg4: memref<32x8xbf16, #tpu.memory_space<vmem>>) attributes {dimension_semantics = [#tpu.dimension_semantics<parallel>], iteration_bounds = array<i64: 2>, scalar_prefetch = 0 : i64, scratch_operands = 0 : i64, tpu.core_type = #tpu.core_type<tc>, window_params = [{transform_indices = @transform_0, window_bounds = array<i64: 32, 108>}, {pipeline_mode = #tpu.pipeline_mode<synchronous>, transform_indices = @transform_1, window_bounds = array<i64: 108, 8>}, {pipeline_mode = #tpu.pipeline_mode<synchronous>, transform_indices = @transform_2, window_bounds = array<i64: 1, 8>}, {transform_indices = @transform_3, window_bounds = array<i64: 32, 8>}]} {
    %c0 = arith.constant 0 : index
    %c0_0 = arith.constant 0 : index
    %0 = vector.load %arg1[%c0, %c0_0] : memref<32x108xbf16, #tpu.memory_space<vmem>>, vector<32x108xbf16>
    %c0_1 = arith.constant 0 : index
    %c0_2 = arith.constant 0 : index
    %1 = vector.load %arg2[%c0_1, %c0_2] : memref<108x8xbf16, #tpu.memory_space<vmem>>, vector<108x8xbf16>
    %cst = arith.constant dense<0.000000e+00> : vector<32x8xf32>
    %2 = tpu.matmul %0, %1, %cst {dimension_numbers = #tpu.dot_dimension_numbers<[1], [0], [0], [1], [0, 0, 1, 1], [], []>} : vector<32x108xbf16>, vector<108x8xbf16>, vector<32x8xf32> -> vector<32x8xf32>
    %c0_3 = arith.constant 0 : index
    %c0_4 = arith.constant 0 : index
    %3 = vector.load %arg3[%c0_3, %c0_4] : memref<1x8xf32, #tpu.memory_space<vmem>>, vector<1x8xf32>
    %4 = vector.broadcast %3 : vector<1x8xf32> to vector<32x8xf32>
    %5 = arith.addf %2, %4 : vector<32x8xf32>
    %6 = arith.truncf %5 : vector<32x8xf32> to vector<32x8xbf16>
    %c0_5 = arith.constant 0 : index
    %c0_6 = arith.constant 0 : index
    %7 = vector.load %arg4[%c0_5, %c0_6] : memref<32x8xbf16, #tpu.memory_space<vmem>>, vector<32x8xbf16>
    tpu.vector_store %arg4[%c0_5, %c0_6], %6 {strides = array<i32>} : memref<32x8xbf16, #tpu.memory_space<vmem>>, vector<32x8xbf16>,
    return
  }
  func.func @transform_0(%arg0: i32) -> (i32, i32) {
    %c0_i32 = arith.constant 0 : i32
    %c0_i32_0 = arith.constant 0 : i32
    return %arg0, %c0_i32 : i32, i32
  }
  func.func @transform_1(%arg0: i32) -> (i32, i32) {
    %c0_i32 = arith.constant 0 : i32
    %c0_i32_0 = arith.constant 0 : i32
    %c0_i32_1 = arith.constant 0 : i32
    return %c0_i32, %c0_i32_0 : i32, i32
  }
  func.func @transform_2(%arg0: i32) -> (i32, i32) {
    %c0_i32 = arith.constant 0 : i32
    %c0_i32_0 = arith.constant 0 : i32
    %c0_i32_1 = arith.constant 0 : i32
    return %c0_i32, %c0_i32_0 : i32, i32
  }
  func.func @transform_3(%arg0: i32) -> (i32, i32) {
    %c0_i32 = arith.constant 0 : i32
    %c0_i32_0 = arith.constant 0 : i32
    return %arg0, %c0_i32 : i32, i32
  }
}

module attributes {stable_mosaic.version = 11 : i64} {
  func.func @_mm_kernel(%arg0: i32, %arg1: memref<32x432xbf16, #tpu.memory_space<vmem>>, %arg2: memref<432x8xbf16, #tpu.memory_space<vmem>>, %arg3: memref<1x8xf32, #tpu.memory_space<vmem>>, %arg4: memref<32x8xbf16, #tpu.memory_space<vmem>>) attributes {dimension_semantics = [#tpu.dimension_semantics<parallel>], iteration_bounds = array<i64: 2>, scalar_prefetch = 0 : i64, scratch_operands = 0 : i64, tpu.core_type = #tpu.core_type<tc>, window_params = [{transform_indices = @transform_0, window_bounds = array<i64: 32, 432>}, {pipeline_mode = #tpu.pipeline_mode<synchronous>, transform_indices = @transform_1, window_bounds = array<i64: 432, 8>}, {pipeline_mode = #tpu.pipeline_mode<synchronous>, transform_indices = @transform_2, window_bounds = array<i64: 1, 8>}, {transform_indices = @transform_3, window_bounds = array<i64: 32, 8>}]} {
    %c0 = arith.constant 0 : index
    %c0_0 = arith.constant 0 : index
    %0 = vector.load %arg1[%c0, %c0_0] : memref<32x432xbf16, #tpu.memory_space<vmem>>, vector<32x432xbf16>
    %c0_1 = arith.constant 0 : index
    %c0_2 = arith.constant 0 : index
    %1 = vector.load %arg2[%c0_1, %c0_2] : memref<432x8xbf16, #tpu.memory_space<vmem>>, vector<432x8xbf16>
    %cst = arith.constant dense<0.000000e+00> : vector<32x8xf32>
    %2 = tpu.matmul %0, %1, %cst {dimension_numbers = #tpu.dot_dimension_numbers<[1], [0], [0], [1], [0, 0, 1, 1], [], []>} : vector<32x432xbf16>, vector<432x8xbf16>, vector<32x8xf32> -> vector<32x8xf32>
    %c0_3 = arith.constant 0 : index
    %c0_4 = arith.constant 0 : index
    %3 = vector.load %arg3[%c0_3, %c0_4] : memref<1x8xf32, #tpu.memory_space<vmem>>, vector<1x8xf32>
    %4 = vector.broadcast %3 : vector<1x8xf32> to vector<32x8xf32>
    %5 = arith.addf %2, %4 : vector<32x8xf32>
    %cst_5 = arith.constant 0.000000e+00 : f32
    %6 = vector.broadcast %cst_5 : f32 to vector<32x8xf32>
    %7 = arith.maximumf %5, %6 : vector<32x8xf32>
    %8 = math.absf %5 : vector<32x8xf32>
    %cst_6 = arith.constant 0.000000e+00 : f32
    %9 = vector.broadcast %cst_6 : f32 to vector<32x8xf32>
    %10 = arith.subf %9, %8 : vector<32x8xf32>
    %11 = math.exp %10 : vector<32x8xf32>
    %12 = math.log1p %11 : vector<32x8xf32>
    %13 = arith.addf %7, %12 : vector<32x8xf32>
    %14 = math.tanh %13 : vector<32x8xf32>
    %15 = arith.mulf %5, %14 : vector<32x8xf32>
    %16 = arith.truncf %15 : vector<32x8xf32> to vector<32x8xbf16>
    %c0_7 = arith.constant 0 : index
    %c0_8 = arith.constant 0 : index
    %17 = vector.load %arg4[%c0_7, %c0_8] : memref<32x8xbf16, #tpu.memory_space<vmem>>, vector<32x8xbf16>
    tpu.vector_store %arg4[%c0_7, %c0_8], %16 {strides = array<i32>} : memref<32x8xbf16, #tpu.memory_space<vmem>>, vector<32x8xbf16>,
    return
  }
  func.func @transform_0(%arg0: i32) -> (i32, i32) {
    %c0_i32 = arith.constant 0 : i32
    %c0_i32_0 = arith.constant 0 : i32
    return %arg0, %c0_i32 : i32, i32
  }
  func.func @transform_1(%arg0: i32) -> (i32, i32) {
    %c0_i32 = arith.constant 0 : i32
    %c0_i32_0 = arith.constant 0 : i32
    %c0_i32_1 = arith.constant 0 : i32
    return %c0_i32, %c0_i32_0 : i32, i32
  }
  func.func @transform_2(%arg0: i32) -> (i32, i32) {
    %c0_i32 = arith.constant 0 : i32
    %c0_i32_0 = arith.constant 0 : i32
    %c0_i32_1 = arith.constant 0 : i32
    return %c0_i32, %c0_i32_0 : i32, i32
  }
  func.func @transform_3(%arg0: i32) -> (i32, i32) {
    %c0_i32 = arith.constant 0 : i32
    %c0_i32_0 = arith.constant 0 : i32
    return %arg0, %c0_i32 : i32, i32
  }
}

module attributes {stable_mosaic.version = 11 : i64} {
  func.func @_mm_kernel(%arg0: i32, %arg1: memref<32x216xbf16, #tpu.memory_space<vmem>>, %arg2: memref<216x8xbf16, #tpu.memory_space<vmem>>, %arg3: memref<1x8xf32, #tpu.memory_space<vmem>>, %arg4: memref<32x8xbf16, #tpu.memory_space<vmem>>) attributes {dimension_semantics = [#tpu.dimension_semantics<parallel>], iteration_bounds = array<i64: 2>, scalar_prefetch = 0 : i64, scratch_operands = 0 : i64, tpu.core_type = #tpu.core_type<tc>, window_params = [{transform_indices = @transform_0, window_bounds = array<i64: 32, 216>}, {pipeline_mode = #tpu.pipeline_mode<synchronous>, transform_indices = @transform_1, window_bounds = array<i64: 216, 8>}, {pipeline_mode = #tpu.pipeline_mode<synchronous>, transform_indices = @transform_2, window_bounds = array<i64: 1, 8>}, {transform_indices = @transform_3, window_bounds = array<i64: 32, 8>}]} {
    %c0 = arith.constant 0 : index
    %c0_0 = arith.constant 0 : index
    %0 = vector.load %arg1[%c0, %c0_0] : memref<32x216xbf16, #tpu.memory_space<vmem>>, vector<32x216xbf16>
    %c0_1 = arith.constant 0 : index
    %c0_2 = arith.constant 0 : index
    %1 = vector.load %arg2[%c0_1, %c0_2] : memref<216x8xbf16, #tpu.memory_space<vmem>>, vector<216x8xbf16>
    %cst = arith.constant dense<0.000000e+00> : vector<32x8xf32>
    %2 = tpu.matmul %0, %1, %cst {dimension_numbers = #tpu.dot_dimension_numbers<[1], [0], [0], [1], [0, 0, 1, 1], [], []>} : vector<32x216xbf16>, vector<216x8xbf16>, vector<32x8xf32> -> vector<32x8xf32>
    %c0_3 = arith.constant 0 : index
    %c0_4 = arith.constant 0 : index
    %3 = vector.load %arg3[%c0_3, %c0_4] : memref<1x8xf32, #tpu.memory_space<vmem>>, vector<1x8xf32>
    %4 = vector.broadcast %3 : vector<1x8xf32> to vector<32x8xf32>
    %5 = arith.addf %2, %4 : vector<32x8xf32>
    %cst_5 = arith.constant 0.000000e+00 : f32
    %6 = vector.broadcast %cst_5 : f32 to vector<32x8xf32>
    %7 = arith.maximumf %5, %6 : vector<32x8xf32>
    %8 = math.absf %5 : vector<32x8xf32>
    %cst_6 = arith.constant 0.000000e+00 : f32
    %9 = vector.broadcast %cst_6 : f32 to vector<32x8xf32>
    %10 = arith.subf %9, %8 : vector<32x8xf32>
    %11 = math.exp %10 : vector<32x8xf32>
    %12 = math.log1p %11 : vector<32x8xf32>
    %13 = arith.addf %7, %12 : vector<32x8xf32>
    %14 = math.tanh %13 : vector<32x8xf32>
    %15 = arith.mulf %5, %14 : vector<32x8xf32>
    %16 = arith.truncf %15 : vector<32x8xf32> to vector<32x8xbf16>
    %c0_7 = arith.constant 0 : index
    %c0_8 = arith.constant 0 : index
    %17 = vector.load %arg4[%c0_7, %c0_8] : memref<32x8xbf16, #tpu.memory_space<vmem>>, vector<32x8xbf16>
    tpu.vector_store %arg4[%c0_7, %c0_8], %16 {strides = array<i32>} : memref<32x8xbf16, #tpu.memory_space<vmem>>, vector<32x8xbf16>,
    return
  }
  func.func @transform_0(%arg0: i32) -> (i32, i32) {
    %c0_i32 = arith.constant 0 : i32
    %c0_i32_0 = arith.constant 0 : i32
    return %arg0, %c0_i32 : i32, i32
  }
  func.func @transform_1(%arg0: i32) -> (i32, i32) {
    %c0_i32 = arith.constant 0 : i32
    %c0_i32_0 = arith.constant 0 : i32
    %c0_i32_1 = arith.constant 0 : i32
    return %c0_i32, %c0_i32_0 : i32, i32
  }
  func.func @transform_2(%arg0: i32) -> (i32, i32) {
    %c0_i32 = arith.constant 0 : i32
    %c0_i32_0 = arith.constant 0 : i32
    %c0_i32_1 = arith.constant 0 : i32
    return %c0_i32, %c0_i32_0 : i32, i32
  }
  func.func @transform_3(%arg0: i32) -> (i32, i32) {
    %c0_i32 = arith.constant 0 : i32
    %c0_i32_0 = arith.constant 0 : i32
    return %arg0, %c0_i32 : i32, i32
  }
}

module attributes {stable_mosaic.version = 11 : i64} {
  func.func @_mm_kernel(%arg0: i32, %arg1: memref<8x216xbf16, #tpu.memory_space<vmem>>, %arg2: memref<216x16xbf16, #tpu.memory_space<vmem>>, %arg3: memref<1x16xf32, #tpu.memory_space<vmem>>, %arg4: memref<8x16xbf16, #tpu.memory_space<vmem>>) attributes {dimension_semantics = [#tpu.dimension_semantics<parallel>], iteration_bounds = array<i64: 1>, scalar_prefetch = 0 : i64, scratch_operands = 0 : i64, tpu.core_type = #tpu.core_type<tc>, window_params = [{transform_indices = @transform_0, window_bounds = array<i64: 8, 216>}, {pipeline_mode = #tpu.pipeline_mode<synchronous>, transform_indices = @transform_1, window_bounds = array<i64: 216, 16>}, {pipeline_mode = #tpu.pipeline_mode<synchronous>, transform_indices = @transform_2, window_bounds = array<i64: 1, 16>}, {transform_indices = @transform_3, window_bounds = array<i64: 8, 16>}]} {
    %c0 = arith.constant 0 : index
    %c0_0 = arith.constant 0 : index
    %0 = vector.load %arg1[%c0, %c0_0] : memref<8x216xbf16, #tpu.memory_space<vmem>>, vector<8x216xbf16>
    %c0_1 = arith.constant 0 : index
    %c0_2 = arith.constant 0 : index
    %1 = vector.load %arg2[%c0_1, %c0_2] : memref<216x16xbf16, #tpu.memory_space<vmem>>, vector<216x16xbf16>
    %cst = arith.constant dense<0.000000e+00> : vector<8x16xf32>
    %2 = tpu.matmul %0, %1, %cst {dimension_numbers = #tpu.dot_dimension_numbers<[1], [0], [0], [1], [0, 0, 1, 1], [], []>} : vector<8x216xbf16>, vector<216x16xbf16>, vector<8x16xf32> -> vector<8x16xf32>
    %c0_3 = arith.constant 0 : index
    %c0_4 = arith.constant 0 : index
    %3 = vector.load %arg3[%c0_3, %c0_4] : memref<1x16xf32, #tpu.memory_space<vmem>>, vector<1x16xf32>
    %4 = vector.broadcast %3 : vector<1x16xf32> to vector<8x16xf32>
    %5 = arith.addf %2, %4 : vector<8x16xf32>
    %6 = arith.truncf %5 : vector<8x16xf32> to vector<8x16xbf16>
    %c0_5 = arith.constant 0 : index
    %c0_6 = arith.constant 0 : index
    %7 = vector.load %arg4[%c0_5, %c0_6] : memref<8x16xbf16, #tpu.memory_space<vmem>>, vector<8x16xbf16>
    tpu.vector_store %arg4[%c0_5, %c0_6], %6 {strides = array<i32>} : memref<8x16xbf16, #tpu.memory_space<vmem>>, vector<8x16xbf16>,
    return
  }
  func.func @transform_0(%arg0: i32) -> (i32, i32) {
    %c0_i32 = arith.constant 0 : i32
    %c0_i32_0 = arith.constant 0 : i32
    return %arg0, %c0_i32 : i32, i32
  }
  func.func @transform_1(%arg0: i32) -> (i32, i32) {
    %c0_i32 = arith.constant 0 : i32
    %c0_i32_0 = arith.constant 0 : i32
    %c0_i32_1 = arith.constant 0 : i32
    return %c0_i32, %c0_i32_0 : i32, i32
  }
  func.func @transform_2(%arg0: i32) -> (i32, i32) {
    %c0_i32 = arith.constant 0 : i32
    %c0_i32_0 = arith.constant 0 : i32
    %c0_i32_1 = arith.constant 0 : i32
    return %c0_i32, %c0_i32_0 : i32, i32
  }
  func.func @transform_3(%arg0: i32) -> (i32, i32) {
    %c0_i32 = arith.constant 0 : i32
    %c0_i32_0 = arith.constant 0 : i32
    return %arg0, %c0_i32 : i32, i32
  }
}

module attributes {stable_mosaic.version = 11 : i64} {
  func.func @_mm_kernel(%arg0: i32, %arg1: memref<8x648xbf16, #tpu.memory_space<vmem>>, %arg2: memref<648x16xbf16, #tpu.memory_space<vmem>>, %arg3: memref<1x16xf32, #tpu.memory_space<vmem>>, %arg4: memref<8x16xbf16, #tpu.memory_space<vmem>>) attributes {dimension_semantics = [#tpu.dimension_semantics<parallel>], iteration_bounds = array<i64: 1>, scalar_prefetch = 0 : i64, scratch_operands = 0 : i64, tpu.core_type = #tpu.core_type<tc>, window_params = [{transform_indices = @transform_0, window_bounds = array<i64: 8, 648>}, {pipeline_mode = #tpu.pipeline_mode<synchronous>, transform_indices = @transform_1, window_bounds = array<i64: 648, 16>}, {pipeline_mode = #tpu.pipeline_mode<synchronous>, transform_indices = @transform_2, window_bounds = array<i64: 1, 16>}, {transform_indices = @transform_3, window_bounds = array<i64: 8, 16>}]} {
    %c0 = arith.constant 0 : index
    %c0_0 = arith.constant 0 : index
    %0 = vector.load %arg1[%c0, %c0_0] : memref<8x648xbf16, #tpu.memory_space<vmem>>, vector<8x648xbf16>
    %c0_1 = arith.constant 0 : index
    %c0_2 = arith.constant 0 : index
    %1 = vector.load %arg2[%c0_1, %c0_2] : memref<648x16xbf16, #tpu.memory_space<vmem>>, vector<648x16xbf16>
    %cst = arith.constant dense<0.000000e+00> : vector<8x16xf32>
    %2 = tpu.matmul %0, %1, %cst {dimension_numbers = #tpu.dot_dimension_numbers<[1], [0], [0], [1], [0, 0, 1, 1], [], []>} : vector<8x648xbf16>, vector<648x16xbf16>, vector<8x16xf32> -> vector<8x16xf32>
    %c0_3 = arith.constant 0 : index
    %c0_4 = arith.constant 0 : index
    %3 = vector.load %arg3[%c0_3, %c0_4] : memref<1x16xf32, #tpu.memory_space<vmem>>, vector<1x16xf32>
    %4 = vector.broadcast %3 : vector<1x16xf32> to vector<8x16xf32>
    %5 = arith.addf %2, %4 : vector<8x16xf32>
    %cst_5 = arith.constant 0.000000e+00 : f32
    %6 = vector.broadcast %cst_5 : f32 to vector<8x16xf32>
    %7 = arith.maximumf %5, %6 : vector<8x16xf32>
    %8 = math.absf %5 : vector<8x16xf32>
    %cst_6 = arith.constant 0.000000e+00 : f32
    %9 = vector.broadcast %cst_6 : f32 to vector<8x16xf32>
    %10 = arith.subf %9, %8 : vector<8x16xf32>
    %11 = math.exp %10 : vector<8x16xf32>
    %12 = math.log1p %11 : vector<8x16xf32>
    %13 = arith.addf %7, %12 : vector<8x16xf32>
    %14 = math.tanh %13 : vector<8x16xf32>
    %15 = arith.mulf %5, %14 : vector<8x16xf32>
    %16 = arith.truncf %15 : vector<8x16xf32> to vector<8x16xbf16>
    %c0_7 = arith.constant 0 : index
    %c0_8 = arith.constant 0 : index
    %17 = vector.load %arg4[%c0_7, %c0_8] : memref<8x16xbf16, #tpu.memory_space<vmem>>, vector<8x16xbf16>
    tpu.vector_store %arg4[%c0_7, %c0_8], %16 {strides = array<i32>} : memref<8x16xbf16, #tpu.memory_space<vmem>>, vector<8x16xbf16>,
    return
  }
  func.func @transform_0(%arg0: i32) -> (i32, i32) {
    %c0_i32 = arith.constant 0 : i32
    %c0_i32_0 = arith.constant 0 : i32
    return %arg0, %c0_i32 : i32, i32
  }
  func.func @transform_1(%arg0: i32) -> (i32, i32) {
    %c0_i32 = arith.constant 0 : i32
    %c0_i32_0 = arith.constant 0 : i32
    %c0_i32_1 = arith.constant 0 : i32
    return %c0_i32, %c0_i32_0 : i32, i32
  }
  func.func @transform_2(%arg0: i32) -> (i32, i32) {
    %c0_i32 = arith.constant 0 : i32
    %c0_i32_0 = arith.constant 0 : i32
    %c0_i32_1 = arith.constant 0 : i32
    return %c0_i32, %c0_i32_0 : i32, i32
  }
  func.func @transform_3(%arg0: i32) -> (i32, i32) {
    %c0_i32 = arith.constant 0 : i32
    %c0_i32_0 = arith.constant 0 : i32
    return %arg0, %c0_i32 : i32, i32
  }
}

module attributes {stable_mosaic.version = 11 : i64} {
  func.func @_mm_kernel(%arg0: i32, %arg1: memref<8x432xbf16, #tpu.memory_space<vmem>>, %arg2: memref<432x16xbf16, #tpu.memory_space<vmem>>, %arg3: memref<1x16xf32, #tpu.memory_space<vmem>>, %arg4: memref<8x16xbf16, #tpu.memory_space<vmem>>) attributes {dimension_semantics = [#tpu.dimension_semantics<parallel>], iteration_bounds = array<i64: 1>, scalar_prefetch = 0 : i64, scratch_operands = 0 : i64, tpu.core_type = #tpu.core_type<tc>, window_params = [{transform_indices = @transform_0, window_bounds = array<i64: 8, 432>}, {pipeline_mode = #tpu.pipeline_mode<synchronous>, transform_indices = @transform_1, window_bounds = array<i64: 432, 16>}, {pipeline_mode = #tpu.pipeline_mode<synchronous>, transform_indices = @transform_2, window_bounds = array<i64: 1, 16>}, {transform_indices = @transform_3, window_bounds = array<i64: 8, 16>}]} {
    %c0 = arith.constant 0 : index
    %c0_0 = arith.constant 0 : index
    %0 = vector.load %arg1[%c0, %c0_0] : memref<8x432xbf16, #tpu.memory_space<vmem>>, vector<8x432xbf16>
    %c0_1 = arith.constant 0 : index
    %c0_2 = arith.constant 0 : index
    %1 = vector.load %arg2[%c0_1, %c0_2] : memref<432x16xbf16, #tpu.memory_space<vmem>>, vector<432x16xbf16>
    %cst = arith.constant dense<0.000000e+00> : vector<8x16xf32>
    %2 = tpu.matmul %0, %1, %cst {dimension_numbers = #tpu.dot_dimension_numbers<[1], [0], [0], [1], [0, 0, 1, 1], [], []>} : vector<8x432xbf16>, vector<432x16xbf16>, vector<8x16xf32> -> vector<8x16xf32>
    %c0_3 = arith.constant 0 : index
    %c0_4 = arith.constant 0 : index
    %3 = vector.load %arg3[%c0_3, %c0_4] : memref<1x16xf32, #tpu.memory_space<vmem>>, vector<1x16xf32>
    %4 = vector.broadcast %3 : vector<1x16xf32> to vector<8x16xf32>
    %5 = arith.addf %2, %4 : vector<8x16xf32>
    %cst_5 = arith.constant 0.000000e+00 : f32
    %6 = vector.broadcast %cst_5 : f32 to vector<8x16xf32>
    %7 = arith.maximumf %5, %6 : vector<8x16xf32>
    %8 = math.absf %5 : vector<8x16xf32>
    %cst_6 = arith.constant 0.000000e+00 : f32
    %9 = vector.broadcast %cst_6 : f32 to vector<8x16xf32>
    %10 = arith.subf %9, %8 : vector<8x16xf32>
    %11 = math.exp %10 : vector<8x16xf32>
    %12 = math.log1p %11 : vector<8x16xf32>
    %13 = arith.addf %7, %12 : vector<8x16xf32>
    %14 = math.tanh %13 : vector<8x16xf32>
    %15 = arith.mulf %5, %14 : vector<8x16xf32>
    %16 = arith.truncf %15 : vector<8x16xf32> to vector<8x16xbf16>
    %c0_7 = arith.constant 0 : index
    %c0_8 = arith.constant 0 : index
    %17 = vector.load %arg4[%c0_7, %c0_8] : memref<8x16xbf16, #tpu.memory_space<vmem>>, vector<8x16xbf16>
    tpu.vector_store %arg4[%c0_7, %c0_8], %16 {strides = array<i32>} : memref<8x16xbf16, #tpu.memory_space<vmem>>, vector<8x16xbf16>,
    return
  }
  func.func @transform_0(%arg0: i32) -> (i32, i32) {
    %c0_i32 = arith.constant 0 : i32
    %c0_i32_0 = arith.constant 0 : i32
    return %arg0, %c0_i32 : i32, i32
  }
  func.func @transform_1(%arg0: i32) -> (i32, i32) {
    %c0_i32 = arith.constant 0 : i32
    %c0_i32_0 = arith.constant 0 : i32
    %c0_i32_1 = arith.constant 0 : i32
    return %c0_i32, %c0_i32_0 : i32, i32
  }
  func.func @transform_2(%arg0: i32) -> (i32, i32) {
    %c0_i32 = arith.constant 0 : i32
    %c0_i32_0 = arith.constant 0 : i32
    %c0_i32_1 = arith.constant 0 : i32
    return %c0_i32, %c0_i32_0 : i32, i32
  }
  func.func @transform_3(%arg0: i32) -> (i32, i32) {
    %c0_i32 = arith.constant 0 : i32
    %c0_i32_0 = arith.constant 0 : i32
    return %arg0, %c0_i32 : i32, i32
  }
}

module attributes {stable_mosaic.version = 11 : i64} {
  func.func @_mm_kernel(%arg0: i32, %arg1: memref<32x8xbf16, #tpu.memory_space<vmem>>, %arg2: memref<8x8xbf16, #tpu.memory_space<vmem>>, %arg3: memref<1x8xf32, #tpu.memory_space<vmem>>, %arg4: memref<32x8xbf16, #tpu.memory_space<vmem>>) attributes {dimension_semantics = [#tpu.dimension_semantics<parallel>], iteration_bounds = array<i64: 2>, scalar_prefetch = 0 : i64, scratch_operands = 0 : i64, tpu.core_type = #tpu.core_type<tc>, window_params = [{transform_indices = @transform_0, window_bounds = array<i64: 32, 8>}, {pipeline_mode = #tpu.pipeline_mode<synchronous>, transform_indices = @transform_1, window_bounds = array<i64: 8, 8>}, {pipeline_mode = #tpu.pipeline_mode<synchronous>, transform_indices = @transform_2, window_bounds = array<i64: 1, 8>}, {transform_indices = @transform_3, window_bounds = array<i64: 32, 8>}]} {
    %c0 = arith.constant 0 : index
    %c0_0 = arith.constant 0 : index
    %0 = vector.load %arg1[%c0, %c0_0] : memref<32x8xbf16, #tpu.memory_space<vmem>>, vector<32x8xbf16>
    %c0_1 = arith.constant 0 : index
    %c0_2 = arith.constant 0 : index
    %1 = vector.load %arg2[%c0_1, %c0_2] : memref<8x8xbf16, #tpu.memory_space<vmem>>, vector<8x8xbf16>
    %cst = arith.constant dense<0.000000e+00> : vector<32x8xf32>
    %2 = tpu.matmul %0, %1, %cst {dimension_numbers = #tpu.dot_dimension_numbers<[1], [0], [0], [1], [0, 0, 1, 1], [], []>} : vector<32x8xbf16>, vector<8x8xbf16>, vector<32x8xf32> -> vector<32x8xf32>
    %c0_3 = arith.constant 0 : index
    %c0_4 = arith.constant 0 : index
    %3 = vector.load %arg3[%c0_3, %c0_4] : memref<1x8xf32, #tpu.memory_space<vmem>>, vector<1x8xf32>
    %4 = vector.broadcast %3 : vector<1x8xf32> to vector<32x8xf32>
    %5 = arith.addf %2, %4 : vector<32x8xf32>
    %6 = arith.truncf %5 : vector<32x8xf32> to vector<32x8xbf16>
    %c0_5 = arith.constant 0 : index
    %c0_6 = arith.constant 0 : index
    %7 = vector.load %arg4[%c0_5, %c0_6] : memref<32x8xbf16, #tpu.memory_space<vmem>>, vector<32x8xbf16>
    tpu.vector_store %arg4[%c0_5, %c0_6], %6 {strides = array<i32>} : memref<32x8xbf16, #tpu.memory_space<vmem>>, vector<32x8xbf16>,
    return
  }
  func.func @transform_0(%arg0: i32) -> (i32, i32) {
    %c0_i32 = arith.constant 0 : i32
    %c0_i32_0 = arith.constant 0 : i32
    return %arg0, %c0_i32 : i32, i32
  }
  func.func @transform_1(%arg0: i32) -> (i32, i32) {
    %c0_i32 = arith.constant 0 : i32
    %c0_i32_0 = arith.constant 0 : i32
    %c0_i32_1 = arith.constant 0 : i32
    return %c0_i32, %c0_i32_0 : i32, i32
  }
  func.func @transform_2(%arg0: i32) -> (i32, i32) {
    %c0_i32 = arith.constant 0 : i32
    %c0_i32_0 = arith.constant 0 : i32
    %c0_i32_1 = arith.constant 0 : i32
    return %c0_i32, %c0_i32_0 : i32, i32
  }
  func.func @transform_3(%arg0: i32) -> (i32, i32) {
    %c0_i32 = arith.constant 0 : i32
    %c0_i32_0 = arith.constant 0 : i32
    return %arg0, %c0_i32 : i32, i32
  }
}

module attributes {stable_mosaic.version = 11 : i64} {
  func.func @_mm_res_kernel(%arg0: i32, %arg1: memref<8x128xbf16, #tpu.memory_space<vmem>>, %arg2: memref<128x8xbf16, #tpu.memory_space<vmem>>, %arg3: memref<1x8xf32, #tpu.memory_space<vmem>>, %arg4: memref<8x8xbf16, #tpu.memory_space<vmem>>, %arg5: memref<8x8xbf16, #tpu.memory_space<vmem>>) attributes {dimension_semantics = [#tpu.dimension_semantics<parallel>], iteration_bounds = array<i64: 1>, scalar_prefetch = 0 : i64, scratch_operands = 0 : i64, tpu.core_type = #tpu.core_type<tc>, window_params = [{transform_indices = @transform_0, window_bounds = array<i64: 8, 128>}, {pipeline_mode = #tpu.pipeline_mode<synchronous>, transform_indices = @transform_1, window_bounds = array<i64: 128, 8>}, {pipeline_mode = #tpu.pipeline_mode<synchronous>, transform_indices = @transform_2, window_bounds = array<i64: 1, 8>}, {transform_indices = @transform_3, window_bounds = array<i64: 8, 8>}, {transform_indices = @transform_4, window_bounds = array<i64: 8, 8>}]} {
    %c0 = arith.constant 0 : index
    %c0_0 = arith.constant 0 : index
    %0 = vector.load %arg1[%c0, %c0_0] : memref<8x128xbf16, #tpu.memory_space<vmem>>, vector<8x128xbf16>
    %c0_1 = arith.constant 0 : index
    %c0_2 = arith.constant 0 : index
    %1 = vector.load %arg2[%c0_1, %c0_2] : memref<128x8xbf16, #tpu.memory_space<vmem>>, vector<128x8xbf16>
    %cst = arith.constant dense<0.000000e+00> : vector<8x8xf32>
    %2 = tpu.matmul %0, %1, %cst {dimension_numbers = #tpu.dot_dimension_numbers<[1], [0], [0], [1], [0, 0, 1, 1], [], []>} : vector<8x128xbf16>, vector<128x8xbf16>, vector<8x8xf32> -> vector<8x8xf32>
    %c0_3 = arith.constant 0 : index
    %c0_4 = arith.constant 0 : index
    %3 = vector.load %arg3[%c0_3, %c0_4] : memref<1x8xf32, #tpu.memory_space<vmem>>, vector<1x8xf32>
    %4 = vector.broadcast %3 : vector<1x8xf32> to vector<8x8xf32>
    %5 = arith.addf %2, %4 : vector<8x8xf32>
    %c0_5 = arith.constant 0 : index
    %c0_6 = arith.constant 0 : index
    %6 = vector.load %arg4[%c0_5, %c0_6] : memref<8x8xbf16, #tpu.memory_space<vmem>>, vector<8x8xbf16>
    %7 = arith.extf %6 : vector<8x8xbf16> to vector<8x8xf32>
    %8 = arith.addf %5, %7 : vector<8x8xf32>
    %cst_7 = arith.constant 0.000000e+00 : f32
    %9 = vector.broadcast %cst_7 : f32 to vector<8x8xf32>
    %10 = arith.maximumf %8, %9 : vector<8x8xf32>
    %11 = math.absf %8 : vector<8x8xf32>
    %cst_8 = arith.constant 0.000000e+00 : f32
    %12 = vector.broadcast %cst_8 : f32 to vector<8x8xf32>
    %13 = arith.subf %12, %11 : vector<8x8xf32>
    %14 = math.exp %13 : vector<8x8xf32>
    %15 = math.log1p %14 : vector<8x8xf32>
    %16 = arith.addf %10, %15 : vector<8x8xf32>
    %17 = math.tanh %16 : vector<8x8xf32>
    %18 = arith.mulf %8, %17 : vector<8x8xf32>
    %19 = arith.truncf %18 : vector<8x8xf32> to vector<8x8xbf16>
    %c0_9 = arith.constant 0 : index
    %c0_10 = arith.constant 0 : index
    %20 = vector.load %arg5[%c0_9, %c0_10] : memref<8x8xbf16, #tpu.memory_space<vmem>>, vector<8x8xbf16>
    tpu.vector_store %arg5[%c0_9, %c0_10], %19 {strides = array<i32>} : memref<8x8xbf16, #tpu.memory_space<vmem>>, vector<8x8xbf16>,
    return
  }
  func.func @transform_0(%arg0: i32) -> (i32, i32) {
    %c0_i32 = arith.constant 0 : i32
    %c0_i32_0 = arith.constant 0 : i32
    return %arg0, %c0_i32 : i32, i32
  }
  func.func @transform_1(%arg0: i32) -> (i32, i32) {
    %c0_i32 = arith.constant 0 : i32
    %c0_i32_0 = arith.constant 0 : i32
    %c0_i32_1 = arith.constant 0 : i32
    return %c0_i32, %c0_i32_0 : i32, i32
  }
  func.func @transform_2(%arg0: i32) -> (i32, i32) {
    %c0_i32 = arith.constant 0 : i32
    %c0_i32_0 = arith.constant 0 : i32
    %c0_i32_1 = arith.constant 0 : i32
    return %c0_i32, %c0_i32_0 : i32, i32
  }
  func.func @transform_3(%arg0: i32) -> (i32, i32) {
    %c0_i32 = arith.constant 0 : i32
    %c0_i32_0 = arith.constant 0 : i32
    return %arg0, %c0_i32 : i32, i32
  }
  func.func @transform_4(%arg0: i32) -> (i32, i32) {
    %c0_i32 = arith.constant 0 : i32
    %c0_i32_0 = arith.constant 0 : i32
    return %arg0, %c0_i32 : i32, i32
  }
}

module attributes {stable_mosaic.version = 11 : i64} {
  func.func @_mm_res_kernel(%arg0: i32, %arg1: memref<8x64xbf16, #tpu.memory_space<vmem>>, %arg2: memref<64x8xbf16, #tpu.memory_space<vmem>>, %arg3: memref<1x8xf32, #tpu.memory_space<vmem>>, %arg4: memref<8x8xbf16, #tpu.memory_space<vmem>>, %arg5: memref<8x8xbf16, #tpu.memory_space<vmem>>) attributes {dimension_semantics = [#tpu.dimension_semantics<parallel>], iteration_bounds = array<i64: 1>, scalar_prefetch = 0 : i64, scratch_operands = 0 : i64, tpu.core_type = #tpu.core_type<tc>, window_params = [{transform_indices = @transform_0, window_bounds = array<i64: 8, 64>}, {pipeline_mode = #tpu.pipeline_mode<synchronous>, transform_indices = @transform_1, window_bounds = array<i64: 64, 8>}, {pipeline_mode = #tpu.pipeline_mode<synchronous>, transform_indices = @transform_2, window_bounds = array<i64: 1, 8>}, {transform_indices = @transform_3, window_bounds = array<i64: 8, 8>}, {transform_indices = @transform_4, window_bounds = array<i64: 8, 8>}]} {
    %c0 = arith.constant 0 : index
    %c0_0 = arith.constant 0 : index
    %0 = vector.load %arg1[%c0, %c0_0] : memref<8x64xbf16, #tpu.memory_space<vmem>>, vector<8x64xbf16>
    %c0_1 = arith.constant 0 : index
    %c0_2 = arith.constant 0 : index
    %1 = vector.load %arg2[%c0_1, %c0_2] : memref<64x8xbf16, #tpu.memory_space<vmem>>, vector<64x8xbf16>
    %cst = arith.constant dense<0.000000e+00> : vector<8x8xf32>
    %2 = tpu.matmul %0, %1, %cst {dimension_numbers = #tpu.dot_dimension_numbers<[1], [0], [0], [1], [0, 0, 1, 1], [], []>} : vector<8x64xbf16>, vector<64x8xbf16>, vector<8x8xf32> -> vector<8x8xf32>
    %c0_3 = arith.constant 0 : index
    %c0_4 = arith.constant 0 : index
    %3 = vector.load %arg3[%c0_3, %c0_4] : memref<1x8xf32, #tpu.memory_space<vmem>>, vector<1x8xf32>
    %4 = vector.broadcast %3 : vector<1x8xf32> to vector<8x8xf32>
    %5 = arith.addf %2, %4 : vector<8x8xf32>
    %c0_5 = arith.constant 0 : index
    %c0_6 = arith.constant 0 : index
    %6 = vector.load %arg4[%c0_5, %c0_6] : memref<8x8xbf16, #tpu.memory_space<vmem>>, vector<8x8xbf16>
    %7 = arith.extf %6 : vector<8x8xbf16> to vector<8x8xf32>
    %8 = arith.addf %5, %7 : vector<8x8xf32>
    %cst_7 = arith.constant 0.000000e+00 : f32
    %9 = vector.broadcast %cst_7 : f32 to vector<8x8xf32>
    %10 = arith.maximumf %8, %9 : vector<8x8xf32>
    %11 = math.absf %8 : vector<8x8xf32>
    %cst_8 = arith.constant 0.000000e+00 : f32
    %12 = vector.broadcast %cst_8 : f32 to vector<8x8xf32>
    %13 = arith.subf %12, %11 : vector<8x8xf32>
    %14 = math.exp %13 : vector<8x8xf32>
    %15 = math.log1p %14 : vector<8x8xf32>
    %16 = arith.addf %10, %15 : vector<8x8xf32>
    %17 = math.tanh %16 : vector<8x8xf32>
    %18 = arith.mulf %8, %17 : vector<8x8xf32>
    %19 = arith.truncf %18 : vector<8x8xf32> to vector<8x8xbf16>
    %c0_9 = arith.constant 0 : index
    %c0_10 = arith.constant 0 : index
    %20 = vector.load %arg5[%c0_9, %c0_10] : memref<8x8xbf16, #tpu.memory_space<vmem>>, vector<8x8xbf16>
    tpu.vector_store %arg5[%c0_9, %c0_10], %19 {strides = array<i32>} : memref<8x8xbf16, #tpu.memory_space<vmem>>, vector<8x8xbf16>,
    return
  }
  func.func @transform_0(%arg0: i32) -> (i32, i32) {
    %c0_i32 = arith.constant 0 : i32
    %c0_i32_0 = arith.constant 0 : i32
    return %arg0, %c0_i32 : i32, i32
  }
  func.func @transform_1(%arg0: i32) -> (i32, i32) {
    %c0_i32 = arith.constant 0 : i32
    %c0_i32_0 = arith.constant 0 : i32
    %c0_i32_1 = arith.constant 0 : i32
    return %c0_i32, %c0_i32_0 : i32, i32
  }
  func.func @transform_2(%arg0: i32) -> (i32, i32) {
    %c0_i32 = arith.constant 0 : i32
    %c0_i32_0 = arith.constant 0 : i32
    %c0_i32_1 = arith.constant 0 : i32
    return %c0_i32, %c0_i32_0 : i32, i32
  }
  func.func @transform_3(%arg0: i32) -> (i32, i32) {
    %c0_i32 = arith.constant 0 : i32
    %c0_i32_0 = arith.constant 0 : i32
    return %arg0, %c0_i32 : i32, i32
  }
  func.func @transform_4(%arg0: i32) -> (i32, i32) {
    %c0_i32 = arith.constant 0 : i32
    %c0_i32_0 = arith.constant 0 : i32
    return %arg0, %c0_i32 : i32, i32
  }
}

module attributes {stable_mosaic.version = 11 : i64} {
  func.func @_mm_res_kernel(%arg0: i32, %arg1: memref<8x32xbf16, #tpu.memory_space<vmem>>, %arg2: memref<32x8xbf16, #tpu.memory_space<vmem>>, %arg3: memref<1x8xf32, #tpu.memory_space<vmem>>, %arg4: memref<8x8xbf16, #tpu.memory_space<vmem>>, %arg5: memref<8x8xbf16, #tpu.memory_space<vmem>>) attributes {dimension_semantics = [#tpu.dimension_semantics<parallel>], iteration_bounds = array<i64: 1>, scalar_prefetch = 0 : i64, scratch_operands = 0 : i64, tpu.core_type = #tpu.core_type<tc>, window_params = [{transform_indices = @transform_0, window_bounds = array<i64: 8, 32>}, {pipeline_mode = #tpu.pipeline_mode<synchronous>, transform_indices = @transform_1, window_bounds = array<i64: 32, 8>}, {pipeline_mode = #tpu.pipeline_mode<synchronous>, transform_indices = @transform_2, window_bounds = array<i64: 1, 8>}, {transform_indices = @transform_3, window_bounds = array<i64: 8, 8>}, {transform_indices = @transform_4, window_bounds = array<i64: 8, 8>}]} {
    %c0 = arith.constant 0 : index
    %c0_0 = arith.constant 0 : index
    %0 = vector.load %arg1[%c0, %c0_0] : memref<8x32xbf16, #tpu.memory_space<vmem>>, vector<8x32xbf16>
    %c0_1 = arith.constant 0 : index
    %c0_2 = arith.constant 0 : index
    %1 = vector.load %arg2[%c0_1, %c0_2] : memref<32x8xbf16, #tpu.memory_space<vmem>>, vector<32x8xbf16>
    %cst = arith.constant dense<0.000000e+00> : vector<8x8xf32>
    %2 = tpu.matmul %0, %1, %cst {dimension_numbers = #tpu.dot_dimension_numbers<[1], [0], [0], [1], [0, 0, 1, 1], [], []>} : vector<8x32xbf16>, vector<32x8xbf16>, vector<8x8xf32> -> vector<8x8xf32>
    %c0_3 = arith.constant 0 : index
    %c0_4 = arith.constant 0 : index
    %3 = vector.load %arg3[%c0_3, %c0_4] : memref<1x8xf32, #tpu.memory_space<vmem>>, vector<1x8xf32>
    %4 = vector.broadcast %3 : vector<1x8xf32> to vector<8x8xf32>
    %5 = arith.addf %2, %4 : vector<8x8xf32>
    %c0_5 = arith.constant 0 : index
    %c0_6 = arith.constant 0 : index
    %6 = vector.load %arg4[%c0_5, %c0_6] : memref<8x8xbf16, #tpu.memory_space<vmem>>, vector<8x8xbf16>
    %7 = arith.extf %6 : vector<8x8xbf16> to vector<8x8xf32>
    %8 = arith.addf %5, %7 : vector<8x8xf32>
    %cst_7 = arith.constant 0.000000e+00 : f32
    %9 = vector.broadcast %cst_7 : f32 to vector<8x8xf32>
    %10 = arith.maximumf %8, %9 : vector<8x8xf32>
    %11 = math.absf %8 : vector<8x8xf32>
    %cst_8 = arith.constant 0.000000e+00 : f32
    %12 = vector.broadcast %cst_8 : f32 to vector<8x8xf32>
    %13 = arith.subf %12, %11 : vector<8x8xf32>
    %14 = math.exp %13 : vector<8x8xf32>
    %15 = math.log1p %14 : vector<8x8xf32>
    %16 = arith.addf %10, %15 : vector<8x8xf32>
    %17 = math.tanh %16 : vector<8x8xf32>
    %18 = arith.mulf %8, %17 : vector<8x8xf32>
    %19 = arith.truncf %18 : vector<8x8xf32> to vector<8x8xbf16>
    %c0_9 = arith.constant 0 : index
    %c0_10 = arith.constant 0 : index
    %20 = vector.load %arg5[%c0_9, %c0_10] : memref<8x8xbf16, #tpu.memory_space<vmem>>, vector<8x8xbf16>
    tpu.vector_store %arg5[%c0_9, %c0_10], %19 {strides = array<i32>} : memref<8x8xbf16, #tpu.memory_space<vmem>>, vector<8x8xbf16>,
    return
  }
  func.func @transform_0(%arg0: i32) -> (i32, i32) {
    %c0_i32 = arith.constant 0 : i32
    %c0_i32_0 = arith.constant 0 : i32
    return %arg0, %c0_i32 : i32, i32
  }
  func.func @transform_1(%arg0: i32) -> (i32, i32) {
    %c0_i32 = arith.constant 0 : i32
    %c0_i32_0 = arith.constant 0 : i32
    %c0_i32_1 = arith.constant 0 : i32
    return %c0_i32, %c0_i32_0 : i32, i32
  }
  func.func @transform_2(%arg0: i32) -> (i32, i32) {
    %c0_i32 = arith.constant 0 : i32
    %c0_i32_0 = arith.constant 0 : i32
    %c0_i32_1 = arith.constant 0 : i32
    return %c0_i32, %c0_i32_0 : i32, i32
  }
  func.func @transform_3(%arg0: i32) -> (i32, i32) {
    %c0_i32 = arith.constant 0 : i32
    %c0_i32_0 = arith.constant 0 : i32
    return %arg0, %c0_i32 : i32, i32
  }
  func.func @transform_4(%arg0: i32) -> (i32, i32) {
    %c0_i32 = arith.constant 0 : i32
    %c0_i32_0 = arith.constant 0 : i32
    return %arg0, %c0_i32 : i32, i32
  }
}

module attributes {stable_mosaic.version = 11 : i64} {
  func.func @_mm_res_kernel(%arg0: i32, %arg1: memref<8x16xbf16, #tpu.memory_space<vmem>>, %arg2: memref<16x8xbf16, #tpu.memory_space<vmem>>, %arg3: memref<1x8xf32, #tpu.memory_space<vmem>>, %arg4: memref<8x8xbf16, #tpu.memory_space<vmem>>, %arg5: memref<8x8xbf16, #tpu.memory_space<vmem>>) attributes {dimension_semantics = [#tpu.dimension_semantics<parallel>], iteration_bounds = array<i64: 1>, scalar_prefetch = 0 : i64, scratch_operands = 0 : i64, tpu.core_type = #tpu.core_type<tc>, window_params = [{transform_indices = @transform_0, window_bounds = array<i64: 8, 16>}, {pipeline_mode = #tpu.pipeline_mode<synchronous>, transform_indices = @transform_1, window_bounds = array<i64: 16, 8>}, {pipeline_mode = #tpu.pipeline_mode<synchronous>, transform_indices = @transform_2, window_bounds = array<i64: 1, 8>}, {transform_indices = @transform_3, window_bounds = array<i64: 8, 8>}, {transform_indices = @transform_4, window_bounds = array<i64: 8, 8>}]} {
    %c0 = arith.constant 0 : index
    %c0_0 = arith.constant 0 : index
    %0 = vector.load %arg1[%c0, %c0_0] : memref<8x16xbf16, #tpu.memory_space<vmem>>, vector<8x16xbf16>
    %c0_1 = arith.constant 0 : index
    %c0_2 = arith.constant 0 : index
    %1 = vector.load %arg2[%c0_1, %c0_2] : memref<16x8xbf16, #tpu.memory_space<vmem>>, vector<16x8xbf16>
    %cst = arith.constant dense<0.000000e+00> : vector<8x8xf32>
    %2 = tpu.matmul %0, %1, %cst {dimension_numbers = #tpu.dot_dimension_numbers<[1], [0], [0], [1], [0, 0, 1, 1], [], []>} : vector<8x16xbf16>, vector<16x8xbf16>, vector<8x8xf32> -> vector<8x8xf32>
    %c0_3 = arith.constant 0 : index
    %c0_4 = arith.constant 0 : index
    %3 = vector.load %arg3[%c0_3, %c0_4] : memref<1x8xf32, #tpu.memory_space<vmem>>, vector<1x8xf32>
    %4 = vector.broadcast %3 : vector<1x8xf32> to vector<8x8xf32>
    %5 = arith.addf %2, %4 : vector<8x8xf32>
    %c0_5 = arith.constant 0 : index
    %c0_6 = arith.constant 0 : index
    %6 = vector.load %arg4[%c0_5, %c0_6] : memref<8x8xbf16, #tpu.memory_space<vmem>>, vector<8x8xbf16>
    %7 = arith.extf %6 : vector<8x8xbf16> to vector<8x8xf32>
    %8 = arith.addf %5, %7 : vector<8x8xf32>
    %cst_7 = arith.constant 0.000000e+00 : f32
    %9 = vector.broadcast %cst_7 : f32 to vector<8x8xf32>
    %10 = arith.maximumf %8, %9 : vector<8x8xf32>
    %11 = math.absf %8 : vector<8x8xf32>
    %cst_8 = arith.constant 0.000000e+00 : f32
    %12 = vector.broadcast %cst_8 : f32 to vector<8x8xf32>
    %13 = arith.subf %12, %11 : vector<8x8xf32>
    %14 = math.exp %13 : vector<8x8xf32>
    %15 = math.log1p %14 : vector<8x8xf32>
    %16 = arith.addf %10, %15 : vector<8x8xf32>
    %17 = math.tanh %16 : vector<8x8xf32>
    %18 = arith.mulf %8, %17 : vector<8x8xf32>
    %19 = arith.truncf %18 : vector<8x8xf32> to vector<8x8xbf16>
    %c0_9 = arith.constant 0 : index
    %c0_10 = arith.constant 0 : index
    %20 = vector.load %arg5[%c0_9, %c0_10] : memref<8x8xbf16, #tpu.memory_space<vmem>>, vector<8x8xbf16>
    tpu.vector_store %arg5[%c0_9, %c0_10], %19 {strides = array<i32>} : memref<8x8xbf16, #tpu.memory_space<vmem>>, vector<8x8xbf16>,
    return
  }
  func.func @transform_0(%arg0: i32) -> (i32, i32) {
    %c0_i32 = arith.constant 0 : i32
    %c0_i32_0 = arith.constant 0 : i32
    return %arg0, %c0_i32 : i32, i32
  }
  func.func @transform_1(%arg0: i32) -> (i32, i32) {
    %c0_i32 = arith.constant 0 : i32
    %c0_i32_0 = arith.constant 0 : i32
    %c0_i32_1 = arith.constant 0 : i32
    return %c0_i32, %c0_i32_0 : i32, i32
  }
  func.func @transform_2(%arg0: i32) -> (i32, i32) {
    %c0_i32 = arith.constant 0 : i32
    %c0_i32_0 = arith.constant 0 : i32
    %c0_i32_1 = arith.constant 0 : i32
    return %c0_i32, %c0_i32_0 : i32, i32
  }
  func.func @transform_3(%arg0: i32) -> (i32, i32) {
    %c0_i32 = arith.constant 0 : i32
    %c0_i32_0 = arith.constant 0 : i32
    return %arg0, %c0_i32 : i32, i32
  }
  func.func @transform_4(%arg0: i32) -> (i32, i32) {
    %c0_i32 = arith.constant 0 : i32
    %c0_i32_0 = arith.constant 0 : i32
    return %arg0, %c0_i32 : i32, i32
  }
}

module attributes {stable_mosaic.version = 11 : i64} {
  func.func @_mm_kernel(%arg0: i32, %arg1: memref<256x4xbf16, #tpu.memory_space<vmem>>, %arg2: memref<4x4xbf16, #tpu.memory_space<vmem>>, %arg3: memref<1x4xf32, #tpu.memory_space<vmem>>, %arg4: memref<256x4xbf16, #tpu.memory_space<vmem>>) attributes {dimension_semantics = [#tpu.dimension_semantics<parallel>], iteration_bounds = array<i64: 2>, scalar_prefetch = 0 : i64, scratch_operands = 0 : i64, tpu.core_type = #tpu.core_type<tc>, window_params = [{transform_indices = @transform_0, window_bounds = array<i64: 256, 4>}, {pipeline_mode = #tpu.pipeline_mode<synchronous>, transform_indices = @transform_1, window_bounds = array<i64: 4, 4>}, {pipeline_mode = #tpu.pipeline_mode<synchronous>, transform_indices = @transform_2, window_bounds = array<i64: 1, 4>}, {transform_indices = @transform_3, window_bounds = array<i64: 256, 4>}]} {
    %c0 = arith.constant 0 : index
    %c0_0 = arith.constant 0 : index
    %0 = vector.load %arg1[%c0, %c0_0] : memref<256x4xbf16, #tpu.memory_space<vmem>>, vector<256x4xbf16>
    %c0_1 = arith.constant 0 : index
    %c0_2 = arith.constant 0 : index
    %1 = vector.load %arg2[%c0_1, %c0_2] : memref<4x4xbf16, #tpu.memory_space<vmem>>, vector<4x4xbf16>
    %cst = arith.constant dense<0.000000e+00> : vector<256x4xf32>
    %2 = tpu.matmul %0, %1, %cst {dimension_numbers = #tpu.dot_dimension_numbers<[1], [0], [0], [1], [0, 0, 1, 1], [], []>} : vector<256x4xbf16>, vector<4x4xbf16>, vector<256x4xf32> -> vector<256x4xf32>
    %c0_3 = arith.constant 0 : index
    %c0_4 = arith.constant 0 : index
    %3 = vector.load %arg3[%c0_3, %c0_4] : memref<1x4xf32, #tpu.memory_space<vmem>>, vector<1x4xf32>
    %4 = vector.broadcast %3 : vector<1x4xf32> to vector<256x4xf32>
    %5 = arith.addf %2, %4 : vector<256x4xf32>
    %6 = arith.truncf %5 : vector<256x4xf32> to vector<256x4xbf16>
    %c0_5 = arith.constant 0 : index
    %c0_6 = arith.constant 0 : index
    %7 = vector.load %arg4[%c0_5, %c0_6] : memref<256x4xbf16, #tpu.memory_space<vmem>>, vector<256x4xbf16>
    tpu.vector_store %arg4[%c0_5, %c0_6], %6 {strides = array<i32>} : memref<256x4xbf16, #tpu.memory_space<vmem>>, vector<256x4xbf16>,
    return
  }
  func.func @transform_0(%arg0: i32) -> (i32, i32) {
    %c0_i32 = arith.constant 0 : i32
    %c0_i32_0 = arith.constant 0 : i32
    return %arg0, %c0_i32 : i32, i32
  }
  func.func @transform_1(%arg0: i32) -> (i32, i32) {
    %c0_i32 = arith.constant 0 : i32
    %c0_i32_0 = arith.constant 0 : i32
    %c0_i32_1 = arith.constant 0 : i32
    return %c0_i32, %c0_i32_0 : i32, i32
  }
  func.func @transform_2(%arg0: i32) -> (i32, i32) {
    %c0_i32 = arith.constant 0 : i32
    %c0_i32_0 = arith.constant 0 : i32
    %c0_i32_1 = arith.constant 0 : i32
    return %c0_i32, %c0_i32_0 : i32, i32
  }
  func.func @transform_3(%arg0: i32) -> (i32, i32) {
    %c0_i32 = arith.constant 0 : i32
    %c0_i32_0 = arith.constant 0 : i32
    return %arg0, %c0_i32 : i32, i32
  }
}

module attributes {stable_mosaic.version = 11 : i64} {
  func.func @_mm_res_kernel(%arg0: i32, %arg1: memref<32x64xbf16, #tpu.memory_space<vmem>>, %arg2: memref<64x4xbf16, #tpu.memory_space<vmem>>, %arg3: memref<1x4xf32, #tpu.memory_space<vmem>>, %arg4: memref<32x4xbf16, #tpu.memory_space<vmem>>, %arg5: memref<32x4xf32, #tpu.memory_space<vmem>>) attributes {dimension_semantics = [#tpu.dimension_semantics<parallel>], iteration_bounds = array<i64: 2>, scalar_prefetch = 0 : i64, scratch_operands = 0 : i64, tpu.core_type = #tpu.core_type<tc>, window_params = [{transform_indices = @transform_0, window_bounds = array<i64: 32, 64>}, {pipeline_mode = #tpu.pipeline_mode<synchronous>, transform_indices = @transform_1, window_bounds = array<i64: 64, 4>}, {pipeline_mode = #tpu.pipeline_mode<synchronous>, transform_indices = @transform_2, window_bounds = array<i64: 1, 4>}, {transform_indices = @transform_3, window_bounds = array<i64: 32, 4>}, {transform_indices = @transform_4, window_bounds = array<i64: 32, 4>}]} {
    %c0 = arith.constant 0 : index
    %c0_0 = arith.constant 0 : index
    %0 = vector.load %arg1[%c0, %c0_0] : memref<32x64xbf16, #tpu.memory_space<vmem>>, vector<32x64xbf16>
    %c0_1 = arith.constant 0 : index
    %c0_2 = arith.constant 0 : index
    %1 = vector.load %arg2[%c0_1, %c0_2] : memref<64x4xbf16, #tpu.memory_space<vmem>>, vector<64x4xbf16>
    %cst = arith.constant dense<0.000000e+00> : vector<32x4xf32>
    %2 = tpu.matmul %0, %1, %cst {dimension_numbers = #tpu.dot_dimension_numbers<[1], [0], [0], [1], [0, 0, 1, 1], [], []>} : vector<32x64xbf16>, vector<64x4xbf16>, vector<32x4xf32> -> vector<32x4xf32>
    %c0_3 = arith.constant 0 : index
    %c0_4 = arith.constant 0 : index
    %3 = vector.load %arg3[%c0_3, %c0_4] : memref<1x4xf32, #tpu.memory_space<vmem>>, vector<1x4xf32>
    %4 = vector.broadcast %3 : vector<1x4xf32> to vector<32x4xf32>
    %5 = arith.addf %2, %4 : vector<32x4xf32>
    %c0_5 = arith.constant 0 : index
    %c0_6 = arith.constant 0 : index
    %6 = vector.load %arg4[%c0_5, %c0_6] : memref<32x4xbf16, #tpu.memory_space<vmem>>, vector<32x4xbf16>
    %7 = arith.extf %6 : vector<32x4xbf16> to vector<32x4xf32>
    %8 = arith.addf %5, %7 : vector<32x4xf32>
    %cst_7 = arith.constant 0.000000e+00 : f32
    %9 = vector.broadcast %cst_7 : f32 to vector<32x4xf32>
    %10 = arith.maximumf %8, %9 : vector<32x4xf32>
    %11 = math.absf %8 : vector<32x4xf32>
    %cst_8 = arith.constant 0.000000e+00 : f32
    %12 = vector.broadcast %cst_8 : f32 to vector<32x4xf32>
    %13 = arith.subf %12, %11 : vector<32x4xf32>
    %14 = math.exp %13 : vector<32x4xf32>
    %15 = math.log1p %14 : vector<32x4xf32>
    %16 = arith.addf %10, %15 : vector<32x4xf32>
    %17 = math.tanh %16 : vector<32x4xf32>
    %18 = arith.mulf %8, %17 : vector<32x4xf32>
    %c0_9 = arith.constant 0 : index
    %c0_10 = arith.constant 0 : index
    %19 = vector.load %arg5[%c0_9, %c0_10] : memref<32x4xf32, #tpu.memory_space<vmem>>, vector<32x4xf32>
    tpu.vector_store %arg5[%c0_9, %c0_10], %18 {strides = array<i32>} : memref<32x4xf32, #tpu.memory_space<vmem>>, vector<32x4xf32>,
    return
  }
  func.func @transform_0(%arg0: i32) -> (i32, i32) {
    %c0_i32 = arith.constant 0 : i32
    %c0_i32_0 = arith.constant 0 : i32
    return %arg0, %c0_i32 : i32, i32
  }
  func.func @transform_1(%arg0: i32) -> (i32, i32) {
    %c0_i32 = arith.constant 0 : i32
    %c0_i32_0 = arith.constant 0 : i32
    %c0_i32_1 = arith.constant 0 : i32
    return %c0_i32, %c0_i32_0 : i32, i32
  }
  func.func @transform_2(%arg0: i32) -> (i32, i32) {
    %c0_i32 = arith.constant 0 : i32
    %c0_i32_0 = arith.constant 0 : i32
    %c0_i32_1 = arith.constant 0 : i32
    return %c0_i32, %c0_i32_0 : i32, i32
  }
  func.func @transform_3(%arg0: i32) -> (i32, i32) {
    %c0_i32 = arith.constant 0 : i32
    %c0_i32_0 = arith.constant 0 : i32
    return %arg0, %c0_i32 : i32, i32
  }
  func.func @transform_4(%arg0: i32) -> (i32, i32) {
    %c0_i32 = arith.constant 0 : i32
    %c0_i32_0 = arith.constant 0 : i32
    return %arg0, %c0_i32 : i32, i32
  }
}

module attributes {stable_mosaic.version = 11 : i64} {
  func.func @_mm_res_kernel(%arg0: i32, %arg1: memref<32x32xbf16, #tpu.memory_space<vmem>>, %arg2: memref<32x4xbf16, #tpu.memory_space<vmem>>, %arg3: memref<1x4xf32, #tpu.memory_space<vmem>>, %arg4: memref<32x4xbf16, #tpu.memory_space<vmem>>, %arg5: memref<32x4xf32, #tpu.memory_space<vmem>>) attributes {dimension_semantics = [#tpu.dimension_semantics<parallel>], iteration_bounds = array<i64: 2>, scalar_prefetch = 0 : i64, scratch_operands = 0 : i64, tpu.core_type = #tpu.core_type<tc>, window_params = [{transform_indices = @transform_0, window_bounds = array<i64: 32, 32>}, {pipeline_mode = #tpu.pipeline_mode<synchronous>, transform_indices = @transform_1, window_bounds = array<i64: 32, 4>}, {pipeline_mode = #tpu.pipeline_mode<synchronous>, transform_indices = @transform_2, window_bounds = array<i64: 1, 4>}, {transform_indices = @transform_3, window_bounds = array<i64: 32, 4>}, {transform_indices = @transform_4, window_bounds = array<i64: 32, 4>}]} {
    %c0 = arith.constant 0 : index
    %c0_0 = arith.constant 0 : index
    %0 = vector.load %arg1[%c0, %c0_0] : memref<32x32xbf16, #tpu.memory_space<vmem>>, vector<32x32xbf16>
    %c0_1 = arith.constant 0 : index
    %c0_2 = arith.constant 0 : index
    %1 = vector.load %arg2[%c0_1, %c0_2] : memref<32x4xbf16, #tpu.memory_space<vmem>>, vector<32x4xbf16>
    %cst = arith.constant dense<0.000000e+00> : vector<32x4xf32>
    %2 = tpu.matmul %0, %1, %cst {dimension_numbers = #tpu.dot_dimension_numbers<[1], [0], [0], [1], [0, 0, 1, 1], [], []>} : vector<32x32xbf16>, vector<32x4xbf16>, vector<32x4xf32> -> vector<32x4xf32>
    %c0_3 = arith.constant 0 : index
    %c0_4 = arith.constant 0 : index
    %3 = vector.load %arg3[%c0_3, %c0_4] : memref<1x4xf32, #tpu.memory_space<vmem>>, vector<1x4xf32>
    %4 = vector.broadcast %3 : vector<1x4xf32> to vector<32x4xf32>
    %5 = arith.addf %2, %4 : vector<32x4xf32>
    %c0_5 = arith.constant 0 : index
    %c0_6 = arith.constant 0 : index
    %6 = vector.load %arg4[%c0_5, %c0_6] : memref<32x4xbf16, #tpu.memory_space<vmem>>, vector<32x4xbf16>
    %7 = arith.extf %6 : vector<32x4xbf16> to vector<32x4xf32>
    %8 = arith.addf %5, %7 : vector<32x4xf32>
    %cst_7 = arith.constant 0.000000e+00 : f32
    %9 = vector.broadcast %cst_7 : f32 to vector<32x4xf32>
    %10 = arith.maximumf %8, %9 : vector<32x4xf32>
    %11 = math.absf %8 : vector<32x4xf32>
    %cst_8 = arith.constant 0.000000e+00 : f32
    %12 = vector.broadcast %cst_8 : f32 to vector<32x4xf32>
    %13 = arith.subf %12, %11 : vector<32x4xf32>
    %14 = math.exp %13 : vector<32x4xf32>
    %15 = math.log1p %14 : vector<32x4xf32>
    %16 = arith.addf %10, %15 : vector<32x4xf32>
    %17 = math.tanh %16 : vector<32x4xf32>
    %18 = arith.mulf %8, %17 : vector<32x4xf32>
    %c0_9 = arith.constant 0 : index
    %c0_10 = arith.constant 0 : index
    %19 = vector.load %arg5[%c0_9, %c0_10] : memref<32x4xf32, #tpu.memory_space<vmem>>, vector<32x4xf32>
    tpu.vector_store %arg5[%c0_9, %c0_10], %18 {strides = array<i32>} : memref<32x4xf32, #tpu.memory_space<vmem>>, vector<32x4xf32>,
    return
  }
  func.func @transform_0(%arg0: i32) -> (i32, i32) {
    %c0_i32 = arith.constant 0 : i32
    %c0_i32_0 = arith.constant 0 : i32
    return %arg0, %c0_i32 : i32, i32
  }
  func.func @transform_1(%arg0: i32) -> (i32, i32) {
    %c0_i32 = arith.constant 0 : i32
    %c0_i32_0 = arith.constant 0 : i32
    %c0_i32_1 = arith.constant 0 : i32
    return %c0_i32, %c0_i32_0 : i32, i32
  }
  func.func @transform_2(%arg0: i32) -> (i32, i32) {
    %c0_i32 = arith.constant 0 : i32
    %c0_i32_0 = arith.constant 0 : i32
    %c0_i32_1 = arith.constant 0 : i32
    return %c0_i32, %c0_i32_0 : i32, i32
  }
  func.func @transform_3(%arg0: i32) -> (i32, i32) {
    %c0_i32 = arith.constant 0 : i32
    %c0_i32_0 = arith.constant 0 : i32
    return %arg0, %c0_i32 : i32, i32
  }
  func.func @transform_4(%arg0: i32) -> (i32, i32) {
    %c0_i32 = arith.constant 0 : i32
    %c0_i32_0 = arith.constant 0 : i32
    return %arg0, %c0_i32 : i32, i32
  }
}

module attributes {stable_mosaic.version = 11 : i64} {
  func.func @_mm_res_kernel(%arg0: i32, %arg1: memref<32x8xbf16, #tpu.memory_space<vmem>>, %arg2: memref<8x4xbf16, #tpu.memory_space<vmem>>, %arg3: memref<1x4xf32, #tpu.memory_space<vmem>>, %arg4: memref<32x4xbf16, #tpu.memory_space<vmem>>, %arg5: memref<32x4xf32, #tpu.memory_space<vmem>>) attributes {dimension_semantics = [#tpu.dimension_semantics<parallel>], iteration_bounds = array<i64: 2>, scalar_prefetch = 0 : i64, scratch_operands = 0 : i64, tpu.core_type = #tpu.core_type<tc>, window_params = [{transform_indices = @transform_0, window_bounds = array<i64: 32, 8>}, {pipeline_mode = #tpu.pipeline_mode<synchronous>, transform_indices = @transform_1, window_bounds = array<i64: 8, 4>}, {pipeline_mode = #tpu.pipeline_mode<synchronous>, transform_indices = @transform_2, window_bounds = array<i64: 1, 4>}, {transform_indices = @transform_3, window_bounds = array<i64: 32, 4>}, {transform_indices = @transform_4, window_bounds = array<i64: 32, 4>}]} {
    %c0 = arith.constant 0 : index
    %c0_0 = arith.constant 0 : index
    %0 = vector.load %arg1[%c0, %c0_0] : memref<32x8xbf16, #tpu.memory_space<vmem>>, vector<32x8xbf16>
    %c0_1 = arith.constant 0 : index
    %c0_2 = arith.constant 0 : index
    %1 = vector.load %arg2[%c0_1, %c0_2] : memref<8x4xbf16, #tpu.memory_space<vmem>>, vector<8x4xbf16>
    %cst = arith.constant dense<0.000000e+00> : vector<32x4xf32>
    %2 = tpu.matmul %0, %1, %cst {dimension_numbers = #tpu.dot_dimension_numbers<[1], [0], [0], [1], [0, 0, 1, 1], [], []>} : vector<32x8xbf16>, vector<8x4xbf16>, vector<32x4xf32> -> vector<32x4xf32>
    %c0_3 = arith.constant 0 : index
    %c0_4 = arith.constant 0 : index
    %3 = vector.load %arg3[%c0_3, %c0_4] : memref<1x4xf32, #tpu.memory_space<vmem>>, vector<1x4xf32>
    %4 = vector.broadcast %3 : vector<1x4xf32> to vector<32x4xf32>
    %5 = arith.addf %2, %4 : vector<32x4xf32>
    %c0_5 = arith.constant 0 : index
    %c0_6 = arith.constant 0 : index
    %6 = vector.load %arg4[%c0_5, %c0_6] : memref<32x4xbf16, #tpu.memory_space<vmem>>, vector<32x4xbf16>
    %7 = arith.extf %6 : vector<32x4xbf16> to vector<32x4xf32>
    %8 = arith.addf %5, %7 : vector<32x4xf32>
    %cst_7 = arith.constant 0.000000e+00 : f32
    %9 = vector.broadcast %cst_7 : f32 to vector<32x4xf32>
    %10 = arith.maximumf %8, %9 : vector<32x4xf32>
    %11 = math.absf %8 : vector<32x4xf32>
    %cst_8 = arith.constant 0.000000e+00 : f32
    %12 = vector.broadcast %cst_8 : f32 to vector<32x4xf32>
    %13 = arith.subf %12, %11 : vector<32x4xf32>
    %14 = math.exp %13 : vector<32x4xf32>
    %15 = math.log1p %14 : vector<32x4xf32>
    %16 = arith.addf %10, %15 : vector<32x4xf32>
    %17 = math.tanh %16 : vector<32x4xf32>
    %18 = arith.mulf %8, %17 : vector<32x4xf32>
    %c0_9 = arith.constant 0 : index
    %c0_10 = arith.constant 0 : index
    %19 = vector.load %arg5[%c0_9, %c0_10] : memref<32x4xf32, #tpu.memory_space<vmem>>, vector<32x4xf32>
    tpu.vector_store %arg5[%c0_9, %c0_10], %18 {strides = array<i32>} : memref<32x4xf32, #tpu.memory_space<vmem>>, vector<32x4xf32>,
    return
  }
  func.func @transform_0(%arg0: i32) -> (i32, i32) {
    %c0_i32 = arith.constant 0 : i32
    %c0_i32_0 = arith.constant 0 : i32
    return %arg0, %c0_i32 : i32, i32
  }
  func.func @transform_1(%arg0: i32) -> (i32, i32) {
    %c0_i32 = arith.constant 0 : i32
    %c0_i32_0 = arith.constant 0 : i32
    %c0_i32_1 = arith.constant 0 : i32
    return %c0_i32, %c0_i32_0 : i32, i32
  }
  func.func @transform_2(%arg0: i32) -> (i32, i32) {
    %c0_i32 = arith.constant 0 : i32
    %c0_i32_0 = arith.constant 0 : i32
    %c0_i32_1 = arith.constant 0 : i32
    return %c0_i32, %c0_i32_0 : i32, i32
  }
  func.func @transform_3(%arg0: i32) -> (i32, i32) {
    %c0_i32 = arith.constant 0 : i32
    %c0_i32_0 = arith.constant 0 : i32
    return %arg0, %c0_i32 : i32, i32
  }
  func.func @transform_4(%arg0: i32) -> (i32, i32) {
    %c0_i32 = arith.constant 0 : i32
    %c0_i32_0 = arith.constant 0 : i32
    return %arg0, %c0_i32 : i32, i32
  }
}

module attributes {stable_mosaic.version = 11 : i64} {
  func.func @_mm_res_kernel(%arg0: i32, %arg1: memref<32x16xbf16, #tpu.memory_space<vmem>>, %arg2: memref<16x4xbf16, #tpu.memory_space<vmem>>, %arg3: memref<1x4xf32, #tpu.memory_space<vmem>>, %arg4: memref<32x4xbf16, #tpu.memory_space<vmem>>, %arg5: memref<32x4xf32, #tpu.memory_space<vmem>>) attributes {dimension_semantics = [#tpu.dimension_semantics<parallel>], iteration_bounds = array<i64: 2>, scalar_prefetch = 0 : i64, scratch_operands = 0 : i64, tpu.core_type = #tpu.core_type<tc>, window_params = [{transform_indices = @transform_0, window_bounds = array<i64: 32, 16>}, {pipeline_mode = #tpu.pipeline_mode<synchronous>, transform_indices = @transform_1, window_bounds = array<i64: 16, 4>}, {pipeline_mode = #tpu.pipeline_mode<synchronous>, transform_indices = @transform_2, window_bounds = array<i64: 1, 4>}, {transform_indices = @transform_3, window_bounds = array<i64: 32, 4>}, {transform_indices = @transform_4, window_bounds = array<i64: 32, 4>}]} {
    %c0 = arith.constant 0 : index
    %c0_0 = arith.constant 0 : index
    %0 = vector.load %arg1[%c0, %c0_0] : memref<32x16xbf16, #tpu.memory_space<vmem>>, vector<32x16xbf16>
    %c0_1 = arith.constant 0 : index
    %c0_2 = arith.constant 0 : index
    %1 = vector.load %arg2[%c0_1, %c0_2] : memref<16x4xbf16, #tpu.memory_space<vmem>>, vector<16x4xbf16>
    %cst = arith.constant dense<0.000000e+00> : vector<32x4xf32>
    %2 = tpu.matmul %0, %1, %cst {dimension_numbers = #tpu.dot_dimension_numbers<[1], [0], [0], [1], [0, 0, 1, 1], [], []>} : vector<32x16xbf16>, vector<16x4xbf16>, vector<32x4xf32> -> vector<32x4xf32>
    %c0_3 = arith.constant 0 : index
    %c0_4 = arith.constant 0 : index
    %3 = vector.load %arg3[%c0_3, %c0_4] : memref<1x4xf32, #tpu.memory_space<vmem>>, vector<1x4xf32>
    %4 = vector.broadcast %3 : vector<1x4xf32> to vector<32x4xf32>
    %5 = arith.addf %2, %4 : vector<32x4xf32>
    %c0_5 = arith.constant 0 : index
    %c0_6 = arith.constant 0 : index
    %6 = vector.load %arg4[%c0_5, %c0_6] : memref<32x4xbf16, #tpu.memory_space<vmem>>, vector<32x4xbf16>
    %7 = arith.extf %6 : vector<32x4xbf16> to vector<32x4xf32>
    %8 = arith.addf %5, %7 : vector<32x4xf32>
    %cst_7 = arith.constant 0.000000e+00 : f32
    %9 = vector.broadcast %cst_7 : f32 to vector<32x4xf32>
    %10 = arith.maximumf %8, %9 : vector<32x4xf32>
    %11 = math.absf %8 : vector<32x4xf32>
    %cst_8 = arith.constant 0.000000e+00 : f32
    %12 = vector.broadcast %cst_8 : f32 to vector<32x4xf32>
    %13 = arith.subf %12, %11 : vector<32x4xf32>
    %14 = math.exp %13 : vector<32x4xf32>
    %15 = math.log1p %14 : vector<32x4xf32>
    %16 = arith.addf %10, %15 : vector<32x4xf32>
    %17 = math.tanh %16 : vector<32x4xf32>
    %18 = arith.mulf %8, %17 : vector<32x4xf32>
    %c0_9 = arith.constant 0 : index
    %c0_10 = arith.constant 0 : index
    %19 = vector.load %arg5[%c0_9, %c0_10] : memref<32x4xf32, #tpu.memory_space<vmem>>, vector<32x4xf32>
    tpu.vector_store %arg5[%c0_9, %c0_10], %18 {strides = array<i32>} : memref<32x4xf32, #tpu.memory_space<vmem>>, vector<32x4xf32>,
    return
  }
  func.func @transform_0(%arg0: i32) -> (i32, i32) {
    %c0_i32 = arith.constant 0 : i32
    %c0_i32_0 = arith.constant 0 : i32
    return %arg0, %c0_i32 : i32, i32
  }
  func.func @transform_1(%arg0: i32) -> (i32, i32) {
    %c0_i32 = arith.constant 0 : i32
    %c0_i32_0 = arith.constant 0 : i32
    %c0_i32_1 = arith.constant 0 : i32
    return %c0_i32, %c0_i32_0 : i32, i32
  }
  func.func @transform_2(%arg0: i32) -> (i32, i32) {
    %c0_i32 = arith.constant 0 : i32
    %c0_i32_0 = arith.constant 0 : i32
    %c0_i32_1 = arith.constant 0 : i32
    return %c0_i32, %c0_i32_0 : i32, i32
  }
  func.func @transform_3(%arg0: i32) -> (i32, i32) {
    %c0_i32 = arith.constant 0 : i32
    %c0_i32_0 = arith.constant 0 : i32
    return %arg0, %c0_i32 : i32, i32
  }
  func.func @transform_4(%arg0: i32) -> (i32, i32) {
    %c0_i32 = arith.constant 0 : i32
    %c0_i32_0 = arith.constant 0 : i32
    return %arg0, %c0_i32 : i32, i32
  }
}

</mosaic_0001>

<llo_original>
// kernel: hourglassup_forward.24
$region0: #{hourglassup_forward.24}
  #allocation0 [shape = 'u32[]', space=smem, size = 0x4, offset = 0x4, fixed_abs, tag = 'smem constant byte address 0x4 - core index']
  #allocation1 [shape = 'u32[144,128]{1,0:T(1,128)}', space=vmem, size = 0x12000, scoped, tag = 'internal scratch']
  %s0 = inlined_call_operand.vmem [shape: bf16[64,108], index: 0, kind: input, shape index: {}]
  %s1 = inlined_call_operand.vmem [shape: bf16[108,8], index: 1, kind: input, shape index: {}]
  %s2 = inlined_call_operand.vmem [shape: f32[1,8], index: 2, kind: input, shape index: {}]
  %s3 = inlined_call_operand.vmem [shape: bf16[64,8], index: 3, kind: output, shape index: {}]
  %s4 = sld [smem:[#allocation0]]
  $region45: #{hourglassup_forward.24} parent=0
    _
  %s6 = ssub.s32 1, %s4
  %s7 = scalar_select 0, %s6, %s4
  loop: start=0, step=1, limit=4
  $region2: #{hourglassup_forward.24} parent=0 // loop_pre_header
    _
  $region3: #{hourglassup_forward.24} parent=0 // loop_header
    %s9 = sphi 0, %s13
    %p10 = scmp.ge.s32.totalorder %s9, 4
    %s19 = sphi 0, %s21
    %s22 = sphi 0, %s19
    %s23 = sphi 0, %s22
    %s39 = sphi 0, %s23
    %s43 = sphi 0, %s43
    %s45 = sphi 0, %s43
    %s46 = sphi 0, %s45
    %s60 = sphi 0, %s46
    %s64 = sphi 0, %s64
    %s66 = sphi 0, %s64
    %s67 = sphi 0, %s66
    %s81 = sphi 0, %s67
    %s87 = sphi 0, %s89
    %s90 = sphi 0, %s87
    %s91 = sphi 0, %s90
    %s107 = sphi 0, %s91
  $region4: #{hourglassup_forward.24} parent=0 // loop_header_branch
    %12 = sbr.rel (%p10) target = $region8
  $region5: #{hourglassup_forward.24} parent=0 // loop_body
    %s14 = ssub.s32 %s9, 1
    %s15 = ssub.s32 %s9, 2
    %s16 = sadd.s32 %s9, 1
    %s17 = ssub.s32 %s9, %s16
    %p18 = scmp.eq.s32.totalorder %s17, 0
    %s20 = sadd.s32 %s19, 1
    %s21 = scalar_select %p18, %s19, %s20
    %p24 = pneg %p18
    %p25 = scmp.eq.s32.totalorder %s9, 1
    %p26 = por %p24, %p25
    %p27 = scmp.ne.s32.totalorder %s19, %s22
    %p28 = scmp.eq.s32.totalorder %s9, 0
    %p29 = por %p27, %p28
    %p30 = scmp.ne.s32.totalorder %s19, %s22
    %p31 = scmp.eq.s32.totalorder %s14, 1
    %p32 = por %p30, %p31
    %p33 = scmp.ne.s32.totalorder %s22, %s23
    %p34 = scmp.eq.s32.totalorder %s14, 0
    %p35 = por %p33, %p34
    %p36 = scmp.ne.s32.totalorder %s22, %s23
    %p37 = scmp.eq.s32.totalorder %s15, 1
    %p38 = por %p36, %p37
    %p40 = scmp.ne.s32.totalorder %s23, %s39
    %p41 = scmp.eq.s32.totalorder %s15, 0
    %p42 = por %p40, %p41
    %s44 = sadd.s32 %s43, 1
    %p47 = scmp.eq.s32.totalorder %s9, 1
    %p48 = scmp.ne.s32.totalorder %s43, %s45
    %p49 = scmp.eq.s32.totalorder %s9, 0
    %p50 = por %p48, %p49
    %p51 = scmp.ne.s32.totalorder %s43, %s45
    %p52 = scmp.eq.s32.totalorder %s14, 1
    %p53 = por %p51, %p52
    %p54 = scmp.ne.s32.totalorder %s45, %s46
    %p55 = scmp.eq.s32.totalorder %s14, 0
    %p56 = por %p54, %p55
    %p57 = scmp.ne.s32.totalorder %s45, %s46
    %p58 = scmp.eq.s32.totalorder %s15, 1
    %p59 = por %p57, %p58
    %p61 = scmp.ne.s32.totalorder %s46, %s60
    %p62 = scmp.eq.s32.totalorder %s15, 0
    %p63 = por %p61, %p62
    %s65 = sadd.s32 %s64, 1
    %p68 = scmp.eq.s32.totalorder %s9, 1
    %p69 = scmp.ne.s32.totalorder %s64, %s66
    %p70 = scmp.eq.s32.totalorder %s9, 0
    %p71 = por %p69, %p70
    %p72 = scmp.ne.s32.totalorder %s64, %s66
    %p73 = scmp.eq.s32.totalorder %s14, 1
    %p74 = por %p72, %p73
    %p75 = scmp.ne.s32.totalorder %s66, %s67
    %p76 = scmp.eq.s32.totalorder %s14, 0
    %p77 = por %p75, %p76
    %p78 = scmp.ne.s32.totalorder %s66, %s67
    %p79 = scmp.eq.s32.totalorder %s15, 1
    %p80 = por %p78, %p79
    %p82 = scmp.ne.s32.totalorder %s67, %s81
    %p83 = scmp.eq.s32.totalorder %s15, 0
    %p84 = por %p82, %p83
    %s85 = ssub.s32 %s9, %s16
    %p86 = scmp.eq.s32.totalorder %s85, 0
    %s88 = sadd.s32 %s87, 1
    %s89 = scalar_select %p86, %s87, %s88
    %p92 = pneg %p86
    %p93 = scmp.eq.s32.totalorder %s9, 1
    %p94 = por %p92, %p93
    %p95 = scmp.ne.s32.totalorder %s87, %s90
    %p96 = scmp.eq.s32.totalorder %s9, 0
    %p97 = por %p95, %p96
    %p98 = scmp.ne.s32.totalorder %s87, %s90
    %p99 = scmp.eq.s32.totalorder %s14, 1
    %p100 = por %p98, %p99
    %p101 = scmp.ne.s32.totalorder %s90, %s91
    %p102 = scmp.eq.s32.totalorder %s14, 0
    %p103 = por %p101, %p102
    %p104 = scmp.ne.s32.totalorder %s90, %s91
    %p105 = scmp.eq.s32.totalorder %s15, 1
    %p106 = por %p104, %p105
    %p108 = scmp.ne.s32.totalorder %s91, %s107
    %p109 = scmp.eq.s32.totalorder %s15, 0
    %p110 = por %p108, %p109
    %p111 = scmp.le.s32.totalorder 1, %s9
    %p112 = scmp.lt.s32.totalorder %s9, 3
    %p113 = pnand %p111, %p112
    %p114 = pneg %p113
    // Predicated region
    $region9: #{hourglassup_forward.24} parent=5 // pred_check
      _
    $region10: #{hourglassup_forward.24} parent=5 // pred_check_branch
      %116 = sbr.rel (%p113) target = $region12
    $region11: #{hourglassup_forward.24} parent=5 // pred_region
      %s117 = ssub.s32 %s9, 1
      // Predicated region
      $region13: #{hourglassup_forward.24} parent=11 // pred_check
        %p118 = pneg %p56
      $region14: #{hourglassup_forward.24} parent=11 // pred_check_branch
        %120 = sbr.rel (%p118) target = $region16
      $region15: #{hourglassup_forward.24} parent=11 // pred_region
        _
      $region16: #{hourglassup_forward.24} parent=11 // pred_fallthru
        _
      // Predicated region
      $region17: #{hourglassup_forward.24} parent=11 // pred_check
        %p121 = pneg %p77
      $region18: #{hourglassup_forward.24} parent=11 // pred_check_branch
        %123 = sbr.rel (%p121) target = $region20
      $region19: #{hourglassup_forward.24} parent=11 // pred_region
        _
      $region20: #{hourglassup_forward.24} parent=11 // pred_fallthru
        _
    $region12: #{hourglassup_forward.24} parent=5 // pred_fallthru
      _
    %p124 = scmp.lt.s32.totalorder %s9, 2
    // Predicated region
    $region21: #{hourglassup_forward.24} parent=5 // pred_check
      %p125 = pneg %p124
    $region22: #{hourglassup_forward.24} parent=5 // pred_check_branch
      %127 = sbr.rel (%p125) target = $region24
    $region23: #{hourglassup_forward.24} parent=5 // pred_region
      // Predicated region
      $region25: #{hourglassup_forward.24} parent=23 // pred_check
        %p128 = pneg %p29
      $region26: #{hourglassup_forward.24} parent=23 // pred_check_branch
        %130 = sbr.rel (%p128) target = $region28
      $region27: #{hourglassup_forward.24} parent=23 // pred_region
        %s131 = smul.u32 4, %s9
        %p132 = scmp.lt.s32.totalorder %s131, 7
        %s133 = scalar_select %p132, %s131, 7
        %s134 = smul.addr %s133, 4
        %s135 = scalar_lea.vmem %s0, %s134
        %s136 = smul.u32 4, %s9
      $region28: #{hourglassup_forward.24} parent=23 // pred_fallthru
        _
    $region24: #{hourglassup_forward.24} parent=5 // pred_fallthru
      _
    %p137 = scmp.le.s32.totalorder 1, %s9
    %p138 = scmp.lt.s32.totalorder %s9, 3
    %p139 = pnand %p137, %p138
    %p140 = pneg %p139
    // Predicated region
    $region29: #{hourglassup_forward.24} parent=5 // pred_check
      _
    $region30: #{hourglassup_forward.24} parent=5 // pred_check_branch
      %142 = sbr.rel (%p139) target = $region32
    $region31: #{hourglassup_forward.24} parent=5 // pred_region
      %s143 = ssub.s32 %s9, 1
      %s144 = smul.u32 4, %s14
      %p145 = scmp.lt.s32.totalorder %s144, 7
      %s146 = scalar_select %p145, %s144, 7
      %s147 = smul.addr %s146, 4
      %s148 = scalar_lea.vmem %s0, %s147
      %p149 = pneg %p35
      %p150 = pneg %p32
      %p151 = pneg %p56
      %p152 = pneg %p53
      %p153 = pneg %p77
      %p154 = pneg %p74
      %p155 = pneg %p103
      %p156 = pneg %p100
      %s157 = smul.u32 4, %s14
      %p158 = scmp.lt.s32.totalorder %s157, 7
      %s159 = scalar_select %p158, %s157, 7
      %s160 = smul.addr %s159, 4
      %s161 = scalar_lea.vmem %s3, %s160
      %s162 = smul.u32 4, %s14
      %p163 = scmp.lt.s32.totalorder %s162, 7
      %s164 = scalar_select %p163, %s162, 7
      %s165 = smul.addr %s164, 4
      %s166 = scalar_lea.vmem %s0, %s165
      %s167 = smul.u32 4, %s14
      %s168 = smul.u32 4, %s14
      %p169 = scmp.lt.s32.totalorder %s168, 7
      %s170 = scalar_select %p169, %s168, 7
      %s171 = smul.addr %s170, 4
      %s172 = scalar_lea.vmem %s3, %s171
      %s173 = smul.u32 4, %s14
      %v175 = vld [vmem:[%s166] sm:$0xf]
      %v176 = vld [vmem:[%s166 + $0x4] sm:$0xf]
      %v177 = vld [vmem:[%s166 + $0x8] sm:$0xf]
      %v178 = vld [vmem:[%s166 + $0xc] sm:$0xf]
      %v179 = vld [vmem:[%s1] sm:$0xf]
      %v180 = vld [vmem:[%s1 + $0x4] sm:$0xf]
      %v181 = vld [vmem:[%s1 + $0x8] sm:$0xf]
      %v182 = vld [vmem:[%s1 + $0xc] sm:$0xf]
      %v183 = vld [vmem:[%s1 + $0x10] sm:$0xf]
      %v184 = vld [vmem:[%s1 + $0x14] sm:$0xf]
      %v185 = vld [vmem:[%s1 + $0x18] sm:$0xf]
      %v186 = vld [vmem:[%s1 + $0x1c] sm:$0xf]
      %v187 = vld [vmem:[%s1 + $0x20] sm:$0xf]
      %v188 = vld [vmem:[%s1 + $0x24] sm:$0xf]
      %v189 = vld [vmem:[%s1 + $0x28] sm:$0xf]
      %v190 = vld [vmem:[%s1 + $0x2c] sm:$0xf]
      %v191 = vld [vmem:[%s1 + $0x30] sm:$0xf]
      %v192 = vld [vmem:[%s1 + $0x34] sm:$0x3]
      %v193 = vld [vmem:[%s2] sm:$0x1]
      %v195 = vlaneseq
      %v196 = vshrl.u32 %v195, 7
      %v197 = vsub.s32 0, %v196
      %v198 = vrot.slane %v193, %v197
      %v204 = vunpack.c.l.b16 %v175
      %v205 = vunpack.c.l.b16 %v176
      %v206 = vunpack.c.l.b16 %v177
      %v207 = vunpack.c.l.b16 %v178
      %v208 = vpack.c.b16 %v205, %v204
      %v209 = vpack.c.b16 %v207, %v206
      %v224 = vunpack.c.l.b16 %v179
      %v225 = vunpack.c.l.b16 %v180
      %v226 = vunpack.c.l.b16 %v181
      %v227 = vunpack.c.l.b16 %v182
      %v228 = vunpack.c.l.b16 %v183
      %v229 = vunpack.c.l.b16 %v184
      %v230 = vunpack.c.l.b16 %v185
      %v231 = vunpack.c.l.b16 %v186
      %v232 = vunpack.c.l.b16 %v187
      %v233 = vunpack.c.l.b16 %v188
      %v234 = vunpack.c.l.b16 %v189
      %v235 = vunpack.c.l.b16 %v190
      %v236 = vunpack.c.l.b16 %v191
      %v237 = vunpack.c.l.b16 %v192
      %v238 = vpack.c.b16 %v225, %v224
      %v239 = vpack.c.b16 %v227, %v226
      %v240 = vpack.c.b16 %v229, %v228
      %v241 = vpack.c.b16 %v231, %v230
      %v242 = vpack.c.b16 %v233, %v232
      %v243 = vpack.c.b16 %v235, %v234
      %v244 = vpack.c.b16 %v237, %v236
      %vm251 = vcmask 883712
      %v253 = vsel %vm251, %v208, 0
      %v256 = vsel %vm251, %v209, 0
      %vm258 = vcmask 1045504
      %v260 = vsel %vm258, %v244, 0
      %262 = vmatprep.subr.bf16.mxu0 0
      %263 = vmatpush1.bf16.msra.mxu0 0
      %264 = vmatprep.subr.bf16.mxu0 0
      %265 = vmatpush1.bf16.msra.mxu0 %v260
      %266 = vmatprep.subr.bf16.mxu0 0
      %267 = vmatpush1.bf16.msra.mxu0 %v243
      %268 = vmatprep.subr.bf16.mxu0 0
      %269 = vmatpush1.bf16.msra.mxu0 %v242
      %270 = vmatprep.subr.bf16.mxu0 0
      %271 = vmatpush1.bf16.msra.mxu0 %v241
      %272 = vmatprep.subr.bf16.mxu0 0
      %273 = vmatpush1.bf16.msra.mxu0 %v240
      %274 = vmatprep.subr.bf16.mxu0 0
      %275 = vmatpush1.bf16.msra.mxu0 %v239
      %276 = vmatprep.subr.bf16.mxu0 0
      %277 = vmatpush1.bf16.msra.mxu0 %v238
      %278 = vmatprep.subr.bf16.mxu0 0
      %279 = vmatpush2.bf16.msra.mxu0 0
      %280 = vmatprep.subr.bf16.mxu0 0
      %281 = vmatpush2.bf16.msra.mxu0 0
      %282 = vmatprep.subr.bf16.mxu0 0
      %283 = vmatpush2.bf16.msra.mxu0 0
      %284 = vmatprep.subr.bf16.mxu0 0
      %285 = vmatpush2.bf16.msra.mxu0 0
      %286 = vmatprep.subr.bf16.mxu0 0
      %287 = vmatpush2.bf16.msra.mxu0 0
      %288 = vmatprep.subr.bf16.mxu0 0
      %289 = vmatpush2.bf16.msra.mxu0 0
      %290 = vmatprep.subr.bf16.mxu0 0
      %291 = vmatpush2.bf16.msra.mxu0 0
      %292 = vmatprep.subr.bf16.mxu0 0
      %293 = vmatpush2.bf16.msra.mxu0 0
      %294 = vmatprep.mubr.bf16.mxu0 0
      %295 = vmatmul.mubr.bf16.gmra.mxu0 %v253
      %v296 = vpop.f32.mrf.mxu0
      %v297 = vadd.f32 %v198, %v296
      %v298 = vpop.f32.mrf.mxu0
      %v299 = vpop.f32.mrf.mxu0
      %v300 = vadd.f32 %v198, %v299
      %v301 = vpop.f32.mrf.mxu0
      %302 = vmatprep.mubr.bf16.mxu0 0
      %303 = vmatmul.mubr.bf16.gmra.mxu0 %v256
      %v304 = vpop.f32.mrf.mxu0
      %v305 = vadd.f32 %v198, %v304
      %v306 = vpop.f32.mrf.mxu0
      %v307 = vpop.f32.mrf.mxu0
      %v308 = vadd.f32 %v198, %v307
      %v309 = vpop.f32.mrf.mxu0
      %310 = vdwg.mxu0
      %v311 = vpack.c.bf16 %v300, %v297
      %v312 = vpack.c.bf16 %v308, %v305
      %v315 = vunpack.c.l.b16 %v311
      %v316 = vunpack.c.h.b16 %v311
      %v317 = vunpack.c.l.b16 %v312
      %v318 = vunpack.c.h.b16 %v312
      %v319 = vpack.c.b16 %v315, %v315
      %v320 = vpack.c.b16 %v316, %v316
      %v321 = vpack.c.b16 %v317, %v317
      %v322 = vpack.c.b16 %v318, %v318
      %vm327 = vcmask 60416
      %328 = vst.msk [vmem:[%s172] sm:$0xf] %vm327, %v319
      %329 = vst.msk [vmem:[%s172 + $0x4] sm:$0xf] %vm327, %v320
      %330 = vst.msk [vmem:[%s172 + $0x8] sm:$0xf] %vm327, %v321
      %331 = vst.msk [vmem:[%s172 + $0xc] sm:$0xf] %vm327, %v322
      %s332 = smul.u32 4, %s14
      %p333 = scmp.lt.s32.totalorder %s332, 7
      %s334 = scalar_select %p333, %s332, 7
      %s335 = smul.addr %s334, 4
      %s336 = scalar_lea.vmem %s3, %s335
      // Predicated region
      $region33: #{hourglassup_forward.24} parent=31 // pred_check
        %p337 = pneg %p100
      $region34: #{hourglassup_forward.24} parent=31 // pred_check_branch
        %339 = sbr.rel (%p337) target = $region36
      $region35: #{hourglassup_forward.24} parent=31 // pred_region
        %s340 = smul.u32 4, %s14
      $region36: #{hourglassup_forward.24} parent=31 // pred_fallthru
        _
    $region32: #{hourglassup_forward.24} parent=5 // pred_fallthru
      _
    %p341 = scmp.le.s32.totalorder 2, %s9
    // Predicated region
    $region37: #{hourglassup_forward.24} parent=5 // pred_check
      %p342 = pneg %p341
    $region38: #{hourglassup_forward.24} parent=5 // pred_check_branch
      %344 = sbr.rel (%p342) target = $region40
    $region39: #{hourglassup_forward.24} parent=5 // pred_region
      %s345 = ssub.s32 %s9, 2
      // Predicated region
      $region41: #{hourglassup_forward.24} parent=39 // pred_check
        %p346 = pneg %p106
      $region42: #{hourglassup_forward.24} parent=39 // pred_check_branch
        %348 = sbr.rel (%p346) target = $region44
      $region43: #{hourglassup_forward.24} parent=39 // pred_region
        %s349 = smul.u32 4, %s15
        %p350 = scmp.lt.s32.totalorder %s349, 7
        %s351 = scalar_select %p350, %s349, 7
        %s352 = smul.addr %s351, 4
        %s353 = scalar_lea.vmem %s3, %s352
      $region44: #{hourglassup_forward.24} parent=39 // pred_fallthru
        _
    $region40: #{hourglassup_forward.24} parent=5 // pred_fallthru
      _
  $region6: #{hourglassup_forward.24} parent=0 // loop_footer
    %s13 = sadd.s32 1, %s9
  $region7: #{hourglassup_forward.24} parent=0 // loop_footer_branch
    %8 = sbr.rel target = $region3
  $region8: #{hourglassup_forward.24} parent=0 // loop_exit
    _

// kernel: hourglassup_forward.25
$region0: #{hourglassup_forward.25}
  #allocation0 [shape = 'u32[]', space=smem, size = 0x4, offset = 0x4, fixed_abs, tag = 'smem constant byte address 0x4 - core index']
  #allocation1 [shape = 'u32[144,128]{1,0:T(1,128)}', space=vmem, size = 0x12000, scoped, tag = 'internal scratch']
  %s0 = inlined_call_operand.vmem [shape: bf16[64,432], index: 0, kind: input, shape index: {}]
  %s1 = inlined_call_operand.vmem [shape: bf16[432,8], index: 1, kind: input, shape index: {}]
  %s2 = inlined_call_operand.vmem [shape: f32[1,8], index: 2, kind: input, shape index: {}]
  %s3 = inlined_call_operand.vmem [shape: bf16[64,8], index: 3, kind: output, shape index: {}]
  %s4 = sld [smem:[#allocation0]]
  $region45: #{hourglassup_forward.25} parent=0
    _
  %s6 = ssub.s32 1, %s4
  %s7 = scalar_select 0, %s6, %s4
  loop: start=0, step=1, limit=4
  $region2: #{hourglassup_forward.25} parent=0 // loop_pre_header
    _
  $region3: #{hourglassup_forward.25} parent=0 // loop_header
    %s9 = sphi 0, %s13
    %p10 = scmp.ge.s32.totalorder %s9, 4
    %s19 = sphi 0, %s21
    %s22 = sphi 0, %s19
    %s23 = sphi 0, %s22
    %s39 = sphi 0, %s23
    %s43 = sphi 0, %s43
    %s45 = sphi 0, %s43
    %s46 = sphi 0, %s45
    %s60 = sphi 0, %s46
    %s64 = sphi 0, %s64
    %s66 = sphi 0, %s64
    %s67 = sphi 0, %s66
    %s81 = sphi 0, %s67
    %s87 = sphi 0, %s89
    %s90 = sphi 0, %s87
    %s91 = sphi 0, %s90
    %s107 = sphi 0, %s91
  $region4: #{hourglassup_forward.25} parent=0 // loop_header_branch
    %12 = sbr.rel (%p10) target = $region8
  $region5: #{hourglassup_forward.25} parent=0 // loop_body
    %s14 = ssub.s32 %s9, 1
    %s15 = ssub.s32 %s9, 2
    %s16 = sadd.s32 %s9, 1
    %s17 = ssub.s32 %s9, %s16
    %p18 = scmp.eq.s32.totalorder %s17, 0
    %s20 = sadd.s32 %s19, 1
    %s21 = scalar_select %p18, %s19, %s20
    %p24 = pneg %p18
    %p25 = scmp.eq.s32.totalorder %s9, 1
    %p26 = por %p24, %p25
    %p27 = scmp.ne.s32.totalorder %s19, %s22
    %p28 = scmp.eq.s32.totalorder %s9, 0
    %p29 = por %p27, %p28
    %p30 = scmp.ne.s32.totalorder %s19, %s22
    %p31 = scmp.eq.s32.totalorder %s14, 1
    %p32 = por %p30, %p31
    %p33 = scmp.ne.s32.totalorder %s22, %s23
    %p34 = scmp.eq.s32.totalorder %s14, 0
    %p35 = por %p33, %p34
    %p36 = scmp.ne.s32.totalorder %s22, %s23
    %p37 = scmp.eq.s32.totalorder %s15, 1
    %p38 = por %p36, %p37
    %p40 = scmp.ne.s32.totalorder %s23, %s39
    %p41 = scmp.eq.s32.totalorder %s15, 0
    %p42 = por %p40, %p41
    %s44 = sadd.s32 %s43, 1
    %p47 = scmp.eq.s32.totalorder %s9, 1
    %p48 = scmp.ne.s32.totalorder %s43, %s45
    %p49 = scmp.eq.s32.totalorder %s9, 0
    %p50 = por %p48, %p49
    %p51 = scmp.ne.s32.totalorder %s43, %s45
    %p52 = scmp.eq.s32.totalorder %s14, 1
    %p53 = por %p51, %p52
    %p54 = scmp.ne.s32.totalorder %s45, %s46
    %p55 = scmp.eq.s32.totalorder %s14, 0
    %p56 = por %p54, %p55
    %p57 = scmp.ne.s32.totalorder %s45, %s46
    %p58 = scmp.eq.s32.totalorder %s15, 1
    %p59 = por %p57, %p58
    %p61 = scmp.ne.s32.totalorder %s46, %s60
    %p62 = scmp.eq.s32.totalorder %s15, 0
    %p63 = por %p61, %p62
    %s65 = sadd.s32 %s64, 1
    %p68 = scmp.eq.s32.totalorder %s9, 1
    %p69 = scmp.ne.s32.totalorder %s64, %s66
    %p70 = scmp.eq.s32.totalorder %s9, 0
    %p71 = por %p69, %p70
    %p72 = scmp.ne.s32.totalorder %s64, %s66
    %p73 = scmp.eq.s32.totalorder %s14, 1
    %p74 = por %p72, %p73
    %p75 = scmp.ne.s32.totalorder %s66, %s67
    %p76 = scmp.eq.s32.totalorder %s14, 0
    %p77 = por %p75, %p76
    %p78 = scmp.ne.s32.totalorder %s66, %s67
    %p79 = scmp.eq.s32.totalorder %s15, 1
    %p80 = por %p78, %p79
    %p82 = scmp.ne.s32.totalorder %s67, %s81
    %p83 = scmp.eq.s32.totalorder %s15, 0
    %p84 = por %p82, %p83
    %s85 = ssub.s32 %s9, %s16
    %p86 = scmp.eq.s32.totalorder %s85, 0
    %s88 = sadd.s32 %s87, 1
    %s89 = scalar_select %p86, %s87, %s88
    %p92 = pneg %p86
    %p93 = scmp.eq.s32.totalorder %s9, 1
    %p94 = por %p92, %p93
    %p95 = scmp.ne.s32.totalorder %s87, %s90
    %p96 = scmp.eq.s32.totalorder %s9, 0
    %p97 = por %p95, %p96
    %p98 = scmp.ne.s32.totalorder %s87, %s90
    %p99 = scmp.eq.s32.totalorder %s14, 1
    %p100 = por %p98, %p99
    %p101 = scmp.ne.s32.totalorder %s90, %s91
    %p102 = scmp.eq.s32.totalorder %s14, 0
    %p103 = por %p101, %p102
    %p104 = scmp.ne.s32.totalorder %s90, %s91
    %p105 = scmp.eq.s32.totalorder %s15, 1
    %p106 = por %p104, %p105
    %p108 = scmp.ne.s32.totalorder %s91, %s107
    %p109 = scmp.eq.s32.totalorder %s15, 0
    %p110 = por %p108, %p109
    %p111 = scmp.le.s32.totalorder 1, %s9
    %p112 = scmp.lt.s32.totalorder %s9, 3
    %p113 = pnand %p111, %p112
    %p114 = pneg %p113
    // Predicated region
    $region9: #{hourglassup_forward.25} parent=5 // pred_check
      _
    $region10: #{hourglassup_forward.25} parent=5 // pred_check_branch
      %116 = sbr.rel (%p113) target = $region12
    $region11: #{hourglassup_forward.25} parent=5 // pred_region
      %s117 = ssub.s32 %s9, 1
      // Predicated region
      $region13: #{hourglassup_forward.25} parent=11 // pred_check
        %p118 = pneg %p56
      $region14: #{hourglassup_forward.25} parent=11 // pred_check_branch
        %120 = sbr.rel (%p118) target = $region16
      $region15: #{hourglassup_forward.25} parent=11 // pred_region
        _
      $region16: #{hourglassup_forward.25} parent=11 // pred_fallthru
        _
      // Predicated region
      $region17: #{hourglassup_forward.25} parent=11 // pred_check
        %p121 = pneg %p77
      $region18: #{hourglassup_forward.25} parent=11 // pred_check_branch
        %123 = sbr.rel (%p121) target = $region20
      $region19: #{hourglassup_forward.25} parent=11 // pred_region
        _
      $region20: #{hourglassup_forward.25} parent=11 // pred_fallthru
        _
    $region12: #{hourglassup_forward.25} parent=5 // pred_fallthru
      _
    %p124 = scmp.lt.s32.totalorder %s9, 2
    // Predicated region
    $region21: #{hourglassup_forward.25} parent=5 // pred_check
      %p125 = pneg %p124
    $region22: #{hourglassup_forward.25} parent=5 // pred_check_branch
      %127 = sbr.rel (%p125) target = $region24
    $region23: #{hourglassup_forward.25} parent=5 // pred_region
      // Predicated region
      $region25: #{hourglassup_forward.25} parent=23 // pred_check
        %p128 = pneg %p29
      $region26: #{hourglassup_forward.25} parent=23 // pred_check_branch
        %130 = sbr.rel (%p128) target = $region28
      $region27: #{hourglassup_forward.25} parent=23 // pred_region
        %s131 = smul.u32 4, %s9
        %p132 = scmp.lt.s32.totalorder %s131, 7
        %s133 = scalar_select %p132, %s131, 7
        %s134 = smul.addr %s133, 4
        %s135 = smul.addr %s134, 4
        %s136 = scalar_lea.vmem %s0, %s135
        %s137 = smul.u32 4, %s9
      $region28: #{hourglassup_forward.25} parent=23 // pred_fallthru
        _
    $region24: #{hourglassup_forward.25} parent=5 // pred_fallthru
      _
    %p138 = scmp.le.s32.totalorder 1, %s9
    %p139 = scmp.lt.s32.totalorder %s9, 3
    %p140 = pnand %p138, %p139
    %p141 = pneg %p140
    // Predicated region
    $region29: #{hourglassup_forward.25} parent=5 // pred_check
      _
    $region30: #{hourglassup_forward.25} parent=5 // pred_check_branch
      %143 = sbr.rel (%p140) target = $region32
    $region31: #{hourglassup_forward.25} parent=5 // pred_region
      %s144 = ssub.s32 %s9, 1
      %s145 = smul.u32 4, %s14
      %p146 = scmp.lt.s32.totalorder %s145, 7
      %s147 = scalar_select %p146, %s145, 7
      %s148 = smul.addr %s147, 4
      %s149 = smul.addr %s148, 4
      %s150 = scalar_lea.vmem %s0, %s149
      %p151 = pneg %p35
      %p152 = pneg %p32
      %p153 = pneg %p56
      %p154 = pneg %p53
      %p155 = pneg %p77
      %p156 = pneg %p74
      %p157 = pneg %p103
      %p158 = pneg %p100
      %s159 = smul.u32 4, %s14
      %p160 = scmp.lt.s32.totalorder %s159, 7
      %s161 = scalar_select %p160, %s159, 7
      %s162 = smul.addr %s161, 4
      %s163 = scalar_lea.vmem %s3, %s162
      %s164 = smul.u32 4, %s14
      %p165 = scmp.lt.s32.totalorder %s164, 7
      %s166 = scalar_select %p165, %s164, 7
      %s167 = smul.addr %s166, 4
      %s168 = smul.addr %s167, 4
      %s169 = scalar_lea.vmem %s0, %s168
      %s170 = smul.u32 4, %s14
      %s171 = smul.u32 4, %s14
      %p172 = scmp.lt.s32.totalorder %s171, 7
      %s173 = scalar_select %p172, %s171, 7
      %s174 = smul.addr %s173, 4
      %s175 = scalar_lea.vmem %s3, %s174
      %s176 = smul.u32 4, %s14
      %v178 = vld [vmem:[%s169] sm:$0xff]
      %v179 = vld [vmem:[%s169 + $0x8] sm:$0xff]
      %v180 = vld [vmem:[%s169 + $0x10] sm:$0xff]
      %v181 = vld [vmem:[%s169 + $0x18] sm:$0xff]
      %v182 = vld [vmem:[%s169 + $0x20] sm:$0xff]
      %v183 = vld [vmem:[%s169 + $0x28] sm:$0xff]
      %v184 = vld [vmem:[%s169 + $0x30] sm:$0xff]
      %v185 = vld [vmem:[%s169 + $0x38] sm:$0xff]
      %v186 = vld [vmem:[%s1] sm:$0xf]
      %v187 = vld [vmem:[%s1 + $0x4] sm:$0xf]
      %v188 = vld [vmem:[%s1 + $0x8] sm:$0xf]
      %v189 = vld [vmem:[%s1 + $0xc] sm:$0xf]
      %v190 = vld [vmem:[%s1 + $0x10] sm:$0xf]
      %v191 = vld [vmem:[%s1 + $0x14] sm:$0xf]
      %v192 = vld [vmem:[%s1 + $0x18] sm:$0xf]
      %v193 = vld [vmem:[%s1 + $0x1c] sm:$0xf]
      %v194 = vld [vmem:[%s1 + $0x20] sm:$0xf]
      %v195 = vld [vmem:[%s1 + $0x24] sm:$0xf]
      %v196 = vld [vmem:[%s1 + $0x28] sm:$0xf]
      %v197 = vld [vmem:[%s1 + $0x2c] sm:$0xf]
      %v198 = vld [vmem:[%s1 + $0x30] sm:$0xf]
      %v199 = vld [vmem:[%s1 + $0x34] sm:$0xf]
      %v200 = vld [vmem:[%s1 + $0x38] sm:$0xf]
      %v201 = vld [vmem:[%s1 + $0x3c] sm:$0xf]
      %v202 = vld [vmem:[%s1 + $0x40] sm:$0xf]
      %v203 = vld [vmem:[%s1 + $0x44] sm:$0xf]
      %v204 = vld [vmem:[%s1 + $0x48] sm:$0xf]
      %v205 = vld [vmem:[%s1 + $0x4c] sm:$0xf]
      %v206 = vld [vmem:[%s1 + $0x50] sm:$0xf]
      %v207 = vld [vmem:[%s1 + $0x54] sm:$0xf]
      %v208 = vld [vmem:[%s1 + $0x58] sm:$0xf]
      %v209 = vld [vmem:[%s1 + $0x5c] sm:$0xf]
      %v210 = vld [vmem:[%s1 + $0x60] sm:$0xf]
      %v211 = vld [vmem:[%s1 + $0x64] sm:$0xf]
      %v212 = vld [vmem:[%s1 + $0x68] sm:$0xf]
      %v213 = vld [vmem:[%s1 + $0x6c] sm:$0xf]
      %v214 = vld [vmem:[%s1 + $0x70] sm:$0xf]
      %v215 = vld [vmem:[%s1 + $0x74] sm:$0xf]
      %v216 = vld [vmem:[%s1 + $0x78] sm:$0xf]
      %v217 = vld [vmem:[%s1 + $0x7c] sm:$0xf]
      %v218 = vld [vmem:[%s1 + $0x80] sm:$0xf]
      %v219 = vld [vmem:[%s1 + $0x84] sm:$0xf]
      %v220 = vld [vmem:[%s1 + $0x88] sm:$0xf]
      %v221 = vld [vmem:[%s1 + $0x8c] sm:$0xf]
      %v222 = vld [vmem:[%s1 + $0x90] sm:$0xf]
      %v223 = vld [vmem:[%s1 + $0x94] sm:$0xf]
      %v224 = vld [vmem:[%s1 + $0x98] sm:$0xf]
      %v225 = vld [vmem:[%s1 + $0x9c] sm:$0xf]
      %v226 = vld [vmem:[%s1 + $0xa0] sm:$0xf]
      %v227 = vld [vmem:[%s1 + $0xa4] sm:$0xf]
      %v228 = vld [vmem:[%s1 + $0xa8] sm:$0xf]
      %v229 = vld [vmem:[%s1 + $0xac] sm:$0xf]
      %v230 = vld [vmem:[%s1 + $0xb0] sm:$0xf]
      %v231 = vld [vmem:[%s1 + $0xb4] sm:$0xf]
      %v232 = vld [vmem:[%s1 + $0xb8] sm:$0xf]
      %v233 = vld [vmem:[%s1 + $0xbc] sm:$0xf]
      %v234 = vld [vmem:[%s1 + $0xc0] sm:$0xf]
      %v235 = vld [vmem:[%s1 + $0xc4] sm:$0xf]
      %v236 = vld [vmem:[%s1 + $0xc8] sm:$0xf]
      %v237 = vld [vmem:[%s1 + $0xcc] sm:$0xf]
      %v238 = vld [vmem:[%s1 + $0xd0] sm:$0xf]
      %v239 = vld [vmem:[%s1 + $0xd4] sm:$0xf]
      %v240 = vld [vmem:[%s2] sm:$0x1]
      %v242 = vlaneseq
      %v243 = vshrl.u32 %v242, 7
      %v244 = vsub.s32 0, %v243
      %v245 = vrot.slane %v240, %v244
      %v255 = vunpack.c.l.b16 %v178
      %v256 = vunpack.c.h.b16 %v178
      %v257 = vunpack.c.l.b16 %v179
      %v258 = vunpack.c.h.b16 %v179
      %v259 = vunpack.c.l.b16 %v180
      %v260 = vunpack.c.h.b16 %v180
      %v261 = vunpack.c.l.b16 %v181
      %v262 = vunpack.c.h.b16 %v181
      %v263 = vunpack.c.l.b16 %v182
      %v264 = vunpack.c.h.b16 %v182
      %v265 = vunpack.c.l.b16 %v183
      %v266 = vunpack.c.h.b16 %v183
      %v267 = vunpack.c.l.b16 %v184
      %v268 = vunpack.c.h.b16 %v184
      %v269 = vunpack.c.l.b16 %v185
      %v270 = vunpack.c.h.b16 %v185
      %v271 = vpack.c.b16 %v259, %v255
      %v272 = vpack.c.b16 %v260, %v256
      %v273 = vpack.c.b16 %v261, %v257
      %v274 = vpack.c.b16 %v262, %v258
      %v275 = vpack.c.b16 %v267, %v263
      %v276 = vpack.c.b16 %v268, %v264
      %v277 = vpack.c.b16 %v269, %v265
      %v278 = vpack.c.b16 %v270, %v266
      %v339 = vunpack.c.l.b16 %v186
      %v340 = vunpack.c.l.b16 %v187
      %v341 = vunpack.c.l.b16 %v188
      %v342 = vunpack.c.l.b16 %v189
      %v343 = vunpack.c.l.b16 %v190
      %v344 = vunpack.c.l.b16 %v191
      %v345 = vunpack.c.l.b16 %v192
      %v346 = vunpack.c.l.b16 %v193
      %v347 = vunpack.c.l.b16 %v194
      %v348 = vunpack.c.l.b16 %v195
      %v349 = vunpack.c.l.b16 %v196
      %v350 = vunpack.c.l.b16 %v197
      %v351 = vunpack.c.l.b16 %v198
      %v352 = vunpack.c.l.b16 %v199
      %v353 = vunpack.c.l.b16 %v200
      %v354 = vunpack.c.l.b16 %v201
      %v355 = vunpack.c.l.b16 %v202
      %v356 = vunpack.c.l.b16 %v203
      %v357 = vunpack.c.l.b16 %v204
      %v358 = vunpack.c.l.b16 %v205
      %v359 = vunpack.c.l.b16 %v206
      %v360 = vunpack.c.l.b16 %v207
      %v361 = vunpack.c.l.b16 %v208
      %v362 = vunpack.c.l.b16 %v209
      %v363 = vunpack.c.l.b16 %v210
      %v364 = vunpack.c.l.b16 %v211
      %v365 = vunpack.c.l.b16 %v212
      %v366 = vunpack.c.l.b16 %v213
      %v367 = vunpack.c.l.b16 %v214
      %v368 = vunpack.c.l.b16 %v215
      %v369 = vunpack.c.l.b16 %v216
      %v370 = vunpack.c.l.b16 %v217
      %v371 = vunpack.c.l.b16 %v218
      %v372 = vunpack.c.l.b16 %v219
      %v373 = vunpack.c.l.b16 %v220
      %v374 = vunpack.c.l.b16 %v221
      %v375 = vunpack.c.l.b16 %v222
      %v376 = vunpack.c.l.b16 %v223
      %v377 = vunpack.c.l.b16 %v224
      %v378 = vunpack.c.l.b16 %v225
      %v379 = vunpack.c.l.b16 %v226
      %v380 = vunpack.c.l.b16 %v227
      %v381 = vunpack.c.l.b16 %v228
      %v382 = vunpack.c.l.b16 %v229
      %v383 = vunpack.c.l.b16 %v230
      %v384 = vunpack.c.l.b16 %v231
      %v385 = vunpack.c.l.b16 %v232
      %v386 = vunpack.c.l.b16 %v233
      %v387 = vunpack.c.l.b16 %v234
      %v388 = vunpack.c.l.b16 %v235
      %v389 = vunpack.c.l.b16 %v236
      %v390 = vunpack.c.l.b16 %v237
      %v391 = vunpack.c.l.b16 %v238
      %v392 = vunpack.c.l.b16 %v239
      %v393 = vpack.c.b16 %v340, %v339
      %v394 = vpack.c.b16 %v342, %v341
      %v395 = vpack.c.b16 %v344, %v343
      %v396 = vpack.c.b16 %v346, %v345
      %v397 = vpack.c.b16 %v348, %v347
      %v398 = vpack.c.b16 %v350, %v349
      %v399 = vpack.c.b16 %v352, %v351
      %v400 = vpack.c.b16 %v354, %v353
      %v401 = vpack.c.b16 %v356, %v355
      %v402 = vpack.c.b16 %v358, %v357
      %v403 = vpack.c.b16 %v360, %v359
      %v404 = vpack.c.b16 %v362, %v361
      %v405 = vpack.c.b16 %v364, %v363
      %v406 = vpack.c.b16 %v366, %v365
      %v407 = vpack.c.b16 %v368, %v367
      %v408 = vpack.c.b16 %v370, %v369
      %v409 = vpack.c.b16 %v372, %v371
      %v410 = vpack.c.b16 %v374, %v373
      %v411 = vpack.c.b16 %v376, %v375
      %v412 = vpack.c.b16 %v378, %v377
      %v413 = vpack.c.b16 %v380, %v379
      %v414 = vpack.c.b16 %v382, %v381
      %v415 = vpack.c.b16 %v384, %v383
      %v416 = vpack.c.b16 %v386, %v385
      %v417 = vpack.c.b16 %v388, %v387
      %v418 = vpack.c.b16 %v390, %v389
      %v419 = vpack.c.b16 %v392, %v391
      %vm447 = vcmask 392192
      %v449 = vsel %vm447, %v274, 0
      %v452 = vsel %vm447, %v278, 0
      %454 = vmatprep.subr.bf16.mxu0 0
      %455 = vmatpush1.bf16.msra.mxu0 %v400
      %456 = vmatprep.subr.bf16.mxu0 0
      %457 = vmatpush1.bf16.msra.mxu0 %v399
      %458 = vmatprep.subr.bf16.mxu0 0
      %459 = vmatpush1.bf16.msra.mxu0 %v398
      %460 = vmatprep.subr.bf16.mxu0 0
      %461 = vmatpush1.bf16.msra.mxu0 %v397
      %462 = vmatprep.subr.bf16.mxu0 0
      %463 = vmatpush1.bf16.msra.mxu0 %v396
      %464 = vmatprep.subr.bf16.mxu0 0
      %465 = vmatpush1.bf16.msra.mxu0 %v395
      %466 = vmatprep.subr.bf16.mxu0 0
      %467 = vmatpush1.bf16.msra.mxu0 %v394
      %468 = vmatprep.subr.bf16.mxu0 0
      %469 = vmatpush1.bf16.msra.mxu0 %v393
      %470 = vmatprep.subr.bf16.mxu0 0
      %471 = vmatpush2.bf16.msra.mxu0 %v408
      %472 = vmatprep.subr.bf16.mxu0 0
      %473 = vmatpush2.bf16.msra.mxu0 %v407
      %474 = vmatprep.subr.bf16.mxu0 0
      %475 = vmatpush2.bf16.msra.mxu0 %v406
      %476 = vmatprep.subr.bf16.mxu0 0
      %477 = vmatpush2.bf16.msra.mxu0 %v405
      %478 = vmatprep.subr.bf16.mxu0 0
      %479 = vmatpush2.bf16.msra.mxu0 %v404
      %480 = vmatprep.subr.bf16.mxu0 0
      %481 = vmatpush2.bf16.msra.mxu0 %v403
      %482 = vmatprep.subr.bf16.mxu0 0
      %483 = vmatpush2.bf16.msra.mxu0 %v402
      %484 = vmatprep.subr.bf16.mxu0 0
      %485 = vmatpush2.bf16.msra.mxu0 %v401
      %486 = vmatprep.mubr.bf16.mxu0 %v272
      %487 = vmatmul.mubr.bf16.gmra.mxu0 %v271
      %v488 = vpop.f32.mrf.mxu0
      %v489 = vadd.f32 %v245, %v488
      %v490 = vpop.f32.mrf.mxu0
      %v491 = vpop.f32.mrf.mxu0
      %v492 = vadd.f32 %v245, %v491
      %v493 = vpop.f32.mrf.mxu0
      %494 = vmatprep.mubr.bf16.mxu0 %v276
      %495 = vmatmul.mubr.bf16.gmra.mxu0 %v275
      %v496 = vpop.f32.mrf.mxu0
      %v497 = vadd.f32 %v245, %v496
      %v498 = vpop.f32.mrf.mxu0
      %v499 = vpop.f32.mrf.mxu0
      %v500 = vadd.f32 %v245, %v499
      %v501 = vpop.f32.mrf.mxu0
      %502 = vdwg.mxu0
      %503 = vmatprep.subr.bf16.mxu0 0
      %504 = vmatpush1.bf16.msra.mxu0 %v416
      %505 = vmatprep.subr.bf16.mxu0 0
      %506 = vmatpush1.bf16.msra.mxu0 %v415
      %507 = vmatprep.subr.bf16.mxu0 0
      %508 = vmatpush1.bf16.msra.mxu0 %v414
      %509 = vmatprep.subr.bf16.mxu0 0
      %510 = vmatpush1.bf16.msra.mxu0 %v413
      %511 = vmatprep.subr.bf16.mxu0 0
      %512 = vmatpush1.bf16.msra.mxu0 %v412
      %513 = vmatprep.subr.bf16.mxu0 0
      %514 = vmatpush1.bf16.msra.mxu0 %v411
      %515 = vmatprep.subr.bf16.mxu0 0
      %516 = vmatpush1.bf16.msra.mxu0 %v410
      %517 = vmatprep.subr.bf16.mxu0 0
      %518 = vmatpush1.bf16.msra.mxu0 %v409
      %519 = vmatprep.subr.bf16.mxu0 0
      %520 = vmatpush2.bf16.msra.mxu0 0
      %521 = vmatprep.subr.bf16.mxu0 0
      %522 = vmatpush2.bf16.msra.mxu0 0
      %523 = vmatprep.subr.bf16.mxu0 0
      %524 = vmatpush2.bf16.msra.mxu0 0
      %525 = vmatprep.subr.bf16.mxu0 0
      %526 = vmatpush2.bf16.msra.mxu0 0
      %527 = vmatprep.subr.bf16.mxu0 0
      %528 = vmatpush2.bf16.msra.mxu0 0
      %529 = vmatprep.subr.bf16.mxu0 0
      %530 = vmatpush2.bf16.msra.mxu0 %v419
      %531 = vmatprep.subr.bf16.mxu0 0
      %532 = vmatpush2.bf16.msra.mxu0 %v418
      %533 = vmatprep.subr.bf16.mxu0 0
      %534 = vmatpush2.bf16.msra.mxu0 %v417
      %535 = vmatprep.mubr.bf16.mxu0 %v449
      %536 = vmatmul.mubr.bf16.gmra.mxu0 %v273
      %v537 = vpop.f32.mrf.mxu0
      %v538 = vadd.f32 %v489, %v537
      %v539 = vpop.f32.mrf.mxu0
      %v540 = vpop.f32.mrf.mxu0
      %v541 = vadd.f32 %v492, %v540
      %v542 = vpop.f32.mrf.mxu0
      %543 = vmatprep.mubr.bf16.mxu0 %v452
      %544 = vmatmul.mubr.bf16.gmra.mxu0 %v277
      %v545 = vpop.f32.mrf.mxu0
      %v546 = vadd.f32 %v497, %v545
      %v547 = vpop.f32.mrf.mxu0
      %v548 = vpop.f32.mrf.mxu0
      %v549 = vadd.f32 %v500, %v548
      %v550 = vpop.f32.mrf.mxu0
      %551 = vdwg.mxu0
      %v552 = vmax.f32 %v538, 0.0
      %v553 = vmax.f32 %v541, 0.0
      %v554 = vmax.f32 %v546, 0.0
      %v555 = vmax.f32 %v549, 0.0
      %v556 = vand.u32 2147483647, %v538
      %v557 = vand.u32 2147483647, %v541
      %v558 = vand.u32 2147483647, %v546
      %v559 = vand.u32 2147483647, %v549
      %v560 = vsub.f32 0.0, %v556
      %v561 = vsub.f32 0.0, %v557
      %v562 = vsub.f32 0.0, %v558
      %v563 = vsub.f32 0.0, %v559
      %v564 = vmul.f32 %v560, 1.442695
      %v565 = vpow.pop %v564
      %v566 = vmul.f32 %v561, 1.442695
      %v567 = vpow.pop %v566
      %v568 = vmul.f32 %v562, 1.442695
      %v569 = vpow.pop %v568
      %v570 = vmul.f32 %v563, 1.442695
      %v571 = vpow.pop %v570
      %v572 = vadd.f32 %v565, 1.0
      %v573 = vlog2.pop %v572
      %v574 = vmul.f32 %v573, 0.6931472
      %v575 = vmul.f32 -0.5, %v565
      %v576 = vadd.f32 %v575, 1.0
      %v577 = vmul.f32 %v576, %v565
      %v578 = vand.u32 2147483647, %v565
      %vm579 = vcmp.lt.f32.partialorder %v578, 0.0004427343
      %v580 = vsel %vm579, %v577, %v574
      %v581 = vadd.f32 %v567, 1.0
      %v582 = vlog2.pop %v581
      %v583 = vmul.f32 %v582, 0.6931472
      %v584 = vmul.f32 -0.5, %v567
      %v585 = vadd.f32 %v584, 1.0
      %v586 = vmul.f32 %v585, %v567
      %v587 = vand.u32 2147483647, %v567
      %vm588 = vcmp.lt.f32.partialorder %v587, 0.0004427343
      %v589 = vsel %vm588, %v586, %v583
      %v590 = vadd.f32 %v569, 1.0
      %v591 = vlog2.pop %v590
      %v592 = vmul.f32 %v591, 0.6931472
      %v593 = vmul.f32 -0.5, %v569
      %v594 = vadd.f32 %v593, 1.0
      %v595 = vmul.f32 %v594, %v569
      %v596 = vand.u32 2147483647, %v569
      %vm597 = vcmp.lt.f32.partialorder %v596, 0.0004427343
      %v598 = vsel %vm597, %v595, %v592
      %v599 = vadd.f32 %v571, 1.0
      %v600 = vlog2.pop %v599
      %v601 = vmul.f32 %v600, 0.6931472
      %v602 = vmul.f32 -0.5, %v571
      %v603 = vadd.f32 %v602, 1.0
      %v604 = vmul.f32 %v603, %v571
      %v605 = vand.u32 2147483647, %v571
      %vm606 = vcmp.lt.f32.partialorder %v605, 0.0004427343
      %v607 = vsel %vm606, %v604, %v601
      %v608 = vadd.f32 %v552, %v580
      %v609 = vadd.f32 %v553, %v589
      %v610 = vadd.f32 %v554, %v598
      %v611 = vadd.f32 %v555, %v607
      %v612 = vtanh.pop %v608
      %v613 = vtanh.pop %v609
      %v614 = vtanh.pop %v610
      %v615 = vtanh.pop %v611
      %v616 = vmul.f32 %v538, %v612
      %v617 = vmul.f32 %v541, %v613
      %v618 = vmul.f32 %v546, %v614
      %v619 = vmul.f32 %v549, %v615
      %v620 = vpack.c.bf16 %v617, %v616
      %v621 = vpack.c.bf16 %v619, %v618
      %v624 = vunpack.c.l.b16 %v620
      %v625 = vunpack.c.h.b16 %v620
      %v626 = vunpack.c.l.b16 %v621
      %v627 = vunpack.c.h.b16 %v621
      %v628 = vpack.c.b16 %v624, %v624
      %v629 = vpack.c.b16 %v625, %v625
      %v630 = vpack.c.b16 %v626, %v626
      %v631 = vpack.c.b16 %v627, %v627
      %vm636 = vcmask 60416
      %637 = vst.msk [vmem:[%s175] sm:$0xf] %vm636, %v628
      %638 = vst.msk [vmem:[%s175 + $0x4] sm:$0xf] %vm636, %v629
      %639 = vst.msk [vmem:[%s175 + $0x8] sm:$0xf] %vm636, %v630
      %640 = vst.msk [vmem:[%s175 + $0xc] sm:$0xf] %vm636, %v631
      %s641 = smul.u32 4, %s14
      %p642 = scmp.lt.s32.totalorder %s641, 7
      %s643 = scalar_select %p642, %s641, 7
      %s644 = smul.addr %s643, 4
      %s645 = scalar_lea.vmem %s3, %s644
      // Predicated region
      $region33: #{hourglassup_forward.25} parent=31 // pred_check
        %p646 = pneg %p100
      $region34: #{hourglassup_forward.25} parent=31 // pred_check_branch
        %648 = sbr.rel (%p646) target = $region36
      $region35: #{hourglassup_forward.25} parent=31 // pred_region
        %s649 = smul.u32 4, %s14
      $region36: #{hourglassup_forward.25} parent=31 // pred_fallthru
        _
    $region32: #{hourglassup_forward.25} parent=5 // pred_fallthru
      _
    %p650 = scmp.le.s32.totalorder 2, %s9
    // Predicated region
    $region37: #{hourglassup_forward.25} parent=5 // pred_check
      %p651 = pneg %p650
    $region38: #{hourglassup_forward.25} parent=5 // pred_check_branch
      %653 = sbr.rel (%p651) target = $region40
    $region39: #{hourglassup_forward.25} parent=5 // pred_region
      %s654 = ssub.s32 %s9, 2
      // Predicated region
      $region41: #{hourglassup_forward.25} parent=39 // pred_check
        %p655 = pneg %p106
      $region42: #{hourglassup_forward.25} parent=39 // pred_check_branch
        %657 = sbr.rel (%p655) target = $region44
      $region43: #{hourglassup_forward.25} parent=39 // pred_region
        %s658 = smul.u32 4, %s15
        %p659 = scmp.lt.s32.totalorder %s658, 7
        %s660 = scalar_select %p659, %s658, 7
        %s661 = smul.addr %s660, 4
        %s662 = scalar_lea.vmem %s3, %s661
      $region44: #{hourglassup_forward.25} parent=39 // pred_fallthru
        _
    $region40: #{hourglassup_forward.25} parent=5 // pred_fallthru
      _
  $region6: #{hourglassup_forward.25} parent=0 // loop_footer
    %s13 = sadd.s32 1, %s9
  $region7: #{hourglassup_forward.25} parent=0 // loop_footer_branch
    %8 = sbr.rel target = $region3
  $region8: #{hourglassup_forward.25} parent=0 // loop_exit
    _

// kernel: hourglassup_forward.26
$region0: #{hourglassup_forward.26}
  #allocation0 [shape = 'u32[]', space=smem, size = 0x4, offset = 0x4, fixed_abs, tag = 'smem constant byte address 0x4 - core index']
  #allocation1 [shape = 'u32[144,128]{1,0:T(1,128)}', space=vmem, size = 0x12000, scoped, tag = 'internal scratch']
  %s0 = inlined_call_operand.vmem [shape: bf16[64,216], index: 0, kind: input, shape index: {}]
  %s1 = inlined_call_operand.vmem [shape: bf16[216,8], index: 1, kind: input, shape index: {}]
  %s2 = inlined_call_operand.vmem [shape: f32[1,8], index: 2, kind: input, shape index: {}]
  %s3 = inlined_call_operand.vmem [shape: bf16[64,8], index: 3, kind: output, shape index: {}]
  %s4 = sld [smem:[#allocation0]]
  $region45: #{hourglassup_forward.26} parent=0
    _
  %s6 = ssub.s32 1, %s4
  %s7 = scalar_select 0, %s6, %s4
  loop: start=0, step=1, limit=4
  $region2: #{hourglassup_forward.26} parent=0 // loop_pre_header
    _
  $region3: #{hourglassup_forward.26} parent=0 // loop_header
    %s9 = sphi 0, %s13
    %p10 = scmp.ge.s32.totalorder %s9, 4
    %s19 = sphi 0, %s21
    %s22 = sphi 0, %s19
    %s23 = sphi 0, %s22
    %s39 = sphi 0, %s23
    %s43 = sphi 0, %s43
    %s45 = sphi 0, %s43
    %s46 = sphi 0, %s45
    %s60 = sphi 0, %s46
    %s64 = sphi 0, %s64
    %s66 = sphi 0, %s64
    %s67 = sphi 0, %s66
    %s81 = sphi 0, %s67
    %s87 = sphi 0, %s89
    %s90 = sphi 0, %s87
    %s91 = sphi 0, %s90
    %s107 = sphi 0, %s91
  $region4: #{hourglassup_forward.26} parent=0 // loop_header_branch
    %12 = sbr.rel (%p10) target = $region8
  $region5: #{hourglassup_forward.26} parent=0 // loop_body
    %s14 = ssub.s32 %s9, 1
    %s15 = ssub.s32 %s9, 2
    %s16 = sadd.s32 %s9, 1
    %s17 = ssub.s32 %s9, %s16
    %p18 = scmp.eq.s32.totalorder %s17, 0
    %s20 = sadd.s32 %s19, 1
    %s21 = scalar_select %p18, %s19, %s20
    %p24 = pneg %p18
    %p25 = scmp.eq.s32.totalorder %s9, 1
    %p26 = por %p24, %p25
    %p27 = scmp.ne.s32.totalorder %s19, %s22
    %p28 = scmp.eq.s32.totalorder %s9, 0
    %p29 = por %p27, %p28
    %p30 = scmp.ne.s32.totalorder %s19, %s22
    %p31 = scmp.eq.s32.totalorder %s14, 1
    %p32 = por %p30, %p31
    %p33 = scmp.ne.s32.totalorder %s22, %s23
    %p34 = scmp.eq.s32.totalorder %s14, 0
    %p35 = por %p33, %p34
    %p36 = scmp.ne.s32.totalorder %s22, %s23
    %p37 = scmp.eq.s32.totalorder %s15, 1
    %p38 = por %p36, %p37
    %p40 = scmp.ne.s32.totalorder %s23, %s39
    %p41 = scmp.eq.s32.totalorder %s15, 0
    %p42 = por %p40, %p41
    %s44 = sadd.s32 %s43, 1
    %p47 = scmp.eq.s32.totalorder %s9, 1
    %p48 = scmp.ne.s32.totalorder %s43, %s45
    %p49 = scmp.eq.s32.totalorder %s9, 0
    %p50 = por %p48, %p49
    %p51 = scmp.ne.s32.totalorder %s43, %s45
    %p52 = scmp.eq.s32.totalorder %s14, 1
    %p53 = por %p51, %p52
    %p54 = scmp.ne.s32.totalorder %s45, %s46
    %p55 = scmp.eq.s32.totalorder %s14, 0
    %p56 = por %p54, %p55
    %p57 = scmp.ne.s32.totalorder %s45, %s46
    %p58 = scmp.eq.s32.totalorder %s15, 1
    %p59 = por %p57, %p58
    %p61 = scmp.ne.s32.totalorder %s46, %s60
    %p62 = scmp.eq.s32.totalorder %s15, 0
    %p63 = por %p61, %p62
    %s65 = sadd.s32 %s64, 1
    %p68 = scmp.eq.s32.totalorder %s9, 1
    %p69 = scmp.ne.s32.totalorder %s64, %s66
    %p70 = scmp.eq.s32.totalorder %s9, 0
    %p71 = por %p69, %p70
    %p72 = scmp.ne.s32.totalorder %s64, %s66
    %p73 = scmp.eq.s32.totalorder %s14, 1
    %p74 = por %p72, %p73
    %p75 = scmp.ne.s32.totalorder %s66, %s67
    %p76 = scmp.eq.s32.totalorder %s14, 0
    %p77 = por %p75, %p76
    %p78 = scmp.ne.s32.totalorder %s66, %s67
    %p79 = scmp.eq.s32.totalorder %s15, 1
    %p80 = por %p78, %p79
    %p82 = scmp.ne.s32.totalorder %s67, %s81
    %p83 = scmp.eq.s32.totalorder %s15, 0
    %p84 = por %p82, %p83
    %s85 = ssub.s32 %s9, %s16
    %p86 = scmp.eq.s32.totalorder %s85, 0
    %s88 = sadd.s32 %s87, 1
    %s89 = scalar_select %p86, %s87, %s88
    %p92 = pneg %p86
    %p93 = scmp.eq.s32.totalorder %s9, 1
    %p94 = por %p92, %p93
    %p95 = scmp.ne.s32.totalorder %s87, %s90
    %p96 = scmp.eq.s32.totalorder %s9, 0
    %p97 = por %p95, %p96
    %p98 = scmp.ne.s32.totalorder %s87, %s90
    %p99 = scmp.eq.s32.totalorder %s14, 1
    %p100 = por %p98, %p99
    %p101 = scmp.ne.s32.totalorder %s90, %s91
    %p102 = scmp.eq.s32.totalorder %s14, 0
    %p103 = por %p101, %p102
    %p104 = scmp.ne.s32.totalorder %s90, %s91
    %p105 = scmp.eq.s32.totalorder %s15, 1
    %p106 = por %p104, %p105
    %p108 = scmp.ne.s32.totalorder %s91, %s107
    %p109 = scmp.eq.s32.totalorder %s15, 0
    %p110 = por %p108, %p109
    %p111 = scmp.le.s32.totalorder 1, %s9
    %p112 = scmp.lt.s32.totalorder %s9, 3
    %p113 = pnand %p111, %p112
    %p114 = pneg %p113
    // Predicated region
    $region9: #{hourglassup_forward.26} parent=5 // pred_check
      _
    $region10: #{hourglassup_forward.26} parent=5 // pred_check_branch
      %116 = sbr.rel (%p113) target = $region12
    $region11: #{hourglassup_forward.26} parent=5 // pred_region
      %s117 = ssub.s32 %s9, 1
      // Predicated region
      $region13: #{hourglassup_forward.26} parent=11 // pred_check
        %p118 = pneg %p56
      $region14: #{hourglassup_forward.26} parent=11 // pred_check_branch
        %120 = sbr.rel (%p118) target = $region16
      $region15: #{hourglassup_forward.26} parent=11 // pred_region
        _
      $region16: #{hourglassup_forward.26} parent=11 // pred_fallthru
        _
      // Predicated region
      $region17: #{hourglassup_forward.26} parent=11 // pred_check
        %p121 = pneg %p77
      $region18: #{hourglassup_forward.26} parent=11 // pred_check_branch
        %123 = sbr.rel (%p121) target = $region20
      $region19: #{hourglassup_forward.26} parent=11 // pred_region
        _
      $region20: #{hourglassup_forward.26} parent=11 // pred_fallthru
        _
    $region12: #{hourglassup_forward.26} parent=5 // pred_fallthru
      _
    %p124 = scmp.lt.s32.totalorder %s9, 2
    // Predicated region
    $region21: #{hourglassup_forward.26} parent=5 // pred_check
      %p125 = pneg %p124
    $region22: #{hourglassup_forward.26} parent=5 // pred_check_branch
      %127 = sbr.rel (%p125) target = $region24
    $region23: #{hourglassup_forward.26} parent=5 // pred_region
      // Predicated region
      $region25: #{hourglassup_forward.26} parent=23 // pred_check
        %p128 = pneg %p29
      $region26: #{hourglassup_forward.26} parent=23 // pred_check_branch
        %130 = sbr.rel (%p128) target = $region28
      $region27: #{hourglassup_forward.26} parent=23 // pred_region
        %s131 = smul.u32 4, %s9
        %p132 = scmp.lt.s32.totalorder %s131, 7
        %s133 = scalar_select %p132, %s131, 7
        %s134 = smul.addr %s133, 2
        %s135 = smul.addr %s134, 4
        %s136 = scalar_lea.vmem %s0, %s135
        %s137 = smul.u32 4, %s9
      $region28: #{hourglassup_forward.26} parent=23 // pred_fallthru
        _
    $region24: #{hourglassup_forward.26} parent=5 // pred_fallthru
      _
    %p138 = scmp.le.s32.totalorder 1, %s9
    %p139 = scmp.lt.s32.totalorder %s9, 3
    %p140 = pnand %p138, %p139
    %p141 = pneg %p140
    // Predicated region
    $region29: #{hourglassup_forward.26} parent=5 // pred_check
      _
    $region30: #{hourglassup_forward.26} parent=5 // pred_check_branch
      %143 = sbr.rel (%p140) target = $region32
    $region31: #{hourglassup_forward.26} parent=5 // pred_region
      %s144 = ssub.s32 %s9, 1
      %s145 = smul.u32 4, %s14
      %p146 = scmp.lt.s32.totalorder %s145, 7
      %s147 = scalar_select %p146, %s145, 7
      %s148 = smul.addr %s147, 2
      %s149 = smul.addr %s148, 4
      %s150 = scalar_lea.vmem %s0, %s149
      %p151 = pneg %p35
      %p152 = pneg %p32
      %p153 = pneg %p56
      %p154 = pneg %p53
      %p155 = pneg %p77
      %p156 = pneg %p74
      %p157 = pneg %p103
      %p158 = pneg %p100
      %s159 = smul.u32 4, %s14
      %p160 = scmp.lt.s32.totalorder %s159, 7
      %s161 = scalar_select %p160, %s159, 7
      %s162 = smul.addr %s161, 4
      %s163 = scalar_lea.vmem %s3, %s162
      %s164 = smul.u32 4, %s14
      %p165 = scmp.lt.s32.totalorder %s164, 7
      %s166 = scalar_select %p165, %s164, 7
      %s167 = smul.addr %s166, 2
      %s168 = smul.addr %s167, 4
      %s169 = scalar_lea.vmem %s0, %s168
      %s170 = smul.u32 4, %s14
      %s171 = smul.u32 4, %s14
      %p172 = scmp.lt.s32.totalorder %s171, 7
      %s173 = scalar_select %p172, %s171, 7
      %s174 = smul.addr %s173, 4
      %s175 = scalar_lea.vmem %s3, %s174
      %s176 = smul.u32 4, %s14
      %v178 = vld [vmem:[%s169] sm:$0xff]
      %v179 = vld [vmem:[%s169 + $0x8] sm:$0xff]
      %v180 = vld [vmem:[%s169 + $0x10] sm:$0xff]
      %v181 = vld [vmem:[%s169 + $0x18] sm:$0xff]
      %v182 = vld [vmem:[%s1] sm:$0xf]
      %v183 = vld [vmem:[%s1 + $0x4] sm:$0xf]
      %v184 = vld [vmem:[%s1 + $0x8] sm:$0xf]
      %v185 = vld [vmem:[%s1 + $0xc] sm:$0xf]
      %v186 = vld [vmem:[%s1 + $0x10] sm:$0xf]
      %v187 = vld [vmem:[%s1 + $0x14] sm:$0xf]
      %v188 = vld [vmem:[%s1 + $0x18] sm:$0xf]
      %v189 = vld [vmem:[%s1 + $0x1c] sm:$0xf]
      %v190 = vld [vmem:[%s1 + $0x20] sm:$0xf]
      %v191 = vld [vmem:[%s1 + $0x24] sm:$0xf]
      %v192 = vld [vmem:[%s1 + $0x28] sm:$0xf]
      %v193 = vld [vmem:[%s1 + $0x2c] sm:$0xf]
      %v194 = vld [vmem:[%s1 + $0x30] sm:$0xf]
      %v195 = vld [vmem:[%s1 + $0x34] sm:$0xf]
      %v196 = vld [vmem:[%s1 + $0x38] sm:$0xf]
      %v197 = vld [vmem:[%s1 + $0x3c] sm:$0xf]
      %v198 = vld [vmem:[%s1 + $0x40] sm:$0xf]
      %v199 = vld [vmem:[%s1 + $0x44] sm:$0xf]
      %v200 = vld [vmem:[%s1 + $0x48] sm:$0xf]
      %v201 = vld [vmem:[%s1 + $0x4c] sm:$0xf]
      %v202 = vld [vmem:[%s1 + $0x50] sm:$0xf]
      %v203 = vld [vmem:[%s1 + $0x54] sm:$0xf]
      %v204 = vld [vmem:[%s1 + $0x58] sm:$0xf]
      %v205 = vld [vmem:[%s1 + $0x5c] sm:$0xf]
      %v206 = vld [vmem:[%s1 + $0x60] sm:$0xf]
      %v207 = vld [vmem:[%s1 + $0x64] sm:$0xf]
      %v208 = vld [vmem:[%s1 + $0x68] sm:$0xf]
      %v209 = vld [vmem:[%s2] sm:$0x1]
      %v211 = vlaneseq
      %v212 = vshrl.u32 %v211, 7
      %v213 = vsub.s32 0, %v212
      %v214 = vrot.slane %v209, %v213
      %v220 = vunpack.c.l.b16 %v178
      %v221 = vunpack.c.h.b16 %v178
      %v222 = vunpack.c.l.b16 %v179
      %v223 = vunpack.c.h.b16 %v179
      %v224 = vunpack.c.l.b16 %v180
      %v225 = vunpack.c.h.b16 %v180
      %v226 = vunpack.c.l.b16 %v181
      %v227 = vunpack.c.h.b16 %v181
      %v228 = vpack.c.b16 %v222, %v220
      %v229 = vpack.c.b16 %v223, %v221
      %v230 = vpack.c.b16 %v226, %v224
      %v231 = vpack.c.b16 %v227, %v225
      %v261 = vunpack.c.l.b16 %v182
      %v262 = vunpack.c.l.b16 %v183
      %v263 = vunpack.c.l.b16 %v184
      %v264 = vunpack.c.l.b16 %v185
      %v265 = vunpack.c.l.b16 %v186
      %v266 = vunpack.c.l.b16 %v187
      %v267 = vunpack.c.l.b16 %v188
      %v268 = vunpack.c.l.b16 %v189
      %v269 = vunpack.c.l.b16 %v190
      %v270 = vunpack.c.l.b16 %v191
      %v271 = vunpack.c.l.b16 %v192
      %v272 = vunpack.c.l.b16 %v193
      %v273 = vunpack.c.l.b16 %v194
      %v274 = vunpack.c.l.b16 %v195
      %v275 = vunpack.c.l.b16 %v196
      %v276 = vunpack.c.l.b16 %v197
      %v277 = vunpack.c.l.b16 %v198
      %v278 = vunpack.c.l.b16 %v199
      %v279 = vunpack.c.l.b16 %v200
      %v280 = vunpack.c.l.b16 %v201
      %v281 = vunpack.c.l.b16 %v202
      %v282 = vunpack.c.l.b16 %v203
      %v283 = vunpack.c.l.b16 %v204
      %v284 = vunpack.c.l.b16 %v205
      %v285 = vunpack.c.l.b16 %v206
      %v286 = vunpack.c.l.b16 %v207
      %v287 = vunpack.c.l.b16 %v208
      %v288 = vpack.c.b16 %v262, %v261
      %v289 = vpack.c.b16 %v264, %v263
      %v290 = vpack.c.b16 %v266, %v265
      %v291 = vpack.c.b16 %v268, %v267
      %v292 = vpack.c.b16 %v270, %v269
      %v293 = vpack.c.b16 %v272, %v271
      %v294 = vpack.c.b16 %v274, %v273
      %v295 = vpack.c.b16 %v276, %v275
      %v296 = vpack.c.b16 %v278, %v277
      %v297 = vpack.c.b16 %v280, %v279
      %v298 = vpack.c.b16 %v282, %v281
      %v299 = vpack.c.b16 %v284, %v283
      %v300 = vpack.c.b16 %v286, %v285
      %v301 = vpack.c.b16 %v287, %v287
      %vm315 = vcmask 719872
      %v317 = vsel %vm315, %v229, 0
      %v320 = vsel %vm315, %v231, 0
      %vm322 = vcmask 1043456
      %v324 = vsel %vm322, %v301, 0
      %326 = vmatprep.subr.bf16.mxu0 0
      %327 = vmatpush1.bf16.msra.mxu0 %v295
      %328 = vmatprep.subr.bf16.mxu0 0
      %329 = vmatpush1.bf16.msra.mxu0 %v294
      %330 = vmatprep.subr.bf16.mxu0 0
      %331 = vmatpush1.bf16.msra.mxu0 %v293
      %332 = vmatprep.subr.bf16.mxu0 0
      %333 = vmatpush1.bf16.msra.mxu0 %v292
      %334 = vmatprep.subr.bf16.mxu0 0
      %335 = vmatpush1.bf16.msra.mxu0 %v291
      %336 = vmatprep.subr.bf16.mxu0 0
      %337 = vmatpush1.bf16.msra.mxu0 %v290
      %338 = vmatprep.subr.bf16.mxu0 0
      %339 = vmatpush1.bf16.msra.mxu0 %v289
      %340 = vmatprep.subr.bf16.mxu0 0
      %341 = vmatpush1.bf16.msra.mxu0 %v288
      %342 = vmatprep.subr.bf16.mxu0 0
      %343 = vmatpush2.bf16.msra.mxu0 0
      %344 = vmatprep.subr.bf16.mxu0 0
      %345 = vmatpush2.bf16.msra.mxu0 0
      %346 = vmatprep.subr.bf16.mxu0 0
      %347 = vmatpush2.bf16.msra.mxu0 %v324
      %348 = vmatprep.subr.bf16.mxu0 0
      %349 = vmatpush2.bf16.msra.mxu0 %v300
      %350 = vmatprep.subr.bf16.mxu0 0
      %351 = vmatpush2.bf16.msra.mxu0 %v299
      %352 = vmatprep.subr.bf16.mxu0 0
      %353 = vmatpush2.bf16.msra.mxu0 %v298
      %354 = vmatprep.subr.bf16.mxu0 0
      %355 = vmatpush2.bf16.msra.mxu0 %v297
      %356 = vmatprep.subr.bf16.mxu0 0
      %357 = vmatpush2.bf16.msra.mxu0 %v296
      %358 = vmatprep.mubr.bf16.mxu0 %v317
      %359 = vmatmul.mubr.bf16.gmra.mxu0 %v228
      %v360 = vpop.f32.mrf.mxu0
      %v361 = vadd.f32 %v214, %v360
      %v362 = vpop.f32.mrf.mxu0
      %v363 = vpop.f32.mrf.mxu0
      %v364 = vadd.f32 %v214, %v363
      %v365 = vpop.f32.mrf.mxu0
      %366 = vmatprep.mubr.bf16.mxu0 %v320
      %367 = vmatmul.mubr.bf16.gmra.mxu0 %v230
      %v368 = vpop.f32.mrf.mxu0
      %v369 = vadd.f32 %v214, %v368
      %v370 = vpop.f32.mrf.mxu0
      %v371 = vpop.f32.mrf.mxu0
      %v372 = vadd.f32 %v214, %v371
      %v373 = vpop.f32.mrf.mxu0
      %374 = vdwg.mxu0
      %v375 = vmax.f32 %v361, 0.0
      %v376 = vmax.f32 %v364, 0.0
      %v377 = vmax.f32 %v369, 0.0
      %v378 = vmax.f32 %v372, 0.0
      %v379 = vand.u32 2147483647, %v361
      %v380 = vand.u32 2147483647, %v364
      %v381 = vand.u32 2147483647, %v369
      %v382 = vand.u32 2147483647, %v372
      %v383 = vsub.f32 0.0, %v379
      %v384 = vsub.f32 0.0, %v380
      %v385 = vsub.f32 0.0, %v381
      %v386 = vsub.f32 0.0, %v382
      %v387 = vmul.f32 %v383, 1.442695
      %v388 = vpow.pop %v387
      %v389 = vmul.f32 %v384, 1.442695
      %v390 = vpow.pop %v389
      %v391 = vmul.f32 %v385, 1.442695
      %v392 = vpow.pop %v391
      %v393 = vmul.f32 %v386, 1.442695
      %v394 = vpow.pop %v393
      %v395 = vadd.f32 %v388, 1.0
      %v396 = vlog2.pop %v395
      %v397 = vmul.f32 %v396, 0.6931472
      %v398 = vmul.f32 -0.5, %v388
      %v399 = vadd.f32 %v398, 1.0
      %v400 = vmul.f32 %v399, %v388
      %v401 = vand.u32 2147483647, %v388
      %vm402 = vcmp.lt.f32.partialorder %v401, 0.0004427343
      %v403 = vsel %vm402, %v400, %v397
      %v404 = vadd.f32 %v390, 1.0
      %v405 = vlog2.pop %v404
      %v406 = vmul.f32 %v405, 0.6931472
      %v407 = vmul.f32 -0.5, %v390
      %v408 = vadd.f32 %v407, 1.0
      %v409 = vmul.f32 %v408, %v390
      %v410 = vand.u32 2147483647, %v390
      %vm411 = vcmp.lt.f32.partialorder %v410, 0.0004427343
      %v412 = vsel %vm411, %v409, %v406
      %v413 = vadd.f32 %v392, 1.0
      %v414 = vlog2.pop %v413
      %v415 = vmul.f32 %v414, 0.6931472
      %v416 = vmul.f32 -0.5, %v392
      %v417 = vadd.f32 %v416, 1.0
      %v418 = vmul.f32 %v417, %v392
      %v419 = vand.u32 2147483647, %v392
      %vm420 = vcmp.lt.f32.partialorder %v419, 0.0004427343
      %v421 = vsel %vm420, %v418, %v415
      %v422 = vadd.f32 %v394, 1.0
      %v423 = vlog2.pop %v422
      %v424 = vmul.f32 %v423, 0.6931472
      %v425 = vmul.f32 -0.5, %v394
      %v426 = vadd.f32 %v425, 1.0
      %v427 = vmul.f32 %v426, %v394
      %v428 = vand.u32 2147483647, %v394
      %vm429 = vcmp.lt.f32.partialorder %v428, 0.0004427343
      %v430 = vsel %vm429, %v427, %v424
      %v431 = vadd.f32 %v375, %v403
      %v432 = vadd.f32 %v376, %v412
      %v433 = vadd.f32 %v377, %v421
      %v434 = vadd.f32 %v378, %v430
      %v435 = vtanh.pop %v431
      %v436 = vtanh.pop %v432
      %v437 = vtanh.pop %v433
      %v438 = vtanh.pop %v434
      %v439 = vmul.f32 %v361, %v435
      %v440 = vmul.f32 %v364, %v436
      %v441 = vmul.f32 %v369, %v437
      %v442 = vmul.f32 %v372, %v438
      %v443 = vpack.c.bf16 %v440, %v439
      %v444 = vpack.c.bf16 %v442, %v441
      %v447 = vunpack.c.l.b16 %v443
      %v448 = vunpack.c.h.b16 %v443
      %v449 = vunpack.c.l.b16 %v444
      %v450 = vunpack.c.h.b16 %v444
      %v451 = vpack.c.b16 %v447, %v447
      %v452 = vpack.c.b16 %v448, %v448
      %v453 = vpack.c.b16 %v449, %v449
      %v454 = vpack.c.b16 %v450, %v450
      %vm459 = vcmask 60416
      %460 = vst.msk [vmem:[%s175] sm:$0xf] %vm459, %v451
      %461 = vst.msk [vmem:[%s175 + $0x4] sm:$0xf] %vm459, %v452
      %462 = vst.msk [vmem:[%s175 + $0x8] sm:$0xf] %vm459, %v453
      %463 = vst.msk [vmem:[%s175 + $0xc] sm:$0xf] %vm459, %v454
      %s464 = smul.u32 4, %s14
      %p465 = scmp.lt.s32.totalorder %s464, 7
      %s466 = scalar_select %p465, %s464, 7
      %s467 = smul.addr %s466, 4
      %s468 = scalar_lea.vmem %s3, %s467
      // Predicated region
      $region33: #{hourglassup_forward.26} parent=31 // pred_check
        %p469 = pneg %p100
      $region34: #{hourglassup_forward.26} parent=31 // pred_check_branch
        %471 = sbr.rel (%p469) target = $region36
      $region35: #{hourglassup_forward.26} parent=31 // pred_region
        %s472 = smul.u32 4, %s14
      $region36: #{hourglassup_forward.26} parent=31 // pred_fallthru
        _
    $region32: #{hourglassup_forward.26} parent=5 // pred_fallthru
      _
    %p473 = scmp.le.s32.totalorder 2, %s9
    // Predicated region
    $region37: #{hourglassup_forward.26} parent=5 // pred_check
      %p474 = pneg %p473
    $region38: #{hourglassup_forward.26} parent=5 // pred_check_branch
      %476 = sbr.rel (%p474) target = $region40
    $region39: #{hourglassup_forward.26} parent=5 // pred_region
      %s477 = ssub.s32 %s9, 2
      // Predicated region
      $region41: #{hourglassup_forward.26} parent=39 // pred_check
        %p478 = pneg %p106
      $region42: #{hourglassup_forward.26} parent=39 // pred_check_branch
        %480 = sbr.rel (%p478) target = $region44
      $region43: #{hourglassup_forward.26} parent=39 // pred_region
        %s481 = smul.u32 4, %s15
        %p482 = scmp.lt.s32.totalorder %s481, 7
        %s483 = scalar_select %p482, %s481, 7
        %s484 = smul.addr %s483, 4
        %s485 = scalar_lea.vmem %s3, %s484
      $region44: #{hourglassup_forward.26} parent=39 // pred_fallthru
        _
    $region40: #{hourglassup_forward.26} parent=5 // pred_fallthru
      _
  $region6: #{hourglassup_forward.26} parent=0 // loop_footer
    %s13 = sadd.s32 1, %s9
  $region7: #{hourglassup_forward.26} parent=0 // loop_footer_branch
    %8 = sbr.rel target = $region3
  $region8: #{hourglassup_forward.26} parent=0 // loop_exit
    _

// kernel: hourglassup_forward.27
$region0: #{hourglassup_forward.27}
  #allocation0 [shape = 'u32[]', space=smem, size = 0x4, offset = 0x4, fixed_abs, tag = 'smem constant byte address 0x4 - core index']
  #allocation1 [shape = 'u32[144,128]{1,0:T(1,128)}', space=vmem, size = 0x12000, scoped, tag = 'internal scratch']
  %s0 = inlined_call_operand.vmem [shape: bf16[8,216], index: 0, kind: input, shape index: {}]
  %s1 = inlined_call_operand.vmem [shape: bf16[216,16], index: 1, kind: input, shape index: {}]
  %s2 = inlined_call_operand.vmem [shape: f32[1,16], index: 2, kind: input, shape index: {}]
  %s3 = inlined_call_operand.vmem [shape: bf16[8,16], index: 3, kind: output, shape index: {}]
  %s4 = sld [smem:[#allocation0]]
  $region22: #{hourglassup_forward.27} parent=0
    _
  %s6 = ssub.s32 1, %s4
  %s7 = scalar_select 0, %s6, %s4
  // Predicated region
  $region2: #{hourglassup_forward.27} parent=0 // pred_check
    _
  $region3: #{hourglassup_forward.27} parent=0 // pred_check_branch
    %9 = sbr.rel (0) target = $region5
  $region4: #{hourglassup_forward.27} parent=0 // pred_region
    _
  $region5: #{hourglassup_forward.27} parent=0 // pred_fallthru
    _
  // Predicated region
  $region6: #{hourglassup_forward.27} parent=0 // pred_check
    _
  $region7: #{hourglassup_forward.27} parent=0 // pred_check_branch
    %11 = sbr.rel (0) target = $region9
  $region8: #{hourglassup_forward.27} parent=0 // pred_region
    _
  $region9: #{hourglassup_forward.27} parent=0 // pred_fallthru
    _
  // Predicated region
  $region10: #{hourglassup_forward.27} parent=0 // pred_check
    _
  $region11: #{hourglassup_forward.27} parent=0 // pred_check_branch
    %13 = sbr.rel (0) target = $region13
  $region12: #{hourglassup_forward.27} parent=0 // pred_region
    _
  $region13: #{hourglassup_forward.27} parent=0 // pred_fallthru
    _
  %v15 = vld [vmem:[%s0] sm:$0xff]
  %v16 = vld [vmem:[%s1] sm:$0xf]
  %v17 = vld [vmem:[%s1 + $0x4] sm:$0xf]
  %v18 = vld [vmem:[%s1 + $0x8] sm:$0xf]
  %v19 = vld [vmem:[%s1 + $0xc] sm:$0xf]
  %v20 = vld [vmem:[%s1 + $0x10] sm:$0xf]
  %v21 = vld [vmem:[%s1 + $0x14] sm:$0xf]
  %v22 = vld [vmem:[%s1 + $0x18] sm:$0xf]
  %v23 = vld [vmem:[%s1 + $0x1c] sm:$0xf]
  %v24 = vld [vmem:[%s1 + $0x20] sm:$0xf]
  %v25 = vld [vmem:[%s1 + $0x24] sm:$0xf]
  %v26 = vld [vmem:[%s1 + $0x28] sm:$0xf]
  %v27 = vld [vmem:[%s1 + $0x2c] sm:$0xf]
  %v28 = vld [vmem:[%s1 + $0x30] sm:$0xf]
  %v29 = vld [vmem:[%s1 + $0x34] sm:$0xf]
  %v30 = vld [vmem:[%s1 + $0x38] sm:$0xf]
  %v31 = vld [vmem:[%s1 + $0x3c] sm:$0xf]
  %v32 = vld [vmem:[%s1 + $0x40] sm:$0xf]
  %v33 = vld [vmem:[%s1 + $0x44] sm:$0xf]
  %v34 = vld [vmem:[%s1 + $0x48] sm:$0xf]
  %v35 = vld [vmem:[%s1 + $0x4c] sm:$0xf]
  %v36 = vld [vmem:[%s1 + $0x50] sm:$0xf]
  %v37 = vld [vmem:[%s1 + $0x54] sm:$0xf]
  %v38 = vld [vmem:[%s1 + $0x58] sm:$0xf]
  %v39 = vld [vmem:[%s1 + $0x5c] sm:$0xf]
  %v40 = vld [vmem:[%s1 + $0x60] sm:$0xf]
  %v41 = vld [vmem:[%s1 + $0x64] sm:$0xf]
  %v42 = vld [vmem:[%s1 + $0x68] sm:$0xf]
  %v43 = vld [vmem:[%s2] sm:$0x1]
  %v45 = vlaneseq
  %v46 = vshrl.u32 %v45, 7
  %v47 = vsub.s32 0, %v46
  %v48 = vrot.slane %v43, %v47
  %v51 = vunpack.c.l.b16 %v15
  %v52 = vunpack.c.h.b16 %v15
  %v53 = vpack.c.b16 %v51, %v51
  %v54 = vpack.c.b16 %v52, %v52
  %v83 = vunpack.c.l.b16 %v16
  %v84 = vunpack.c.l.b16 %v17
  %v85 = vunpack.c.l.b16 %v18
  %v86 = vunpack.c.l.b16 %v19
  %v87 = vunpack.c.l.b16 %v20
  %v88 = vunpack.c.l.b16 %v21
  %v89 = vunpack.c.l.b16 %v22
  %v90 = vunpack.c.l.b16 %v23
  %v91 = vunpack.c.l.b16 %v24
  %v92 = vunpack.c.l.b16 %v25
  %v93 = vunpack.c.l.b16 %v26
  %v94 = vunpack.c.l.b16 %v27
  %v95 = vunpack.c.l.b16 %v28
  %v96 = vunpack.c.l.b16 %v29
  %v97 = vunpack.c.l.b16 %v30
  %v98 = vunpack.c.l.b16 %v31
  %v99 = vunpack.c.l.b16 %v32
  %v100 = vunpack.c.l.b16 %v33
  %v101 = vunpack.c.l.b16 %v34
  %v102 = vunpack.c.l.b16 %v35
  %v103 = vunpack.c.l.b16 %v36
  %v104 = vunpack.c.l.b16 %v37
  %v105 = vunpack.c.l.b16 %v38
  %v106 = vunpack.c.l.b16 %v39
  %v107 = vunpack.c.l.b16 %v40
  %v108 = vunpack.c.l.b16 %v41
  %v109 = vunpack.c.l.b16 %v42
  %v110 = vpack.c.b16 %v84, %v83
  %v111 = vpack.c.b16 %v86, %v85
  %v112 = vpack.c.b16 %v88, %v87
  %v113 = vpack.c.b16 %v90, %v89
  %v114 = vpack.c.b16 %v92, %v91
  %v115 = vpack.c.b16 %v94, %v93
  %v116 = vpack.c.b16 %v96, %v95
  %v117 = vpack.c.b16 %v98, %v97
  %v118 = vpack.c.b16 %v100, %v99
  %v119 = vpack.c.b16 %v102, %v101
  %v120 = vpack.c.b16 %v104, %v103
  %v121 = vpack.c.b16 %v106, %v105
  %v122 = vpack.c.b16 %v108, %v107
  %v123 = vpack.c.b16 %v109, %v109
  %vm137 = vcmask 719872
  %v139 = vsel %vm137, %v54, 0
  %vm141 = vcmask 1043456
  %v143 = vsel %vm141, %v123, 0
  %145 = vmatprep.subr.bf16.mxu0 0
  %146 = vmatpush1.bf16.msra.mxu0 %v117
  %147 = vmatprep.subr.bf16.mxu0 0
  %148 = vmatpush1.bf16.msra.mxu0 %v116
  %149 = vmatprep.subr.bf16.mxu0 0
  %150 = vmatpush1.bf16.msra.mxu0 %v115
  %151 = vmatprep.subr.bf16.mxu0 0
  %152 = vmatpush1.bf16.msra.mxu0 %v114
  %153 = vmatprep.subr.bf16.mxu0 0
  %154 = vmatpush1.bf16.msra.mxu0 %v113
  %155 = vmatprep.subr.bf16.mxu0 0
  %156 = vmatpush1.bf16.msra.mxu0 %v112
  %157 = vmatprep.subr.bf16.mxu0 0
  %158 = vmatpush1.bf16.msra.mxu0 %v111
  %159 = vmatprep.subr.bf16.mxu0 0
  %160 = vmatpush1.bf16.msra.mxu0 %v110
  %161 = vmatprep.subr.bf16.mxu0 0
  %162 = vmatpush2.bf16.msra.mxu0 0
  %163 = vmatprep.subr.bf16.mxu0 0
  %164 = vmatpush2.bf16.msra.mxu0 0
  %165 = vmatprep.subr.bf16.mxu0 0
  %166 = vmatpush2.bf16.msra.mxu0 %v143
  %167 = vmatprep.subr.bf16.mxu0 0
  %168 = vmatpush2.bf16.msra.mxu0 %v122
  %169 = vmatprep.subr.bf16.mxu0 0
  %170 = vmatpush2.bf16.msra.mxu0 %v121
  %171 = vmatprep.subr.bf16.mxu0 0
  %172 = vmatpush2.bf16.msra.mxu0 %v120
  %173 = vmatprep.subr.bf16.mxu0 0
  %174 = vmatpush2.bf16.msra.mxu0 %v119
  %175 = vmatprep.subr.bf16.mxu0 0
  %176 = vmatpush2.bf16.msra.mxu0 %v118
  %177 = vmatprep.mubr.bf16.mxu0 %v139
  %178 = vmatmul.mubr.bf16.gmra.mxu0 %v53
  %v179 = vpop.f32.mrf.mxu0
  %v180 = vadd.f32 %v48, %v179
  %v181 = vpop.f32.mrf.mxu0
  %v182 = vpop.f32.mrf.mxu0
  %v183 = vpop.f32.mrf.mxu0
  %184 = vdwg.mxu0
  %v185 = vpack.c.bf16 %v180, %v180
  %vm186 = vcmask 125952
  %187 = vst.msk [vmem:[%s3] sm:$0xf] %vm186, %v185
  // Predicated region
  $region14: #{hourglassup_forward.27} parent=0 // pred_check
    _
  $region15: #{hourglassup_forward.27} parent=0 // pred_check_branch
    %189 = sbr.rel (0) target = $region17
  $region16: #{hourglassup_forward.27} parent=0 // pred_region
    _
  $region17: #{hourglassup_forward.27} parent=0 // pred_fallthru
    _
  // Predicated region
  $region18: #{hourglassup_forward.27} parent=0 // pred_check
    _
  $region19: #{hourglassup_forward.27} parent=0 // pred_check_branch
    %191 = sbr.rel (0) target = $region21
  $region20: #{hourglassup_forward.27} parent=0 // pred_region
    _
  $region21: #{hourglassup_forward.27} parent=0 // pred_fallthru
    _

// kernel: hourglassup_forward.28
$region0: #{hourglassup_forward.28}
  #allocation0 [shape = 'u32[]', space=smem, size = 0x4, offset = 0x4, fixed_abs, tag = 'smem constant byte address 0x4 - core index']
  #allocation1 [shape = 'u32[144,128]{1,0:T(1,128)}', space=vmem, size = 0x12000, scoped, tag = 'internal scratch']
  %s0 = inlined_call_operand.vmem [shape: bf16[8,648], index: 0, kind: input, shape index: {}]
  %s1 = inlined_call_operand.vmem [shape: bf16[648,16], index: 1, kind: input, shape index: {}]
  %s2 = inlined_call_operand.vmem [shape: f32[1,16], index: 2, kind: input, shape index: {}]
  %s3 = inlined_call_operand.vmem [shape: bf16[8,16], index: 3, kind: output, shape index: {}]
  %s4 = sld [smem:[#allocation0]]
  $region22: #{hourglassup_forward.28} parent=0
    _
  %s6 = ssub.s32 1, %s4
  %s7 = scalar_select 0, %s6, %s4
  // Predicated region
  $region2: #{hourglassup_forward.28} parent=0 // pred_check
    _
  $region3: #{hourglassup_forward.28} parent=0 // pred_check_branch
    %9 = sbr.rel (0) target = $region5
  $region4: #{hourglassup_forward.28} parent=0 // pred_region
    _
  $region5: #{hourglassup_forward.28} parent=0 // pred_fallthru
    _
  // Predicated region
  $region6: #{hourglassup_forward.28} parent=0 // pred_check
    _
  $region7: #{hourglassup_forward.28} parent=0 // pred_check_branch
    %11 = sbr.rel (0) target = $region9
  $region8: #{hourglassup_forward.28} parent=0 // pred_region
    _
  $region9: #{hourglassup_forward.28} parent=0 // pred_fallthru
    _
  // Predicated region
  $region10: #{hourglassup_forward.28} parent=0 // pred_check
    _
  $region11: #{hourglassup_forward.28} parent=0 // pred_check_branch
    %13 = sbr.rel (0) target = $region13
  $region12: #{hourglassup_forward.28} parent=0 // pred_region
    _
  $region13: #{hourglassup_forward.28} parent=0 // pred_fallthru
    _
  %v15 = vld [vmem:[%s0] sm:$0xff]
  %v16 = vld [vmem:[%s0 + $0x8] sm:$0xff]
  %v17 = vld [vmem:[%s0 + $0x10] sm:$0xff]
  %v18 = vld [vmem:[%s1] sm:$0xf]
  %v19 = vld [vmem:[%s1 + $0x4] sm:$0xf]
  %v20 = vld [vmem:[%s1 + $0x8] sm:$0xf]
  %v21 = vld [vmem:[%s1 + $0xc] sm:$0xf]
  %v22 = vld [vmem:[%s1 + $0x10] sm:$0xf]
  %v23 = vld [vmem:[%s1 + $0x14] sm:$0xf]
  %v24 = vld [vmem:[%s1 + $0x18] sm:$0xf]
  %v25 = vld [vmem:[%s1 + $0x1c] sm:$0xf]
  %v26 = vld [vmem:[%s1 + $0x20] sm:$0xf]
  %v27 = vld [vmem:[%s1 + $0x24] sm:$0xf]
  %v28 = vld [vmem:[%s1 + $0x28] sm:$0xf]
  %v29 = vld [vmem:[%s1 + $0x2c] sm:$0xf]
  %v30 = vld [vmem:[%s1 + $0x30] sm:$0xf]
  %v31 = vld [vmem:[%s1 + $0x34] sm:$0xf]
  %v32 = vld [vmem:[%s1 + $0x38] sm:$0xf]
  %v33 = vld [vmem:[%s1 + $0x3c] sm:$0xf]
  %v34 = vld [vmem:[%s1 + $0x40] sm:$0xf]
  %v35 = vld [vmem:[%s1 + $0x44] sm:$0xf]
  %v36 = vld [vmem:[%s1 + $0x48] sm:$0xf]
  %v37 = vld [vmem:[%s1 + $0x4c] sm:$0xf]
  %v38 = vld [vmem:[%s1 + $0x50] sm:$0xf]
  %v39 = vld [vmem:[%s1 + $0x54] sm:$0xf]
  %v40 = vld [vmem:[%s1 + $0x58] sm:$0xf]
  %v41 = vld [vmem:[%s1 + $0x5c] sm:$0xf]
  %v42 = vld [vmem:[%s1 + $0x60] sm:$0xf]
  %v43 = vld [vmem:[%s1 + $0x64] sm:$0xf]
  %v44 = vld [vmem:[%s1 + $0x68] sm:$0xf]
  %v45 = vld [vmem:[%s1 + $0x6c] sm:$0xf]
  %v46 = vld [vmem:[%s1 + $0x70] sm:$0xf]
  %v47 = vld [vmem:[%s1 + $0x74] sm:$0xf]
  %v48 = vld [vmem:[%s1 + $0x78] sm:$0xf]
  %v49 = vld [vmem:[%s1 + $0x7c] sm:$0xf]
  %v50 = vld [vmem:[%s1 + $0x80] sm:$0xf]
  %v51 = vld [vmem:[%s1 + $0x84] sm:$0xf]
  %v52 = vld [vmem:[%s1 + $0x88] sm:$0xf]
  %v53 = vld [vmem:[%s1 + $0x8c] sm:$0xf]
  %v54 = vld [vmem:[%s1 + $0x90] sm:$0xf]
  %v55 = vld [vmem:[%s1 + $0x94] sm:$0xf]
  %v56 = vld [vmem:[%s1 + $0x98] sm:$0xf]
  %v57 = vld [vmem:[%s1 + $0x9c] sm:$0xf]
  %v58 = vld [vmem:[%s1 + $0xa0] sm:$0xf]
  %v59 = vld [vmem:[%s1 + $0xa4] sm:$0xf]
  %v60 = vld [vmem:[%s1 + $0xa8] sm:$0xf]
  %v61 = vld [vmem:[%s1 + $0xac] sm:$0xf]
  %v62 = vld [vmem:[%s1 + $0xb0] sm:$0xf]
  %v63 = vld [vmem:[%s1 + $0xb4] sm:$0xf]
  %v64 = vld [vmem:[%s1 + $0xb8] sm:$0xf]
  %v65 = vld [vmem:[%s1 + $0xbc] sm:$0xf]
  %v66 = vld [vmem:[%s1 + $0xc0] sm:$0xf]
  %v67 = vld [vmem:[%s1 + $0xc4] sm:$0xf]
  %v68 = vld [vmem:[%s1 + $0xc8] sm:$0xf]
  %v69 = vld [vmem:[%s1 + $0xcc] sm:$0xf]
  %v70 = vld [vmem:[%s1 + $0xd0] sm:$0xf]
  %v71 = vld [vmem:[%s1 + $0xd4] sm:$0xf]
  %v72 = vld [vmem:[%s1 + $0xd8] sm:$0xf]
  %v73 = vld [vmem:[%s1 + $0xdc] sm:$0xf]
  %v74 = vld [vmem:[%s1 + $0xe0] sm:$0xf]
  %v75 = vld [vmem:[%s1 + $0xe4] sm:$0xf]
  %v76 = vld [vmem:[%s1 + $0xe8] sm:$0xf]
  %v77 = vld [vmem:[%s1 + $0xec] sm:$0xf]
  %v78 = vld [vmem:[%s1 + $0xf0] sm:$0xf]
  %v79 = vld [vmem:[%s1 + $0xf4] sm:$0xf]
  %v80 = vld [vmem:[%s1 + $0xf8] sm:$0xf]
  %v81 = vld [vmem:[%s1 + $0xfc] sm:$0xf]
  %v82 = vld [vmem:[%s1 + $0x100] sm:$0xf]
  %v83 = vld [vmem:[%s1 + $0x104] sm:$0xf]
  %v84 = vld [vmem:[%s1 + $0x108] sm:$0xf]
  %v85 = vld [vmem:[%s1 + $0x10c] sm:$0xf]
  %v86 = vld [vmem:[%s1 + $0x110] sm:$0xf]
  %v87 = vld [vmem:[%s1 + $0x114] sm:$0xf]
  %v88 = vld [vmem:[%s1 + $0x118] sm:$0xf]
  %v89 = vld [vmem:[%s1 + $0x11c] sm:$0xf]
  %v90 = vld [vmem:[%s1 + $0x120] sm:$0xf]
  %v91 = vld [vmem:[%s1 + $0x124] sm:$0xf]
  %v92 = vld [vmem:[%s1 + $0x128] sm:$0xf]
  %v93 = vld [vmem:[%s1 + $0x12c] sm:$0xf]
  %v94 = vld [vmem:[%s1 + $0x130] sm:$0xf]
  %v95 = vld [vmem:[%s1 + $0x134] sm:$0xf]
  %v96 = vld [vmem:[%s1 + $0x138] sm:$0xf]
  %v97 = vld [vmem:[%s1 + $0x13c] sm:$0xf]
  %v98 = vld [vmem:[%s1 + $0x140] sm:$0xf]
  %v99 = vld [vmem:[%s2] sm:$0x1]
  %v101 = vlaneseq
  %v102 = vshrl.u32 %v101, 7
  %v103 = vsub.s32 0, %v102
  %v104 = vrot.slane %v99, %v103
  %v109 = vunpack.c.l.b16 %v15
  %v110 = vunpack.c.h.b16 %v15
  %v111 = vunpack.c.l.b16 %v16
  %v112 = vunpack.c.h.b16 %v16
  %v113 = vunpack.c.l.b16 %v17
  %v114 = vunpack.c.h.b16 %v17
  %v115 = vpack.c.b16 %v109, %v109
  %v116 = vpack.c.b16 %v110, %v110
  %v117 = vpack.c.b16 %v111, %v111
  %v118 = vpack.c.b16 %v112, %v112
  %v119 = vpack.c.b16 %v113, %v113
  %v120 = vpack.c.b16 %v114, %v114
  %v207 = vunpack.c.l.b16 %v18
  %v208 = vunpack.c.l.b16 %v19
  %v209 = vunpack.c.l.b16 %v20
  %v210 = vunpack.c.l.b16 %v21
  %v211 = vunpack.c.l.b16 %v22
  %v212 = vunpack.c.l.b16 %v23
  %v213 = vunpack.c.l.b16 %v24
  %v214 = vunpack.c.l.b16 %v25
  %v215 = vunpack.c.l.b16 %v26
  %v216 = vunpack.c.l.b16 %v27
  %v217 = vunpack.c.l.b16 %v28
  %v218 = vunpack.c.l.b16 %v29
  %v219 = vunpack.c.l.b16 %v30
  %v220 = vunpack.c.l.b16 %v31
  %v221 = vunpack.c.l.b16 %v32
  %v222 = vunpack.c.l.b16 %v33
  %v223 = vunpack.c.l.b16 %v34
  %v224 = vunpack.c.l.b16 %v35
  %v225 = vunpack.c.l.b16 %v36
  %v226 = vunpack.c.l.b16 %v37
  %v227 = vunpack.c.l.b16 %v38
  %v228 = vunpack.c.l.b16 %v39
  %v229 = vunpack.c.l.b16 %v40
  %v230 = vunpack.c.l.b16 %v41
  %v231 = vunpack.c.l.b16 %v42
  %v232 = vunpack.c.l.b16 %v43
  %v233 = vunpack.c.l.b16 %v44
  %v234 = vunpack.c.l.b16 %v45
  %v235 = vunpack.c.l.b16 %v46
  %v236 = vunpack.c.l.b16 %v47
  %v237 = vunpack.c.l.b16 %v48
  %v238 = vunpack.c.l.b16 %v49
  %v239 = vunpack.c.l.b16 %v50
  %v240 = vunpack.c.l.b16 %v51
  %v241 = vunpack.c.l.b16 %v52
  %v242 = vunpack.c.l.b16 %v53
  %v243 = vunpack.c.l.b16 %v54
  %v244 = vunpack.c.l.b16 %v55
  %v245 = vunpack.c.l.b16 %v56
  %v246 = vunpack.c.l.b16 %v57
  %v247 = vunpack.c.l.b16 %v58
  %v248 = vunpack.c.l.b16 %v59
  %v249 = vunpack.c.l.b16 %v60
  %v250 = vunpack.c.l.b16 %v61
  %v251 = vunpack.c.l.b16 %v62
  %v252 = vunpack.c.l.b16 %v63
  %v253 = vunpack.c.l.b16 %v64
  %v254 = vunpack.c.l.b16 %v65
  %v255 = vunpack.c.l.b16 %v66
  %v256 = vunpack.c.l.b16 %v67
  %v257 = vunpack.c.l.b16 %v68
  %v258 = vunpack.c.l.b16 %v69
  %v259 = vunpack.c.l.b16 %v70
  %v260 = vunpack.c.l.b16 %v71
  %v261 = vunpack.c.l.b16 %v72
  %v262 = vunpack.c.l.b16 %v73
  %v263 = vunpack.c.l.b16 %v74
  %v264 = vunpack.c.l.b16 %v75
  %v265 = vunpack.c.l.b16 %v76
  %v266 = vunpack.c.l.b16 %v77
  %v267 = vunpack.c.l.b16 %v78
  %v268 = vunpack.c.l.b16 %v79
  %v269 = vunpack.c.l.b16 %v80
  %v270 = vunpack.c.l.b16 %v81
  %v271 = vunpack.c.l.b16 %v82
  %v272 = vunpack.c.l.b16 %v83
  %v273 = vunpack.c.l.b16 %v84
  %v274 = vunpack.c.l.b16 %v85
  %v275 = vunpack.c.l.b16 %v86
  %v276 = vunpack.c.l.b16 %v87
  %v277 = vunpack.c.l.b16 %v88
  %v278 = vunpack.c.l.b16 %v89
  %v279 = vunpack.c.l.b16 %v90
  %v280 = vunpack.c.l.b16 %v91
  %v281 = vunpack.c.l.b16 %v92
  %v282 = vunpack.c.l.b16 %v93
  %v283 = vunpack.c.l.b16 %v94
  %v284 = vunpack.c.l.b16 %v95
  %v285 = vunpack.c.l.b16 %v96
  %v286 = vunpack.c.l.b16 %v97
  %v287 = vunpack.c.l.b16 %v98
  %v288 = vpack.c.b16 %v208, %v207
  %v289 = vpack.c.b16 %v210, %v209
  %v290 = vpack.c.b16 %v212, %v211
  %v291 = vpack.c.b16 %v214, %v213
  %v292 = vpack.c.b16 %v216, %v215
  %v293 = vpack.c.b16 %v218, %v217
  %v294 = vpack.c.b16 %v220, %v219
  %v295 = vpack.c.b16 %v222, %v221
  %v296 = vpack.c.b16 %v224, %v223
  %v297 = vpack.c.b16 %v226, %v225
  %v298 = vpack.c.b16 %v228, %v227
  %v299 = vpack.c.b16 %v230, %v229
  %v300 = vpack.c.b16 %v232, %v231
  %v301 = vpack.c.b16 %v234, %v233
  %v302 = vpack.c.b16 %v236, %v235
  %v303 = vpack.c.b16 %v238, %v237
  %v304 = vpack.c.b16 %v240, %v239
  %v305 = vpack.c.b16 %v242, %v241
  %v306 = vpack.c.b16 %v244, %v243
  %v307 = vpack.c.b16 %v246, %v245
  %v308 = vpack.c.b16 %v248, %v247
  %v309 = vpack.c.b16 %v250, %v249
  %v310 = vpack.c.b16 %v252, %v251
  %v311 = vpack.c.b16 %v254, %v253
  %v312 = vpack.c.b16 %v256, %v255
  %v313 = vpack.c.b16 %v258, %v257
  %v314 = vpack.c.b16 %v260, %v259
  %v315 = vpack.c.b16 %v262, %v261
  %v316 = vpack.c.b16 %v264, %v263
  %v317 = vpack.c.b16 %v266, %v265
  %v318 = vpack.c.b16 %v268, %v267
  %v319 = vpack.c.b16 %v270, %v269
  %v320 = vpack.c.b16 %v272, %v271
  %v321 = vpack.c.b16 %v274, %v273
  %v322 = vpack.c.b16 %v276, %v275
  %v323 = vpack.c.b16 %v278, %v277
  %v324 = vpack.c.b16 %v280, %v279
  %v325 = vpack.c.b16 %v282, %v281
  %v326 = vpack.c.b16 %v284, %v283
  %v327 = vpack.c.b16 %v286, %v285
  %v328 = vpack.c.b16 %v287, %v287
  %vm369 = vcmask 64512
  %v371 = vsel %vm369, %v120, 0
  %vm373 = vcmask 1043456
  %v375 = vsel %vm373, %v328, 0
  %377 = vmatprep.subr.bf16.mxu0 0
  %378 = vmatpush1.bf16.msra.mxu0 %v295
  %379 = vmatprep.subr.bf16.mxu0 0
  %380 = vmatpush1.bf16.msra.mxu0 %v294
  %381 = vmatprep.subr.bf16.mxu0 0
  %382 = vmatpush1.bf16.msra.mxu0 %v293
  %383 = vmatprep.subr.bf16.mxu0 0
  %384 = vmatpush1.bf16.msra.mxu0 %v292
  %385 = vmatprep.subr.bf16.mxu0 0
  %386 = vmatpush1.bf16.msra.mxu0 %v291
  %387 = vmatprep.subr.bf16.mxu0 0
  %388 = vmatpush1.bf16.msra.mxu0 %v290
  %389 = vmatprep.subr.bf16.mxu0 0
  %390 = vmatpush1.bf16.msra.mxu0 %v289
  %391 = vmatprep.subr.bf16.mxu0 0
  %392 = vmatpush1.bf16.msra.mxu0 %v288
  %393 = vmatprep.subr.bf16.mxu0 0
  %394 = vmatpush2.bf16.msra.mxu0 %v303
  %395 = vmatprep.subr.bf16.mxu0 0
  %396 = vmatpush2.bf16.msra.mxu0 %v302
  %397 = vmatprep.subr.bf16.mxu0 0
  %398 = vmatpush2.bf16.msra.mxu0 %v301
  %399 = vmatprep.subr.bf16.mxu0 0
  %400 = vmatpush2.bf16.msra.mxu0 %v300
  %401 = vmatprep.subr.bf16.mxu0 0
  %402 = vmatpush2.bf16.msra.mxu0 %v299
  %403 = vmatprep.subr.bf16.mxu0 0
  %404 = vmatpush2.bf16.msra.mxu0 %v298
  %405 = vmatprep.subr.bf16.mxu0 0
  %406 = vmatpush2.bf16.msra.mxu0 %v297
  %407 = vmatprep.subr.bf16.mxu0 0
  %408 = vmatpush2.bf16.msra.mxu0 %v296
  %409 = vmatprep.mubr.bf16.mxu0 %v116
  %410 = vmatmul.mubr.bf16.gmra.mxu0 %v115
  %v411 = vpop.f32.mrf.mxu0
  %v412 = vadd.f32 %v104, %v411
  %v413 = vpop.f32.mrf.mxu0
  %v414 = vpop.f32.mrf.mxu0
  %v415 = vpop.f32.mrf.mxu0
  %416 = vdwg.mxu0
  %417 = vmatprep.subr.bf16.mxu0 0
  %418 = vmatpush1.bf16.msra.mxu0 %v311
  %419 = vmatprep.subr.bf16.mxu0 0
  %420 = vmatpush1.bf16.msra.mxu0 %v310
  %421 = vmatprep.subr.bf16.mxu0 0
  %422 = vmatpush1.bf16.msra.mxu0 %v309
  %423 = vmatprep.subr.bf16.mxu0 0
  %424 = vmatpush1.bf16.msra.mxu0 %v308
  %425 = vmatprep.subr.bf16.mxu0 0
  %426 = vmatpush1.bf16.msra.mxu0 %v307
  %427 = vmatprep.subr.bf16.mxu0 0
  %428 = vmatpush1.bf16.msra.mxu0 %v306
  %429 = vmatprep.subr.bf16.mxu0 0
  %430 = vmatpush1.bf16.msra.mxu0 %v305
  %431 = vmatprep.subr.bf16.mxu0 0
  %432 = vmatpush1.bf16.msra.mxu0 %v304
  %433 = vmatprep.subr.bf16.mxu0 0
  %434 = vmatpush2.bf16.msra.mxu0 %v319
  %435 = vmatprep.subr.bf16.mxu0 0
  %436 = vmatpush2.bf16.msra.mxu0 %v318
  %437 = vmatprep.subr.bf16.mxu0 0
  %438 = vmatpush2.bf16.msra.mxu0 %v317
  %439 = vmatprep.subr.bf16.mxu0 0
  %440 = vmatpush2.bf16.msra.mxu0 %v316
  %441 = vmatprep.subr.bf16.mxu0 0
  %442 = vmatpush2.bf16.msra.mxu0 %v315
  %443 = vmatprep.subr.bf16.mxu0 0
  %444 = vmatpush2.bf16.msra.mxu0 %v314
  %445 = vmatprep.subr.bf16.mxu0 0
  %446 = vmatpush2.bf16.msra.mxu0 %v313
  %447 = vmatprep.subr.bf16.mxu0 0
  %448 = vmatpush2.bf16.msra.mxu0 %v312
  %449 = vmatprep.mubr.bf16.mxu0 %v118
  %450 = vmatmul.mubr.bf16.gmra.mxu0 %v117
  %v451 = vpop.f32.mrf.mxu0
  %v452 = vadd.f32 %v412, %v451
  %v453 = vpop.f32.mrf.mxu0
  %v454 = vpop.f32.mrf.mxu0
  %v455 = vpop.f32.mrf.mxu0
  %456 = vdwg.mxu0
  %457 = vmatprep.subr.bf16.mxu0 0
  %458 = vmatpush1.bf16.msra.mxu0 %v327
  %459 = vmatprep.subr.bf16.mxu0 0
  %460 = vmatpush1.bf16.msra.mxu0 %v326
  %461 = vmatprep.subr.bf16.mxu0 0
  %462 = vmatpush1.bf16.msra.mxu0 %v325
  %463 = vmatprep.subr.bf16.mxu0 0
  %464 = vmatpush1.bf16.msra.mxu0 %v324
  %465 = vmatprep.subr.bf16.mxu0 0
  %466 = vmatpush1.bf16.msra.mxu0 %v323
  %467 = vmatprep.subr.bf16.mxu0 0
  %468 = vmatpush1.bf16.msra.mxu0 %v322
  %469 = vmatprep.subr.bf16.mxu0 0
  %470 = vmatpush1.bf16.msra.mxu0 %v321
  %471 = vmatprep.subr.bf16.mxu0 0
  %472 = vmatpush1.bf16.msra.mxu0 %v320
  %473 = vmatprep.subr.bf16.mxu0 0
  %474 = vmatpush2.bf16.msra.mxu0 0
  %475 = vmatprep.subr.bf16.mxu0 0
  %476 = vmatpush2.bf16.msra.mxu0 0
  %477 = vmatprep.subr.bf16.mxu0 0
  %478 = vmatpush2.bf16.msra.mxu0 0
  %479 = vmatprep.subr.bf16.mxu0 0
  %480 = vmatpush2.bf16.msra.mxu0 0
  %481 = vmatprep.subr.bf16.mxu0 0
  %482 = vmatpush2.bf16.msra.mxu0 0
  %483 = vmatprep.subr.bf16.mxu0 0
  %484 = vmatpush2.bf16.msra.mxu0 0
  %485 = vmatprep.subr.bf16.mxu0 0
  %486 = vmatpush2.bf16.msra.mxu0 0
  %487 = vmatprep.subr.bf16.mxu0 0
  %488 = vmatpush2.bf16.msra.mxu0 %v375
  %489 = vmatprep.mubr.bf16.mxu0 %v371
  %490 = vmatmul.mubr.bf16.gmra.mxu0 %v119
  %v491 = vpop.f32.mrf.mxu0
  %v492 = vadd.f32 %v452, %v491
  %v493 = vpop.f32.mrf.mxu0
  %v494 = vpop.f32.mrf.mxu0
  %v495 = vpop.f32.mrf.mxu0
  %496 = vdwg.mxu0
  %v497 = vmax.f32 %v492, 0.0
  %v498 = vand.u32 2147483647, %v492
  %v499 = vsub.f32 0.0, %v498
  %v500 = vmul.f32 %v499, 1.442695
  %v501 = vpow.pop %v500
  %v502 = vadd.f32 %v501, 1.0
  %v503 = vlog2.pop %v502
  %v504 = vmul.f32 %v503, 0.6931472
  %v505 = vmul.f32 -0.5, %v501
  %v506 = vadd.f32 %v505, 1.0
  %v507 = vmul.f32 %v506, %v501
  %v508 = vand.u32 2147483647, %v501
  %vm509 = vcmp.lt.f32.partialorder %v508, 0.0004427343
  %v510 = vsel %vm509, %v507, %v504
  %v511 = vadd.f32 %v497, %v510
  %v512 = vtanh.pop %v511
  %v513 = vmul.f32 %v492, %v512
  %v514 = vpack.c.bf16 %v513, %v513
  %vm515 = vcmask 125952
  %516 = vst.msk [vmem:[%s3] sm:$0xf] %vm515, %v514
  // Predicated region
  $region14: #{hourglassup_forward.28} parent=0 // pred_check
    _
  $region15: #{hourglassup_forward.28} parent=0 // pred_check_branch
    %518 = sbr.rel (0) target = $region17
  $region16: #{hourglassup_forward.28} parent=0 // pred_region
    _
  $region17: #{hourglassup_forward.28} parent=0 // pred_fallthru
    _
  // Predicated region
  $region18: #{hourglassup_forward.28} parent=0 // pred_check
    _
  $region19: #{hourglassup_forward.28} parent=0 // pred_check_branch
    %520 = sbr.rel (0) target = $region21
  $region20: #{hourglassup_forward.28} parent=0 // pred_region
    _
  $region21: #{hourglassup_forward.28} parent=0 // pred_fallthru
    _

// kernel: hourglassup_forward.30
$region0: #{hourglassup_forward.30}
  #allocation0 [shape = 'u32[]', space=smem, size = 0x4, offset = 0x4, fixed_abs, tag = 'smem constant byte address 0x4 - core index']
  #allocation1 [shape = 'u32[144,128]{1,0:T(1,128)}', space=vmem, size = 0x12000, scoped, tag = 'internal scratch']
  %s0 = inlined_call_operand.vmem [shape: bf16[64,8], index: 0, kind: input, shape index: {}]
  %s1 = inlined_call_operand.vmem [shape: bf16[8,8], index: 1, kind: input, shape index: {}]
  %s2 = inlined_call_operand.vmem [shape: f32[1,8], index: 2, kind: input, shape index: {}]
  %s3 = inlined_call_operand.vmem [shape: bf16[64,8], index: 3, kind: output, shape index: {}]
  %s4 = sld [smem:[#allocation0]]
  $region45: #{hourglassup_forward.30} parent=0
    _
  %s6 = ssub.s32 1, %s4
  %s7 = scalar_select 0, %s6, %s4
  loop: start=0, step=1, limit=4
  $region2: #{hourglassup_forward.30} parent=0 // loop_pre_header
    _
  $region3: #{hourglassup_forward.30} parent=0 // loop_header
    %s9 = sphi 0, %s13
    %p10 = scmp.ge.s32.totalorder %s9, 4
    %s19 = sphi 0, %s21
    %s22 = sphi 0, %s19
    %s23 = sphi 0, %s22
    %s39 = sphi 0, %s23
    %s43 = sphi 0, %s43
    %s45 = sphi 0, %s43
    %s46 = sphi 0, %s45
    %s60 = sphi 0, %s46
    %s64 = sphi 0, %s64
    %s66 = sphi 0, %s64
    %s67 = sphi 0, %s66
    %s81 = sphi 0, %s67
    %s87 = sphi 0, %s89
    %s90 = sphi 0, %s87
    %s91 = sphi 0, %s90
    %s107 = sphi 0, %s91
  $region4: #{hourglassup_forward.30} parent=0 // loop_header_branch
    %12 = sbr.rel (%p10) target = $region8
  $region5: #{hourglassup_forward.30} parent=0 // loop_body
    %s14 = ssub.s32 %s9, 1
    %s15 = ssub.s32 %s9, 2
    %s16 = sadd.s32 %s9, 1
    %s17 = ssub.s32 %s9, %s16
    %p18 = scmp.eq.s32.totalorder %s17, 0
    %s20 = sadd.s32 %s19, 1
    %s21 = scalar_select %p18, %s19, %s20
    %p24 = pneg %p18
    %p25 = scmp.eq.s32.totalorder %s9, 1
    %p26 = por %p24, %p25
    %p27 = scmp.ne.s32.totalorder %s19, %s22
    %p28 = scmp.eq.s32.totalorder %s9, 0
    %p29 = por %p27, %p28
    %p30 = scmp.ne.s32.totalorder %s19, %s22
    %p31 = scmp.eq.s32.totalorder %s14, 1
    %p32 = por %p30, %p31
    %p33 = scmp.ne.s32.totalorder %s22, %s23
    %p34 = scmp.eq.s32.totalorder %s14, 0
    %p35 = por %p33, %p34
    %p36 = scmp.ne.s32.totalorder %s22, %s23
    %p37 = scmp.eq.s32.totalorder %s15, 1
    %p38 = por %p36, %p37
    %p40 = scmp.ne.s32.totalorder %s23, %s39
    %p41 = scmp.eq.s32.totalorder %s15, 0
    %p42 = por %p40, %p41
    %s44 = sadd.s32 %s43, 1
    %p47 = scmp.eq.s32.totalorder %s9, 1
    %p48 = scmp.ne.s32.totalorder %s43, %s45
    %p49 = scmp.eq.s32.totalorder %s9, 0
    %p50 = por %p48, %p49
    %p51 = scmp.ne.s32.totalorder %s43, %s45
    %p52 = scmp.eq.s32.totalorder %s14, 1
    %p53 = por %p51, %p52
    %p54 = scmp.ne.s32.totalorder %s45, %s46
    %p55 = scmp.eq.s32.totalorder %s14, 0
    %p56 = por %p54, %p55
    %p57 = scmp.ne.s32.totalorder %s45, %s46
    %p58 = scmp.eq.s32.totalorder %s15, 1
    %p59 = por %p57, %p58
    %p61 = scmp.ne.s32.totalorder %s46, %s60
    %p62 = scmp.eq.s32.totalorder %s15, 0
    %p63 = por %p61, %p62
    %s65 = sadd.s32 %s64, 1
    %p68 = scmp.eq.s32.totalorder %s9, 1
    %p69 = scmp.ne.s32.totalorder %s64, %s66
    %p70 = scmp.eq.s32.totalorder %s9, 0
    %p71 = por %p69, %p70
    %p72 = scmp.ne.s32.totalorder %s64, %s66
    %p73 = scmp.eq.s32.totalorder %s14, 1
    %p74 = por %p72, %p73
    %p75 = scmp.ne.s32.totalorder %s66, %s67
    %p76 = scmp.eq.s32.totalorder %s14, 0
    %p77 = por %p75, %p76
    %p78 = scmp.ne.s32.totalorder %s66, %s67
    %p79 = scmp.eq.s32.totalorder %s15, 1
    %p80 = por %p78, %p79
    %p82 = scmp.ne.s32.totalorder %s67, %s81
    %p83 = scmp.eq.s32.totalorder %s15, 0
    %p84 = por %p82, %p83
    %s85 = ssub.s32 %s9, %s16
    %p86 = scmp.eq.s32.totalorder %s85, 0
    %s88 = sadd.s32 %s87, 1
    %s89 = scalar_select %p86, %s87, %s88
    %p92 = pneg %p86
    %p93 = scmp.eq.s32.totalorder %s9, 1
    %p94 = por %p92, %p93
    %p95 = scmp.ne.s32.totalorder %s87, %s90
    %p96 = scmp.eq.s32.totalorder %s9, 0
    %p97 = por %p95, %p96
    %p98 = scmp.ne.s32.totalorder %s87, %s90
    %p99 = scmp.eq.s32.totalorder %s14, 1
    %p100 = por %p98, %p99
    %p101 = scmp.ne.s32.totalorder %s90, %s91
    %p102 = scmp.eq.s32.totalorder %s14, 0
    %p103 = por %p101, %p102
    %p104 = scmp.ne.s32.totalorder %s90, %s91
    %p105 = scmp.eq.s32.totalorder %s15, 1
    %p106 = por %p104, %p105
    %p108 = scmp.ne.s32.totalorder %s91, %s107
    %p109 = scmp.eq.s32.totalorder %s15, 0
    %p110 = por %p108, %p109
    %p111 = scmp.le.s32.totalorder 1, %s9
    %p112 = scmp.lt.s32.totalorder %s9, 3
    %p113 = pnand %p111, %p112
    %p114 = pneg %p113
    // Predicated region
    $region9: #{hourglassup_forward.30} parent=5 // pred_check
      _
    $region10: #{hourglassup_forward.30} parent=5 // pred_check_branch
      %116 = sbr.rel (%p113) target = $region12
    $region11: #{hourglassup_forward.30} parent=5 // pred_region
      %s117 = ssub.s32 %s9, 1
      // Predicated region
      $region13: #{hourglassup_forward.30} parent=11 // pred_check
        %p118 = pneg %p56
      $region14: #{hourglassup_forward.30} parent=11 // pred_check_branch
        %120 = sbr.rel (%p118) target = $region16
      $region15: #{hourglassup_forward.30} parent=11 // pred_region
        _
      $region16: #{hourglassup_forward.30} parent=11 // pred_fallthru
        _
      // Predicated region
      $region17: #{hourglassup_forward.30} parent=11 // pred_check
        %p121 = pneg %p77
      $region18: #{hourglassup_forward.30} parent=11 // pred_check_branch
        %123 = sbr.rel (%p121) target = $region20
      $region19: #{hourglassup_forward.30} parent=11 // pred_region
        _
      $region20: #{hourglassup_forward.30} parent=11 // pred_fallthru
        _
    $region12: #{hourglassup_forward.30} parent=5 // pred_fallthru
      _
    %p124 = scmp.lt.s32.totalorder %s9, 2
    // Predicated region
    $region21: #{hourglassup_forward.30} parent=5 // pred_check
      %p125 = pneg %p124
    $region22: #{hourglassup_forward.30} parent=5 // pred_check_branch
      %127 = sbr.rel (%p125) target = $region24
    $region23: #{hourglassup_forward.30} parent=5 // pred_region
      // Predicated region
      $region25: #{hourglassup_forward.30} parent=23 // pred_check
        %p128 = pneg %p29
      $region26: #{hourglassup_forward.30} parent=23 // pred_check_branch
        %130 = sbr.rel (%p128) target = $region28
      $region27: #{hourglassup_forward.30} parent=23 // pred_region
        %s131 = smul.u32 4, %s9
        %p132 = scmp.lt.s32.totalorder %s131, 7
        %s133 = scalar_select %p132, %s131, 7
        %s134 = smul.addr %s133, 4
        %s135 = scalar_lea.vmem %s0, %s134
        %s136 = smul.u32 4, %s9
      $region28: #{hourglassup_forward.30} parent=23 // pred_fallthru
        _
    $region24: #{hourglassup_forward.30} parent=5 // pred_fallthru
      _
    %p137 = scmp.le.s32.totalorder 1, %s9
    %p138 = scmp.lt.s32.totalorder %s9, 3
    %p139 = pnand %p137, %p138
    %p140 = pneg %p139
    // Predicated region
    $region29: #{hourglassup_forward.30} parent=5 // pred_check
      _
    $region30: #{hourglassup_forward.30} parent=5 // pred_check_branch
      %142 = sbr.rel (%p139) target = $region32
    $region31: #{hourglassup_forward.30} parent=5 // pred_region
      %s143 = ssub.s32 %s9, 1
      %s144 = smul.u32 4, %s14
      %p145 = scmp.lt.s32.totalorder %s144, 7
      %s146 = scalar_select %p145, %s144, 7
      %s147 = smul.addr %s146, 4
      %s148 = scalar_lea.vmem %s0, %s147
      %p149 = pneg %p35
      %p150 = pneg %p32
      %p151 = pneg %p56
      %p152 = pneg %p53
      %p153 = pneg %p77
      %p154 = pneg %p74
      %p155 = pneg %p103
      %p156 = pneg %p100
      %s157 = smul.u32 4, %s14
      %p158 = scmp.lt.s32.totalorder %s157, 7
      %s159 = scalar_select %p158, %s157, 7
      %s160 = smul.addr %s159, 4
      %s161 = scalar_lea.vmem %s3, %s160
      %s162 = smul.u32 4, %s14
      %p163 = scmp.lt.s32.totalorder %s162, 7
      %s164 = scalar_select %p163, %s162, 7
      %s165 = smul.addr %s164, 4
      %s166 = scalar_lea.vmem %s0, %s165
      %s167 = smul.u32 4, %s14
      %s168 = smul.u32 4, %s14
      %p169 = scmp.lt.s32.totalorder %s168, 7
      %s170 = scalar_select %p169, %s168, 7
      %s171 = smul.addr %s170, 4
      %s172 = scalar_lea.vmem %s3, %s171
      %s173 = smul.u32 4, %s14
      %v175 = vld [vmem:[%s166] sm:$0xf]
      %v176 = vld [vmem:[%s166 + $0x4] sm:$0xf]
      %v177 = vld [vmem:[%s166 + $0x8] sm:$0xf]
      %v178 = vld [vmem:[%s166 + $0xc] sm:$0xf]
      %v179 = vld [vmem:[%s1] sm:$0xf]
      %v180 = vld [vmem:[%s2] sm:$0x1]
      %v182 = vlaneseq
      %v183 = vshrl.u32 %v182, 7
      %v184 = vsub.s32 0, %v183
      %v185 = vrot.slane %v180, %v184
      %v191 = vunpack.c.l.b16 %v175
      %v192 = vunpack.c.l.b16 %v176
      %v193 = vunpack.c.l.b16 %v177
      %v194 = vunpack.c.l.b16 %v178
      %v195 = vpack.c.b16 %v192, %v191
      %v196 = vpack.c.b16 %v194, %v193
      %vm197 = vcmask 64512
      %v199 = vsel %vm197, %v195, 0
      %v202 = vsel %vm197, %v196, 0
      %vm204 = vcmask 1043456
      %v206 = vsel %vm204, %v179, 0
      %208 = vmatprep.subr.bf16.mxu0 0
      %209 = vmatpush1.bf16.msra.mxu0 0
      %210 = vmatprep.subr.bf16.mxu0 0
      %211 = vmatpush1.bf16.msra.mxu0 0
      %212 = vmatprep.subr.bf16.mxu0 0
      %213 = vmatpush1.bf16.msra.mxu0 0
      %214 = vmatprep.subr.bf16.mxu0 0
      %215 = vmatpush1.bf16.msra.mxu0 0
      %216 = vmatprep.subr.bf16.mxu0 0
      %217 = vmatpush1.bf16.msra.mxu0 0
      %218 = vmatprep.subr.bf16.mxu0 0
      %219 = vmatpush1.bf16.msra.mxu0 0
      %220 = vmatprep.subr.bf16.mxu0 0
      %221 = vmatpush1.bf16.msra.mxu0 0
      %222 = vmatprep.subr.bf16.mxu0 0
      %223 = vmatpush1.bf16.msra.mxu0 %v206
      %224 = vmatprep.subr.bf16.mxu0 0
      %225 = vmatpush2.bf16.msra.mxu0 0
      %226 = vmatprep.subr.bf16.mxu0 0
      %227 = vmatpush2.bf16.msra.mxu0 0
      %228 = vmatprep.subr.bf16.mxu0 0
      %229 = vmatpush2.bf16.msra.mxu0 0
      %230 = vmatprep.subr.bf16.mxu0 0
      %231 = vmatpush2.bf16.msra.mxu0 0
      %232 = vmatprep.subr.bf16.mxu0 0
      %233 = vmatpush2.bf16.msra.mxu0 0
      %234 = vmatprep.subr.bf16.mxu0 0
      %235 = vmatpush2.bf16.msra.mxu0 0
      %236 = vmatprep.subr.bf16.mxu0 0
      %237 = vmatpush2.bf16.msra.mxu0 0
      %238 = vmatprep.subr.bf16.mxu0 0
      %239 = vmatpush2.bf16.msra.mxu0 0
      %240 = vmatprep.mubr.bf16.mxu0 0
      %241 = vmatmul.mubr.bf16.gmra.mxu0 %v199
      %v242 = vpop.f32.mrf.mxu0
      %v243 = vadd.f32 %v185, %v242
      %v244 = vpop.f32.mrf.mxu0
      %v245 = vpop.f32.mrf.mxu0
      %v246 = vadd.f32 %v185, %v245
      %v247 = vpop.f32.mrf.mxu0
      %248 = vmatprep.mubr.bf16.mxu0 0
      %249 = vmatmul.mubr.bf16.gmra.mxu0 %v202
      %v250 = vpop.f32.mrf.mxu0
      %v251 = vadd.f32 %v185, %v250
      %v252 = vpop.f32.mrf.mxu0
      %v253 = vpop.f32.mrf.mxu0
      %v254 = vadd.f32 %v185, %v253
      %v255 = vpop.f32.mrf.mxu0
      %256 = vdwg.mxu0
      %v257 = vpack.c.bf16 %v246, %v243
      %v258 = vpack.c.bf16 %v254, %v251
      %v261 = vunpack.c.l.b16 %v257
      %v262 = vunpack.c.h.b16 %v257
      %v263 = vunpack.c.l.b16 %v258
      %v264 = vunpack.c.h.b16 %v258
      %v265 = vpack.c.b16 %v261, %v261
      %v266 = vpack.c.b16 %v262, %v262
      %v267 = vpack.c.b16 %v263, %v263
      %v268 = vpack.c.b16 %v264, %v264
      %vm273 = vcmask 60416
      %274 = vst.msk [vmem:[%s172] sm:$0xf] %vm273, %v265
      %275 = vst.msk [vmem:[%s172 + $0x4] sm:$0xf] %vm273, %v266
      %276 = vst.msk [vmem:[%s172 + $0x8] sm:$0xf] %vm273, %v267
      %277 = vst.msk [vmem:[%s172 + $0xc] sm:$0xf] %vm273, %v268
      %s278 = smul.u32 4, %s14
      %p279 = scmp.lt.s32.totalorder %s278, 7
      %s280 = scalar_select %p279, %s278, 7
      %s281 = smul.addr %s280, 4
      %s282 = scalar_lea.vmem %s3, %s281
      // Predicated region
      $region33: #{hourglassup_forward.30} parent=31 // pred_check
        %p283 = pneg %p100
      $region34: #{hourglassup_forward.30} parent=31 // pred_check_branch
        %285 = sbr.rel (%p283) target = $region36
      $region35: #{hourglassup_forward.30} parent=31 // pred_region
        %s286 = smul.u32 4, %s14
      $region36: #{hourglassup_forward.30} parent=31 // pred_fallthru
        _
    $region32: #{hourglassup_forward.30} parent=5 // pred_fallthru
      _
    %p287 = scmp.le.s32.totalorder 2, %s9
    // Predicated region
    $region37: #{hourglassup_forward.30} parent=5 // pred_check
      %p288 = pneg %p287
    $region38: #{hourglassup_forward.30} parent=5 // pred_check_branch
      %290 = sbr.rel (%p288) target = $region40
    $region39: #{hourglassup_forward.30} parent=5 // pred_region
      %s291 = ssub.s32 %s9, 2
      // Predicated region
      $region41: #{hourglassup_forward.30} parent=39 // pred_check
        %p292 = pneg %p106
      $region42: #{hourglassup_forward.30} parent=39 // pred_check_branch
        %294 = sbr.rel (%p292) target = $region44
      $region43: #{hourglassup_forward.30} parent=39 // pred_region
        %s295 = smul.u32 4, %s15
        %p296 = scmp.lt.s32.totalorder %s295, 7
        %s297 = scalar_select %p296, %s295, 7
        %s298 = smul.addr %s297, 4
        %s299 = scalar_lea.vmem %s3, %s298
      $region44: #{hourglassup_forward.30} parent=39 // pred_fallthru
        _
    $region40: #{hourglassup_forward.30} parent=5 // pred_fallthru
      _
  $region6: #{hourglassup_forward.30} parent=0 // loop_footer
    %s13 = sadd.s32 1, %s9
  $region7: #{hourglassup_forward.30} parent=0 // loop_footer_branch
    %8 = sbr.rel target = $region3
  $region8: #{hourglassup_forward.30} parent=0 // loop_exit
    _

// kernel: hourglassup_forward.38
$region0: #{hourglassup_forward.38}
  #allocation0 [shape = 'u32[]', space=smem, size = 0x4, offset = 0x4, fixed_abs, tag = 'smem constant byte address 0x4 - core index']
  #allocation1 [shape = 'u32[144,128]{1,0:T(1,128)}', space=vmem, size = 0x12000, scoped, tag = 'internal scratch']
  %s0 = inlined_call_operand.vmem [shape: bf16[8,128], index: 0, kind: input, shape index: {}]
  %s1 = inlined_call_operand.vmem [shape: bf16[128,8], index: 1, kind: input, shape index: {}]
  %s2 = inlined_call_operand.vmem [shape: f32[1,8], index: 2, kind: input, shape index: {}]
  %s3 = inlined_call_operand.vmem [shape: bf16[8,8], index: 3, kind: input, shape index: {}]
  %s4 = inlined_call_operand.vmem [shape: bf16[8,8], index: 4, kind: output, shape index: {}]
  %s5 = sld [smem:[#allocation0]]
  $region26: #{hourglassup_forward.38} parent=0
    _
  %s7 = ssub.s32 1, %s5
  %s8 = scalar_select 0, %s7, %s5
  // Predicated region
  $region2: #{hourglassup_forward.38} parent=0 // pred_check
    _
  $region3: #{hourglassup_forward.38} parent=0 // pred_check_branch
    %10 = sbr.rel (0) target = $region5
  $region4: #{hourglassup_forward.38} parent=0 // pred_region
    _
  $region5: #{hourglassup_forward.38} parent=0 // pred_fallthru
    _
  // Predicated region
  $region6: #{hourglassup_forward.38} parent=0 // pred_check
    _
  $region7: #{hourglassup_forward.38} parent=0 // pred_check_branch
    %12 = sbr.rel (0) target = $region9
  $region8: #{hourglassup_forward.38} parent=0 // pred_region
    _
  $region9: #{hourglassup_forward.38} parent=0 // pred_fallthru
    _
  // Predicated region
  $region10: #{hourglassup_forward.38} parent=0 // pred_check
    _
  $region11: #{hourglassup_forward.38} parent=0 // pred_check_branch
    %14 = sbr.rel (0) target = $region13
  $region12: #{hourglassup_forward.38} parent=0 // pred_region
    _
  $region13: #{hourglassup_forward.38} parent=0 // pred_fallthru
    _
  // Predicated region
  $region14: #{hourglassup_forward.38} parent=0 // pred_check
    _
  $region15: #{hourglassup_forward.38} parent=0 // pred_check_branch
    %16 = sbr.rel (0) target = $region17
  $region16: #{hourglassup_forward.38} parent=0 // pred_region
    _
  $region17: #{hourglassup_forward.38} parent=0 // pred_fallthru
    _
  %v18 = vld [vmem:[%s0] sm:$0xf]
  %v19 = vld [vmem:[%s1] sm:$0xf]
  %v20 = vld [vmem:[%s1 + $0x4] sm:$0xf]
  %v21 = vld [vmem:[%s1 + $0x8] sm:$0xf]
  %v22 = vld [vmem:[%s1 + $0xc] sm:$0xf]
  %v23 = vld [vmem:[%s1 + $0x10] sm:$0xf]
  %v24 = vld [vmem:[%s1 + $0x14] sm:$0xf]
  %v25 = vld [vmem:[%s1 + $0x18] sm:$0xf]
  %v26 = vld [vmem:[%s1 + $0x1c] sm:$0xf]
  %v27 = vld [vmem:[%s1 + $0x20] sm:$0xf]
  %v28 = vld [vmem:[%s1 + $0x24] sm:$0xf]
  %v29 = vld [vmem:[%s1 + $0x28] sm:$0xf]
  %v30 = vld [vmem:[%s1 + $0x2c] sm:$0xf]
  %v31 = vld [vmem:[%s1 + $0x30] sm:$0xf]
  %v32 = vld [vmem:[%s1 + $0x34] sm:$0xf]
  %v33 = vld [vmem:[%s1 + $0x38] sm:$0xf]
  %v34 = vld [vmem:[%s1 + $0x3c] sm:$0xf]
  %v35 = vld [vmem:[%s2] sm:$0x1]
  %v37 = vlaneseq
  %v38 = vshrl.u32 %v37, 7
  %v39 = vsub.s32 0, %v38
  %v40 = vrot.slane %v35, %v39
  %v58 = vunpack.c.l.b16 %v19
  %v59 = vunpack.c.l.b16 %v20
  %v60 = vunpack.c.l.b16 %v21
  %v61 = vunpack.c.l.b16 %v22
  %v62 = vunpack.c.l.b16 %v23
  %v63 = vunpack.c.l.b16 %v24
  %v64 = vunpack.c.l.b16 %v25
  %v65 = vunpack.c.l.b16 %v26
  %v66 = vunpack.c.l.b16 %v27
  %v67 = vunpack.c.l.b16 %v28
  %v68 = vunpack.c.l.b16 %v29
  %v69 = vunpack.c.l.b16 %v30
  %v70 = vunpack.c.l.b16 %v31
  %v71 = vunpack.c.l.b16 %v32
  %v72 = vunpack.c.l.b16 %v33
  %v73 = vunpack.c.l.b16 %v34
  %v74 = vpack.c.b16 %v59, %v58
  %v75 = vpack.c.b16 %v61, %v60
  %v76 = vpack.c.b16 %v63, %v62
  %v77 = vpack.c.b16 %v65, %v64
  %v78 = vpack.c.b16 %v67, %v66
  %v79 = vpack.c.b16 %v69, %v68
  %v80 = vpack.c.b16 %v71, %v70
  %v81 = vpack.c.b16 %v73, %v72
  %90 = vmatprep.subr.bf16.mxu0 0
  %91 = vmatpush1.bf16.msra.mxu0 %v81
  %92 = vmatprep.subr.bf16.mxu0 0
  %93 = vmatpush1.bf16.msra.mxu0 %v80
  %94 = vmatprep.subr.bf16.mxu0 0
  %95 = vmatpush1.bf16.msra.mxu0 %v79
  %96 = vmatprep.subr.bf16.mxu0 0
  %97 = vmatpush1.bf16.msra.mxu0 %v78
  %98 = vmatprep.subr.bf16.mxu0 0
  %99 = vmatpush1.bf16.msra.mxu0 %v77
  %100 = vmatprep.subr.bf16.mxu0 0
  %101 = vmatpush1.bf16.msra.mxu0 %v76
  %102 = vmatprep.subr.bf16.mxu0 0
  %103 = vmatpush1.bf16.msra.mxu0 %v75
  %104 = vmatprep.subr.bf16.mxu0 0
  %105 = vmatpush1.bf16.msra.mxu0 %v74
  %106 = vmatprep.subr.bf16.mxu0 0
  %107 = vmatpush2.bf16.msra.mxu0 0
  %108 = vmatprep.subr.bf16.mxu0 0
  %109 = vmatpush2.bf16.msra.mxu0 0
  %110 = vmatprep.subr.bf16.mxu0 0
  %111 = vmatpush2.bf16.msra.mxu0 0
  %112 = vmatprep.subr.bf16.mxu0 0
  %113 = vmatpush2.bf16.msra.mxu0 0
  %114 = vmatprep.subr.bf16.mxu0 0
  %115 = vmatpush2.bf16.msra.mxu0 0
  %116 = vmatprep.subr.bf16.mxu0 0
  %117 = vmatpush2.bf16.msra.mxu0 0
  %118 = vmatprep.subr.bf16.mxu0 0
  %119 = vmatpush2.bf16.msra.mxu0 0
  %120 = vmatprep.subr.bf16.mxu0 0
  %121 = vmatpush2.bf16.msra.mxu0 0
  %122 = vmatprep.mubr.bf16.mxu0 0
  %123 = vmatmul.mubr.bf16.gmra.mxu0 %v18
  %v124 = vpop.f32.mrf.mxu0
  %v125 = vadd.f32 %v40, %v124
  %v126 = vpop.f32.mrf.mxu0
  %v127 = vpop.f32.mrf.mxu0
  %v128 = vpop.f32.mrf.mxu0
  %129 = vdwg.mxu0
  %v130 = vld [vmem:[%s3] sm:$0xf]
  %v131 = vunpack.c.l.bf16 %v130
  %v132 = vadd.f32 %v125, %v131
  %v133 = vmax.f32 %v132, 0.0
  %v134 = vand.u32 2147483647, %v132
  %v135 = vsub.f32 0.0, %v134
  %v136 = vmul.f32 %v135, 1.442695
  %v137 = vpow.pop %v136
  %v138 = vadd.f32 %v137, 1.0
  %v139 = vlog2.pop %v138
  %v140 = vmul.f32 %v139, 0.6931472
  %v141 = vmul.f32 -0.5, %v137
  %v142 = vadd.f32 %v141, 1.0
  %v143 = vmul.f32 %v142, %v137
  %v144 = vand.u32 2147483647, %v137
  %vm145 = vcmp.lt.f32.partialorder %v144, 0.0004427343
  %v146 = vsel %vm145, %v143, %v140
  %v147 = vadd.f32 %v133, %v146
  %v148 = vtanh.pop %v147
  %v149 = vmul.f32 %v132, %v148
  %v150 = vpack.c.bf16 %v149, %v149
  %vm151 = vcmask 60416
  %152 = vst.msk [vmem:[%s4] sm:$0xf] %vm151, %v150
  // Predicated region
  $region18: #{hourglassup_forward.38} parent=0 // pred_check
    _
  $region19: #{hourglassup_forward.38} parent=0 // pred_check_branch
    %154 = sbr.rel (0) target = $region21
  $region20: #{hourglassup_forward.38} parent=0 // pred_region
    _
  $region21: #{hourglassup_forward.38} parent=0 // pred_fallthru
    _
  // Predicated region
  $region22: #{hourglassup_forward.38} parent=0 // pred_check
    _
  $region23: #{hourglassup_forward.38} parent=0 // pred_check_branch
    %156 = sbr.rel (0) target = $region25
  $region24: #{hourglassup_forward.38} parent=0 // pred_region
    _
  $region25: #{hourglassup_forward.38} parent=0 // pred_fallthru
    _

// kernel: hourglassup_forward.29
$region0: #{hourglassup_forward.29}
  #allocation0 [shape = 'u32[]', space=smem, size = 0x4, offset = 0x4, fixed_abs, tag = 'smem constant byte address 0x4 - core index']
  #allocation1 [shape = 'u32[144,128]{1,0:T(1,128)}', space=vmem, size = 0x12000, scoped, tag = 'internal scratch']
  %s0 = inlined_call_operand.vmem [shape: bf16[8,432], index: 0, kind: input, shape index: {}]
  %s1 = inlined_call_operand.vmem [shape: bf16[432,16], index: 1, kind: input, shape index: {}]
  %s2 = inlined_call_operand.vmem [shape: f32[1,16], index: 2, kind: input, shape index: {}]
  %s3 = inlined_call_operand.vmem [shape: bf16[8,16], index: 3, kind: output, shape index: {}]
  %s4 = sld [smem:[#allocation0]]
  $region22: #{hourglassup_forward.29} parent=0
    _
  %s6 = ssub.s32 1, %s4
  %s7 = scalar_select 0, %s6, %s4
  // Predicated region
  $region2: #{hourglassup_forward.29} parent=0 // pred_check
    _
  $region3: #{hourglassup_forward.29} parent=0 // pred_check_branch
    %9 = sbr.rel (0) target = $region5
  $region4: #{hourglassup_forward.29} parent=0 // pred_region
    _
  $region5: #{hourglassup_forward.29} parent=0 // pred_fallthru
    _
  // Predicated region
  $region6: #{hourglassup_forward.29} parent=0 // pred_check
    _
  $region7: #{hourglassup_forward.29} parent=0 // pred_check_branch
    %11 = sbr.rel (0) target = $region9
  $region8: #{hourglassup_forward.29} parent=0 // pred_region
    _
  $region9: #{hourglassup_forward.29} parent=0 // pred_fallthru
    _
  // Predicated region
  $region10: #{hourglassup_forward.29} parent=0 // pred_check
    _
  $region11: #{hourglassup_forward.29} parent=0 // pred_check_branch
    %13 = sbr.rel (0) target = $region13
  $region12: #{hourglassup_forward.29} parent=0 // pred_region
    _
  $region13: #{hourglassup_forward.29} parent=0 // pred_fallthru
    _
  %v15 = vld [vmem:[%s0] sm:$0xff]
  %v16 = vld [vmem:[%s0 + $0x8] sm:$0xff]
  %v17 = vld [vmem:[%s1] sm:$0xf]
  %v18 = vld [vmem:[%s1 + $0x4] sm:$0xf]
  %v19 = vld [vmem:[%s1 + $0x8] sm:$0xf]
  %v20 = vld [vmem:[%s1 + $0xc] sm:$0xf]
  %v21 = vld [vmem:[%s1 + $0x10] sm:$0xf]
  %v22 = vld [vmem:[%s1 + $0x14] sm:$0xf]
  %v23 = vld [vmem:[%s1 + $0x18] sm:$0xf]
  %v24 = vld [vmem:[%s1 + $0x1c] sm:$0xf]
  %v25 = vld [vmem:[%s1 + $0x20] sm:$0xf]
  %v26 = vld [vmem:[%s1 + $0x24] sm:$0xf]
  %v27 = vld [vmem:[%s1 + $0x28] sm:$0xf]
  %v28 = vld [vmem:[%s1 + $0x2c] sm:$0xf]
  %v29 = vld [vmem:[%s1 + $0x30] sm:$0xf]
  %v30 = vld [vmem:[%s1 + $0x34] sm:$0xf]
  %v31 = vld [vmem:[%s1 + $0x38] sm:$0xf]
  %v32 = vld [vmem:[%s1 + $0x3c] sm:$0xf]
  %v33 = vld [vmem:[%s1 + $0x40] sm:$0xf]
  %v34 = vld [vmem:[%s1 + $0x44] sm:$0xf]
  %v35 = vld [vmem:[%s1 + $0x48] sm:$0xf]
  %v36 = vld [vmem:[%s1 + $0x4c] sm:$0xf]
  %v37 = vld [vmem:[%s1 + $0x50] sm:$0xf]
  %v38 = vld [vmem:[%s1 + $0x54] sm:$0xf]
  %v39 = vld [vmem:[%s1 + $0x58] sm:$0xf]
  %v40 = vld [vmem:[%s1 + $0x5c] sm:$0xf]
  %v41 = vld [vmem:[%s1 + $0x60] sm:$0xf]
  %v42 = vld [vmem:[%s1 + $0x64] sm:$0xf]
  %v43 = vld [vmem:[%s1 + $0x68] sm:$0xf]
  %v44 = vld [vmem:[%s1 + $0x6c] sm:$0xf]
  %v45 = vld [vmem:[%s1 + $0x70] sm:$0xf]
  %v46 = vld [vmem:[%s1 + $0x74] sm:$0xf]
  %v47 = vld [vmem:[%s1 + $0x78] sm:$0xf]
  %v48 = vld [vmem:[%s1 + $0x7c] sm:$0xf]
  %v49 = vld [vmem:[%s1 + $0x80] sm:$0xf]
  %v50 = vld [vmem:[%s1 + $0x84] sm:$0xf]
  %v51 = vld [vmem:[%s1 + $0x88] sm:$0xf]
  %v52 = vld [vmem:[%s1 + $0x8c] sm:$0xf]
  %v53 = vld [vmem:[%s1 + $0x90] sm:$0xf]
  %v54 = vld [vmem:[%s1 + $0x94] sm:$0xf]
  %v55 = vld [vmem:[%s1 + $0x98] sm:$0xf]
  %v56 = vld [vmem:[%s1 + $0x9c] sm:$0xf]
  %v57 = vld [vmem:[%s1 + $0xa0] sm:$0xf]
  %v58 = vld [vmem:[%s1 + $0xa4] sm:$0xf]
  %v59 = vld [vmem:[%s1 + $0xa8] sm:$0xf]
  %v60 = vld [vmem:[%s1 + $0xac] sm:$0xf]
  %v61 = vld [vmem:[%s1 + $0xb0] sm:$0xf]
  %v62 = vld [vmem:[%s1 + $0xb4] sm:$0xf]
  %v63 = vld [vmem:[%s1 + $0xb8] sm:$0xf]
  %v64 = vld [vmem:[%s1 + $0xbc] sm:$0xf]
  %v65 = vld [vmem:[%s1 + $0xc0] sm:$0xf]
  %v66 = vld [vmem:[%s1 + $0xc4] sm:$0xf]
  %v67 = vld [vmem:[%s1 + $0xc8] sm:$0xf]
  %v68 = vld [vmem:[%s1 + $0xcc] sm:$0xf]
  %v69 = vld [vmem:[%s1 + $0xd0] sm:$0xf]
  %v70 = vld [vmem:[%s1 + $0xd4] sm:$0xf]
  %v71 = vld [vmem:[%s2] sm:$0x1]
  %v73 = vlaneseq
  %v74 = vshrl.u32 %v73, 7
  %v75 = vsub.s32 0, %v74
  %v76 = vrot.slane %v71, %v75
  %v80 = vunpack.c.l.b16 %v15
  %v81 = vunpack.c.h.b16 %v15
  %v82 = vunpack.c.l.b16 %v16
  %v83 = vunpack.c.h.b16 %v16
  %v84 = vpack.c.b16 %v80, %v80
  %v85 = vpack.c.b16 %v81, %v81
  %v86 = vpack.c.b16 %v82, %v82
  %v87 = vpack.c.b16 %v83, %v83
  %v145 = vunpack.c.l.b16 %v17
  %v146 = vunpack.c.l.b16 %v18
  %v147 = vunpack.c.l.b16 %v19
  %v148 = vunpack.c.l.b16 %v20
  %v149 = vunpack.c.l.b16 %v21
  %v150 = vunpack.c.l.b16 %v22
  %v151 = vunpack.c.l.b16 %v23
  %v152 = vunpack.c.l.b16 %v24
  %v153 = vunpack.c.l.b16 %v25
  %v154 = vunpack.c.l.b16 %v26
  %v155 = vunpack.c.l.b16 %v27
  %v156 = vunpack.c.l.b16 %v28
  %v157 = vunpack.c.l.b16 %v29
  %v158 = vunpack.c.l.b16 %v30
  %v159 = vunpack.c.l.b16 %v31
  %v160 = vunpack.c.l.b16 %v32
  %v161 = vunpack.c.l.b16 %v33
  %v162 = vunpack.c.l.b16 %v34
  %v163 = vunpack.c.l.b16 %v35
  %v164 = vunpack.c.l.b16 %v36
  %v165 = vunpack.c.l.b16 %v37
  %v166 = vunpack.c.l.b16 %v38
  %v167 = vunpack.c.l.b16 %v39
  %v168 = vunpack.c.l.b16 %v40
  %v169 = vunpack.c.l.b16 %v41
  %v170 = vunpack.c.l.b16 %v42
  %v171 = vunpack.c.l.b16 %v43
  %v172 = vunpack.c.l.b16 %v44
  %v173 = vunpack.c.l.b16 %v45
  %v174 = vunpack.c.l.b16 %v46
  %v175 = vunpack.c.l.b16 %v47
  %v176 = vunpack.c.l.b16 %v48
  %v177 = vunpack.c.l.b16 %v49
  %v178 = vunpack.c.l.b16 %v50
  %v179 = vunpack.c.l.b16 %v51
  %v180 = vunpack.c.l.b16 %v52
  %v181 = vunpack.c.l.b16 %v53
  %v182 = vunpack.c.l.b16 %v54
  %v183 = vunpack.c.l.b16 %v55
  %v184 = vunpack.c.l.b16 %v56
  %v185 = vunpack.c.l.b16 %v57
  %v186 = vunpack.c.l.b16 %v58
  %v187 = vunpack.c.l.b16 %v59
  %v188 = vunpack.c.l.b16 %v60
  %v189 = vunpack.c.l.b16 %v61
  %v190 = vunpack.c.l.b16 %v62
  %v191 = vunpack.c.l.b16 %v63
  %v192 = vunpack.c.l.b16 %v64
  %v193 = vunpack.c.l.b16 %v65
  %v194 = vunpack.c.l.b16 %v66
  %v195 = vunpack.c.l.b16 %v67
  %v196 = vunpack.c.l.b16 %v68
  %v197 = vunpack.c.l.b16 %v69
  %v198 = vunpack.c.l.b16 %v70
  %v199 = vpack.c.b16 %v146, %v145
  %v200 = vpack.c.b16 %v148, %v147
  %v201 = vpack.c.b16 %v150, %v149
  %v202 = vpack.c.b16 %v152, %v151
  %v203 = vpack.c.b16 %v154, %v153
  %v204 = vpack.c.b16 %v156, %v155
  %v205 = vpack.c.b16 %v158, %v157
  %v206 = vpack.c.b16 %v160, %v159
  %v207 = vpack.c.b16 %v162, %v161
  %v208 = vpack.c.b16 %v164, %v163
  %v209 = vpack.c.b16 %v166, %v165
  %v210 = vpack.c.b16 %v168, %v167
  %v211 = vpack.c.b16 %v170, %v169
  %v212 = vpack.c.b16 %v172, %v171
  %v213 = vpack.c.b16 %v174, %v173
  %v214 = vpack.c.b16 %v176, %v175
  %v215 = vpack.c.b16 %v178, %v177
  %v216 = vpack.c.b16 %v180, %v179
  %v217 = vpack.c.b16 %v182, %v181
  %v218 = vpack.c.b16 %v184, %v183
  %v219 = vpack.c.b16 %v186, %v185
  %v220 = vpack.c.b16 %v188, %v187
  %v221 = vpack.c.b16 %v190, %v189
  %v222 = vpack.c.b16 %v192, %v191
  %v223 = vpack.c.b16 %v194, %v193
  %v224 = vpack.c.b16 %v196, %v195
  %v225 = vpack.c.b16 %v198, %v197
  %vm253 = vcmask 392192
  %v255 = vsel %vm253, %v87, 0
  %257 = vmatprep.subr.bf16.mxu0 0
  %258 = vmatpush1.bf16.msra.mxu0 %v206
  %259 = vmatprep.subr.bf16.mxu0 0
  %260 = vmatpush1.bf16.msra.mxu0 %v205
  %261 = vmatprep.subr.bf16.mxu0 0
  %262 = vmatpush1.bf16.msra.mxu0 %v204
  %263 = vmatprep.subr.bf16.mxu0 0
  %264 = vmatpush1.bf16.msra.mxu0 %v203
  %265 = vmatprep.subr.bf16.mxu0 0
  %266 = vmatpush1.bf16.msra.mxu0 %v202
  %267 = vmatprep.subr.bf16.mxu0 0
  %268 = vmatpush1.bf16.msra.mxu0 %v201
  %269 = vmatprep.subr.bf16.mxu0 0
  %270 = vmatpush1.bf16.msra.mxu0 %v200
  %271 = vmatprep.subr.bf16.mxu0 0
  %272 = vmatpush1.bf16.msra.mxu0 %v199
  %273 = vmatprep.subr.bf16.mxu0 0
  %274 = vmatpush2.bf16.msra.mxu0 %v214
  %275 = vmatprep.subr.bf16.mxu0 0
  %276 = vmatpush2.bf16.msra.mxu0 %v213
  %277 = vmatprep.subr.bf16.mxu0 0
  %278 = vmatpush2.bf16.msra.mxu0 %v212
  %279 = vmatprep.subr.bf16.mxu0 0
  %280 = vmatpush2.bf16.msra.mxu0 %v211
  %281 = vmatprep.subr.bf16.mxu0 0
  %282 = vmatpush2.bf16.msra.mxu0 %v210
  %283 = vmatprep.subr.bf16.mxu0 0
  %284 = vmatpush2.bf16.msra.mxu0 %v209
  %285 = vmatprep.subr.bf16.mxu0 0
  %286 = vmatpush2.bf16.msra.mxu0 %v208
  %287 = vmatprep.subr.bf16.mxu0 0
  %288 = vmatpush2.bf16.msra.mxu0 %v207
  %289 = vmatprep.mubr.bf16.mxu0 %v85
  %290 = vmatmul.mubr.bf16.gmra.mxu0 %v84
  %v291 = vpop.f32.mrf.mxu0
  %v292 = vadd.f32 %v76, %v291
  %v293 = vpop.f32.mrf.mxu0
  %v294 = vpop.f32.mrf.mxu0
  %v295 = vpop.f32.mrf.mxu0
  %296 = vdwg.mxu0
  %297 = vmatprep.subr.bf16.mxu0 0
  %298 = vmatpush1.bf16.msra.mxu0 %v222
  %299 = vmatprep.subr.bf16.mxu0 0
  %300 = vmatpush1.bf16.msra.mxu0 %v221
  %301 = vmatprep.subr.bf16.mxu0 0
  %302 = vmatpush1.bf16.msra.mxu0 %v220
  %303 = vmatprep.subr.bf16.mxu0 0
  %304 = vmatpush1.bf16.msra.mxu0 %v219
  %305 = vmatprep.subr.bf16.mxu0 0
  %306 = vmatpush1.bf16.msra.mxu0 %v218
  %307 = vmatprep.subr.bf16.mxu0 0
  %308 = vmatpush1.bf16.msra.mxu0 %v217
  %309 = vmatprep.subr.bf16.mxu0 0
  %310 = vmatpush1.bf16.msra.mxu0 %v216
  %311 = vmatprep.subr.bf16.mxu0 0
  %312 = vmatpush1.bf16.msra.mxu0 %v215
  %313 = vmatprep.subr.bf16.mxu0 0
  %314 = vmatpush2.bf16.msra.mxu0 0
  %315 = vmatprep.subr.bf16.mxu0 0
  %316 = vmatpush2.bf16.msra.mxu0 0
  %317 = vmatprep.subr.bf16.mxu0 0
  %318 = vmatpush2.bf16.msra.mxu0 0
  %319 = vmatprep.subr.bf16.mxu0 0
  %320 = vmatpush2.bf16.msra.mxu0 0
  %321 = vmatprep.subr.bf16.mxu0 0
  %322 = vmatpush2.bf16.msra.mxu0 0
  %323 = vmatprep.subr.bf16.mxu0 0
  %324 = vmatpush2.bf16.msra.mxu0 %v225
  %325 = vmatprep.subr.bf16.mxu0 0
  %326 = vmatpush2.bf16.msra.mxu0 %v224
  %327 = vmatprep.subr.bf16.mxu0 0
  %328 = vmatpush2.bf16.msra.mxu0 %v223
  %329 = vmatprep.mubr.bf16.mxu0 %v255
  %330 = vmatmul.mubr.bf16.gmra.mxu0 %v86
  %v331 = vpop.f32.mrf.mxu0
  %v332 = vadd.f32 %v292, %v331
  %v333 = vpop.f32.mrf.mxu0
  %v334 = vpop.f32.mrf.mxu0
  %v335 = vpop.f32.mrf.mxu0
  %336 = vdwg.mxu0
  %v337 = vmax.f32 %v332, 0.0
  %v338 = vand.u32 2147483647, %v332
  %v339 = vsub.f32 0.0, %v338
  %v340 = vmul.f32 %v339, 1.442695
  %v341 = vpow.pop %v340
  %v342 = vadd.f32 %v341, 1.0
  %v343 = vlog2.pop %v342
  %v344 = vmul.f32 %v343, 0.6931472
  %v345 = vmul.f32 -0.5, %v341
  %v346 = vadd.f32 %v345, 1.0
  %v347 = vmul.f32 %v346, %v341
  %v348 = vand.u32 2147483647, %v341
  %vm349 = vcmp.lt.f32.partialorder %v348, 0.0004427343
  %v350 = vsel %vm349, %v347, %v344
  %v351 = vadd.f32 %v337, %v350
  %v352 = vtanh.pop %v351
  %v353 = vmul.f32 %v332, %v352
  %v354 = vpack.c.bf16 %v353, %v353
  %vm355 = vcmask 125952
  %356 = vst.msk [vmem:[%s3] sm:$0xf] %vm355, %v354
  // Predicated region
  $region14: #{hourglassup_forward.29} parent=0 // pred_check
    _
  $region15: #{hourglassup_forward.29} parent=0 // pred_check_branch
    %358 = sbr.rel (0) target = $region17
  $region16: #{hourglassup_forward.29} parent=0 // pred_region
    _
  $region17: #{hourglassup_forward.29} parent=0 // pred_fallthru
    _
  // Predicated region
  $region18: #{hourglassup_forward.29} parent=0 // pred_check
    _
  $region19: #{hourglassup_forward.29} parent=0 // pred_check_branch
    %360 = sbr.rel (0) target = $region21
  $region20: #{hourglassup_forward.29} parent=0 // pred_region
    _
  $region21: #{hourglassup_forward.29} parent=0 // pred_fallthru
    _

// kernel: hourglassup_forward.37
$region0: #{hourglassup_forward.37}
  #allocation0 [shape = 'u32[]', space=smem, size = 0x4, offset = 0x4, fixed_abs, tag = 'smem constant byte address 0x4 - core index']
  #allocation1 [shape = 'u32[144,128]{1,0:T(1,128)}', space=vmem, size = 0x12000, scoped, tag = 'internal scratch']
  %s0 = inlined_call_operand.vmem [shape: bf16[8,64], index: 0, kind: input, shape index: {}]
  %s1 = inlined_call_operand.vmem [shape: bf16[64,8], index: 1, kind: input, shape index: {}]
  %s2 = inlined_call_operand.vmem [shape: f32[1,8], index: 2, kind: input, shape index: {}]
  %s3 = inlined_call_operand.vmem [shape: bf16[8,8], index: 3, kind: input, shape index: {}]
  %s4 = inlined_call_operand.vmem [shape: bf16[8,8], index: 4, kind: output, shape index: {}]
  %s5 = sld [smem:[#allocation0]]
  $region26: #{hourglassup_forward.37} parent=0
    _
  %s7 = ssub.s32 1, %s5
  %s8 = scalar_select 0, %s7, %s5
  // Predicated region
  $region2: #{hourglassup_forward.37} parent=0 // pred_check
    _
  $region3: #{hourglassup_forward.37} parent=0 // pred_check_branch
    %10 = sbr.rel (0) target = $region5
  $region4: #{hourglassup_forward.37} parent=0 // pred_region
    _
  $region5: #{hourglassup_forward.37} parent=0 // pred_fallthru
    _
  // Predicated region
  $region6: #{hourglassup_forward.37} parent=0 // pred_check
    _
  $region7: #{hourglassup_forward.37} parent=0 // pred_check_branch
    %12 = sbr.rel (0) target = $region9
  $region8: #{hourglassup_forward.37} parent=0 // pred_region
    _
  $region9: #{hourglassup_forward.37} parent=0 // pred_fallthru
    _
  // Predicated region
  $region10: #{hourglassup_forward.37} parent=0 // pred_check
    _
  $region11: #{hourglassup_forward.37} parent=0 // pred_check_branch
    %14 = sbr.rel (0) target = $region13
  $region12: #{hourglassup_forward.37} parent=0 // pred_region
    _
  $region13: #{hourglassup_forward.37} parent=0 // pred_fallthru
    _
  // Predicated region
  $region14: #{hourglassup_forward.37} parent=0 // pred_check
    _
  $region15: #{hourglassup_forward.37} parent=0 // pred_check_branch
    %16 = sbr.rel (0) target = $region17
  $region16: #{hourglassup_forward.37} parent=0 // pred_region
    _
  $region17: #{hourglassup_forward.37} parent=0 // pred_fallthru
    _
  %v18 = vld [vmem:[%s0] sm:$0xf]
  %v19 = vld [vmem:[%s1] sm:$0xf]
  %v20 = vld [vmem:[%s1 + $0x4] sm:$0xf]
  %v21 = vld [vmem:[%s1 + $0x8] sm:$0xf]
  %v22 = vld [vmem:[%s1 + $0xc] sm:$0xf]
  %v23 = vld [vmem:[%s1 + $0x10] sm:$0xf]
  %v24 = vld [vmem:[%s1 + $0x14] sm:$0xf]
  %v25 = vld [vmem:[%s1 + $0x18] sm:$0xf]
  %v26 = vld [vmem:[%s1 + $0x1c] sm:$0xf]
  %v27 = vld [vmem:[%s2] sm:$0x1]
  %v29 = vlaneseq
  %v30 = vshrl.u32 %v29, 7
  %v31 = vsub.s32 0, %v30
  %v32 = vrot.slane %v27, %v31
  %v42 = vunpack.c.l.b16 %v19
  %v43 = vunpack.c.l.b16 %v20
  %v44 = vunpack.c.l.b16 %v21
  %v45 = vunpack.c.l.b16 %v22
  %v46 = vunpack.c.l.b16 %v23
  %v47 = vunpack.c.l.b16 %v24
  %v48 = vunpack.c.l.b16 %v25
  %v49 = vunpack.c.l.b16 %v26
  %v50 = vpack.c.b16 %v43, %v42
  %v51 = vpack.c.b16 %v45, %v44
  %v52 = vpack.c.b16 %v47, %v46
  %v53 = vpack.c.b16 %v49, %v48
  %vm58 = vcmask 523264
  %v60 = vsel %vm58, %v18, 0
  %62 = vmatprep.subr.bf16.mxu0 0
  %63 = vmatpush1.bf16.msra.mxu0 0
  %64 = vmatprep.subr.bf16.mxu0 0
  %65 = vmatpush1.bf16.msra.mxu0 0
  %66 = vmatprep.subr.bf16.mxu0 0
  %67 = vmatpush1.bf16.msra.mxu0 0
  %68 = vmatprep.subr.bf16.mxu0 0
  %69 = vmatpush1.bf16.msra.mxu0 0
  %70 = vmatprep.subr.bf16.mxu0 0
  %71 = vmatpush1.bf16.msra.mxu0 %v53
  %72 = vmatprep.subr.bf16.mxu0 0
  %73 = vmatpush1.bf16.msra.mxu0 %v52
  %74 = vmatprep.subr.bf16.mxu0 0
  %75 = vmatpush1.bf16.msra.mxu0 %v51
  %76 = vmatprep.subr.bf16.mxu0 0
  %77 = vmatpush1.bf16.msra.mxu0 %v50
  %78 = vmatprep.subr.bf16.mxu0 0
  %79 = vmatpush2.bf16.msra.mxu0 0
  %80 = vmatprep.subr.bf16.mxu0 0
  %81 = vmatpush2.bf16.msra.mxu0 0
  %82 = vmatprep.subr.bf16.mxu0 0
  %83 = vmatpush2.bf16.msra.mxu0 0
  %84 = vmatprep.subr.bf16.mxu0 0
  %85 = vmatpush2.bf16.msra.mxu0 0
  %86 = vmatprep.subr.bf16.mxu0 0
  %87 = vmatpush2.bf16.msra.mxu0 0
  %88 = vmatprep.subr.bf16.mxu0 0
  %89 = vmatpush2.bf16.msra.mxu0 0
  %90 = vmatprep.subr.bf16.mxu0 0
  %91 = vmatpush2.bf16.msra.mxu0 0
  %92 = vmatprep.subr.bf16.mxu0 0
  %93 = vmatpush2.bf16.msra.mxu0 0
  %94 = vmatprep.mubr.bf16.mxu0 0
  %95 = vmatmul.mubr.bf16.gmra.mxu0 %v60
  %v96 = vpop.f32.mrf.mxu0
  %v97 = vadd.f32 %v32, %v96
  %v98 = vpop.f32.mrf.mxu0
  %v99 = vpop.f32.mrf.mxu0
  %v100 = vpop.f32.mrf.mxu0
  %101 = vdwg.mxu0
  %v102 = vld [vmem:[%s3] sm:$0xf]
  %v103 = vunpack.c.l.bf16 %v102
  %v104 = vadd.f32 %v97, %v103
  %v105 = vmax.f32 %v104, 0.0
  %v106 = vand.u32 2147483647, %v104
  %v107 = vsub.f32 0.0, %v106
  %v108 = vmul.f32 %v107, 1.442695
  %v109 = vpow.pop %v108
  %v110 = vadd.f32 %v109, 1.0
  %v111 = vlog2.pop %v110
  %v112 = vmul.f32 %v111, 0.6931472
  %v113 = vmul.f32 -0.5, %v109
  %v114 = vadd.f32 %v113, 1.0
  %v115 = vmul.f32 %v114, %v109
  %v116 = vand.u32 2147483647, %v109
  %vm117 = vcmp.lt.f32.partialorder %v116, 0.0004427343
  %v118 = vsel %vm117, %v115, %v112
  %v119 = vadd.f32 %v105, %v118
  %v120 = vtanh.pop %v119
  %v121 = vmul.f32 %v104, %v120
  %v122 = vpack.c.bf16 %v121, %v121
  %vm123 = vcmask 60416
  %124 = vst.msk [vmem:[%s4] sm:$0xf] %vm123, %v122
  // Predicated region
  $region18: #{hourglassup_forward.37} parent=0 // pred_check
    _
  $region19: #{hourglassup_forward.37} parent=0 // pred_check_branch
    %126 = sbr.rel (0) target = $region21
  $region20: #{hourglassup_forward.37} parent=0 // pred_region
    _
  $region21: #{hourglassup_forward.37} parent=0 // pred_fallthru
    _
  // Predicated region
  $region22: #{hourglassup_forward.37} parent=0 // pred_check
    _
  $region23: #{hourglassup_forward.37} parent=0 // pred_check_branch
    %128 = sbr.rel (0) target = $region25
  $region24: #{hourglassup_forward.37} parent=0 // pred_region
    _
  $region25: #{hourglassup_forward.37} parent=0 // pred_fallthru
    _

// kernel: hourglassup_forward.35
$region0: #{hourglassup_forward.35}
  #allocation0 [shape = 'u32[]', space=smem, size = 0x4, offset = 0x4, fixed_abs, tag = 'smem constant byte address 0x4 - core index']
  #allocation1 [shape = 'u32[144,128]{1,0:T(1,128)}', space=vmem, size = 0x12000, scoped, tag = 'internal scratch']
  %s0 = inlined_call_operand.vmem [shape: bf16[8,32], index: 0, kind: input, shape index: {}]
  %s1 = inlined_call_operand.vmem [shape: bf16[32,8], index: 1, kind: input, shape index: {}]
  %s2 = inlined_call_operand.vmem [shape: f32[1,8], index: 2, kind: input, shape index: {}]
  %s3 = inlined_call_operand.vmem [shape: bf16[8,8], index: 3, kind: input, shape index: {}]
  %s4 = inlined_call_operand.vmem [shape: bf16[8,8], index: 4, kind: output, shape index: {}]
  %s5 = sld [smem:[#allocation0]]
  $region26: #{hourglassup_forward.35} parent=0
    _
  %s7 = ssub.s32 1, %s5
  %s8 = scalar_select 0, %s7, %s5
  // Predicated region
  $region2: #{hourglassup_forward.35} parent=0 // pred_check
    _
  $region3: #{hourglassup_forward.35} parent=0 // pred_check_branch
    %10 = sbr.rel (0) target = $region5
  $region4: #{hourglassup_forward.35} parent=0 // pred_region
    _
  $region5: #{hourglassup_forward.35} parent=0 // pred_fallthru
    _
  // Predicated region
  $region6: #{hourglassup_forward.35} parent=0 // pred_check
    _
  $region7: #{hourglassup_forward.35} parent=0 // pred_check_branch
    %12 = sbr.rel (0) target = $region9
  $region8: #{hourglassup_forward.35} parent=0 // pred_region
    _
  $region9: #{hourglassup_forward.35} parent=0 // pred_fallthru
    _
  // Predicated region
  $region10: #{hourglassup_forward.35} parent=0 // pred_check
    _
  $region11: #{hourglassup_forward.35} parent=0 // pred_check_branch
    %14 = sbr.rel (0) target = $region13
  $region12: #{hourglassup_forward.35} parent=0 // pred_region
    _
  $region13: #{hourglassup_forward.35} parent=0 // pred_fallthru
    _
  // Predicated region
  $region14: #{hourglassup_forward.35} parent=0 // pred_check
    _
  $region15: #{hourglassup_forward.35} parent=0 // pred_check_branch
    %16 = sbr.rel (0) target = $region17
  $region16: #{hourglassup_forward.35} parent=0 // pred_region
    _
  $region17: #{hourglassup_forward.35} parent=0 // pred_fallthru
    _
  %v18 = vld [vmem:[%s0] sm:$0xf]
  %v19 = vld [vmem:[%s1] sm:$0xf]
  %v20 = vld [vmem:[%s1 + $0x4] sm:$0xf]
  %v21 = vld [vmem:[%s1 + $0x8] sm:$0xf]
  %v22 = vld [vmem:[%s1 + $0xc] sm:$0xf]
  %v23 = vld [vmem:[%s2] sm:$0x1]
  %v25 = vlaneseq
  %v26 = vshrl.u32 %v25, 7
  %v27 = vsub.s32 0, %v26
  %v28 = vrot.slane %v23, %v27
  %v34 = vunpack.c.l.b16 %v19
  %v35 = vunpack.c.l.b16 %v20
  %v36 = vunpack.c.l.b16 %v21
  %v37 = vunpack.c.l.b16 %v22
  %v38 = vpack.c.b16 %v35, %v34
  %v39 = vpack.c.b16 %v37, %v36
  %vm42 = vcmask 261120
  %v44 = vsel %vm42, %v18, 0
  %46 = vmatprep.subr.bf16.mxu0 0
  %47 = vmatpush1.bf16.msra.mxu0 0
  %48 = vmatprep.subr.bf16.mxu0 0
  %49 = vmatpush1.bf16.msra.mxu0 0
  %50 = vmatprep.subr.bf16.mxu0 0
  %51 = vmatpush1.bf16.msra.mxu0 0
  %52 = vmatprep.subr.bf16.mxu0 0
  %53 = vmatpush1.bf16.msra.mxu0 0
  %54 = vmatprep.subr.bf16.mxu0 0
  %55 = vmatpush1.bf16.msra.mxu0 0
  %56 = vmatprep.subr.bf16.mxu0 0
  %57 = vmatpush1.bf16.msra.mxu0 0
  %58 = vmatprep.subr.bf16.mxu0 0
  %59 = vmatpush1.bf16.msra.mxu0 %v39
  %60 = vmatprep.subr.bf16.mxu0 0
  %61 = vmatpush1.bf16.msra.mxu0 %v38
  %62 = vmatprep.subr.bf16.mxu0 0
  %63 = vmatpush2.bf16.msra.mxu0 0
  %64 = vmatprep.subr.bf16.mxu0 0
  %65 = vmatpush2.bf16.msra.mxu0 0
  %66 = vmatprep.subr.bf16.mxu0 0
  %67 = vmatpush2.bf16.msra.mxu0 0
  %68 = vmatprep.subr.bf16.mxu0 0
  %69 = vmatpush2.bf16.msra.mxu0 0
  %70 = vmatprep.subr.bf16.mxu0 0
  %71 = vmatpush2.bf16.msra.mxu0 0
  %72 = vmatprep.subr.bf16.mxu0 0
  %73 = vmatpush2.bf16.msra.mxu0 0
  %74 = vmatprep.subr.bf16.mxu0 0
  %75 = vmatpush2.bf16.msra.mxu0 0
  %76 = vmatprep.subr.bf16.mxu0 0
  %77 = vmatpush2.bf16.msra.mxu0 0
  %78 = vmatprep.mubr.bf16.mxu0 0
  %79 = vmatmul.mubr.bf16.gmra.mxu0 %v44
  %v80 = vpop.f32.mrf.mxu0
  %v81 = vadd.f32 %v28, %v80
  %v82 = vpop.f32.mrf.mxu0
  %v83 = vpop.f32.mrf.mxu0
  %v84 = vpop.f32.mrf.mxu0
  %85 = vdwg.mxu0
  %v86 = vld [vmem:[%s3] sm:$0xf]
  %v87 = vunpack.c.l.bf16 %v86
  %v88 = vadd.f32 %v81, %v87
  %v89 = vmax.f32 %v88, 0.0
  %v90 = vand.u32 2147483647, %v88
  %v91 = vsub.f32 0.0, %v90
  %v92 = vmul.f32 %v91, 1.442695
  %v93 = vpow.pop %v92
  %v94 = vadd.f32 %v93, 1.0
  %v95 = vlog2.pop %v94
  %v96 = vmul.f32 %v95, 0.6931472
  %v97 = vmul.f32 -0.5, %v93
  %v98 = vadd.f32 %v97, 1.0
  %v99 = vmul.f32 %v98, %v93
  %v100 = vand.u32 2147483647, %v93
  %vm101 = vcmp.lt.f32.partialorder %v100, 0.0004427343
  %v102 = vsel %vm101, %v99, %v96
  %v103 = vadd.f32 %v89, %v102
  %v104 = vtanh.pop %v103
  %v105 = vmul.f32 %v88, %v104
  %v106 = vpack.c.bf16 %v105, %v105
  %vm107 = vcmask 60416
  %108 = vst.msk [vmem:[%s4] sm:$0xf] %vm107, %v106
  // Predicated region
  $region18: #{hourglassup_forward.35} parent=0 // pred_check
    _
  $region19: #{hourglassup_forward.35} parent=0 // pred_check_branch
    %110 = sbr.rel (0) target = $region21
  $region20: #{hourglassup_forward.35} parent=0 // pred_region
    _
  $region21: #{hourglassup_forward.35} parent=0 // pred_fallthru
    _
  // Predicated region
  $region22: #{hourglassup_forward.35} parent=0 // pred_check
    _
  $region23: #{hourglassup_forward.35} parent=0 // pred_check_branch
    %112 = sbr.rel (0) target = $region25
  $region24: #{hourglassup_forward.35} parent=0 // pred_region
    _
  $region25: #{hourglassup_forward.35} parent=0 // pred_fallthru
    _

// kernel: hourglassup_forward.31
$region0: #{hourglassup_forward.31}
  #allocation0 [shape = 'u32[]', space=smem, size = 0x4, offset = 0x4, fixed_abs, tag = 'smem constant byte address 0x4 - core index']
  #allocation1 [shape = 'u32[144,128]{1,0:T(1,128)}', space=vmem, size = 0x12000, scoped, tag = 'internal scratch']
  %s0 = inlined_call_operand.vmem [shape: bf16[8,16], index: 0, kind: input, shape index: {}]
  %s1 = inlined_call_operand.vmem [shape: bf16[16,8], index: 1, kind: input, shape index: {}]
  %s2 = inlined_call_operand.vmem [shape: f32[1,8], index: 2, kind: input, shape index: {}]
  %s3 = inlined_call_operand.vmem [shape: bf16[8,8], index: 3, kind: input, shape index: {}]
  %s4 = inlined_call_operand.vmem [shape: bf16[8,8], index: 4, kind: output, shape index: {}]
  %s5 = sld [smem:[#allocation0]]
  $region26: #{hourglassup_forward.31} parent=0
    _
  %s7 = ssub.s32 1, %s5
  %s8 = scalar_select 0, %s7, %s5
  // Predicated region
  $region2: #{hourglassup_forward.31} parent=0 // pred_check
    _
  $region3: #{hourglassup_forward.31} parent=0 // pred_check_branch
    %10 = sbr.rel (0) target = $region5
  $region4: #{hourglassup_forward.31} parent=0 // pred_region
    _
  $region5: #{hourglassup_forward.31} parent=0 // pred_fallthru
    _
  // Predicated region
  $region6: #{hourglassup_forward.31} parent=0 // pred_check
    _
  $region7: #{hourglassup_forward.31} parent=0 // pred_check_branch
    %12 = sbr.rel (0) target = $region9
  $region8: #{hourglassup_forward.31} parent=0 // pred_region
    _
  $region9: #{hourglassup_forward.31} parent=0 // pred_fallthru
    _
  // Predicated region
  $region10: #{hourglassup_forward.31} parent=0 // pred_check
    _
  $region11: #{hourglassup_forward.31} parent=0 // pred_check_branch
    %14 = sbr.rel (0) target = $region13
  $region12: #{hourglassup_forward.31} parent=0 // pred_region
    _
  $region13: #{hourglassup_forward.31} parent=0 // pred_fallthru
    _
  // Predicated region
  $region14: #{hourglassup_forward.31} parent=0 // pred_check
    _
  $region15: #{hourglassup_forward.31} parent=0 // pred_check_branch
    %16 = sbr.rel (0) target = $region17
  $region16: #{hourglassup_forward.31} parent=0 // pred_region
    _
  $region17: #{hourglassup_forward.31} parent=0 // pred_fallthru
    _
  %v18 = vld [vmem:[%s0] sm:$0xf]
  %v19 = vld [vmem:[%s1] sm:$0xf]
  %v20 = vld [vmem:[%s1 + $0x4] sm:$0xf]
  %v21 = vld [vmem:[%s2] sm:$0x1]
  %v23 = vlaneseq
  %v24 = vshrl.u32 %v23, 7
  %v25 = vsub.s32 0, %v24
  %v26 = vrot.slane %v21, %v25
  %v30 = vunpack.c.l.b16 %v19
  %v31 = vunpack.c.l.b16 %v20
  %v32 = vpack.c.b16 %v31, %v30
  %vm34 = vcmask 130048
  %v36 = vsel %vm34, %v18, 0
  %38 = vmatprep.subr.bf16.mxu0 0
  %39 = vmatpush1.bf16.msra.mxu0 0
  %40 = vmatprep.subr.bf16.mxu0 0
  %41 = vmatpush1.bf16.msra.mxu0 0
  %42 = vmatprep.subr.bf16.mxu0 0
  %43 = vmatpush1.bf16.msra.mxu0 0
  %44 = vmatprep.subr.bf16.mxu0 0
  %45 = vmatpush1.bf16.msra.mxu0 0
  %46 = vmatprep.subr.bf16.mxu0 0
  %47 = vmatpush1.bf16.msra.mxu0 0
  %48 = vmatprep.subr.bf16.mxu0 0
  %49 = vmatpush1.bf16.msra.mxu0 0
  %50 = vmatprep.subr.bf16.mxu0 0
  %51 = vmatpush1.bf16.msra.mxu0 0
  %52 = vmatprep.subr.bf16.mxu0 0
  %53 = vmatpush1.bf16.msra.mxu0 %v32
  %54 = vmatprep.subr.bf16.mxu0 0
  %55 = vmatpush2.bf16.msra.mxu0 0
  %56 = vmatprep.subr.bf16.mxu0 0
  %57 = vmatpush2.bf16.msra.mxu0 0
  %58 = vmatprep.subr.bf16.mxu0 0
  %59 = vmatpush2.bf16.msra.mxu0 0
  %60 = vmatprep.subr.bf16.mxu0 0
  %61 = vmatpush2.bf16.msra.mxu0 0
  %62 = vmatprep.subr.bf16.mxu0 0
  %63 = vmatpush2.bf16.msra.mxu0 0
  %64 = vmatprep.subr.bf16.mxu0 0
  %65 = vmatpush2.bf16.msra.mxu0 0
  %66 = vmatprep.subr.bf16.mxu0 0
  %67 = vmatpush2.bf16.msra.mxu0 0
  %68 = vmatprep.subr.bf16.mxu0 0
  %69 = vmatpush2.bf16.msra.mxu0 0
  %70 = vmatprep.mubr.bf16.mxu0 0
  %71 = vmatmul.mubr.bf16.gmra.mxu0 %v36
  %v72 = vpop.f32.mrf.mxu0
  %v73 = vadd.f32 %v26, %v72
  %v74 = vpop.f32.mrf.mxu0
  %v75 = vpop.f32.mrf.mxu0
  %v76 = vpop.f32.mrf.mxu0
  %77 = vdwg.mxu0
  %v78 = vld [vmem:[%s3] sm:$0xf]
  %v79 = vunpack.c.l.bf16 %v78
  %v80 = vadd.f32 %v73, %v79
  %v81 = vmax.f32 %v80, 0.0
  %v82 = vand.u32 2147483647, %v80
  %v83 = vsub.f32 0.0, %v82
  %v84 = vmul.f32 %v83, 1.442695
  %v85 = vpow.pop %v84
  %v86 = vadd.f32 %v85, 1.0
  %v87 = vlog2.pop %v86
  %v88 = vmul.f32 %v87, 0.6931472
  %v89 = vmul.f32 -0.5, %v85
  %v90 = vadd.f32 %v89, 1.0
  %v91 = vmul.f32 %v90, %v85
  %v92 = vand.u32 2147483647, %v85
  %vm93 = vcmp.lt.f32.partialorder %v92, 0.0004427343
  %v94 = vsel %vm93, %v91, %v88
  %v95 = vadd.f32 %v81, %v94
  %v96 = vtanh.pop %v95
  %v97 = vmul.f32 %v80, %v96
  %v98 = vpack.c.bf16 %v97, %v97
  %vm99 = vcmask 60416
  %100 = vst.msk [vmem:[%s4] sm:$0xf] %vm99, %v98
  // Predicated region
  $region18: #{hourglassup_forward.31} parent=0 // pred_check
    _
  $region19: #{hourglassup_forward.31} parent=0 // pred_check_branch
    %102 = sbr.rel (0) target = $region21
  $region20: #{hourglassup_forward.31} parent=0 // pred_region
    _
  $region21: #{hourglassup_forward.31} parent=0 // pred_fallthru
    _
  // Predicated region
  $region22: #{hourglassup_forward.31} parent=0 // pred_check
    _
  $region23: #{hourglassup_forward.31} parent=0 // pred_check_branch
    %104 = sbr.rel (0) target = $region25
  $region24: #{hourglassup_forward.31} parent=0 // pred_region
    _
  $region25: #{hourglassup_forward.31} parent=0 // pred_fallthru
    _

// kernel: hourglassup_forward.39
$region0: #{hourglassup_forward.39}
  #allocation0 [shape = 'u32[]', space=smem, size = 0x4, offset = 0x4, fixed_abs, tag = 'smem constant byte address 0x4 - core index']
  #allocation1 [shape = 'u32[144,128]{1,0:T(1,128)}', space=vmem, size = 0x12000, scoped, tag = 'internal scratch']
  %s0 = inlined_call_operand.vmem [shape: bf16[512,4], index: 0, kind: input, shape index: {}]
  %s1 = inlined_call_operand.vmem [shape: bf16[4,4], index: 1, kind: input, shape index: {}]
  %s2 = inlined_call_operand.vmem [shape: f32[1,4], index: 2, kind: input, shape index: {}]
  %s3 = inlined_call_operand.vmem [shape: bf16[512,4], index: 3, kind: output, shape index: {}]
  %s4 = sld [smem:[#allocation0]]
  $region45: #{hourglassup_forward.39} parent=0
    _
  %s6 = ssub.s32 1, %s4
  %s7 = scalar_select 0, %s6, %s4
  loop: start=0, step=1, limit=4
  $region2: #{hourglassup_forward.39} parent=0 // loop_pre_header
    _
  $region3: #{hourglassup_forward.39} parent=0 // loop_header
    %s9 = sphi 0, %s13
    %p10 = scmp.ge.s32.totalorder %s9, 4
    %s19 = sphi 0, %s21
    %s22 = sphi 0, %s19
    %s23 = sphi 0, %s22
    %s39 = sphi 0, %s23
    %s43 = sphi 0, %s43
    %s45 = sphi 0, %s43
    %s46 = sphi 0, %s45
    %s60 = sphi 0, %s46
    %s64 = sphi 0, %s64
    %s66 = sphi 0, %s64
    %s67 = sphi 0, %s66
    %s81 = sphi 0, %s67
    %s87 = sphi 0, %s89
    %s90 = sphi 0, %s87
    %s91 = sphi 0, %s90
    %s107 = sphi 0, %s91
  $region4: #{hourglassup_forward.39} parent=0 // loop_header_branch
    %12 = sbr.rel (%p10) target = $region8
  $region5: #{hourglassup_forward.39} parent=0 // loop_body
    %s14 = ssub.s32 %s9, 1
    %s15 = ssub.s32 %s9, 2
    %s16 = sadd.s32 %s9, 1
    %s17 = ssub.s32 %s9, %s16
    %p18 = scmp.eq.s32.totalorder %s17, 0
    %s20 = sadd.s32 %s19, 1
    %s21 = scalar_select %p18, %s19, %s20
    %p24 = pneg %p18
    %p25 = scmp.eq.s32.totalorder %s9, 1
    %p26 = por %p24, %p25
    %p27 = scmp.ne.s32.totalorder %s19, %s22
    %p28 = scmp.eq.s32.totalorder %s9, 0
    %p29 = por %p27, %p28
    %p30 = scmp.ne.s32.totalorder %s19, %s22
    %p31 = scmp.eq.s32.totalorder %s14, 1
    %p32 = por %p30, %p31
    %p33 = scmp.ne.s32.totalorder %s22, %s23
    %p34 = scmp.eq.s32.totalorder %s14, 0
    %p35 = por %p33, %p34
    %p36 = scmp.ne.s32.totalorder %s22, %s23
    %p37 = scmp.eq.s32.totalorder %s15, 1
    %p38 = por %p36, %p37
    %p40 = scmp.ne.s32.totalorder %s23, %s39
    %p41 = scmp.eq.s32.totalorder %s15, 0
    %p42 = por %p40, %p41
    %s44 = sadd.s32 %s43, 1
    %p47 = scmp.eq.s32.totalorder %s9, 1
    %p48 = scmp.ne.s32.totalorder %s43, %s45
    %p49 = scmp.eq.s32.totalorder %s9, 0
    %p50 = por %p48, %p49
    %p51 = scmp.ne.s32.totalorder %s43, %s45
    %p52 = scmp.eq.s32.totalorder %s14, 1
    %p53 = por %p51, %p52
    %p54 = scmp.ne.s32.totalorder %s45, %s46
    %p55 = scmp.eq.s32.totalorder %s14, 0
    %p56 = por %p54, %p55
    %p57 = scmp.ne.s32.totalorder %s45, %s46
    %p58 = scmp.eq.s32.totalorder %s15, 1
    %p59 = por %p57, %p58
    %p61 = scmp.ne.s32.totalorder %s46, %s60
    %p62 = scmp.eq.s32.totalorder %s15, 0
    %p63 = por %p61, %p62
    %s65 = sadd.s32 %s64, 1
    %p68 = scmp.eq.s32.totalorder %s9, 1
    %p69 = scmp.ne.s32.totalorder %s64, %s66
    %p70 = scmp.eq.s32.totalorder %s9, 0
    %p71 = por %p69, %p70
    %p72 = scmp.ne.s32.totalorder %s64, %s66
    %p73 = scmp.eq.s32.totalorder %s14, 1
    %p74 = por %p72, %p73
    %p75 = scmp.ne.s32.totalorder %s66, %s67
    %p76 = scmp.eq.s32.totalorder %s14, 0
    %p77 = por %p75, %p76
    %p78 = scmp.ne.s32.totalorder %s66, %s67
    %p79 = scmp.eq.s32.totalorder %s15, 1
    %p80 = por %p78, %p79
    %p82 = scmp.ne.s32.totalorder %s67, %s81
    %p83 = scmp.eq.s32.totalorder %s15, 0
    %p84 = por %p82, %p83
    %s85 = ssub.s32 %s9, %s16
    %p86 = scmp.eq.s32.totalorder %s85, 0
    %s88 = sadd.s32 %s87, 1
    %s89 = scalar_select %p86, %s87, %s88
    %p92 = pneg %p86
    %p93 = scmp.eq.s32.totalorder %s9, 1
    %p94 = por %p92, %p93
    %p95 = scmp.ne.s32.totalorder %s87, %s90
    %p96 = scmp.eq.s32.totalorder %s9, 0
    %p97 = por %p95, %p96
    %p98 = scmp.ne.s32.totalorder %s87, %s90
    %p99 = scmp.eq.s32.totalorder %s14, 1
    %p100 = por %p98, %p99
    %p101 = scmp.ne.s32.totalorder %s90, %s91
    %p102 = scmp.eq.s32.totalorder %s14, 0
    %p103 = por %p101, %p102
    %p104 = scmp.ne.s32.totalorder %s90, %s91
    %p105 = scmp.eq.s32.totalorder %s15, 1
    %p106 = por %p104, %p105
    %p108 = scmp.ne.s32.totalorder %s91, %s107
    %p109 = scmp.eq.s32.totalorder %s15, 0
    %p110 = por %p108, %p109
    %p111 = scmp.le.s32.totalorder 1, %s9
    %p112 = scmp.lt.s32.totalorder %s9, 3
    %p113 = pnand %p111, %p112
    %p114 = pneg %p113
    // Predicated region
    $region9: #{hourglassup_forward.39} parent=5 // pred_check
      _
    $region10: #{hourglassup_forward.39} parent=5 // pred_check_branch
      %116 = sbr.rel (%p113) target = $region12
    $region11: #{hourglassup_forward.39} parent=5 // pred_region
      %s117 = ssub.s32 %s9, 1
      // Predicated region
      $region13: #{hourglassup_forward.39} parent=11 // pred_check
        %p118 = pneg %p56
      $region14: #{hourglassup_forward.39} parent=11 // pred_check_branch
        %120 = sbr.rel (%p118) target = $region16
      $region15: #{hourglassup_forward.39} parent=11 // pred_region
        _
      $region16: #{hourglassup_forward.39} parent=11 // pred_fallthru
        _
      // Predicated region
      $region17: #{hourglassup_forward.39} parent=11 // pred_check
        %p121 = pneg %p77
      $region18: #{hourglassup_forward.39} parent=11 // pred_check_branch
        %123 = sbr.rel (%p121) target = $region20
      $region19: #{hourglassup_forward.39} parent=11 // pred_region
        _
      $region20: #{hourglassup_forward.39} parent=11 // pred_fallthru
        _
    $region12: #{hourglassup_forward.39} parent=5 // pred_fallthru
      _
    %p124 = scmp.lt.s32.totalorder %s9, 2
    // Predicated region
    $region21: #{hourglassup_forward.39} parent=5 // pred_check
      %p125 = pneg %p124
    $region22: #{hourglassup_forward.39} parent=5 // pred_check_branch
      %127 = sbr.rel (%p125) target = $region24
    $region23: #{hourglassup_forward.39} parent=5 // pred_region
      // Predicated region
      $region25: #{hourglassup_forward.39} parent=23 // pred_check
        %p128 = pneg %p29
      $region26: #{hourglassup_forward.39} parent=23 // pred_check_branch
        %130 = sbr.rel (%p128) target = $region28
      $region27: #{hourglassup_forward.39} parent=23 // pred_region
        %s131 = smul.u32 32, %s9
        %p132 = scmp.lt.s32.totalorder %s131, 63
        %s133 = scalar_select %p132, %s131, 63
        %s134 = smul.addr %s133, 4
        %s135 = scalar_lea.vmem %s0, %s134
        %s136 = smul.u32 32, %s9
      $region28: #{hourglassup_forward.39} parent=23 // pred_fallthru
        _
    $region24: #{hourglassup_forward.39} parent=5 // pred_fallthru
      _
    %p137 = scmp.le.s32.totalorder 1, %s9
    %p138 = scmp.lt.s32.totalorder %s9, 3
    %p139 = pnand %p137, %p138
    %p140 = pneg %p139
    // Predicated region
    $region29: #{hourglassup_forward.39} parent=5 // pred_check
      _
    $region30: #{hourglassup_forward.39} parent=5 // pred_check_branch
      %142 = sbr.rel (%p139) target = $region32
    $region31: #{hourglassup_forward.39} parent=5 // pred_region
      %s143 = ssub.s32 %s9, 1
      %s144 = smul.u32 32, %s14
      %p145 = scmp.lt.s32.totalorder %s144, 63
      %s146 = scalar_select %p145, %s144, 63
      %s147 = smul.addr %s146, 4
      %s148 = scalar_lea.vmem %s0, %s147
      %p149 = pneg %p35
      %p150 = pneg %p32
      %p151 = pneg %p56
      %p152 = pneg %p53
      %p153 = pneg %p77
      %p154 = pneg %p74
      %p155 = pneg %p103
      %p156 = pneg %p100
      %s157 = smul.u32 32, %s14
      %p158 = scmp.lt.s32.totalorder %s157, 63
      %s159 = scalar_select %p158, %s157, 63
      %s160 = smul.addr %s159, 4
      %s161 = scalar_lea.vmem %s3, %s160
      %s162 = smul.u32 32, %s14
      %p163 = scmp.lt.s32.totalorder %s162, 63
      %s164 = scalar_select %p163, %s162, 63
      %s165 = smul.addr %s164, 4
      %s166 = scalar_lea.vmem %s0, %s165
      %s167 = smul.u32 32, %s14
      %s168 = smul.u32 32, %s14
      %p169 = scmp.lt.s32.totalorder %s168, 63
      %s170 = scalar_select %p169, %s168, 63
      %s171 = smul.addr %s170, 4
      %s172 = scalar_lea.vmem %s3, %s171
      %s173 = smul.u32 32, %s14
      %v175 = vld [vmem:[%s166] sm:$0xf]
      %v176 = vld [vmem:[%s166 + $0x4] sm:$0xf]
      %v177 = vld [vmem:[%s166 + $0x8] sm:$0xf]
      %v178 = vld [vmem:[%s166 + $0xc] sm:$0xf]
      %v179 = vld [vmem:[%s166 + $0x10] sm:$0xf]
      %v180 = vld [vmem:[%s166 + $0x14] sm:$0xf]
      %v181 = vld [vmem:[%s166 + $0x18] sm:$0xf]
      %v182 = vld [vmem:[%s166 + $0x1c] sm:$0xf]
      %v183 = vld [vmem:[%s166 + $0x20] sm:$0xf]
      %v184 = vld [vmem:[%s166 + $0x24] sm:$0xf]
      %v185 = vld [vmem:[%s166 + $0x28] sm:$0xf]
      %v186 = vld [vmem:[%s166 + $0x2c] sm:$0xf]
      %v187 = vld [vmem:[%s166 + $0x30] sm:$0xf]
      %v188 = vld [vmem:[%s166 + $0x34] sm:$0xf]
      %v189 = vld [vmem:[%s166 + $0x38] sm:$0xf]
      %v190 = vld [vmem:[%s166 + $0x3c] sm:$0xf]
      %v191 = vld [vmem:[%s166 + $0x40] sm:$0xf]
      %v192 = vld [vmem:[%s166 + $0x44] sm:$0xf]
      %v193 = vld [vmem:[%s166 + $0x48] sm:$0xf]
      %v194 = vld [vmem:[%s166 + $0x4c] sm:$0xf]
      %v195 = vld [vmem:[%s166 + $0x50] sm:$0xf]
      %v196 = vld [vmem:[%s166 + $0x54] sm:$0xf]
      %v197 = vld [vmem:[%s166 + $0x58] sm:$0xf]
      %v198 = vld [vmem:[%s166 + $0x5c] sm:$0xf]
      %v199 = vld [vmem:[%s166 + $0x60] sm:$0xf]
      %v200 = vld [vmem:[%s166 + $0x64] sm:$0xf]
      %v201 = vld [vmem:[%s166 + $0x68] sm:$0xf]
      %v202 = vld [vmem:[%s166 + $0x6c] sm:$0xf]
      %v203 = vld [vmem:[%s166 + $0x70] sm:$0xf]
      %v204 = vld [vmem:[%s166 + $0x74] sm:$0xf]
      %v205 = vld [vmem:[%s166 + $0x78] sm:$0xf]
      %v206 = vld [vmem:[%s166 + $0x7c] sm:$0xf]
      %v207 = vld [vmem:[%s1] sm:$0x3]
      %v208 = vld [vmem:[%s2] sm:$0x1]
      %v210 = vlaneseq
      %v211 = vshrl.u32 %v210, 7
      %v212 = vsub.s32 0, %v211
      %v213 = vrot.slane %v208, %v212
      %v247 = vunpack.c.l.b16 %v175
      %v248 = vunpack.c.l.b16 %v176
      %v249 = vunpack.c.l.b16 %v177
      %v250 = vunpack.c.l.b16 %v178
      %v251 = vunpack.c.l.b16 %v179
      %v252 = vunpack.c.l.b16 %v180
      %v253 = vunpack.c.l.b16 %v181
      %v254 = vunpack.c.l.b16 %v182
      %v255 = vunpack.c.l.b16 %v183
      %v256 = vunpack.c.l.b16 %v184
      %v257 = vunpack.c.l.b16 %v185
      %v258 = vunpack.c.l.b16 %v186
      %v259 = vunpack.c.l.b16 %v187
      %v260 = vunpack.c.l.b16 %v188
      %v261 = vunpack.c.l.b16 %v189
      %v262 = vunpack.c.l.b16 %v190
      %v263 = vunpack.c.l.b16 %v191
      %v264 = vunpack.c.l.b16 %v192
      %v265 = vunpack.c.l.b16 %v193
      %v266 = vunpack.c.l.b16 %v194
      %v267 = vunpack.c.l.b16 %v195
      %v268 = vunpack.c.l.b16 %v196
      %v269 = vunpack.c.l.b16 %v197
      %v270 = vunpack.c.l.b16 %v198
      %v271 = vunpack.c.l.b16 %v199
      %v272 = vunpack.c.l.b16 %v200
      %v273 = vunpack.c.l.b16 %v201
      %v274 = vunpack.c.l.b16 %v202
      %v275 = vunpack.c.l.b16 %v203
      %v276 = vunpack.c.l.b16 %v204
      %v277 = vunpack.c.l.b16 %v205
      %v278 = vunpack.c.l.b16 %v206
      %v279 = vpack.c.b16 %v248, %v247
      %v280 = vpack.c.b16 %v250, %v249
      %v281 = vpack.c.b16 %v252, %v251
      %v282 = vpack.c.b16 %v254, %v253
      %v283 = vpack.c.b16 %v256, %v255
      %v284 = vpack.c.b16 %v258, %v257
      %v285 = vpack.c.b16 %v260, %v259
      %v286 = vpack.c.b16 %v262, %v261
      %v287 = vpack.c.b16 %v264, %v263
      %v288 = vpack.c.b16 %v266, %v265
      %v289 = vpack.c.b16 %v268, %v267
      %v290 = vpack.c.b16 %v270, %v269
      %v291 = vpack.c.b16 %v272, %v271
      %v292 = vpack.c.b16 %v274, %v273
      %v293 = vpack.c.b16 %v276, %v275
      %v294 = vpack.c.b16 %v278, %v277
      %vm295 = vcmask 31744
      %v297 = vsel %vm295, %v279, 0
      %v300 = vsel %vm295, %v280, 0
      %v303 = vsel %vm295, %v281, 0
      %v306 = vsel %vm295, %v282, 0
      %v309 = vsel %vm295, %v283, 0
      %v312 = vsel %vm295, %v284, 0
      %v315 = vsel %vm295, %v285, 0
      %v318 = vsel %vm295, %v286, 0
      %v321 = vsel %vm295, %v287, 0
      %v324 = vsel %vm295, %v288, 0
      %v327 = vsel %vm295, %v289, 0
      %v330 = vsel %vm295, %v290, 0
      %v333 = vsel %vm295, %v291, 0
      %v336 = vsel %vm295, %v292, 0
      %v339 = vsel %vm295, %v293, 0
      %v342 = vsel %vm295, %v294, 0
      %vm344 = vcmask 1041408
      %v346 = vsel %vm344, %v207, 0
      %348 = vmatprep.subr.bf16.mxu0 0
      %349 = vmatpush1.bf16.msra.mxu0 0
      %350 = vmatprep.subr.bf16.mxu0 0
      %351 = vmatpush1.bf16.msra.mxu0 0
      %352 = vmatprep.subr.bf16.mxu0 0
      %353 = vmatpush1.bf16.msra.mxu0 0
      %354 = vmatprep.subr.bf16.mxu0 0
      %355 = vmatpush1.bf16.msra.mxu0 0
      %356 = vmatprep.subr.bf16.mxu0 0
      %357 = vmatpush1.bf16.msra.mxu0 0
      %358 = vmatprep.subr.bf16.mxu0 0
      %359 = vmatpush1.bf16.msra.mxu0 0
      %360 = vmatprep.subr.bf16.mxu0 0
      %361 = vmatpush1.bf16.msra.mxu0 0
      %362 = vmatprep.subr.bf16.mxu0 0
      %363 = vmatpush1.bf16.msra.mxu0 %v346
      %364 = vmatprep.subr.bf16.mxu0 0
      %365 = vmatpush2.bf16.msra.mxu0 0
      %366 = vmatprep.subr.bf16.mxu0 0
      %367 = vmatpush2.bf16.msra.mxu0 0
      %368 = vmatprep.subr.bf16.mxu0 0
      %369 = vmatpush2.bf16.msra.mxu0 0
      %370 = vmatprep.subr.bf16.mxu0 0
      %371 = vmatpush2.bf16.msra.mxu0 0
      %372 = vmatprep.subr.bf16.mxu0 0
      %373 = vmatpush2.bf16.msra.mxu0 0
      %374 = vmatprep.subr.bf16.mxu0 0
      %375 = vmatpush2.bf16.msra.mxu0 0
      %376 = vmatprep.subr.bf16.mxu0 0
      %377 = vmatpush2.bf16.msra.mxu0 0
      %378 = vmatprep.subr.bf16.mxu0 0
      %379 = vmatpush2.bf16.msra.mxu0 0
      %380 = vmatprep.mubr.bf16.mxu0 0
      %381 = vmatmul.mubr.bf16.gmra.mxu0 %v297
      %v382 = vpop.f32.mrf.mxu0
      %v383 = vadd.f32 %v213, %v382
      %v384 = vpop.f32.mrf.mxu0
      %v385 = vpop.f32.mrf.mxu0
      %v386 = vadd.f32 %v213, %v385
      %v387 = vpop.f32.mrf.mxu0
      %388 = vmatprep.mubr.bf16.mxu0 0
      %389 = vmatmul.mubr.bf16.gmra.mxu0 %v300
      %v390 = vpop.f32.mrf.mxu0
      %v391 = vadd.f32 %v213, %v390
      %v392 = vpop.f32.mrf.mxu0
      %v393 = vpop.f32.mrf.mxu0
      %v394 = vadd.f32 %v213, %v393
      %v395 = vpop.f32.mrf.mxu0
      %396 = vmatprep.mubr.bf16.mxu0 0
      %397 = vmatmul.mubr.bf16.gmra.mxu0 %v303
      %v398 = vpop.f32.mrf.mxu0
      %v399 = vadd.f32 %v213, %v398
      %v400 = vpop.f32.mrf.mxu0
      %v401 = vpop.f32.mrf.mxu0
      %v402 = vadd.f32 %v213, %v401
      %v403 = vpop.f32.mrf.mxu0
      %404 = vmatprep.mubr.bf16.mxu0 0
      %405 = vmatmul.mubr.bf16.gmra.mxu0 %v306
      %v406 = vpop.f32.mrf.mxu0
      %v407 = vadd.f32 %v213, %v406
      %v408 = vpop.f32.mrf.mxu0
      %v409 = vpop.f32.mrf.mxu0
      %v410 = vadd.f32 %v213, %v409
      %v411 = vpop.f32.mrf.mxu0
      %412 = vmatprep.mubr.bf16.mxu0 0
      %413 = vmatmul.mubr.bf16.gmra.mxu0 %v309
      %v414 = vpop.f32.mrf.mxu0
      %v415 = vadd.f32 %v213, %v414
      %v416 = vpop.f32.mrf.mxu0
      %v417 = vpop.f32.mrf.mxu0
      %v418 = vadd.f32 %v213, %v417
      %v419 = vpop.f32.mrf.mxu0
      %420 = vmatprep.mubr.bf16.mxu0 0
      %421 = vmatmul.mubr.bf16.gmra.mxu0 %v312
      %v422 = vpop.f32.mrf.mxu0
      %v423 = vadd.f32 %v213, %v422
      %v424 = vpop.f32.mrf.mxu0
      %v425 = vpop.f32.mrf.mxu0
      %v426 = vadd.f32 %v213, %v425
      %v427 = vpop.f32.mrf.mxu0
      %428 = vmatprep.mubr.bf16.mxu0 0
      %429 = vmatmul.mubr.bf16.gmra.mxu0 %v315
      %v430 = vpop.f32.mrf.mxu0
      %v431 = vadd.f32 %v213, %v430
      %v432 = vpop.f32.mrf.mxu0
      %v433 = vpop.f32.mrf.mxu0
      %v434 = vadd.f32 %v213, %v433
      %v435 = vpop.f32.mrf.mxu0
      %436 = vmatprep.mubr.bf16.mxu0 0
      %437 = vmatmul.mubr.bf16.gmra.mxu0 %v318
      %v438 = vpop.f32.mrf.mxu0
      %v439 = vadd.f32 %v213, %v438
      %v440 = vpop.f32.mrf.mxu0
      %v441 = vpop.f32.mrf.mxu0
      %v442 = vadd.f32 %v213, %v441
      %v443 = vpop.f32.mrf.mxu0
      %444 = vmatprep.mubr.bf16.mxu0 0
      %445 = vmatmul.mubr.bf16.gmra.mxu0 %v321
      %v446 = vpop.f32.mrf.mxu0
      %v447 = vadd.f32 %v213, %v446
      %v448 = vpop.f32.mrf.mxu0
      %v449 = vpop.f32.mrf.mxu0
      %v450 = vadd.f32 %v213, %v449
      %v451 = vpop.f32.mrf.mxu0
      %452 = vmatprep.mubr.bf16.mxu0 0
      %453 = vmatmul.mubr.bf16.gmra.mxu0 %v324
      %v454 = vpop.f32.mrf.mxu0
      %v455 = vadd.f32 %v213, %v454
      %v456 = vpop.f32.mrf.mxu0
      %v457 = vpop.f32.mrf.mxu0
      %v458 = vadd.f32 %v213, %v457
      %v459 = vpop.f32.mrf.mxu0
      %460 = vmatprep.mubr.bf16.mxu0 0
      %461 = vmatmul.mubr.bf16.gmra.mxu0 %v327
      %v462 = vpop.f32.mrf.mxu0
      %v463 = vadd.f32 %v213, %v462
      %v464 = vpop.f32.mrf.mxu0
      %v465 = vpop.f32.mrf.mxu0
      %v466 = vadd.f32 %v213, %v465
      %v467 = vpop.f32.mrf.mxu0
      %468 = vmatprep.mubr.bf16.mxu0 0
      %469 = vmatmul.mubr.bf16.gmra.mxu0 %v330
      %v470 = vpop.f32.mrf.mxu0
      %v471 = vadd.f32 %v213, %v470
      %v472 = vpop.f32.mrf.mxu0
      %v473 = vpop.f32.mrf.mxu0
      %v474 = vadd.f32 %v213, %v473
      %v475 = vpop.f32.mrf.mxu0
      %476 = vmatprep.mubr.bf16.mxu0 0
      %477 = vmatmul.mubr.bf16.gmra.mxu0 %v333
      %v478 = vpop.f32.mrf.mxu0
      %v479 = vadd.f32 %v213, %v478
      %v480 = vpop.f32.mrf.mxu0
      %v481 = vpop.f32.mrf.mxu0
      %v482 = vadd.f32 %v213, %v481
      %v483 = vpop.f32.mrf.mxu0
      %484 = vmatprep.mubr.bf16.mxu0 0
      %485 = vmatmul.mubr.bf16.gmra.mxu0 %v336
      %v486 = vpop.f32.mrf.mxu0
      %v487 = vadd.f32 %v213, %v486
      %v488 = vpop.f32.mrf.mxu0
      %v489 = vpop.f32.mrf.mxu0
      %v490 = vadd.f32 %v213, %v489
      %v491 = vpop.f32.mrf.mxu0
      %492 = vmatprep.mubr.bf16.mxu0 0
      %493 = vmatmul.mubr.bf16.gmra.mxu0 %v339
      %v494 = vpop.f32.mrf.mxu0
      %v495 = vadd.f32 %v213, %v494
      %v496 = vpop.f32.mrf.mxu0
      %v497 = vpop.f32.mrf.mxu0
      %v498 = vadd.f32 %v213, %v497
      %v499 = vpop.f32.mrf.mxu0
      %500 = vmatprep.mubr.bf16.mxu0 0
      %501 = vmatmul.mubr.bf16.gmra.mxu0 %v342
      %v502 = vpop.f32.mrf.mxu0
      %v503 = vadd.f32 %v213, %v502
      %v504 = vpop.f32.mrf.mxu0
      %v505 = vpop.f32.mrf.mxu0
      %v506 = vadd.f32 %v213, %v505
      %v507 = vpop.f32.mrf.mxu0
      %508 = vdwg.mxu0
      %v509 = vpack.c.bf16 %v386, %v383
      %v510 = vpack.c.bf16 %v394, %v391
      %v511 = vpack.c.bf16 %v402, %v399
      %v512 = vpack.c.bf16 %v410, %v407
      %v513 = vpack.c.bf16 %v418, %v415
      %v514 = vpack.c.bf16 %v426, %v423
      %v515 = vpack.c.bf16 %v434, %v431
      %v516 = vpack.c.bf16 %v442, %v439
      %v517 = vpack.c.bf16 %v450, %v447
      %v518 = vpack.c.bf16 %v458, %v455
      %v519 = vpack.c.bf16 %v466, %v463
      %v520 = vpack.c.bf16 %v474, %v471
      %v521 = vpack.c.bf16 %v482, %v479
      %v522 = vpack.c.bf16 %v490, %v487
      %v523 = vpack.c.bf16 %v498, %v495
      %v524 = vpack.c.bf16 %v506, %v503
      %v541 = vunpack.c.l.b16 %v509
      %v542 = vunpack.c.h.b16 %v509
      %v543 = vunpack.c.l.b16 %v510
      %v544 = vunpack.c.h.b16 %v510
      %v545 = vunpack.c.l.b16 %v511
      %v546 = vunpack.c.h.b16 %v511
      %v547 = vunpack.c.l.b16 %v512
      %v548 = vunpack.c.h.b16 %v512
      %v549 = vunpack.c.l.b16 %v513
      %v550 = vunpack.c.h.b16 %v513
      %v551 = vunpack.c.l.b16 %v514
      %v552 = vunpack.c.h.b16 %v514
      %v553 = vunpack.c.l.b16 %v515
      %v554 = vunpack.c.h.b16 %v515
      %v555 = vunpack.c.l.b16 %v516
      %v556 = vunpack.c.h.b16 %v516
      %v557 = vunpack.c.l.b16 %v517
      %v558 = vunpack.c.h.b16 %v517
      %v559 = vunpack.c.l.b16 %v518
      %v560 = vunpack.c.h.b16 %v518
      %v561 = vunpack.c.l.b16 %v519
      %v562 = vunpack.c.h.b16 %v519
      %v563 = vunpack.c.l.b16 %v520
      %v564 = vunpack.c.h.b16 %v520
      %v565 = vunpack.c.l.b16 %v521
      %v566 = vunpack.c.h.b16 %v521
      %v567 = vunpack.c.l.b16 %v522
      %v568 = vunpack.c.h.b16 %v522
      %v569 = vunpack.c.l.b16 %v523
      %v570 = vunpack.c.h.b16 %v523
      %v571 = vunpack.c.l.b16 %v524
      %v572 = vunpack.c.h.b16 %v524
      %v573 = vpack.c.b16 %v541, %v541
      %v574 = vpack.c.b16 %v542, %v542
      %v575 = vpack.c.b16 %v543, %v543
      %v576 = vpack.c.b16 %v544, %v544
      %v577 = vpack.c.b16 %v545, %v545
      %v578 = vpack.c.b16 %v546, %v546
      %v579 = vpack.c.b16 %v547, %v547
      %v580 = vpack.c.b16 %v548, %v548
      %v581 = vpack.c.b16 %v549, %v549
      %v582 = vpack.c.b16 %v550, %v550
      %v583 = vpack.c.b16 %v551, %v551
      %v584 = vpack.c.b16 %v552, %v552
      %v585 = vpack.c.b16 %v553, %v553
      %v586 = vpack.c.b16 %v554, %v554
      %v587 = vpack.c.b16 %v555, %v555
      %v588 = vpack.c.b16 %v556, %v556
      %v589 = vpack.c.b16 %v557, %v557
      %v590 = vpack.c.b16 %v558, %v558
      %v591 = vpack.c.b16 %v559, %v559
      %v592 = vpack.c.b16 %v560, %v560
      %v593 = vpack.c.b16 %v561, %v561
      %v594 = vpack.c.b16 %v562, %v562
      %v595 = vpack.c.b16 %v563, %v563
      %v596 = vpack.c.b16 %v564, %v564
      %v597 = vpack.c.b16 %v565, %v565
      %v598 = vpack.c.b16 %v566, %v566
      %v599 = vpack.c.b16 %v567, %v567
      %v600 = vpack.c.b16 %v568, %v568
      %v601 = vpack.c.b16 %v569, %v569
      %v602 = vpack.c.b16 %v570, %v570
      %v603 = vpack.c.b16 %v571, %v571
      %v604 = vpack.c.b16 %v572, %v572
      %vm637 = vcmask 27648
      %638 = vst.msk [vmem:[%s172] sm:$0xf] %vm637, %v573
      %639 = vst.msk [vmem:[%s172 + $0x4] sm:$0xf] %vm637, %v574
      %640 = vst.msk [vmem:[%s172 + $0x8] sm:$0xf] %vm637, %v575
      %641 = vst.msk [vmem:[%s172 + $0xc] sm:$0xf] %vm637, %v576
      %642 = vst.msk [vmem:[%s172 + $0x10] sm:$0xf] %vm637, %v577
      %643 = vst.msk [vmem:[%s172 + $0x14] sm:$0xf] %vm637, %v578
      %644 = vst.msk [vmem:[%s172 + $0x18] sm:$0xf] %vm637, %v579
      %645 = vst.msk [vmem:[%s172 + $0x1c] sm:$0xf] %vm637, %v580
      %646 = vst.msk [vmem:[%s172 + $0x20] sm:$0xf] %vm637, %v581
      %647 = vst.msk [vmem:[%s172 + $0x24] sm:$0xf] %vm637, %v582
      %648 = vst.msk [vmem:[%s172 + $0x28] sm:$0xf] %vm637, %v583
      %649 = vst.msk [vmem:[%s172 + $0x2c] sm:$0xf] %vm637, %v584
      %650 = vst.msk [vmem:[%s172 + $0x30] sm:$0xf] %vm637, %v585
      %651 = vst.msk [vmem:[%s172 + $0x34] sm:$0xf] %vm637, %v586
      %652 = vst.msk [vmem:[%s172 + $0x38] sm:$0xf] %vm637, %v587
      %653 = vst.msk [vmem:[%s172 + $0x3c] sm:$0xf] %vm637, %v588
      %654 = vst.msk [vmem:[%s172 + $0x40] sm:$0xf] %vm637, %v589
      %655 = vst.msk [vmem:[%s172 + $0x44] sm:$0xf] %vm637, %v590
      %656 = vst.msk [vmem:[%s172 + $0x48] sm:$0xf] %vm637, %v591
      %657 = vst.msk [vmem:[%s172 + $0x4c] sm:$0xf] %vm637, %v592
      %658 = vst.msk [vmem:[%s172 + $0x50] sm:$0xf] %vm637, %v593
      %659 = vst.msk [vmem:[%s172 + $0x54] sm:$0xf] %vm637, %v594
      %660 = vst.msk [vmem:[%s172 + $0x58] sm:$0xf] %vm637, %v595
      %661 = vst.msk [vmem:[%s172 + $0x5c] sm:$0xf] %vm637, %v596
      %662 = vst.msk [vmem:[%s172 + $0x60] sm:$0xf] %vm637, %v597
      %663 = vst.msk [vmem:[%s172 + $0x64] sm:$0xf] %vm637, %v598
      %664 = vst.msk [vmem:[%s172 + $0x68] sm:$0xf] %vm637, %v599
      %665 = vst.msk [vmem:[%s172 + $0x6c] sm:$0xf] %vm637, %v600
      %666 = vst.msk [vmem:[%s172 + $0x70] sm:$0xf] %vm637, %v601
      %667 = vst.msk [vmem:[%s172 + $0x74] sm:$0xf] %vm637, %v602
      %668 = vst.msk [vmem:[%s172 + $0x78] sm:$0xf] %vm637, %v603
      %669 = vst.msk [vmem:[%s172 + $0x7c] sm:$0xf] %vm637, %v604
      %s670 = smul.u32 32, %s14
      %p671 = scmp.lt.s32.totalorder %s670, 63
      %s672 = scalar_select %p671, %s670, 63
      %s673 = smul.addr %s672, 4
      %s674 = scalar_lea.vmem %s3, %s673
      // Predicated region
      $region33: #{hourglassup_forward.39} parent=31 // pred_check
        %p675 = pneg %p100
      $region34: #{hourglassup_forward.39} parent=31 // pred_check_branch
        %677 = sbr.rel (%p675) target = $region36
      $region35: #{hourglassup_forward.39} parent=31 // pred_region
        %s678 = smul.u32 32, %s14
      $region36: #{hourglassup_forward.39} parent=31 // pred_fallthru
        _
    $region32: #{hourglassup_forward.39} parent=5 // pred_fallthru
      _
    %p679 = scmp.le.s32.totalorder 2, %s9
    // Predicated region
    $region37: #{hourglassup_forward.39} parent=5 // pred_check
      %p680 = pneg %p679
    $region38: #{hourglassup_forward.39} parent=5 // pred_check_branch
      %682 = sbr.rel (%p680) target = $region40
    $region39: #{hourglassup_forward.39} parent=5 // pred_region
      %s683 = ssub.s32 %s9, 2
      // Predicated region
      $region41: #{hourglassup_forward.39} parent=39 // pred_check
        %p684 = pneg %p106
      $region42: #{hourglassup_forward.39} parent=39 // pred_check_branch
        %686 = sbr.rel (%p684) target = $region44
      $region43: #{hourglassup_forward.39} parent=39 // pred_region
        %s687 = smul.u32 32, %s15
        %p688 = scmp.lt.s32.totalorder %s687, 63
        %s689 = scalar_select %p688, %s687, 63
        %s690 = smul.addr %s689, 4
        %s691 = scalar_lea.vmem %s3, %s690
      $region44: #{hourglassup_forward.39} parent=39 // pred_fallthru
        _
    $region40: #{hourglassup_forward.39} parent=5 // pred_fallthru
      _
  $region6: #{hourglassup_forward.39} parent=0 // loop_footer
    %s13 = sadd.s32 1, %s9
  $region7: #{hourglassup_forward.39} parent=0 // loop_footer_branch
    %8 = sbr.rel target = $region3
  $region8: #{hourglassup_forward.39} parent=0 // loop_exit
    _

// kernel: hourglassup_forward.47
$region0: #{hourglassup_forward.47}
  #allocation0 [shape = 'u32[]', space=smem, size = 0x4, offset = 0x4, fixed_abs, tag = 'smem constant byte address 0x4 - core index']
  #allocation1 [shape = 'u32[144,128]{1,0:T(1,128)}', space=vmem, size = 0x12000, scoped, tag = 'internal scratch']
  %s0 = inlined_call_operand.vmem [shape: bf16[64,64], index: 0, kind: input, shape index: {}]
  %s1 = inlined_call_operand.vmem [shape: bf16[64,4], index: 1, kind: input, shape index: {}]
  %s2 = inlined_call_operand.vmem [shape: f32[1,4], index: 2, kind: input, shape index: {}]
  %s3 = inlined_call_operand.vmem [shape: bf16[64,4], index: 3, kind: input, shape index: {}]
  %s4 = inlined_call_operand.vmem [shape: f32[64,4], index: 4, kind: output, shape index: {}]
  %s5 = sld [smem:[#allocation0]]
  $region49: #{hourglassup_forward.47} parent=0
    _
  %s7 = ssub.s32 1, %s5
  %s8 = scalar_select 0, %s7, %s5
  loop: start=0, step=1, limit=4
  $region2: #{hourglassup_forward.47} parent=0 // loop_pre_header
    _
  $region3: #{hourglassup_forward.47} parent=0 // loop_header
    %s10 = sphi 0, %s14
    %p11 = scmp.ge.s32.totalorder %s10, 4
    %s20 = sphi 0, %s22
    %s23 = sphi 0, %s20
    %s24 = sphi 0, %s23
    %s40 = sphi 0, %s24
    %s44 = sphi 0, %s44
    %s46 = sphi 0, %s44
    %s47 = sphi 0, %s46
    %s61 = sphi 0, %s47
    %s65 = sphi 0, %s65
    %s67 = sphi 0, %s65
    %s68 = sphi 0, %s67
    %s82 = sphi 0, %s68
    %s88 = sphi 0, %s90
    %s91 = sphi 0, %s88
    %s92 = sphi 0, %s91
    %s108 = sphi 0, %s92
    %s114 = sphi 0, %s116
    %s117 = sphi 0, %s114
    %s118 = sphi 0, %s117
    %s134 = sphi 0, %s118
  $region4: #{hourglassup_forward.47} parent=0 // loop_header_branch
    %13 = sbr.rel (%p11) target = $region8
  $region5: #{hourglassup_forward.47} parent=0 // loop_body
    %s15 = ssub.s32 %s10, 1
    %s16 = ssub.s32 %s10, 2
    %s17 = sadd.s32 %s10, 1
    %s18 = ssub.s32 %s10, %s17
    %p19 = scmp.eq.s32.totalorder %s18, 0
    %s21 = sadd.s32 %s20, 1
    %s22 = scalar_select %p19, %s20, %s21
    %p25 = pneg %p19
    %p26 = scmp.eq.s32.totalorder %s10, 1
    %p27 = por %p25, %p26
    %p28 = scmp.ne.s32.totalorder %s20, %s23
    %p29 = scmp.eq.s32.totalorder %s10, 0
    %p30 = por %p28, %p29
    %p31 = scmp.ne.s32.totalorder %s20, %s23
    %p32 = scmp.eq.s32.totalorder %s15, 1
    %p33 = por %p31, %p32
    %p34 = scmp.ne.s32.totalorder %s23, %s24
    %p35 = scmp.eq.s32.totalorder %s15, 0
    %p36 = por %p34, %p35
    %p37 = scmp.ne.s32.totalorder %s23, %s24
    %p38 = scmp.eq.s32.totalorder %s16, 1
    %p39 = por %p37, %p38
    %p41 = scmp.ne.s32.totalorder %s24, %s40
    %p42 = scmp.eq.s32.totalorder %s16, 0
    %p43 = por %p41, %p42
    %s45 = sadd.s32 %s44, 1
    %p48 = scmp.eq.s32.totalorder %s10, 1
    %p49 = scmp.ne.s32.totalorder %s44, %s46
    %p50 = scmp.eq.s32.totalorder %s10, 0
    %p51 = por %p49, %p50
    %p52 = scmp.ne.s32.totalorder %s44, %s46
    %p53 = scmp.eq.s32.totalorder %s15, 1
    %p54 = por %p52, %p53
    %p55 = scmp.ne.s32.totalorder %s46, %s47
    %p56 = scmp.eq.s32.totalorder %s15, 0
    %p57 = por %p55, %p56
    %p58 = scmp.ne.s32.totalorder %s46, %s47
    %p59 = scmp.eq.s32.totalorder %s16, 1
    %p60 = por %p58, %p59
    %p62 = scmp.ne.s32.totalorder %s47, %s61
    %p63 = scmp.eq.s32.totalorder %s16, 0
    %p64 = por %p62, %p63
    %s66 = sadd.s32 %s65, 1
    %p69 = scmp.eq.s32.totalorder %s10, 1
    %p70 = scmp.ne.s32.totalorder %s65, %s67
    %p71 = scmp.eq.s32.totalorder %s10, 0
    %p72 = por %p70, %p71
    %p73 = scmp.ne.s32.totalorder %s65, %s67
    %p74 = scmp.eq.s32.totalorder %s15, 1
    %p75 = por %p73, %p74
    %p76 = scmp.ne.s32.totalorder %s67, %s68
    %p77 = scmp.eq.s32.totalorder %s15, 0
    %p78 = por %p76, %p77
    %p79 = scmp.ne.s32.totalorder %s67, %s68
    %p80 = scmp.eq.s32.totalorder %s16, 1
    %p81 = por %p79, %p80
    %p83 = scmp.ne.s32.totalorder %s68, %s82
    %p84 = scmp.eq.s32.totalorder %s16, 0
    %p85 = por %p83, %p84
    %s86 = ssub.s32 %s10, %s17
    %p87 = scmp.eq.s32.totalorder %s86, 0
    %s89 = sadd.s32 %s88, 1
    %s90 = scalar_select %p87, %s88, %s89
    %p93 = pneg %p87
    %p94 = scmp.eq.s32.totalorder %s10, 1
    %p95 = por %p93, %p94
    %p96 = scmp.ne.s32.totalorder %s88, %s91
    %p97 = scmp.eq.s32.totalorder %s10, 0
    %p98 = por %p96, %p97
    %p99 = scmp.ne.s32.totalorder %s88, %s91
    %p100 = scmp.eq.s32.totalorder %s15, 1
    %p101 = por %p99, %p100
    %p102 = scmp.ne.s32.totalorder %s91, %s92
    %p103 = scmp.eq.s32.totalorder %s15, 0
    %p104 = por %p102, %p103
    %p105 = scmp.ne.s32.totalorder %s91, %s92
    %p106 = scmp.eq.s32.totalorder %s16, 1
    %p107 = por %p105, %p106
    %p109 = scmp.ne.s32.totalorder %s92, %s108
    %p110 = scmp.eq.s32.totalorder %s16, 0
    %p111 = por %p109, %p110
    %s112 = ssub.s32 %s10, %s17
    %p113 = scmp.eq.s32.totalorder %s112, 0
    %s115 = sadd.s32 %s114, 1
    %s116 = scalar_select %p113, %s114, %s115
    %p119 = pneg %p113
    %p120 = scmp.eq.s32.totalorder %s10, 1
    %p121 = por %p119, %p120
    %p122 = scmp.ne.s32.totalorder %s114, %s117
    %p123 = scmp.eq.s32.totalorder %s10, 0
    %p124 = por %p122, %p123
    %p125 = scmp.ne.s32.totalorder %s114, %s117
    %p126 = scmp.eq.s32.totalorder %s15, 1
    %p127 = por %p125, %p126
    %p128 = scmp.ne.s32.totalorder %s117, %s118
    %p129 = scmp.eq.s32.totalorder %s15, 0
    %p130 = por %p128, %p129
    %p131 = scmp.ne.s32.totalorder %s117, %s118
    %p132 = scmp.eq.s32.totalorder %s16, 1
    %p133 = por %p131, %p132
    %p135 = scmp.ne.s32.totalorder %s118, %s134
    %p136 = scmp.eq.s32.totalorder %s16, 0
    %p137 = por %p135, %p136
    %p138 = scmp.le.s32.totalorder 1, %s10
    %p139 = scmp.lt.s32.totalorder %s10, 3
    %p140 = pnand %p138, %p139
    %p141 = pneg %p140
    // Predicated region
    $region9: #{hourglassup_forward.47} parent=5 // pred_check
      _
    $region10: #{hourglassup_forward.47} parent=5 // pred_check_branch
      %143 = sbr.rel (%p140) target = $region12
    $region11: #{hourglassup_forward.47} parent=5 // pred_region
      %s144 = ssub.s32 %s10, 1
      // Predicated region
      $region13: #{hourglassup_forward.47} parent=11 // pred_check
        %p145 = pneg %p57
      $region14: #{hourglassup_forward.47} parent=11 // pred_check_branch
        %147 = sbr.rel (%p145) target = $region16
      $region15: #{hourglassup_forward.47} parent=11 // pred_region
        _
      $region16: #{hourglassup_forward.47} parent=11 // pred_fallthru
        _
      // Predicated region
      $region17: #{hourglassup_forward.47} parent=11 // pred_check
        %p148 = pneg %p78
      $region18: #{hourglassup_forward.47} parent=11 // pred_check_branch
        %150 = sbr.rel (%p148) target = $region20
      $region19: #{hourglassup_forward.47} parent=11 // pred_region
        _
      $region20: #{hourglassup_forward.47} parent=11 // pred_fallthru
        _
    $region12: #{hourglassup_forward.47} parent=5 // pred_fallthru
      _
    %p151 = scmp.lt.s32.totalorder %s10, 2
    // Predicated region
    $region21: #{hourglassup_forward.47} parent=5 // pred_check
      %p152 = pneg %p151
    $region22: #{hourglassup_forward.47} parent=5 // pred_check_branch
      %154 = sbr.rel (%p152) target = $region24
    $region23: #{hourglassup_forward.47} parent=5 // pred_region
      // Predicated region
      $region25: #{hourglassup_forward.47} parent=23 // pred_check
        %p155 = pneg %p30
      $region26: #{hourglassup_forward.47} parent=23 // pred_check_branch
        %157 = sbr.rel (%p155) target = $region28
      $region27: #{hourglassup_forward.47} parent=23 // pred_region
        %s158 = smul.u32 4, %s10
        %p159 = scmp.lt.s32.totalorder %s158, 7
        %s160 = scalar_select %p159, %s158, 7
        %s161 = smul.addr %s160, 4
        %s162 = scalar_lea.vmem %s0, %s161
        %s163 = smul.u32 4, %s10
      $region28: #{hourglassup_forward.47} parent=23 // pred_fallthru
        _
      // Predicated region
      $region29: #{hourglassup_forward.47} parent=23 // pred_check
        %p164 = pneg %p98
      $region30: #{hourglassup_forward.47} parent=23 // pred_check_branch
        %166 = sbr.rel (%p164) target = $region32
      $region31: #{hourglassup_forward.47} parent=23 // pred_region
        %s167 = smul.u32 4, %s10
        %p168 = scmp.lt.s32.totalorder %s167, 7
        %s169 = scalar_select %p168, %s167, 7
        %s170 = smul.addr %s169, 4
        %s171 = scalar_lea.vmem %s3, %s170
        %s172 = smul.u32 4, %s10
      $region32: #{hourglassup_forward.47} parent=23 // pred_fallthru
        _
    $region24: #{hourglassup_forward.47} parent=5 // pred_fallthru
      _
    %p173 = scmp.le.s32.totalorder 1, %s10
    %p174 = scmp.lt.s32.totalorder %s10, 3
    %p175 = pnand %p173, %p174
    %p176 = pneg %p175
    // Predicated region
    $region33: #{hourglassup_forward.47} parent=5 // pred_check
      _
    $region34: #{hourglassup_forward.47} parent=5 // pred_check_branch
      %178 = sbr.rel (%p175) target = $region36
    $region35: #{hourglassup_forward.47} parent=5 // pred_region
      %s179 = ssub.s32 %s10, 1
      %s180 = smul.u32 4, %s15
      %p181 = scmp.lt.s32.totalorder %s180, 7
      %s182 = scalar_select %p181, %s180, 7
      %s183 = smul.addr %s182, 4
      %s184 = scalar_lea.vmem %s0, %s183
      %p185 = pneg %p36
      %p186 = pneg %p33
      %p187 = pneg %p57
      %p188 = pneg %p54
      %p189 = pneg %p78
      %p190 = pneg %p75
      %s191 = smul.u32 4, %s15
      %p192 = scmp.lt.s32.totalorder %s191, 7
      %s193 = scalar_select %p192, %s191, 7
      %s194 = smul.addr %s193, 4
      %s195 = scalar_lea.vmem %s3, %s194
      %p196 = pneg %p104
      %p197 = pneg %p101
      %p198 = pneg %p130
      %p199 = pneg %p127
      %s200 = smul.u32 4, %s15
      %p201 = scmp.lt.s32.totalorder %s200, 7
      %s202 = scalar_select %p201, %s200, 7
      %s203 = smul.addr %s202, 8
      %s204 = scalar_lea.vmem %s4, %s203
      %s205 = smul.u32 4, %s15
      %p206 = scmp.lt.s32.totalorder %s205, 7
      %s207 = scalar_select %p206, %s205, 7
      %s208 = smul.addr %s207, 4
      %s209 = scalar_lea.vmem %s0, %s208
      %s210 = smul.u32 4, %s15
      %s211 = smul.u32 4, %s15
      %p212 = scmp.lt.s32.totalorder %s211, 7
      %s213 = scalar_select %p212, %s211, 7
      %s214 = smul.addr %s213, 4
      %s215 = scalar_lea.vmem %s3, %s214
      %s216 = smul.u32 4, %s15
      %s217 = smul.u32 4, %s15
      %p218 = scmp.lt.s32.totalorder %s217, 7
      %s219 = scalar_select %p218, %s217, 7
      %s220 = smul.addr %s219, 8
      %s221 = scalar_lea.vmem %s4, %s220
      %s222 = smul.u32 4, %s15
      %v224 = vld [vmem:[%s209] sm:$0xf]
      %v225 = vld [vmem:[%s209 + $0x4] sm:$0xf]
      %v226 = vld [vmem:[%s209 + $0x8] sm:$0xf]
      %v227 = vld [vmem:[%s209 + $0xc] sm:$0xf]
      %v228 = vld [vmem:[%s1] sm:$0xf]
      %v229 = vld [vmem:[%s1 + $0x4] sm:$0xf]
      %v230 = vld [vmem:[%s1 + $0x8] sm:$0xf]
      %v231 = vld [vmem:[%s1 + $0xc] sm:$0xf]
      %v232 = vld [vmem:[%s1 + $0x10] sm:$0xf]
      %v233 = vld [vmem:[%s1 + $0x14] sm:$0xf]
      %v234 = vld [vmem:[%s1 + $0x18] sm:$0xf]
      %v235 = vld [vmem:[%s1 + $0x1c] sm:$0xf]
      %v236 = vld [vmem:[%s2] sm:$0x1]
      %v238 = vlaneseq
      %v239 = vshrl.u32 %v238, 7
      %v240 = vsub.s32 0, %v239
      %v241 = vrot.slane %v236, %v240
      %v247 = vunpack.c.l.b16 %v224
      %v248 = vunpack.c.l.b16 %v225
      %v249 = vunpack.c.l.b16 %v226
      %v250 = vunpack.c.l.b16 %v227
      %v251 = vpack.c.b16 %v248, %v247
      %v252 = vpack.c.b16 %v250, %v249
      %v261 = vunpack.c.l.b16 %v228
      %v262 = vunpack.c.l.b16 %v229
      %v263 = vunpack.c.l.b16 %v230
      %v264 = vunpack.c.l.b16 %v231
      %v265 = vunpack.c.l.b16 %v232
      %v266 = vunpack.c.l.b16 %v233
      %v267 = vunpack.c.l.b16 %v234
      %v268 = vunpack.c.l.b16 %v235
      %v269 = vpack.c.b16 %v262, %v261
      %v270 = vpack.c.b16 %v264, %v263
      %v271 = vpack.c.b16 %v266, %v265
      %v272 = vpack.c.b16 %v268, %v267
      %vm277 = vcmask 523264
      %v279 = vsel %vm277, %v251, 0
      %v282 = vsel %vm277, %v252, 0
      %284 = vmatprep.subr.bf16.mxu0 0
      %285 = vmatpush1.bf16.msra.mxu0 0
      %286 = vmatprep.subr.bf16.mxu0 0
      %287 = vmatpush1.bf16.msra.mxu0 0
      %288 = vmatprep.subr.bf16.mxu0 0
      %289 = vmatpush1.bf16.msra.mxu0 0
      %290 = vmatprep.subr.bf16.mxu0 0
      %291 = vmatpush1.bf16.msra.mxu0 0
      %292 = vmatprep.subr.bf16.mxu0 0
      %293 = vmatpush1.bf16.msra.mxu0 %v272
      %294 = vmatprep.subr.bf16.mxu0 0
      %295 = vmatpush1.bf16.msra.mxu0 %v271
      %296 = vmatprep.subr.bf16.mxu0 0
      %297 = vmatpush1.bf16.msra.mxu0 %v270
      %298 = vmatprep.subr.bf16.mxu0 0
      %299 = vmatpush1.bf16.msra.mxu0 %v269
      %300 = vmatprep.subr.bf16.mxu0 0
      %301 = vmatpush2.bf16.msra.mxu0 0
      %302 = vmatprep.subr.bf16.mxu0 0
      %303 = vmatpush2.bf16.msra.mxu0 0
      %304 = vmatprep.subr.bf16.mxu0 0
      %305 = vmatpush2.bf16.msra.mxu0 0
      %306 = vmatprep.subr.bf16.mxu0 0
      %307 = vmatpush2.bf16.msra.mxu0 0
      %308 = vmatprep.subr.bf16.mxu0 0
      %309 = vmatpush2.bf16.msra.mxu0 0
      %310 = vmatprep.subr.bf16.mxu0 0
      %311 = vmatpush2.bf16.msra.mxu0 0
      %312 = vmatprep.subr.bf16.mxu0 0
      %313 = vmatpush2.bf16.msra.mxu0 0
      %314 = vmatprep.subr.bf16.mxu0 0
      %315 = vmatpush2.bf16.msra.mxu0 0
      %316 = vmatprep.mubr.bf16.mxu0 0
      %317 = vmatmul.mubr.bf16.gmra.mxu0 %v279
      %v318 = vpop.f32.mrf.mxu0
      %v319 = vadd.f32 %v241, %v318
      %v320 = vpop.f32.mrf.mxu0
      %v321 = vpop.f32.mrf.mxu0
      %v322 = vadd.f32 %v241, %v321
      %v323 = vpop.f32.mrf.mxu0
      %324 = vmatprep.mubr.bf16.mxu0 0
      %325 = vmatmul.mubr.bf16.gmra.mxu0 %v282
      %v326 = vpop.f32.mrf.mxu0
      %v327 = vadd.f32 %v241, %v326
      %v328 = vpop.f32.mrf.mxu0
      %v329 = vpop.f32.mrf.mxu0
      %v330 = vadd.f32 %v241, %v329
      %v331 = vpop.f32.mrf.mxu0
      %332 = vdwg.mxu0
      %v333 = vld [vmem:[%s215] sm:$0xf]
      %v334 = vld [vmem:[%s215 + $0x4] sm:$0xf]
      %v335 = vld [vmem:[%s215 + $0x8] sm:$0xf]
      %v336 = vld [vmem:[%s215 + $0xc] sm:$0xf]
      %v337 = vunpack.c.l.bf16 %v333
      %v338 = vunpack.c.l.bf16 %v334
      %v339 = vunpack.c.l.bf16 %v335
      %v340 = vunpack.c.l.bf16 %v336
      %v341 = vadd.f32 %v319, %v337
      %v342 = vadd.f32 %v322, %v338
      %v343 = vadd.f32 %v327, %v339
      %v344 = vadd.f32 %v330, %v340
      %v345 = vmax.f32 %v341, 0.0
      %v346 = vmax.f32 %v342, 0.0
      %v347 = vmax.f32 %v343, 0.0
      %v348 = vmax.f32 %v344, 0.0
      %v349 = vand.u32 2147483647, %v341
      %v350 = vand.u32 2147483647, %v342
      %v351 = vand.u32 2147483647, %v343
      %v352 = vand.u32 2147483647, %v344
      %v353 = vsub.f32 0.0, %v349
      %v354 = vsub.f32 0.0, %v350
      %v355 = vsub.f32 0.0, %v351
      %v356 = vsub.f32 0.0, %v352
      %v357 = vmul.f32 %v353, 1.442695
      %v358 = vpow.pop %v357
      %v359 = vmul.f32 %v354, 1.442695
      %v360 = vpow.pop %v359
      %v361 = vmul.f32 %v355, 1.442695
      %v362 = vpow.pop %v361
      %v363 = vmul.f32 %v356, 1.442695
      %v364 = vpow.pop %v363
      %v365 = vadd.f32 %v358, 1.0
      %v366 = vlog2.pop %v365
      %v367 = vmul.f32 %v366, 0.6931472
      %v368 = vmul.f32 -0.5, %v358
      %v369 = vadd.f32 %v368, 1.0
      %v370 = vmul.f32 %v369, %v358
      %v371 = vand.u32 2147483647, %v358
      %vm372 = vcmp.lt.f32.partialorder %v371, 0.0004427343
      %v373 = vsel %vm372, %v370, %v367
      %v374 = vadd.f32 %v360, 1.0
      %v375 = vlog2.pop %v374
      %v376 = vmul.f32 %v375, 0.6931472
      %v377 = vmul.f32 -0.5, %v360
      %v378 = vadd.f32 %v377, 1.0
      %v379 = vmul.f32 %v378, %v360
      %v380 = vand.u32 2147483647, %v360
      %vm381 = vcmp.lt.f32.partialorder %v380, 0.0004427343
      %v382 = vsel %vm381, %v379, %v376
      %v383 = vadd.f32 %v362, 1.0
      %v384 = vlog2.pop %v383
      %v385 = vmul.f32 %v384, 0.6931472
      %v386 = vmul.f32 -0.5, %v362
      %v387 = vadd.f32 %v386, 1.0
      %v388 = vmul.f32 %v387, %v362
      %v389 = vand.u32 2147483647, %v362
      %vm390 = vcmp.lt.f32.partialorder %v389, 0.0004427343
      %v391 = vsel %vm390, %v388, %v385
      %v392 = vadd.f32 %v364, 1.0
      %v393 = vlog2.pop %v392
      %v394 = vmul.f32 %v393, 0.6931472
      %v395 = vmul.f32 -0.5, %v364
      %v396 = vadd.f32 %v395, 1.0
      %v397 = vmul.f32 %v396, %v364
      %v398 = vand.u32 2147483647, %v364
      %vm399 = vcmp.lt.f32.partialorder %v398, 0.0004427343
      %v400 = vsel %vm399, %v397, %v394
      %v401 = vadd.f32 %v345, %v373
      %v402 = vadd.f32 %v346, %v382
      %v403 = vadd.f32 %v347, %v391
      %v404 = vadd.f32 %v348, %v400
      %v405 = vtanh.pop %v401
      %v406 = vtanh.pop %v402
      %v407 = vtanh.pop %v403
      %v408 = vtanh.pop %v404
      %v409 = vmul.f32 %v341, %v405
      %v410 = vmul.f32 %v342, %v406
      %v411 = vmul.f32 %v343, %v407
      %v412 = vmul.f32 %v344, %v408
      %vm413 = vcmask 31744
      %414 = vst.msk [vmem:[%s221] sm:$0xff] %vm413, %v409
      %415 = vst.msk [vmem:[%s221 + $0x8] sm:$0xff] %vm413, %v410
      %416 = vst.msk [vmem:[%s221 + $0x10] sm:$0xff] %vm413, %v411
      %417 = vst.msk [vmem:[%s221 + $0x18] sm:$0xff] %vm413, %v412
      %s418 = smul.u32 4, %s15
      %p419 = scmp.lt.s32.totalorder %s418, 7
      %s420 = scalar_select %p419, %s418, 7
      %s421 = smul.addr %s420, 8
      %s422 = scalar_lea.vmem %s4, %s421
      // Predicated region
      $region37: #{hourglassup_forward.47} parent=35 // pred_check
        %p423 = pneg %p127
      $region38: #{hourglassup_forward.47} parent=35 // pred_check_branch
        %425 = sbr.rel (%p423) target = $region40
      $region39: #{hourglassup_forward.47} parent=35 // pred_region
        %s426 = smul.u32 4, %s15
      $region40: #{hourglassup_forward.47} parent=35 // pred_fallthru
        _
    $region36: #{hourglassup_forward.47} parent=5 // pred_fallthru
      _
    %p427 = scmp.le.s32.totalorder 2, %s10
    // Predicated region
    $region41: #{hourglassup_forward.47} parent=5 // pred_check
      %p428 = pneg %p427
    $region42: #{hourglassup_forward.47} parent=5 // pred_check_branch
      %430 = sbr.rel (%p428) target = $region44
    $region43: #{hourglassup_forward.47} parent=5 // pred_region
      %s431 = ssub.s32 %s10, 2
      // Predicated region
      $region45: #{hourglassup_forward.47} parent=43 // pred_check
        %p432 = pneg %p133
      $region46: #{hourglassup_forward.47} parent=43 // pred_check_branch
        %434 = sbr.rel (%p432) target = $region48
      $region47: #{hourglassup_forward.47} parent=43 // pred_region
        %s435 = smul.u32 4, %s16
        %p436 = scmp.lt.s32.totalorder %s435, 7
        %s437 = scalar_select %p436, %s435, 7
        %s438 = smul.addr %s437, 8
        %s439 = scalar_lea.vmem %s4, %s438
      $region48: #{hourglassup_forward.47} parent=43 // pred_fallthru
        _
    $region44: #{hourglassup_forward.47} parent=5 // pred_fallthru
      _
  $region6: #{hourglassup_forward.47} parent=0 // loop_footer
    %s14 = sadd.s32 1, %s10
  $region7: #{hourglassup_forward.47} parent=0 // loop_footer_branch
    %9 = sbr.rel target = $region3
  $region8: #{hourglassup_forward.47} parent=0 // loop_exit
    _

// kernel: hourglassup_forward.43
$region0: #{hourglassup_forward.43}
  #allocation0 [shape = 'u32[]', space=smem, size = 0x4, offset = 0x4, fixed_abs, tag = 'smem constant byte address 0x4 - core index']
  #allocation1 [shape = 'u32[144,128]{1,0:T(1,128)}', space=vmem, size = 0x12000, scoped, tag = 'internal scratch']
  %s0 = inlined_call_operand.vmem [shape: bf16[64,32], index: 0, kind: input, shape index: {}]
  %s1 = inlined_call_operand.vmem [shape: bf16[32,4], index: 1, kind: input, shape index: {}]
  %s2 = inlined_call_operand.vmem [shape: f32[1,4], index: 2, kind: input, shape index: {}]
  %s3 = inlined_call_operand.vmem [shape: bf16[64,4], index: 3, kind: input, shape index: {}]
  %s4 = inlined_call_operand.vmem [shape: f32[64,4], index: 4, kind: output, shape index: {}]
  %s5 = sld [smem:[#allocation0]]
  $region49: #{hourglassup_forward.43} parent=0
    _
  %s7 = ssub.s32 1, %s5
  %s8 = scalar_select 0, %s7, %s5
  loop: start=0, step=1, limit=4
  $region2: #{hourglassup_forward.43} parent=0 // loop_pre_header
    _
  $region3: #{hourglassup_forward.43} parent=0 // loop_header
    %s10 = sphi 0, %s14
    %p11 = scmp.ge.s32.totalorder %s10, 4
    %s20 = sphi 0, %s22
    %s23 = sphi 0, %s20
    %s24 = sphi 0, %s23
    %s40 = sphi 0, %s24
    %s44 = sphi 0, %s44
    %s46 = sphi 0, %s44
    %s47 = sphi 0, %s46
    %s61 = sphi 0, %s47
    %s65 = sphi 0, %s65
    %s67 = sphi 0, %s65
    %s68 = sphi 0, %s67
    %s82 = sphi 0, %s68
    %s88 = sphi 0, %s90
    %s91 = sphi 0, %s88
    %s92 = sphi 0, %s91
    %s108 = sphi 0, %s92
    %s114 = sphi 0, %s116
    %s117 = sphi 0, %s114
    %s118 = sphi 0, %s117
    %s134 = sphi 0, %s118
  $region4: #{hourglassup_forward.43} parent=0 // loop_header_branch
    %13 = sbr.rel (%p11) target = $region8
  $region5: #{hourglassup_forward.43} parent=0 // loop_body
    %s15 = ssub.s32 %s10, 1
    %s16 = ssub.s32 %s10, 2
    %s17 = sadd.s32 %s10, 1
    %s18 = ssub.s32 %s10, %s17
    %p19 = scmp.eq.s32.totalorder %s18, 0
    %s21 = sadd.s32 %s20, 1
    %s22 = scalar_select %p19, %s20, %s21
    %p25 = pneg %p19
    %p26 = scmp.eq.s32.totalorder %s10, 1
    %p27 = por %p25, %p26
    %p28 = scmp.ne.s32.totalorder %s20, %s23
    %p29 = scmp.eq.s32.totalorder %s10, 0
    %p30 = por %p28, %p29
    %p31 = scmp.ne.s32.totalorder %s20, %s23
    %p32 = scmp.eq.s32.totalorder %s15, 1
    %p33 = por %p31, %p32
    %p34 = scmp.ne.s32.totalorder %s23, %s24
    %p35 = scmp.eq.s32.totalorder %s15, 0
    %p36 = por %p34, %p35
    %p37 = scmp.ne.s32.totalorder %s23, %s24
    %p38 = scmp.eq.s32.totalorder %s16, 1
    %p39 = por %p37, %p38
    %p41 = scmp.ne.s32.totalorder %s24, %s40
    %p42 = scmp.eq.s32.totalorder %s16, 0
    %p43 = por %p41, %p42
    %s45 = sadd.s32 %s44, 1
    %p48 = scmp.eq.s32.totalorder %s10, 1
    %p49 = scmp.ne.s32.totalorder %s44, %s46
    %p50 = scmp.eq.s32.totalorder %s10, 0
    %p51 = por %p49, %p50
    %p52 = scmp.ne.s32.totalorder %s44, %s46
    %p53 = scmp.eq.s32.totalorder %s15, 1
    %p54 = por %p52, %p53
    %p55 = scmp.ne.s32.totalorder %s46, %s47
    %p56 = scmp.eq.s32.totalorder %s15, 0
    %p57 = por %p55, %p56
    %p58 = scmp.ne.s32.totalorder %s46, %s47
    %p59 = scmp.eq.s32.totalorder %s16, 1
    %p60 = por %p58, %p59
    %p62 = scmp.ne.s32.totalorder %s47, %s61
    %p63 = scmp.eq.s32.totalorder %s16, 0
    %p64 = por %p62, %p63
    %s66 = sadd.s32 %s65, 1
    %p69 = scmp.eq.s32.totalorder %s10, 1
    %p70 = scmp.ne.s32.totalorder %s65, %s67
    %p71 = scmp.eq.s32.totalorder %s10, 0
    %p72 = por %p70, %p71
    %p73 = scmp.ne.s32.totalorder %s65, %s67
    %p74 = scmp.eq.s32.totalorder %s15, 1
    %p75 = por %p73, %p74
    %p76 = scmp.ne.s32.totalorder %s67, %s68
    %p77 = scmp.eq.s32.totalorder %s15, 0
    %p78 = por %p76, %p77
    %p79 = scmp.ne.s32.totalorder %s67, %s68
    %p80 = scmp.eq.s32.totalorder %s16, 1
    %p81 = por %p79, %p80
    %p83 = scmp.ne.s32.totalorder %s68, %s82
    %p84 = scmp.eq.s32.totalorder %s16, 0
    %p85 = por %p83, %p84
    %s86 = ssub.s32 %s10, %s17
    %p87 = scmp.eq.s32.totalorder %s86, 0
    %s89 = sadd.s32 %s88, 1
    %s90 = scalar_select %p87, %s88, %s89
    %p93 = pneg %p87
    %p94 = scmp.eq.s32.totalorder %s10, 1
    %p95 = por %p93, %p94
    %p96 = scmp.ne.s32.totalorder %s88, %s91
    %p97 = scmp.eq.s32.totalorder %s10, 0
    %p98 = por %p96, %p97
    %p99 = scmp.ne.s32.totalorder %s88, %s91
    %p100 = scmp.eq.s32.totalorder %s15, 1
    %p101 = por %p99, %p100
    %p102 = scmp.ne.s32.totalorder %s91, %s92
    %p103 = scmp.eq.s32.totalorder %s15, 0
    %p104 = por %p102, %p103
    %p105 = scmp.ne.s32.totalorder %s91, %s92
    %p106 = scmp.eq.s32.totalorder %s16, 1
    %p107 = por %p105, %p106
    %p109 = scmp.ne.s32.totalorder %s92, %s108
    %p110 = scmp.eq.s32.totalorder %s16, 0
    %p111 = por %p109, %p110
    %s112 = ssub.s32 %s10, %s17
    %p113 = scmp.eq.s32.totalorder %s112, 0
    %s115 = sadd.s32 %s114, 1
    %s116 = scalar_select %p113, %s114, %s115
    %p119 = pneg %p113
    %p120 = scmp.eq.s32.totalorder %s10, 1
    %p121 = por %p119, %p120
    %p122 = scmp.ne.s32.totalorder %s114, %s117
    %p123 = scmp.eq.s32.totalorder %s10, 0
    %p124 = por %p122, %p123
    %p125 = scmp.ne.s32.totalorder %s114, %s117
    %p126 = scmp.eq.s32.totalorder %s15, 1
    %p127 = por %p125, %p126
    %p128 = scmp.ne.s32.totalorder %s117, %s118
    %p129 = scmp.eq.s32.totalorder %s15, 0
    %p130 = por %p128, %p129
    %p131 = scmp.ne.s32.totalorder %s117, %s118
    %p132 = scmp.eq.s32.totalorder %s16, 1
    %p133 = por %p131, %p132
    %p135 = scmp.ne.s32.totalorder %s118, %s134
    %p136 = scmp.eq.s32.totalorder %s16, 0
    %p137 = por %p135, %p136
    %p138 = scmp.le.s32.totalorder 1, %s10
    %p139 = scmp.lt.s32.totalorder %s10, 3
    %p140 = pnand %p138, %p139
    %p141 = pneg %p140
    // Predicated region
    $region9: #{hourglassup_forward.43} parent=5 // pred_check
      _
    $region10: #{hourglassup_forward.43} parent=5 // pred_check_branch
      %143 = sbr.rel (%p140) target = $region12
    $region11: #{hourglassup_forward.43} parent=5 // pred_region
      %s144 = ssub.s32 %s10, 1
      // Predicated region
      $region13: #{hourglassup_forward.43} parent=11 // pred_check
        %p145 = pneg %p57
      $region14: #{hourglassup_forward.43} parent=11 // pred_check_branch
        %147 = sbr.rel (%p145) target = $region16
      $region15: #{hourglassup_forward.43} parent=11 // pred_region
        _
      $region16: #{hourglassup_forward.43} parent=11 // pred_fallthru
        _
      // Predicated region
      $region17: #{hourglassup_forward.43} parent=11 // pred_check
        %p148 = pneg %p78
      $region18: #{hourglassup_forward.43} parent=11 // pred_check_branch
        %150 = sbr.rel (%p148) target = $region20
      $region19: #{hourglassup_forward.43} parent=11 // pred_region
        _
      $region20: #{hourglassup_forward.43} parent=11 // pred_fallthru
        _
    $region12: #{hourglassup_forward.43} parent=5 // pred_fallthru
      _
    %p151 = scmp.lt.s32.totalorder %s10, 2
    // Predicated region
    $region21: #{hourglassup_forward.43} parent=5 // pred_check
      %p152 = pneg %p151
    $region22: #{hourglassup_forward.43} parent=5 // pred_check_branch
      %154 = sbr.rel (%p152) target = $region24
    $region23: #{hourglassup_forward.43} parent=5 // pred_region
      // Predicated region
      $region25: #{hourglassup_forward.43} parent=23 // pred_check
        %p155 = pneg %p30
      $region26: #{hourglassup_forward.43} parent=23 // pred_check_branch
        %157 = sbr.rel (%p155) target = $region28
      $region27: #{hourglassup_forward.43} parent=23 // pred_region
        %s158 = smul.u32 4, %s10
        %p159 = scmp.lt.s32.totalorder %s158, 7
        %s160 = scalar_select %p159, %s158, 7
        %s161 = smul.addr %s160, 4
        %s162 = scalar_lea.vmem %s0, %s161
        %s163 = smul.u32 4, %s10
      $region28: #{hourglassup_forward.43} parent=23 // pred_fallthru
        _
      // Predicated region
      $region29: #{hourglassup_forward.43} parent=23 // pred_check
        %p164 = pneg %p98
      $region30: #{hourglassup_forward.43} parent=23 // pred_check_branch
        %166 = sbr.rel (%p164) target = $region32
      $region31: #{hourglassup_forward.43} parent=23 // pred_region
        %s167 = smul.u32 4, %s10
        %p168 = scmp.lt.s32.totalorder %s167, 7
        %s169 = scalar_select %p168, %s167, 7
        %s170 = smul.addr %s169, 4
        %s171 = scalar_lea.vmem %s3, %s170
        %s172 = smul.u32 4, %s10
      $region32: #{hourglassup_forward.43} parent=23 // pred_fallthru
        _
    $region24: #{hourglassup_forward.43} parent=5 // pred_fallthru
      _
    %p173 = scmp.le.s32.totalorder 1, %s10
    %p174 = scmp.lt.s32.totalorder %s10, 3
    %p175 = pnand %p173, %p174
    %p176 = pneg %p175
    // Predicated region
    $region33: #{hourglassup_forward.43} parent=5 // pred_check
      _
    $region34: #{hourglassup_forward.43} parent=5 // pred_check_branch
      %178 = sbr.rel (%p175) target = $region36
    $region35: #{hourglassup_forward.43} parent=5 // pred_region
      %s179 = ssub.s32 %s10, 1
      %s180 = smul.u32 4, %s15
      %p181 = scmp.lt.s32.totalorder %s180, 7
      %s182 = scalar_select %p181, %s180, 7
      %s183 = smul.addr %s182, 4
      %s184 = scalar_lea.vmem %s0, %s183
      %p185 = pneg %p36
      %p186 = pneg %p33
      %p187 = pneg %p57
      %p188 = pneg %p54
      %p189 = pneg %p78
      %p190 = pneg %p75
      %s191 = smul.u32 4, %s15
      %p192 = scmp.lt.s32.totalorder %s191, 7
      %s193 = scalar_select %p192, %s191, 7
      %s194 = smul.addr %s193, 4
      %s195 = scalar_lea.vmem %s3, %s194
      %p196 = pneg %p104
      %p197 = pneg %p101
      %p198 = pneg %p130
      %p199 = pneg %p127
      %s200 = smul.u32 4, %s15
      %p201 = scmp.lt.s32.totalorder %s200, 7
      %s202 = scalar_select %p201, %s200, 7
      %s203 = smul.addr %s202, 8
      %s204 = scalar_lea.vmem %s4, %s203
      %s205 = smul.u32 4, %s15
      %p206 = scmp.lt.s32.totalorder %s205, 7
      %s207 = scalar_select %p206, %s205, 7
      %s208 = smul.addr %s207, 4
      %s209 = scalar_lea.vmem %s0, %s208
      %s210 = smul.u32 4, %s15
      %s211 = smul.u32 4, %s15
      %p212 = scmp.lt.s32.totalorder %s211, 7
      %s213 = scalar_select %p212, %s211, 7
      %s214 = smul.addr %s213, 4
      %s215 = scalar_lea.vmem %s3, %s214
      %s216 = smul.u32 4, %s15
      %s217 = smul.u32 4, %s15
      %p218 = scmp.lt.s32.totalorder %s217, 7
      %s219 = scalar_select %p218, %s217, 7
      %s220 = smul.addr %s219, 8
      %s221 = scalar_lea.vmem %s4, %s220
      %s222 = smul.u32 4, %s15
      %v224 = vld [vmem:[%s209] sm:$0xf]
      %v225 = vld [vmem:[%s209 + $0x4] sm:$0xf]
      %v226 = vld [vmem:[%s209 + $0x8] sm:$0xf]
      %v227 = vld [vmem:[%s209 + $0xc] sm:$0xf]
      %v228 = vld [vmem:[%s1] sm:$0xf]
      %v229 = vld [vmem:[%s1 + $0x4] sm:$0xf]
      %v230 = vld [vmem:[%s1 + $0x8] sm:$0xf]
      %v231 = vld [vmem:[%s1 + $0xc] sm:$0xf]
      %v232 = vld [vmem:[%s2] sm:$0x1]
      %v234 = vlaneseq
      %v235 = vshrl.u32 %v234, 7
      %v236 = vsub.s32 0, %v235
      %v237 = vrot.slane %v232, %v236
      %v243 = vunpack.c.l.b16 %v224
      %v244 = vunpack.c.l.b16 %v225
      %v245 = vunpack.c.l.b16 %v226
      %v246 = vunpack.c.l.b16 %v227
      %v247 = vpack.c.b16 %v244, %v243
      %v248 = vpack.c.b16 %v246, %v245
      %v253 = vunpack.c.l.b16 %v228
      %v254 = vunpack.c.l.b16 %v229
      %v255 = vunpack.c.l.b16 %v230
      %v256 = vunpack.c.l.b16 %v231
      %v257 = vpack.c.b16 %v254, %v253
      %v258 = vpack.c.b16 %v256, %v255
      %vm261 = vcmask 261120
      %v263 = vsel %vm261, %v247, 0
      %v266 = vsel %vm261, %v248, 0
      %268 = vmatprep.subr.bf16.mxu0 0
      %269 = vmatpush1.bf16.msra.mxu0 0
      %270 = vmatprep.subr.bf16.mxu0 0
      %271 = vmatpush1.bf16.msra.mxu0 0
      %272 = vmatprep.subr.bf16.mxu0 0
      %273 = vmatpush1.bf16.msra.mxu0 0
      %274 = vmatprep.subr.bf16.mxu0 0
      %275 = vmatpush1.bf16.msra.mxu0 0
      %276 = vmatprep.subr.bf16.mxu0 0
      %277 = vmatpush1.bf16.msra.mxu0 0
      %278 = vmatprep.subr.bf16.mxu0 0
      %279 = vmatpush1.bf16.msra.mxu0 0
      %280 = vmatprep.subr.bf16.mxu0 0
      %281 = vmatpush1.bf16.msra.mxu0 %v258
      %282 = vmatprep.subr.bf16.mxu0 0
      %283 = vmatpush1.bf16.msra.mxu0 %v257
      %284 = vmatprep.subr.bf16.mxu0 0
      %285 = vmatpush2.bf16.msra.mxu0 0
      %286 = vmatprep.subr.bf16.mxu0 0
      %287 = vmatpush2.bf16.msra.mxu0 0
      %288 = vmatprep.subr.bf16.mxu0 0
      %289 = vmatpush2.bf16.msra.mxu0 0
      %290 = vmatprep.subr.bf16.mxu0 0
      %291 = vmatpush2.bf16.msra.mxu0 0
      %292 = vmatprep.subr.bf16.mxu0 0
      %293 = vmatpush2.bf16.msra.mxu0 0
      %294 = vmatprep.subr.bf16.mxu0 0
      %295 = vmatpush2.bf16.msra.mxu0 0
      %296 = vmatprep.subr.bf16.mxu0 0
      %297 = vmatpush2.bf16.msra.mxu0 0
      %298 = vmatprep.subr.bf16.mxu0 0
      %299 = vmatpush2.bf16.msra.mxu0 0
      %300 = vmatprep.mubr.bf16.mxu0 0
      %301 = vmatmul.mubr.bf16.gmra.mxu0 %v263
      %v302 = vpop.f32.mrf.mxu0
      %v303 = vadd.f32 %v237, %v302
      %v304 = vpop.f32.mrf.mxu0
      %v305 = vpop.f32.mrf.mxu0
      %v306 = vadd.f32 %v237, %v305
      %v307 = vpop.f32.mrf.mxu0
      %308 = vmatprep.mubr.bf16.mxu0 0
      %309 = vmatmul.mubr.bf16.gmra.mxu0 %v266
      %v310 = vpop.f32.mrf.mxu0
      %v311 = vadd.f32 %v237, %v310
      %v312 = vpop.f32.mrf.mxu0
      %v313 = vpop.f32.mrf.mxu0
      %v314 = vadd.f32 %v237, %v313
      %v315 = vpop.f32.mrf.mxu0
      %316 = vdwg.mxu0
      %v317 = vld [vmem:[%s215] sm:$0xf]
      %v318 = vld [vmem:[%s215 + $0x4] sm:$0xf]
      %v319 = vld [vmem:[%s215 + $0x8] sm:$0xf]
      %v320 = vld [vmem:[%s215 + $0xc] sm:$0xf]
      %v321 = vunpack.c.l.bf16 %v317
      %v322 = vunpack.c.l.bf16 %v318
      %v323 = vunpack.c.l.bf16 %v319
      %v324 = vunpack.c.l.bf16 %v320
      %v325 = vadd.f32 %v303, %v321
      %v326 = vadd.f32 %v306, %v322
      %v327 = vadd.f32 %v311, %v323
      %v328 = vadd.f32 %v314, %v324
      %v329 = vmax.f32 %v325, 0.0
      %v330 = vmax.f32 %v326, 0.0
      %v331 = vmax.f32 %v327, 0.0
      %v332 = vmax.f32 %v328, 0.0
      %v333 = vand.u32 2147483647, %v325
      %v334 = vand.u32 2147483647, %v326
      %v335 = vand.u32 2147483647, %v327
      %v336 = vand.u32 2147483647, %v328
      %v337 = vsub.f32 0.0, %v333
      %v338 = vsub.f32 0.0, %v334
      %v339 = vsub.f32 0.0, %v335
      %v340 = vsub.f32 0.0, %v336
      %v341 = vmul.f32 %v337, 1.442695
      %v342 = vpow.pop %v341
      %v343 = vmul.f32 %v338, 1.442695
      %v344 = vpow.pop %v343
      %v345 = vmul.f32 %v339, 1.442695
      %v346 = vpow.pop %v345
      %v347 = vmul.f32 %v340, 1.442695
      %v348 = vpow.pop %v347
      %v349 = vadd.f32 %v342, 1.0
      %v350 = vlog2.pop %v349
      %v351 = vmul.f32 %v350, 0.6931472
      %v352 = vmul.f32 -0.5, %v342
      %v353 = vadd.f32 %v352, 1.0
      %v354 = vmul.f32 %v353, %v342
      %v355 = vand.u32 2147483647, %v342
      %vm356 = vcmp.lt.f32.partialorder %v355, 0.0004427343
      %v357 = vsel %vm356, %v354, %v351
      %v358 = vadd.f32 %v344, 1.0
      %v359 = vlog2.pop %v358
      %v360 = vmul.f32 %v359, 0.6931472
      %v361 = vmul.f32 -0.5, %v344
      %v362 = vadd.f32 %v361, 1.0
      %v363 = vmul.f32 %v362, %v344
      %v364 = vand.u32 2147483647, %v344
      %vm365 = vcmp.lt.f32.partialorder %v364, 0.0004427343
      %v366 = vsel %vm365, %v363, %v360
      %v367 = vadd.f32 %v346, 1.0
      %v368 = vlog2.pop %v367
      %v369 = vmul.f32 %v368, 0.6931472
      %v370 = vmul.f32 -0.5, %v346
      %v371 = vadd.f32 %v370, 1.0
      %v372 = vmul.f32 %v371, %v346
      %v373 = vand.u32 2147483647, %v346
      %vm374 = vcmp.lt.f32.partialorder %v373, 0.0004427343
      %v375 = vsel %vm374, %v372, %v369
      %v376 = vadd.f32 %v348, 1.0
      %v377 = vlog2.pop %v376
      %v378 = vmul.f32 %v377, 0.6931472
      %v379 = vmul.f32 -0.5, %v348
      %v380 = vadd.f32 %v379, 1.0
      %v381 = vmul.f32 %v380, %v348
      %v382 = vand.u32 2147483647, %v348
      %vm383 = vcmp.lt.f32.partialorder %v382, 0.0004427343
      %v384 = vsel %vm383, %v381, %v378
      %v385 = vadd.f32 %v329, %v357
      %v386 = vadd.f32 %v330, %v366
      %v387 = vadd.f32 %v331, %v375
      %v388 = vadd.f32 %v332, %v384
      %v389 = vtanh.pop %v385
      %v390 = vtanh.pop %v386
      %v391 = vtanh.pop %v387
      %v392 = vtanh.pop %v388
      %v393 = vmul.f32 %v325, %v389
      %v394 = vmul.f32 %v326, %v390
      %v395 = vmul.f32 %v327, %v391
      %v396 = vmul.f32 %v328, %v392
      %vm397 = vcmask 31744
      %398 = vst.msk [vmem:[%s221] sm:$0xff] %vm397, %v393
      %399 = vst.msk [vmem:[%s221 + $0x8] sm:$0xff] %vm397, %v394
      %400 = vst.msk [vmem:[%s221 + $0x10] sm:$0xff] %vm397, %v395
      %401 = vst.msk [vmem:[%s221 + $0x18] sm:$0xff] %vm397, %v396
      %s402 = smul.u32 4, %s15
      %p403 = scmp.lt.s32.totalorder %s402, 7
      %s404 = scalar_select %p403, %s402, 7
      %s405 = smul.addr %s404, 8
      %s406 = scalar_lea.vmem %s4, %s405
      // Predicated region
      $region37: #{hourglassup_forward.43} parent=35 // pred_check
        %p407 = pneg %p127
      $region38: #{hourglassup_forward.43} parent=35 // pred_check_branch
        %409 = sbr.rel (%p407) target = $region40
      $region39: #{hourglassup_forward.43} parent=35 // pred_region
        %s410 = smul.u32 4, %s15
      $region40: #{hourglassup_forward.43} parent=35 // pred_fallthru
        _
    $region36: #{hourglassup_forward.43} parent=5 // pred_fallthru
      _
    %p411 = scmp.le.s32.totalorder 2, %s10
    // Predicated region
    $region41: #{hourglassup_forward.43} parent=5 // pred_check
      %p412 = pneg %p411
    $region42: #{hourglassup_forward.43} parent=5 // pred_check_branch
      %414 = sbr.rel (%p412) target = $region44
    $region43: #{hourglassup_forward.43} parent=5 // pred_region
      %s415 = ssub.s32 %s10, 2
      // Predicated region
      $region45: #{hourglassup_forward.43} parent=43 // pred_check
        %p416 = pneg %p133
      $region46: #{hourglassup_forward.43} parent=43 // pred_check_branch
        %418 = sbr.rel (%p416) target = $region48
      $region47: #{hourglassup_forward.43} parent=43 // pred_region
        %s419 = smul.u32 4, %s16
        %p420 = scmp.lt.s32.totalorder %s419, 7
        %s421 = scalar_select %p420, %s419, 7
        %s422 = smul.addr %s421, 8
        %s423 = scalar_lea.vmem %s4, %s422
      $region48: #{hourglassup_forward.43} parent=43 // pred_fallthru
        _
    $region44: #{hourglassup_forward.43} parent=5 // pred_fallthru
      _
  $region6: #{hourglassup_forward.43} parent=0 // loop_footer
    %s14 = sadd.s32 1, %s10
  $region7: #{hourglassup_forward.43} parent=0 // loop_footer_branch
    %9 = sbr.rel target = $region3
  $region8: #{hourglassup_forward.43} parent=0 // loop_exit
    _

// kernel: hourglassup_forward.40
$region0: #{hourglassup_forward.40}
  #allocation0 [shape = 'u32[]', space=smem, size = 0x4, offset = 0x4, fixed_abs, tag = 'smem constant byte address 0x4 - core index']
  #allocation1 [shape = 'u32[144,128]{1,0:T(1,128)}', space=vmem, size = 0x12000, scoped, tag = 'internal scratch']
  %s0 = inlined_call_operand.vmem [shape: bf16[64,8], index: 0, kind: input, shape index: {}]
  %s1 = inlined_call_operand.vmem [shape: bf16[8,4], index: 1, kind: input, shape index: {}]
  %s2 = inlined_call_operand.vmem [shape: f32[1,4], index: 2, kind: input, shape index: {}]
  %s3 = inlined_call_operand.vmem [shape: bf16[64,4], index: 3, kind: input, shape index: {}]
  %s4 = inlined_call_operand.vmem [shape: f32[64,4], index: 4, kind: output, shape index: {}]
  %s5 = sld [smem:[#allocation0]]
  $region49: #{hourglassup_forward.40} parent=0
    _
  %s7 = ssub.s32 1, %s5
  %s8 = scalar_select 0, %s7, %s5
  loop: start=0, step=1, limit=4
  $region2: #{hourglassup_forward.40} parent=0 // loop_pre_header
    _
  $region3: #{hourglassup_forward.40} parent=0 // loop_header
    %s10 = sphi 0, %s14
    %p11 = scmp.ge.s32.totalorder %s10, 4
    %s20 = sphi 0, %s22
    %s23 = sphi 0, %s20
    %s24 = sphi 0, %s23
    %s40 = sphi 0, %s24
    %s44 = sphi 0, %s44
    %s46 = sphi 0, %s44
    %s47 = sphi 0, %s46
    %s61 = sphi 0, %s47
    %s65 = sphi 0, %s65
    %s67 = sphi 0, %s65
    %s68 = sphi 0, %s67
    %s82 = sphi 0, %s68
    %s88 = sphi 0, %s90
    %s91 = sphi 0, %s88
    %s92 = sphi 0, %s91
    %s108 = sphi 0, %s92
    %s114 = sphi 0, %s116
    %s117 = sphi 0, %s114
    %s118 = sphi 0, %s117
    %s134 = sphi 0, %s118
  $region4: #{hourglassup_forward.40} parent=0 // loop_header_branch
    %13 = sbr.rel (%p11) target = $region8
  $region5: #{hourglassup_forward.40} parent=0 // loop_body
    %s15 = ssub.s32 %s10, 1
    %s16 = ssub.s32 %s10, 2
    %s17 = sadd.s32 %s10, 1
    %s18 = ssub.s32 %s10, %s17
    %p19 = scmp.eq.s32.totalorder %s18, 0
    %s21 = sadd.s32 %s20, 1
    %s22 = scalar_select %p19, %s20, %s21
    %p25 = pneg %p19
    %p26 = scmp.eq.s32.totalorder %s10, 1
    %p27 = por %p25, %p26
    %p28 = scmp.ne.s32.totalorder %s20, %s23
    %p29 = scmp.eq.s32.totalorder %s10, 0
    %p30 = por %p28, %p29
    %p31 = scmp.ne.s32.totalorder %s20, %s23
    %p32 = scmp.eq.s32.totalorder %s15, 1
    %p33 = por %p31, %p32
    %p34 = scmp.ne.s32.totalorder %s23, %s24
    %p35 = scmp.eq.s32.totalorder %s15, 0
    %p36 = por %p34, %p35
    %p37 = scmp.ne.s32.totalorder %s23, %s24
    %p38 = scmp.eq.s32.totalorder %s16, 1
    %p39 = por %p37, %p38
    %p41 = scmp.ne.s32.totalorder %s24, %s40
    %p42 = scmp.eq.s32.totalorder %s16, 0
    %p43 = por %p41, %p42
    %s45 = sadd.s32 %s44, 1
    %p48 = scmp.eq.s32.totalorder %s10, 1
    %p49 = scmp.ne.s32.totalorder %s44, %s46
    %p50 = scmp.eq.s32.totalorder %s10, 0
    %p51 = por %p49, %p50
    %p52 = scmp.ne.s32.totalorder %s44, %s46
    %p53 = scmp.eq.s32.totalorder %s15, 1
    %p54 = por %p52, %p53
    %p55 = scmp.ne.s32.totalorder %s46, %s47
    %p56 = scmp.eq.s32.totalorder %s15, 0
    %p57 = por %p55, %p56
    %p58 = scmp.ne.s32.totalorder %s46, %s47
    %p59 = scmp.eq.s32.totalorder %s16, 1
    %p60 = por %p58, %p59
    %p62 = scmp.ne.s32.totalorder %s47, %s61
    %p63 = scmp.eq.s32.totalorder %s16, 0
    %p64 = por %p62, %p63
    %s66 = sadd.s32 %s65, 1
    %p69 = scmp.eq.s32.totalorder %s10, 1
    %p70 = scmp.ne.s32.totalorder %s65, %s67
    %p71 = scmp.eq.s32.totalorder %s10, 0
    %p72 = por %p70, %p71
    %p73 = scmp.ne.s32.totalorder %s65, %s67
    %p74 = scmp.eq.s32.totalorder %s15, 1
    %p75 = por %p73, %p74
    %p76 = scmp.ne.s32.totalorder %s67, %s68
    %p77 = scmp.eq.s32.totalorder %s15, 0
    %p78 = por %p76, %p77
    %p79 = scmp.ne.s32.totalorder %s67, %s68
    %p80 = scmp.eq.s32.totalorder %s16, 1
    %p81 = por %p79, %p80
    %p83 = scmp.ne.s32.totalorder %s68, %s82
    %p84 = scmp.eq.s32.totalorder %s16, 0
    %p85 = por %p83, %p84
    %s86 = ssub.s32 %s10, %s17
    %p87 = scmp.eq.s32.totalorder %s86, 0
    %s89 = sadd.s32 %s88, 1
    %s90 = scalar_select %p87, %s88, %s89
    %p93 = pneg %p87
    %p94 = scmp.eq.s32.totalorder %s10, 1
    %p95 = por %p93, %p94
    %p96 = scmp.ne.s32.totalorder %s88, %s91
    %p97 = scmp.eq.s32.totalorder %s10, 0
    %p98 = por %p96, %p97
    %p99 = scmp.ne.s32.totalorder %s88, %s91
    %p100 = scmp.eq.s32.totalorder %s15, 1
    %p101 = por %p99, %p100
    %p102 = scmp.ne.s32.totalorder %s91, %s92
    %p103 = scmp.eq.s32.totalorder %s15, 0
    %p104 = por %p102, %p103
    %p105 = scmp.ne.s32.totalorder %s91, %s92
    %p106 = scmp.eq.s32.totalorder %s16, 1
    %p107 = por %p105, %p106
    %p109 = scmp.ne.s32.totalorder %s92, %s108
    %p110 = scmp.eq.s32.totalorder %s16, 0
    %p111 = por %p109, %p110
    %s112 = ssub.s32 %s10, %s17
    %p113 = scmp.eq.s32.totalorder %s112, 0
    %s115 = sadd.s32 %s114, 1
    %s116 = scalar_select %p113, %s114, %s115
    %p119 = pneg %p113
    %p120 = scmp.eq.s32.totalorder %s10, 1
    %p121 = por %p119, %p120
    %p122 = scmp.ne.s32.totalorder %s114, %s117
    %p123 = scmp.eq.s32.totalorder %s10, 0
    %p124 = por %p122, %p123
    %p125 = scmp.ne.s32.totalorder %s114, %s117
    %p126 = scmp.eq.s32.totalorder %s15, 1
    %p127 = por %p125, %p126
    %p128 = scmp.ne.s32.totalorder %s117, %s118
    %p129 = scmp.eq.s32.totalorder %s15, 0
    %p130 = por %p128, %p129
    %p131 = scmp.ne.s32.totalorder %s117, %s118
    %p132 = scmp.eq.s32.totalorder %s16, 1
    %p133 = por %p131, %p132
    %p135 = scmp.ne.s32.totalorder %s118, %s134
    %p136 = scmp.eq.s32.totalorder %s16, 0
    %p137 = por %p135, %p136
    %p138 = scmp.le.s32.totalorder 1, %s10
    %p139 = scmp.lt.s32.totalorder %s10, 3
    %p140 = pnand %p138, %p139
    %p141 = pneg %p140
    // Predicated region
    $region9: #{hourglassup_forward.40} parent=5 // pred_check
      _
    $region10: #{hourglassup_forward.40} parent=5 // pred_check_branch
      %143 = sbr.rel (%p140) target = $region12
    $region11: #{hourglassup_forward.40} parent=5 // pred_region
      %s144 = ssub.s32 %s10, 1
      // Predicated region
      $region13: #{hourglassup_forward.40} parent=11 // pred_check
        %p145 = pneg %p57
      $region14: #{hourglassup_forward.40} parent=11 // pred_check_branch
        %147 = sbr.rel (%p145) target = $region16
      $region15: #{hourglassup_forward.40} parent=11 // pred_region
        _
      $region16: #{hourglassup_forward.40} parent=11 // pred_fallthru
        _
      // Predicated region
      $region17: #{hourglassup_forward.40} parent=11 // pred_check
        %p148 = pneg %p78
      $region18: #{hourglassup_forward.40} parent=11 // pred_check_branch
        %150 = sbr.rel (%p148) target = $region20
      $region19: #{hourglassup_forward.40} parent=11 // pred_region
        _
      $region20: #{hourglassup_forward.40} parent=11 // pred_fallthru
        _
    $region12: #{hourglassup_forward.40} parent=5 // pred_fallthru
      _
    %p151 = scmp.lt.s32.totalorder %s10, 2
    // Predicated region
    $region21: #{hourglassup_forward.40} parent=5 // pred_check
      %p152 = pneg %p151
    $region22: #{hourglassup_forward.40} parent=5 // pred_check_branch
      %154 = sbr.rel (%p152) target = $region24
    $region23: #{hourglassup_forward.40} parent=5 // pred_region
      // Predicated region
      $region25: #{hourglassup_forward.40} parent=23 // pred_check
        %p155 = pneg %p30
      $region26: #{hourglassup_forward.40} parent=23 // pred_check_branch
        %157 = sbr.rel (%p155) target = $region28
      $region27: #{hourglassup_forward.40} parent=23 // pred_region
        %s158 = smul.u32 4, %s10
        %p159 = scmp.lt.s32.totalorder %s158, 7
        %s160 = scalar_select %p159, %s158, 7
        %s161 = smul.addr %s160, 4
        %s162 = scalar_lea.vmem %s0, %s161
        %s163 = smul.u32 4, %s10
      $region28: #{hourglassup_forward.40} parent=23 // pred_fallthru
        _
      // Predicated region
      $region29: #{hourglassup_forward.40} parent=23 // pred_check
        %p164 = pneg %p98
      $region30: #{hourglassup_forward.40} parent=23 // pred_check_branch
        %166 = sbr.rel (%p164) target = $region32
      $region31: #{hourglassup_forward.40} parent=23 // pred_region
        %s167 = smul.u32 4, %s10
        %p168 = scmp.lt.s32.totalorder %s167, 7
        %s169 = scalar_select %p168, %s167, 7
        %s170 = smul.addr %s169, 4
        %s171 = scalar_lea.vmem %s3, %s170
        %s172 = smul.u32 4, %s10
      $region32: #{hourglassup_forward.40} parent=23 // pred_fallthru
        _
    $region24: #{hourglassup_forward.40} parent=5 // pred_fallthru
      _
    %p173 = scmp.le.s32.totalorder 1, %s10
    %p174 = scmp.lt.s32.totalorder %s10, 3
    %p175 = pnand %p173, %p174
    %p176 = pneg %p175
    // Predicated region
    $region33: #{hourglassup_forward.40} parent=5 // pred_check
      _
    $region34: #{hourglassup_forward.40} parent=5 // pred_check_branch
      %178 = sbr.rel (%p175) target = $region36
    $region35: #{hourglassup_forward.40} parent=5 // pred_region
      %s179 = ssub.s32 %s10, 1
      %s180 = smul.u32 4, %s15
      %p181 = scmp.lt.s32.totalorder %s180, 7
      %s182 = scalar_select %p181, %s180, 7
      %s183 = smul.addr %s182, 4
      %s184 = scalar_lea.vmem %s0, %s183
      %p185 = pneg %p36
      %p186 = pneg %p33
      %p187 = pneg %p57
      %p188 = pneg %p54
      %p189 = pneg %p78
      %p190 = pneg %p75
      %s191 = smul.u32 4, %s15
      %p192 = scmp.lt.s32.totalorder %s191, 7
      %s193 = scalar_select %p192, %s191, 7
      %s194 = smul.addr %s193, 4
      %s195 = scalar_lea.vmem %s3, %s194
      %p196 = pneg %p104
      %p197 = pneg %p101
      %p198 = pneg %p130
      %p199 = pneg %p127
      %s200 = smul.u32 4, %s15
      %p201 = scmp.lt.s32.totalorder %s200, 7
      %s202 = scalar_select %p201, %s200, 7
      %s203 = smul.addr %s202, 8
      %s204 = scalar_lea.vmem %s4, %s203
      %s205 = smul.u32 4, %s15
      %p206 = scmp.lt.s32.totalorder %s205, 7
      %s207 = scalar_select %p206, %s205, 7
      %s208 = smul.addr %s207, 4
      %s209 = scalar_lea.vmem %s0, %s208
      %s210 = smul.u32 4, %s15
      %s211 = smul.u32 4, %s15
      %p212 = scmp.lt.s32.totalorder %s211, 7
      %s213 = scalar_select %p212, %s211, 7
      %s214 = smul.addr %s213, 4
      %s215 = scalar_lea.vmem %s3, %s214
      %s216 = smul.u32 4, %s15
      %s217 = smul.u32 4, %s15
      %p218 = scmp.lt.s32.totalorder %s217, 7
      %s219 = scalar_select %p218, %s217, 7
      %s220 = smul.addr %s219, 8
      %s221 = scalar_lea.vmem %s4, %s220
      %s222 = smul.u32 4, %s15
      %v224 = vld [vmem:[%s209] sm:$0xf]
      %v225 = vld [vmem:[%s209 + $0x4] sm:$0xf]
      %v226 = vld [vmem:[%s209 + $0x8] sm:$0xf]
      %v227 = vld [vmem:[%s209 + $0xc] sm:$0xf]
      %v228 = vld [vmem:[%s1] sm:$0xf]
      %v229 = vld [vmem:[%s2] sm:$0x1]
      %v231 = vlaneseq
      %v232 = vshrl.u32 %v231, 7
      %v233 = vsub.s32 0, %v232
      %v234 = vrot.slane %v229, %v233
      %v240 = vunpack.c.l.b16 %v224
      %v241 = vunpack.c.l.b16 %v225
      %v242 = vunpack.c.l.b16 %v226
      %v243 = vunpack.c.l.b16 %v227
      %v244 = vpack.c.b16 %v241, %v240
      %v245 = vpack.c.b16 %v243, %v242
      %vm246 = vcmask 64512
      %v248 = vsel %vm246, %v244, 0
      %v251 = vsel %vm246, %v245, 0
      %vm253 = vcmask 1043456
      %v255 = vsel %vm253, %v228, 0
      %257 = vmatprep.subr.bf16.mxu0 0
      %258 = vmatpush1.bf16.msra.mxu0 0
      %259 = vmatprep.subr.bf16.mxu0 0
      %260 = vmatpush1.bf16.msra.mxu0 0
      %261 = vmatprep.subr.bf16.mxu0 0
      %262 = vmatpush1.bf16.msra.mxu0 0
      %263 = vmatprep.subr.bf16.mxu0 0
      %264 = vmatpush1.bf16.msra.mxu0 0
      %265 = vmatprep.subr.bf16.mxu0 0
      %266 = vmatpush1.bf16.msra.mxu0 0
      %267 = vmatprep.subr.bf16.mxu0 0
      %268 = vmatpush1.bf16.msra.mxu0 0
      %269 = vmatprep.subr.bf16.mxu0 0
      %270 = vmatpush1.bf16.msra.mxu0 0
      %271 = vmatprep.subr.bf16.mxu0 0
      %272 = vmatpush1.bf16.msra.mxu0 %v255
      %273 = vmatprep.subr.bf16.mxu0 0
      %274 = vmatpush2.bf16.msra.mxu0 0
      %275 = vmatprep.subr.bf16.mxu0 0
      %276 = vmatpush2.bf16.msra.mxu0 0
      %277 = vmatprep.subr.bf16.mxu0 0
      %278 = vmatpush2.bf16.msra.mxu0 0
      %279 = vmatprep.subr.bf16.mxu0 0
      %280 = vmatpush2.bf16.msra.mxu0 0
      %281 = vmatprep.subr.bf16.mxu0 0
      %282 = vmatpush2.bf16.msra.mxu0 0
      %283 = vmatprep.subr.bf16.mxu0 0
      %284 = vmatpush2.bf16.msra.mxu0 0
      %285 = vmatprep.subr.bf16.mxu0 0
      %286 = vmatpush2.bf16.msra.mxu0 0
      %287 = vmatprep.subr.bf16.mxu0 0
      %288 = vmatpush2.bf16.msra.mxu0 0
      %289 = vmatprep.mubr.bf16.mxu0 0
      %290 = vmatmul.mubr.bf16.gmra.mxu0 %v248
      %v291 = vpop.f32.mrf.mxu0
      %v292 = vadd.f32 %v234, %v291
      %v293 = vpop.f32.mrf.mxu0
      %v294 = vpop.f32.mrf.mxu0
      %v295 = vadd.f32 %v234, %v294
      %v296 = vpop.f32.mrf.mxu0
      %297 = vmatprep.mubr.bf16.mxu0 0
      %298 = vmatmul.mubr.bf16.gmra.mxu0 %v251
      %v299 = vpop.f32.mrf.mxu0
      %v300 = vadd.f32 %v234, %v299
      %v301 = vpop.f32.mrf.mxu0
      %v302 = vpop.f32.mrf.mxu0
      %v303 = vadd.f32 %v234, %v302
      %v304 = vpop.f32.mrf.mxu0
      %305 = vdwg.mxu0
      %v306 = vld [vmem:[%s215] sm:$0xf]
      %v307 = vld [vmem:[%s215 + $0x4] sm:$0xf]
      %v308 = vld [vmem:[%s215 + $0x8] sm:$0xf]
      %v309 = vld [vmem:[%s215 + $0xc] sm:$0xf]
      %v310 = vunpack.c.l.bf16 %v306
      %v311 = vunpack.c.l.bf16 %v307
      %v312 = vunpack.c.l.bf16 %v308
      %v313 = vunpack.c.l.bf16 %v309
      %v314 = vadd.f32 %v292, %v310
      %v315 = vadd.f32 %v295, %v311
      %v316 = vadd.f32 %v300, %v312
      %v317 = vadd.f32 %v303, %v313
      %v318 = vmax.f32 %v314, 0.0
      %v319 = vmax.f32 %v315, 0.0
      %v320 = vmax.f32 %v316, 0.0
      %v321 = vmax.f32 %v317, 0.0
      %v322 = vand.u32 2147483647, %v314
      %v323 = vand.u32 2147483647, %v315
      %v324 = vand.u32 2147483647, %v316
      %v325 = vand.u32 2147483647, %v317
      %v326 = vsub.f32 0.0, %v322
      %v327 = vsub.f32 0.0, %v323
      %v328 = vsub.f32 0.0, %v324
      %v329 = vsub.f32 0.0, %v325
      %v330 = vmul.f32 %v326, 1.442695
      %v331 = vpow.pop %v330
      %v332 = vmul.f32 %v327, 1.442695
      %v333 = vpow.pop %v332
      %v334 = vmul.f32 %v328, 1.442695
      %v335 = vpow.pop %v334
      %v336 = vmul.f32 %v329, 1.442695
      %v337 = vpow.pop %v336
      %v338 = vadd.f32 %v331, 1.0
      %v339 = vlog2.pop %v338
      %v340 = vmul.f32 %v339, 0.6931472
      %v341 = vmul.f32 -0.5, %v331
      %v342 = vadd.f32 %v341, 1.0
      %v343 = vmul.f32 %v342, %v331
      %v344 = vand.u32 2147483647, %v331
      %vm345 = vcmp.lt.f32.partialorder %v344, 0.0004427343
      %v346 = vsel %vm345, %v343, %v340
      %v347 = vadd.f32 %v333, 1.0
      %v348 = vlog2.pop %v347
      %v349 = vmul.f32 %v348, 0.6931472
      %v350 = vmul.f32 -0.5, %v333
      %v351 = vadd.f32 %v350, 1.0
      %v352 = vmul.f32 %v351, %v333
      %v353 = vand.u32 2147483647, %v333
      %vm354 = vcmp.lt.f32.partialorder %v353, 0.0004427343
      %v355 = vsel %vm354, %v352, %v349
      %v356 = vadd.f32 %v335, 1.0
      %v357 = vlog2.pop %v356
      %v358 = vmul.f32 %v357, 0.6931472
      %v359 = vmul.f32 -0.5, %v335
      %v360 = vadd.f32 %v359, 1.0
      %v361 = vmul.f32 %v360, %v335
      %v362 = vand.u32 2147483647, %v335
      %vm363 = vcmp.lt.f32.partialorder %v362, 0.0004427343
      %v364 = vsel %vm363, %v361, %v358
      %v365 = vadd.f32 %v337, 1.0
      %v366 = vlog2.pop %v365
      %v367 = vmul.f32 %v366, 0.6931472
      %v368 = vmul.f32 -0.5, %v337
      %v369 = vadd.f32 %v368, 1.0
      %v370 = vmul.f32 %v369, %v337
      %v371 = vand.u32 2147483647, %v337
      %vm372 = vcmp.lt.f32.partialorder %v371, 0.0004427343
      %v373 = vsel %vm372, %v370, %v367
      %v374 = vadd.f32 %v318, %v346
      %v375 = vadd.f32 %v319, %v355
      %v376 = vadd.f32 %v320, %v364
      %v377 = vadd.f32 %v321, %v373
      %v378 = vtanh.pop %v374
      %v379 = vtanh.pop %v375
      %v380 = vtanh.pop %v376
      %v381 = vtanh.pop %v377
      %v382 = vmul.f32 %v314, %v378
      %v383 = vmul.f32 %v315, %v379
      %v384 = vmul.f32 %v316, %v380
      %v385 = vmul.f32 %v317, %v381
      %vm386 = vcmask 31744
      %387 = vst.msk [vmem:[%s221] sm:$0xff] %vm386, %v382
      %388 = vst.msk [vmem:[%s221 + $0x8] sm:$0xff] %vm386, %v383
      %389 = vst.msk [vmem:[%s221 + $0x10] sm:$0xff] %vm386, %v384
      %390 = vst.msk [vmem:[%s221 + $0x18] sm:$0xff] %vm386, %v385
      %s391 = smul.u32 4, %s15
      %p392 = scmp.lt.s32.totalorder %s391, 7
      %s393 = scalar_select %p392, %s391, 7
      %s394 = smul.addr %s393, 8
      %s395 = scalar_lea.vmem %s4, %s394
      // Predicated region
      $region37: #{hourglassup_forward.40} parent=35 // pred_check
        %p396 = pneg %p127
      $region38: #{hourglassup_forward.40} parent=35 // pred_check_branch
        %398 = sbr.rel (%p396) target = $region40
      $region39: #{hourglassup_forward.40} parent=35 // pred_region
        %s399 = smul.u32 4, %s15
      $region40: #{hourglassup_forward.40} parent=35 // pred_fallthru
        _
    $region36: #{hourglassup_forward.40} parent=5 // pred_fallthru
      _
    %p400 = scmp.le.s32.totalorder 2, %s10
    // Predicated region
    $region41: #{hourglassup_forward.40} parent=5 // pred_check
      %p401 = pneg %p400
    $region42: #{hourglassup_forward.40} parent=5 // pred_check_branch
      %403 = sbr.rel (%p401) target = $region44
    $region43: #{hourglassup_forward.40} parent=5 // pred_region
      %s404 = ssub.s32 %s10, 2
      // Predicated region
      $region45: #{hourglassup_forward.40} parent=43 // pred_check
        %p405 = pneg %p133
      $region46: #{hourglassup_forward.40} parent=43 // pred_check_branch
        %407 = sbr.rel (%p405) target = $region48
      $region47: #{hourglassup_forward.40} parent=43 // pred_region
        %s408 = smul.u32 4, %s16
        %p409 = scmp.lt.s32.totalorder %s408, 7
        %s410 = scalar_select %p409, %s408, 7
        %s411 = smul.addr %s410, 8
        %s412 = scalar_lea.vmem %s4, %s411
      $region48: #{hourglassup_forward.40} parent=43 // pred_fallthru
        _
    $region44: #{hourglassup_forward.40} parent=5 // pred_fallthru
      _
  $region6: #{hourglassup_forward.40} parent=0 // loop_footer
    %s14 = sadd.s32 1, %s10
  $region7: #{hourglassup_forward.40} parent=0 // loop_footer_branch
    %9 = sbr.rel target = $region3
  $region8: #{hourglassup_forward.40} parent=0 // loop_exit
    _

// kernel: hourglassup_forward.42
$region0: #{hourglassup_forward.42}
  #allocation0 [shape = 'u32[]', space=smem, size = 0x4, offset = 0x4, fixed_abs, tag = 'smem constant byte address 0x4 - core index']
  #allocation1 [shape = 'u32[144,128]{1,0:T(1,128)}', space=vmem, size = 0x12000, scoped, tag = 'internal scratch']
  %s0 = inlined_call_operand.vmem [shape: bf16[64,16], index: 0, kind: input, shape index: {}]
  %s1 = inlined_call_operand.vmem [shape: bf16[16,4], index: 1, kind: input, shape index: {}]
  %s2 = inlined_call_operand.vmem [shape: f32[1,4], index: 2, kind: input, shape index: {}]
  %s3 = inlined_call_operand.vmem [shape: bf16[64,4], index: 3, kind: input, shape index: {}]
  %s4 = inlined_call_operand.vmem [shape: f32[64,4], index: 4, kind: output, shape index: {}]
  %s5 = sld [smem:[#allocation0]]
  $region49: #{hourglassup_forward.42} parent=0
    _
  %s7 = ssub.s32 1, %s5
  %s8 = scalar_select 0, %s7, %s5
  loop: start=0, step=1, limit=4
  $region2: #{hourglassup_forward.42} parent=0 // loop_pre_header
    _
  $region3: #{hourglassup_forward.42} parent=0 // loop_header
    %s10 = sphi 0, %s14
    %p11 = scmp.ge.s32.totalorder %s10, 4
    %s20 = sphi 0, %s22
    %s23 = sphi 0, %s20
    %s24 = sphi 0, %s23
    %s40 = sphi 0, %s24
    %s44 = sphi 0, %s44
    %s46 = sphi 0, %s44
    %s47 = sphi 0, %s46
    %s61 = sphi 0, %s47
    %s65 = sphi 0, %s65
    %s67 = sphi 0, %s65
    %s68 = sphi 0, %s67
    %s82 = sphi 0, %s68
    %s88 = sphi 0, %s90
    %s91 = sphi 0, %s88
    %s92 = sphi 0, %s91
    %s108 = sphi 0, %s92
    %s114 = sphi 0, %s116
    %s117 = sphi 0, %s114
    %s118 = sphi 0, %s117
    %s134 = sphi 0, %s118
  $region4: #{hourglassup_forward.42} parent=0 // loop_header_branch
    %13 = sbr.rel (%p11) target = $region8
  $region5: #{hourglassup_forward.42} parent=0 // loop_body
    %s15 = ssub.s32 %s10, 1
    %s16 = ssub.s32 %s10, 2
    %s17 = sadd.s32 %s10, 1
    %s18 = ssub.s32 %s10, %s17
    %p19 = scmp.eq.s32.totalorder %s18, 0
    %s21 = sadd.s32 %s20, 1
    %s22 = scalar_select %p19, %s20, %s21
    %p25 = pneg %p19
    %p26 = scmp.eq.s32.totalorder %s10, 1
    %p27 = por %p25, %p26
    %p28 = scmp.ne.s32.totalorder %s20, %s23
    %p29 = scmp.eq.s32.totalorder %s10, 0
    %p30 = por %p28, %p29
    %p31 = scmp.ne.s32.totalorder %s20, %s23
    %p32 = scmp.eq.s32.totalorder %s15, 1
    %p33 = por %p31, %p32
    %p34 = scmp.ne.s32.totalorder %s23, %s24
    %p35 = scmp.eq.s32.totalorder %s15, 0
    %p36 = por %p34, %p35
    %p37 = scmp.ne.s32.totalorder %s23, %s24
    %p38 = scmp.eq.s32.totalorder %s16, 1
    %p39 = por %p37, %p38
    %p41 = scmp.ne.s32.totalorder %s24, %s40
    %p42 = scmp.eq.s32.totalorder %s16, 0
    %p43 = por %p41, %p42
    %s45 = sadd.s32 %s44, 1
    %p48 = scmp.eq.s32.totalorder %s10, 1
    %p49 = scmp.ne.s32.totalorder %s44, %s46
    %p50 = scmp.eq.s32.totalorder %s10, 0
    %p51 = por %p49, %p50
    %p52 = scmp.ne.s32.totalorder %s44, %s46
    %p53 = scmp.eq.s32.totalorder %s15, 1
    %p54 = por %p52, %p53
    %p55 = scmp.ne.s32.totalorder %s46, %s47
    %p56 = scmp.eq.s32.totalorder %s15, 0
    %p57 = por %p55, %p56
    %p58 = scmp.ne.s32.totalorder %s46, %s47
    %p59 = scmp.eq.s32.totalorder %s16, 1
    %p60 = por %p58, %p59
    %p62 = scmp.ne.s32.totalorder %s47, %s61
    %p63 = scmp.eq.s32.totalorder %s16, 0
    %p64 = por %p62, %p63
    %s66 = sadd.s32 %s65, 1
    %p69 = scmp.eq.s32.totalorder %s10, 1
    %p70 = scmp.ne.s32.totalorder %s65, %s67
    %p71 = scmp.eq.s32.totalorder %s10, 0
    %p72 = por %p70, %p71
    %p73 = scmp.ne.s32.totalorder %s65, %s67
    %p74 = scmp.eq.s32.totalorder %s15, 1
    %p75 = por %p73, %p74
    %p76 = scmp.ne.s32.totalorder %s67, %s68
    %p77 = scmp.eq.s32.totalorder %s15, 0
    %p78 = por %p76, %p77
    %p79 = scmp.ne.s32.totalorder %s67, %s68
    %p80 = scmp.eq.s32.totalorder %s16, 1
    %p81 = por %p79, %p80
    %p83 = scmp.ne.s32.totalorder %s68, %s82
    %p84 = scmp.eq.s32.totalorder %s16, 0
    %p85 = por %p83, %p84
    %s86 = ssub.s32 %s10, %s17
    %p87 = scmp.eq.s32.totalorder %s86, 0
    %s89 = sadd.s32 %s88, 1
    %s90 = scalar_select %p87, %s88, %s89
    %p93 = pneg %p87
    %p94 = scmp.eq.s32.totalorder %s10, 1
    %p95 = por %p93, %p94
    %p96 = scmp.ne.s32.totalorder %s88, %s91
    %p97 = scmp.eq.s32.totalorder %s10, 0
    %p98 = por %p96, %p97
    %p99 = scmp.ne.s32.totalorder %s88, %s91
    %p100 = scmp.eq.s32.totalorder %s15, 1
    %p101 = por %p99, %p100
    %p102 = scmp.ne.s32.totalorder %s91, %s92
    %p103 = scmp.eq.s32.totalorder %s15, 0
    %p104 = por %p102, %p103
    %p105 = scmp.ne.s32.totalorder %s91, %s92
    %p106 = scmp.eq.s32.totalorder %s16, 1
    %p107 = por %p105, %p106
    %p109 = scmp.ne.s32.totalorder %s92, %s108
    %p110 = scmp.eq.s32.totalorder %s16, 0
    %p111 = por %p109, %p110
    %s112 = ssub.s32 %s10, %s17
    %p113 = scmp.eq.s32.totalorder %s112, 0
    %s115 = sadd.s32 %s114, 1
    %s116 = scalar_select %p113, %s114, %s115
    %p119 = pneg %p113
    %p120 = scmp.eq.s32.totalorder %s10, 1
    %p121 = por %p119, %p120
    %p122 = scmp.ne.s32.totalorder %s114, %s117
    %p123 = scmp.eq.s32.totalorder %s10, 0
    %p124 = por %p122, %p123
    %p125 = scmp.ne.s32.totalorder %s114, %s117
    %p126 = scmp.eq.s32.totalorder %s15, 1
    %p127 = por %p125, %p126
    %p128 = scmp.ne.s32.totalorder %s117, %s118
    %p129 = scmp.eq.s32.totalorder %s15, 0
    %p130 = por %p128, %p129
    %p131 = scmp.ne.s32.totalorder %s117, %s118
    %p132 = scmp.eq.s32.totalorder %s16, 1
    %p133 = por %p131, %p132
    %p135 = scmp.ne.s32.totalorder %s118, %s134
    %p136 = scmp.eq.s32.totalorder %s16, 0
    %p137 = por %p135, %p136
    %p138 = scmp.le.s32.totalorder 1, %s10
    %p139 = scmp.lt.s32.totalorder %s10, 3
    %p140 = pnand %p138, %p139
    %p141 = pneg %p140
    // Predicated region
    $region9: #{hourglassup_forward.42} parent=5 // pred_check
      _
    $region10: #{hourglassup_forward.42} parent=5 // pred_check_branch
      %143 = sbr.rel (%p140) target = $region12
    $region11: #{hourglassup_forward.42} parent=5 // pred_region
      %s144 = ssub.s32 %s10, 1
      // Predicated region
      $region13: #{hourglassup_forward.42} parent=11 // pred_check
        %p145 = pneg %p57
      $region14: #{hourglassup_forward.42} parent=11 // pred_check_branch
        %147 = sbr.rel (%p145) target = $region16
      $region15: #{hourglassup_forward.42} parent=11 // pred_region
        _
      $region16: #{hourglassup_forward.42} parent=11 // pred_fallthru
        _
      // Predicated region
      $region17: #{hourglassup_forward.42} parent=11 // pred_check
        %p148 = pneg %p78
      $region18: #{hourglassup_forward.42} parent=11 // pred_check_branch
        %150 = sbr.rel (%p148) target = $region20
      $region19: #{hourglassup_forward.42} parent=11 // pred_region
        _
      $region20: #{hourglassup_forward.42} parent=11 // pred_fallthru
        _
    $region12: #{hourglassup_forward.42} parent=5 // pred_fallthru
      _
    %p151 = scmp.lt.s32.totalorder %s10, 2
    // Predicated region
    $region21: #{hourglassup_forward.42} parent=5 // pred_check
      %p152 = pneg %p151
    $region22: #{hourglassup_forward.42} parent=5 // pred_check_branch
      %154 = sbr.rel (%p152) target = $region24
    $region23: #{hourglassup_forward.42} parent=5 // pred_region
      // Predicated region
      $region25: #{hourglassup_forward.42} parent=23 // pred_check
        %p155 = pneg %p30
      $region26: #{hourglassup_forward.42} parent=23 // pred_check_branch
        %157 = sbr.rel (%p155) target = $region28
      $region27: #{hourglassup_forward.42} parent=23 // pred_region
        %s158 = smul.u32 4, %s10
        %p159 = scmp.lt.s32.totalorder %s158, 7
        %s160 = scalar_select %p159, %s158, 7
        %s161 = smul.addr %s160, 4
        %s162 = scalar_lea.vmem %s0, %s161
        %s163 = smul.u32 4, %s10
      $region28: #{hourglassup_forward.42} parent=23 // pred_fallthru
        _
      // Predicated region
      $region29: #{hourglassup_forward.42} parent=23 // pred_check
        %p164 = pneg %p98
      $region30: #{hourglassup_forward.42} parent=23 // pred_check_branch
        %166 = sbr.rel (%p164) target = $region32
      $region31: #{hourglassup_forward.42} parent=23 // pred_region
        %s167 = smul.u32 4, %s10
        %p168 = scmp.lt.s32.totalorder %s167, 7
        %s169 = scalar_select %p168, %s167, 7
        %s170 = smul.addr %s169, 4
        %s171 = scalar_lea.vmem %s3, %s170
        %s172 = smul.u32 4, %s10
      $region32: #{hourglassup_forward.42} parent=23 // pred_fallthru
        _
    $region24: #{hourglassup_forward.42} parent=5 // pred_fallthru
      _
    %p173 = scmp.le.s32.totalorder 1, %s10
    %p174 = scmp.lt.s32.totalorder %s10, 3
    %p175 = pnand %p173, %p174
    %p176 = pneg %p175
    // Predicated region
    $region33: #{hourglassup_forward.42} parent=5 // pred_check
      _
    $region34: #{hourglassup_forward.42} parent=5 // pred_check_branch
      %178 = sbr.rel (%p175) target = $region36
    $region35: #{hourglassup_forward.42} parent=5 // pred_region
      %s179 = ssub.s32 %s10, 1
      %s180 = smul.u32 4, %s15
      %p181 = scmp.lt.s32.totalorder %s180, 7
      %s182 = scalar_select %p181, %s180, 7
      %s183 = smul.addr %s182, 4
      %s184 = scalar_lea.vmem %s0, %s183
      %p185 = pneg %p36
      %p186 = pneg %p33
      %p187 = pneg %p57
      %p188 = pneg %p54
      %p189 = pneg %p78
      %p190 = pneg %p75
      %s191 = smul.u32 4, %s15
      %p192 = scmp.lt.s32.totalorder %s191, 7
      %s193 = scalar_select %p192, %s191, 7
      %s194 = smul.addr %s193, 4
      %s195 = scalar_lea.vmem %s3, %s194
      %p196 = pneg %p104
      %p197 = pneg %p101
      %p198 = pneg %p130
      %p199 = pneg %p127
      %s200 = smul.u32 4, %s15
      %p201 = scmp.lt.s32.totalorder %s200, 7
      %s202 = scalar_select %p201, %s200, 7
      %s203 = smul.addr %s202, 8
      %s204 = scalar_lea.vmem %s4, %s203
      %s205 = smul.u32 4, %s15
      %p206 = scmp.lt.s32.totalorder %s205, 7
      %s207 = scalar_select %p206, %s205, 7
      %s208 = smul.addr %s207, 4
      %s209 = scalar_lea.vmem %s0, %s208
      %s210 = smul.u32 4, %s15
      %s211 = smul.u32 4, %s15
      %p212 = scmp.lt.s32.totalorder %s211, 7
      %s213 = scalar_select %p212, %s211, 7
      %s214 = smul.addr %s213, 4
      %s215 = scalar_lea.vmem %s3, %s214
      %s216 = smul.u32 4, %s15
      %s217 = smul.u32 4, %s15
      %p218 = scmp.lt.s32.totalorder %s217, 7
      %s219 = scalar_select %p218, %s217, 7
      %s220 = smul.addr %s219, 8
      %s221 = scalar_lea.vmem %s4, %s220
      %s222 = smul.u32 4, %s15
      %v224 = vld [vmem:[%s209] sm:$0xf]
      %v225 = vld [vmem:[%s209 + $0x4] sm:$0xf]
      %v226 = vld [vmem:[%s209 + $0x8] sm:$0xf]
      %v227 = vld [vmem:[%s209 + $0xc] sm:$0xf]
      %v228 = vld [vmem:[%s1] sm:$0xf]
      %v229 = vld [vmem:[%s1 + $0x4] sm:$0xf]
      %v230 = vld [vmem:[%s2] sm:$0x1]
      %v232 = vlaneseq
      %v233 = vshrl.u32 %v232, 7
      %v234 = vsub.s32 0, %v233
      %v235 = vrot.slane %v230, %v234
      %v241 = vunpack.c.l.b16 %v224
      %v242 = vunpack.c.l.b16 %v225
      %v243 = vunpack.c.l.b16 %v226
      %v244 = vunpack.c.l.b16 %v227
      %v245 = vpack.c.b16 %v242, %v241
      %v246 = vpack.c.b16 %v244, %v243
      %v249 = vunpack.c.l.b16 %v228
      %v250 = vunpack.c.l.b16 %v229
      %v251 = vpack.c.b16 %v250, %v249
      %vm253 = vcmask 130048
      %v255 = vsel %vm253, %v245, 0
      %v258 = vsel %vm253, %v246, 0
      %260 = vmatprep.subr.bf16.mxu0 0
      %261 = vmatpush1.bf16.msra.mxu0 0
      %262 = vmatprep.subr.bf16.mxu0 0
      %263 = vmatpush1.bf16.msra.mxu0 0
      %264 = vmatprep.subr.bf16.mxu0 0
      %265 = vmatpush1.bf16.msra.mxu0 0
      %266 = vmatprep.subr.bf16.mxu0 0
      %267 = vmatpush1.bf16.msra.mxu0 0
      %268 = vmatprep.subr.bf16.mxu0 0
      %269 = vmatpush1.bf16.msra.mxu0 0
      %270 = vmatprep.subr.bf16.mxu0 0
      %271 = vmatpush1.bf16.msra.mxu0 0
      %272 = vmatprep.subr.bf16.mxu0 0
      %273 = vmatpush1.bf16.msra.mxu0 0
      %274 = vmatprep.subr.bf16.mxu0 0
      %275 = vmatpush1.bf16.msra.mxu0 %v251
      %276 = vmatprep.subr.bf16.mxu0 0
      %277 = vmatpush2.bf16.msra.mxu0 0
      %278 = vmatprep.subr.bf16.mxu0 0
      %279 = vmatpush2.bf16.msra.mxu0 0
      %280 = vmatprep.subr.bf16.mxu0 0
      %281 = vmatpush2.bf16.msra.mxu0 0
      %282 = vmatprep.subr.bf16.mxu0 0
      %283 = vmatpush2.bf16.msra.mxu0 0
      %284 = vmatprep.subr.bf16.mxu0 0
      %285 = vmatpush2.bf16.msra.mxu0 0
      %286 = vmatprep.subr.bf16.mxu0 0
      %287 = vmatpush2.bf16.msra.mxu0 0
      %288 = vmatprep.subr.bf16.mxu0 0
      %289 = vmatpush2.bf16.msra.mxu0 0
      %290 = vmatprep.subr.bf16.mxu0 0
      %291 = vmatpush2.bf16.msra.mxu0 0
      %292 = vmatprep.mubr.bf16.mxu0 0
      %293 = vmatmul.mubr.bf16.gmra.mxu0 %v255
      %v294 = vpop.f32.mrf.mxu0
      %v295 = vadd.f32 %v235, %v294
      %v296 = vpop.f32.mrf.mxu0
      %v297 = vpop.f32.mrf.mxu0
      %v298 = vadd.f32 %v235, %v297
      %v299 = vpop.f32.mrf.mxu0
      %300 = vmatprep.mubr.bf16.mxu0 0
      %301 = vmatmul.mubr.bf16.gmra.mxu0 %v258
      %v302 = vpop.f32.mrf.mxu0
      %v303 = vadd.f32 %v235, %v302
      %v304 = vpop.f32.mrf.mxu0
      %v305 = vpop.f32.mrf.mxu0
      %v306 = vadd.f32 %v235, %v305
      %v307 = vpop.f32.mrf.mxu0
      %308 = vdwg.mxu0
      %v309 = vld [vmem:[%s215] sm:$0xf]
      %v310 = vld [vmem:[%s215 + $0x4] sm:$0xf]
      %v311 = vld [vmem:[%s215 + $0x8] sm:$0xf]
      %v312 = vld [vmem:[%s215 + $0xc] sm:$0xf]
      %v313 = vunpack.c.l.bf16 %v309
      %v314 = vunpack.c.l.bf16 %v310
      %v315 = vunpack.c.l.bf16 %v311
      %v316 = vunpack.c.l.bf16 %v312
      %v317 = vadd.f32 %v295, %v313
      %v318 = vadd.f32 %v298, %v314
      %v319 = vadd.f32 %v303, %v315
      %v320 = vadd.f32 %v306, %v316
      %v321 = vmax.f32 %v317, 0.0
      %v322 = vmax.f32 %v318, 0.0
      %v323 = vmax.f32 %v319, 0.0
      %v324 = vmax.f32 %v320, 0.0
      %v325 = vand.u32 2147483647, %v317
      %v326 = vand.u32 2147483647, %v318
      %v327 = vand.u32 2147483647, %v319
      %v328 = vand.u32 2147483647, %v320
      %v329 = vsub.f32 0.0, %v325
      %v330 = vsub.f32 0.0, %v326
      %v331 = vsub.f32 0.0, %v327
      %v332 = vsub.f32 0.0, %v328
      %v333 = vmul.f32 %v329, 1.442695
      %v334 = vpow.pop %v333
      %v335 = vmul.f32 %v330, 1.442695
      %v336 = vpow.pop %v335
      %v337 = vmul.f32 %v331, 1.442695
      %v338 = vpow.pop %v337
      %v339 = vmul.f32 %v332, 1.442695
      %v340 = vpow.pop %v339
      %v341 = vadd.f32 %v334, 1.0
      %v342 = vlog2.pop %v341
      %v343 = vmul.f32 %v342, 0.6931472
      %v344 = vmul.f32 -0.5, %v334
      %v345 = vadd.f32 %v344, 1.0
      %v346 = vmul.f32 %v345, %v334
      %v347 = vand.u32 2147483647, %v334
      %vm348 = vcmp.lt.f32.partialorder %v347, 0.0004427343
      %v349 = vsel %vm348, %v346, %v343
      %v350 = vadd.f32 %v336, 1.0
      %v351 = vlog2.pop %v350
      %v352 = vmul.f32 %v351, 0.6931472
      %v353 = vmul.f32 -0.5, %v336
      %v354 = vadd.f32 %v353, 1.0
      %v355 = vmul.f32 %v354, %v336
      %v356 = vand.u32 2147483647, %v336
      %vm357 = vcmp.lt.f32.partialorder %v356, 0.0004427343
      %v358 = vsel %vm357, %v355, %v352
      %v359 = vadd.f32 %v338, 1.0
      %v360 = vlog2.pop %v359
      %v361 = vmul.f32 %v360, 0.6931472
      %v362 = vmul.f32 -0.5, %v338
      %v363 = vadd.f32 %v362, 1.0
      %v364 = vmul.f32 %v363, %v338
      %v365 = vand.u32 2147483647, %v338
      %vm366 = vcmp.lt.f32.partialorder %v365, 0.0004427343
      %v367 = vsel %vm366, %v364, %v361
      %v368 = vadd.f32 %v340, 1.0
      %v369 = vlog2.pop %v368
      %v370 = vmul.f32 %v369, 0.6931472
      %v371 = vmul.f32 -0.5, %v340
      %v372 = vadd.f32 %v371, 1.0
      %v373 = vmul.f32 %v372, %v340
      %v374 = vand.u32 2147483647, %v340
      %vm375 = vcmp.lt.f32.partialorder %v374, 0.0004427343
      %v376 = vsel %vm375, %v373, %v370
      %v377 = vadd.f32 %v321, %v349
      %v378 = vadd.f32 %v322, %v358
      %v379 = vadd.f32 %v323, %v367
      %v380 = vadd.f32 %v324, %v376
      %v381 = vtanh.pop %v377
      %v382 = vtanh.pop %v378
      %v383 = vtanh.pop %v379
      %v384 = vtanh.pop %v380
      %v385 = vmul.f32 %v317, %v381
      %v386 = vmul.f32 %v318, %v382
      %v387 = vmul.f32 %v319, %v383
      %v388 = vmul.f32 %v320, %v384
      %vm389 = vcmask 31744
      %390 = vst.msk [vmem:[%s221] sm:$0xff] %vm389, %v385
      %391 = vst.msk [vmem:[%s221 + $0x8] sm:$0xff] %vm389, %v386
      %392 = vst.msk [vmem:[%s221 + $0x10] sm:$0xff] %vm389, %v387
      %393 = vst.msk [vmem:[%s221 + $0x18] sm:$0xff] %vm389, %v388
      %s394 = smul.u32 4, %s15
      %p395 = scmp.lt.s32.totalorder %s394, 7
      %s396 = scalar_select %p395, %s394, 7
      %s397 = smul.addr %s396, 8
      %s398 = scalar_lea.vmem %s4, %s397
      // Predicated region
      $region37: #{hourglassup_forward.42} parent=35 // pred_check
        %p399 = pneg %p127
      $region38: #{hourglassup_forward.42} parent=35 // pred_check_branch
        %401 = sbr.rel (%p399) target = $region40
      $region39: #{hourglassup_forward.42} parent=35 // pred_region
        %s402 = smul.u32 4, %s15
      $region40: #{hourglassup_forward.42} parent=35 // pred_fallthru
        _
    $region36: #{hourglassup_forward.42} parent=5 // pred_fallthru
      _
    %p403 = scmp.le.s32.totalorder 2, %s10
    // Predicated region
    $region41: #{hourglassup_forward.42} parent=5 // pred_check
      %p404 = pneg %p403
    $region42: #{hourglassup_forward.42} parent=5 // pred_check_branch
      %406 = sbr.rel (%p404) target = $region44
    $region43: #{hourglassup_forward.42} parent=5 // pred_region
      %s407 = ssub.s32 %s10, 2
      // Predicated region
      $region45: #{hourglassup_forward.42} parent=43 // pred_check
        %p408 = pneg %p133
      $region46: #{hourglassup_forward.42} parent=43 // pred_check_branch
        %410 = sbr.rel (%p408) target = $region48
      $region47: #{hourglassup_forward.42} parent=43 // pred_region
        %s411 = smul.u32 4, %s16
        %p412 = scmp.lt.s32.totalorder %s411, 7
        %s413 = scalar_select %p412, %s411, 7
        %s414 = smul.addr %s413, 8
        %s415 = scalar_lea.vmem %s4, %s414
      $region48: #{hourglassup_forward.42} parent=43 // pred_fallthru
        _
    $region44: #{hourglassup_forward.42} parent=5 // pred_fallthru
      _
  $region6: #{hourglassup_forward.42} parent=0 // loop_footer
    %s14 = sadd.s32 1, %s10
  $region7: #{hourglassup_forward.42} parent=0 // loop_footer_branch
    %9 = sbr.rel target = $region3
  $region8: #{hourglassup_forward.42} parent=0 // loop_exit
    _

</llo_original>
